<compile_context>
chip_gen: v7x
topology: tpu7x:2x2x1
jax: 0.10.0
libtpu: 0.0.40
codegen_flags: <defaults>
</compile_context>

<pallas_src>
import jax
import jax.numpy as jnp
from jax.experimental import pallas as pl
from jax.experimental.pallas import tpu as pltpu

# Problem sizes (small, consistent with the module: 3D feature maps)
N, C, D, H, W = 2, 4, 8, 16, 16
K = 7                     # kernel_size (must be 3 or 7)
P = 3 if K == 7 else 1    # padding
L = K * W                 # kw-expanded lane width (112)
DP = D + 2 * P            # zero-padded depth (14)


def spatial_attention_kernel(x_ref, w_ref, o_ref, hp_ref):
    # x_ref  : (C, D*H, W)     one batch element, rows ordered (d, h)
    # w_ref  : (2, K, K, L)    weights: w_ref[c, kd, kh, kw*W + i] == w[c, kd, kh, kw]
    # o_ref  : (D*H, W)        sigmoid(conv) output
    # hp_ref : (2, DP, H, L)   D-padded, kw-expanded avg/max slabs (VMEM)

    # ---- channel mean / max, streamed channel by channel ----
    x0 = x_ref[0]
    csum = x0
    cmax = x0
    for ci in range(1, C):
        xc = x_ref[ci]
        csum = csum + xc
        cmax = jnp.maximum(cmax, xc)
    avg = (csum * (1.0 / C)).reshape(D, H, W)
    mx = cmax.reshape(D, H, W)

    # ---- build the kw-expanded slab in registers; one full-width store per
    #      channel, plus zero fill of only the 2*P depth pad planes. ----
    def kw_expand(src):
        # src: (D, H, W) -> (D, H, K*W); group kw holds src shifted by (kw - P)
        # along W with zero fill at the edges.
        groups = []
        for kw in range(K):
            s = kw - P
            if s < 0:
                g = jnp.concatenate(
                    [jnp.zeros((D, H, -s), jnp.float32), src[:, :, :W + s]],
                    axis=-1)
            elif s > 0:
                g = jnp.concatenate(
                    [src[:, :, s:], jnp.zeros((D, H, s), jnp.float32)],
                    axis=-1)
            else:
                g = src
            groups.append(g)
        return jnp.concatenate(groups, axis=-1)

    zpad = jnp.zeros((P, H, L), jnp.float32)
    for ci, src in ((0, avg), (1, mx)):
        hp_ref[ci, 0:P] = zpad
        hp_ref[ci, P:P + D] = kw_expand(src)
        hp_ref[ci, P + D:DP] = zpad

    # ---- tap loop: kd via free major-dim slicing of the D-padded slab,
    #      kw folded into lanes, kh via a register-domain sublane shift.
    #      Accumulator stays in vregs. ----
    acc = jnp.zeros((D, H, L), jnp.float32)
    for kh in range(K):
        part = None
        for ci in range(2):
            for kd in range(K):
                w_row = w_ref[ci, kd, kh:kh + 1]          # (1, L) sublane splat
                term = hp_ref[ci, kd:kd + D] * w_row      # (D, H, L)
                part = term if part is None else part + term
        t = kh - P
        if t < 0:
            shifted = jnp.concatenate(
                [jnp.zeros((D, -t, L), jnp.float32), part[:, :H + t, :]], axis=1)
        elif t > 0:
            shifted = jnp.concatenate(
                [part[:, t:, :], jnp.zeros((D, t, L), jnp.float32)], axis=1)
        else:
            shifted = part
        acc = acc + shifted

    # ---- fold the K kw lane groups, apply sigmoid, store ----
    y = acc[:, :, 0:W]
    for kw in range(1, K):
        y = y + acc[:, :, kw * W:(kw + 1) * W]
    o_ref[...] = jax.nn.sigmoid(y.reshape(D * H, W))


def spatial_attention(x, weight):
    """x: (N, C, D, H, W) f32; weight: (1, 2, K, K, K) f32 -> (N, 1, D, H, W)."""
    n, c, d, h, w = x.shape
    assert (c, d, h, w) == (C, D, H, W)
    x_r = x.reshape(n, c, d * h, w).astype(jnp.float32)

    # Compact kw-expanded weights (43 KiB): wb[c, kd, kh, kw*W + i] = w[c, kd, kh, kw].
    # The broadcast over (D, H) happens inside the kernel as a sublane splat.
    w2 = weight.reshape(2, K, K, K).astype(jnp.float32)
    wb = jnp.repeat(w2, w, axis=-1)                                  # (2, K, K, K*W)

    out = pl.pallas_call(
        spatial_attention_kernel,
        out_shape=jax.ShapeDtypeStruct((n, d * h, w), jnp.float32),
        grid=(n,),
        in_specs=[
            pl.BlockSpec((None, c, d * h, w), lambda i: (i, 0, 0, 0)),
            pl.BlockSpec((2, K, K, K * w), lambda i: (0, 0, 0, 0)),
        ],
        out_specs=pl.BlockSpec((None, d * h, w), lambda i: (i, 0, 0)),
        scratch_shapes=[
            pltpu.VMEM((2, DP, H, L), jnp.float32),
        ],
        compiler_params=pltpu.CompilerParams(dimension_semantics=("parallel",)),
    )(x_r, wb)
    return out.reshape(n, 1, d, h, w)


def reference(x, weight):
    avg = jnp.mean(x, axis=1, keepdims=True)
    mx = jnp.max(x, axis=1, keepdims=True)
    x2 = jnp.concatenate([avg, mx], axis=1)
    y = jax.lax.conv_general_dilated(
        x2, weight, window_strides=(1, 1, 1),
        padding=[(P, P)] * 3,
        dimension_numbers=("NCDHW", "OIDHW", "NCDHW"),
        precision=jax.lax.Precision.HIGHEST,
    )
    return jax.nn.sigmoid(y)


if __name__ == "__main__":
    key = jax.random.PRNGKey(0)
    k1, k2 = jax.random.split(key)
    x = jax.random.normal(k1, (N, C, D, H, W), dtype=jnp.float32)
    # Deterministic synthetic Conv3d(2, 1, 7, padding=3, bias=False) weights.
    weight = 0.05 * jax.random.normal(k2, (1, 2, K, K, K), dtype=jnp.float32)

    out = jax.block_until_ready(spatial_attention(x, weight))
    ref = jax.block_until_ready(reference(x, weight))

    assert out.shape == (N, 1, D, H, W), out.shape
    max_err = float(jnp.max(jnp.abs(out - ref)))
    assert jnp.allclose(out, ref, rtol=1e-3, atol=1e-3), max_err

    print("KERNEL_OK")
</pallas_src>

<mosaic_0001>
module attributes {stable_mosaic.version = 11 : i64} {
  func.func @spatial_attention_kernel(%arg0: i32, %arg1: memref<1x4x128x16xf32, #tpu.memory_space<vmem>>, %arg2: memref<2x7x7x112xf32, #tpu.memory_space<vmem>>, %arg3: memref<1x128x16xf32, #tpu.memory_space<vmem>>, %arg4: memref<2x14x16x112xf32, #tpu.memory_space<vmem>>) attributes {dimension_semantics = [#tpu.dimension_semantics<parallel>], iteration_bounds = array<i64: 2>, scalar_prefetch = 0 : i64, scratch_operands = 1 : i64, tpu.core_type = #tpu.core_type<tc>, window_params = [{transform_indices = @transform_0, window_bounds = array<i64: 1, 4, 128, 16>}, {pipeline_mode = #tpu.pipeline_mode<synchronous>, transform_indices = @transform_1, window_bounds = array<i64: 2, 7, 7, 112>}, {transform_indices = @transform_2, window_bounds = array<i64: 1, 128, 16>}]} {
    %c0 = arith.constant 0 : index
    %c0_0 = arith.constant 0 : index
    %c0_1 = arith.constant 0 : index
    %c0_2 = arith.constant 0 : index
    %0 = vector.load %arg1[%c0, %c0_0, %c0_1, %c0_2] : memref<1x4x128x16xf32, #tpu.memory_space<vmem>>, vector<1x1x128x16xf32>
    %1 = vector.shape_cast %0 : vector<1x1x128x16xf32> to vector<128x16xf32>
    %c0_3 = arith.constant 0 : index
    %c1 = arith.constant 1 : index
    %c0_4 = arith.constant 0 : index
    %c0_5 = arith.constant 0 : index
    %2 = vector.load %arg1[%c0_3, %c1, %c0_4, %c0_5] : memref<1x4x128x16xf32, #tpu.memory_space<vmem>>, vector<1x1x128x16xf32>
    %3 = vector.shape_cast %2 : vector<1x1x128x16xf32> to vector<128x16xf32>
    %4 = arith.addf %1, %3 : vector<128x16xf32>
    %5 = arith.maximumf %1, %3 : vector<128x16xf32>
    %c0_6 = arith.constant 0 : index
    %c2 = arith.constant 2 : index
    %c0_7 = arith.constant 0 : index
    %c0_8 = arith.constant 0 : index
    %6 = vector.load %arg1[%c0_6, %c2, %c0_7, %c0_8] : memref<1x4x128x16xf32, #tpu.memory_space<vmem>>, vector<1x1x128x16xf32>
    %7 = vector.shape_cast %6 : vector<1x1x128x16xf32> to vector<128x16xf32>
    %8 = arith.addf %4, %7 : vector<128x16xf32>
    %9 = arith.maximumf %5, %7 : vector<128x16xf32>
    %c0_9 = arith.constant 0 : index
    %c3 = arith.constant 3 : index
    %c0_10 = arith.constant 0 : index
    %c0_11 = arith.constant 0 : index
    %10 = vector.load %arg1[%c0_9, %c3, %c0_10, %c0_11] : memref<1x4x128x16xf32, #tpu.memory_space<vmem>>, vector<1x1x128x16xf32>
    %11 = vector.shape_cast %10 : vector<1x1x128x16xf32> to vector<128x16xf32>
    %12 = arith.addf %8, %11 : vector<128x16xf32>
    %13 = arith.maximumf %9, %11 : vector<128x16xf32>
    %cst = arith.constant 2.500000e-01 : f32
    %14 = vector.broadcast %cst : f32 to vector<128x16xf32>
    %15 = arith.mulf %12, %14 : vector<128x16xf32>
    %16 = vector.shape_cast %15 : vector<128x16xf32> to vector<8x16x16xf32>
    %17 = vector.shape_cast %13 : vector<128x16xf32> to vector<8x16x16xf32>
    %cst_12 = arith.constant 0.000000e+00 : f32
    %18 = vector.broadcast %cst_12 : f32 to vector<3x16x112xf32>
    %c0_13 = arith.constant 0 : index
    %c0_14 = arith.constant 0 : index
    %c0_15 = arith.constant 0 : index
    %c0_16 = arith.constant 0 : index
    %19 = vector.load %arg4[%c0_13, %c0_14, %c0_15, %c0_16] : memref<2x14x16x112xf32, #tpu.memory_space<vmem>>, vector<1x3x16x112xf32>
    %20 = vector.shape_cast %19 : vector<1x3x16x112xf32> to vector<3x16x112xf32>
    %21 = vector.shape_cast %18 : vector<3x16x112xf32> to vector<1x3x16x112xf32>
    tpu.vector_store %arg4[%c0_13, %c0_14, %c0_15, %c0_16], %21 {strides = array<i32>} : memref<2x14x16x112xf32, #tpu.memory_space<vmem>>, vector<1x3x16x112xf32>,
    %cst_17 = arith.constant 0.000000e+00 : f32
    %22 = vector.broadcast %cst_17 : f32 to vector<8x16x3xf32>
    %23 = vector.extract_strided_slice %16 {offsets = [0, 0, 0], sizes = [8, 16, 13], strides = [1, 1, 1]} : vector<8x16x16xf32> to vector<8x16x13xf32>
    %24 = tpu.concatenate %22, %23 in 2 : vector<8x16x3xf32>, vector<8x16x13xf32> -> vector<8x16x16xf32>
    %cst_18 = arith.constant 0.000000e+00 : f32
    %25 = vector.broadcast %cst_18 : f32 to vector<8x16x2xf32>
    %26 = vector.extract_strided_slice %16 {offsets = [0, 0, 0], sizes = [8, 16, 14], strides = [1, 1, 1]} : vector<8x16x16xf32> to vector<8x16x14xf32>
    %27 = tpu.concatenate %25, %26 in 2 : vector<8x16x2xf32>, vector<8x16x14xf32> -> vector<8x16x16xf32>
    %cst_19 = arith.constant 0.000000e+00 : f32
    %28 = vector.broadcast %cst_19 : f32 to vector<8x16x1xf32>
    %29 = vector.extract_strided_slice %16 {offsets = [0, 0, 0], sizes = [8, 16, 15], strides = [1, 1, 1]} : vector<8x16x16xf32> to vector<8x16x15xf32>
    %30 = tpu.concatenate %28, %29 in 2 : vector<8x16x1xf32>, vector<8x16x15xf32> -> vector<8x16x16xf32>
    %31 = vector.extract_strided_slice %16 {offsets = [0, 0, 1], sizes = [8, 16, 15], strides = [1, 1, 1]} : vector<8x16x16xf32> to vector<8x16x15xf32>
    %cst_20 = arith.constant 0.000000e+00 : f32
    %32 = vector.broadcast %cst_20 : f32 to vector<8x16x1xf32>
    %33 = tpu.concatenate %31, %32 in 2 : vector<8x16x15xf32>, vector<8x16x1xf32> -> vector<8x16x16xf32>
    %34 = vector.extract_strided_slice %16 {offsets = [0, 0, 2], sizes = [8, 16, 14], strides = [1, 1, 1]} : vector<8x16x16xf32> to vector<8x16x14xf32>
    %cst_21 = arith.constant 0.000000e+00 : f32
    %35 = vector.broadcast %cst_21 : f32 to vector<8x16x2xf32>
    %36 = tpu.concatenate %34, %35 in 2 : vector<8x16x14xf32>, vector<8x16x2xf32> -> vector<8x16x16xf32>
    %37 = vector.extract_strided_slice %16 {offsets = [0, 0, 3], sizes = [8, 16, 13], strides = [1, 1, 1]} : vector<8x16x16xf32> to vector<8x16x13xf32>
    %cst_22 = arith.constant 0.000000e+00 : f32
    %38 = vector.broadcast %cst_22 : f32 to vector<8x16x3xf32>
    %39 = tpu.concatenate %37, %38 in 2 : vector<8x16x13xf32>, vector<8x16x3xf32> -> vector<8x16x16xf32>
    %40 = tpu.concatenate %24, %27, %30, %16, %33, %36, %39 in 2 : vector<8x16x16xf32>, vector<8x16x16xf32>, vector<8x16x16xf32>, vector<8x16x16xf32>, vector<8x16x16xf32>, vector<8x16x16xf32>, vector<8x16x16xf32> -> vector<8x16x112xf32>
    %c0_23 = arith.constant 0 : index
    %c3_24 = arith.constant 3 : index
    %c0_25 = arith.constant 0 : index
    %c0_26 = arith.constant 0 : index
    %41 = vector.load %arg4[%c0_23, %c3_24, %c0_25, %c0_26] : memref<2x14x16x112xf32, #tpu.memory_space<vmem>>, vector<1x8x16x112xf32>
    %42 = vector.shape_cast %41 : vector<1x8x16x112xf32> to vector<8x16x112xf32>
    %43 = vector.shape_cast %40 : vector<8x16x112xf32> to vector<1x8x16x112xf32>
    tpu.vector_store %arg4[%c0_23, %c3_24, %c0_25, %c0_26], %43 {strides = array<i32>} : memref<2x14x16x112xf32, #tpu.memory_space<vmem>>, vector<1x8x16x112xf32>,
    %c0_27 = arith.constant 0 : index
    %c11 = arith.constant 11 : index
    %c0_28 = arith.constant 0 : index
    %c0_29 = arith.constant 0 : index
    %44 = vector.load %arg4[%c0_27, %c11, %c0_28, %c0_29] : memref<2x14x16x112xf32, #tpu.memory_space<vmem>>, vector<1x3x16x112xf32>
    %45 = vector.shape_cast %44 : vector<1x3x16x112xf32> to vector<3x16x112xf32>
    %46 = vector.shape_cast %18 : vector<3x16x112xf32> to vector<1x3x16x112xf32>
    tpu.vector_store %arg4[%c0_27, %c11, %c0_28, %c0_29], %46 {strides = array<i32>} : memref<2x14x16x112xf32, #tpu.memory_space<vmem>>, vector<1x3x16x112xf32>,
    %c1_30 = arith.constant 1 : index
    %c0_31 = arith.constant 0 : index
    %c0_32 = arith.constant 0 : index
    %c0_33 = arith.constant 0 : index
    %47 = vector.load %arg4[%c1_30, %c0_31, %c0_32, %c0_33] : memref<2x14x16x112xf32, #tpu.memory_space<vmem>>, vector<1x3x16x112xf32>
    %48 = vector.shape_cast %47 : vector<1x3x16x112xf32> to vector<3x16x112xf32>
    %49 = vector.shape_cast %18 : vector<3x16x112xf32> to vector<1x3x16x112xf32>
    tpu.vector_store %arg4[%c1_30, %c0_31, %c0_32, %c0_33], %49 {strides = array<i32>} : memref<2x14x16x112xf32, #tpu.memory_space<vmem>>, vector<1x3x16x112xf32>,
    %cst_34 = arith.constant 0.000000e+00 : f32
    %50 = vector.broadcast %cst_34 : f32 to vector<8x16x3xf32>
    %51 = vector.extract_strided_slice %17 {offsets = [0, 0, 0], sizes = [8, 16, 13], strides = [1, 1, 1]} : vector<8x16x16xf32> to vector<8x16x13xf32>
    %52 = tpu.concatenate %50, %51 in 2 : vector<8x16x3xf32>, vector<8x16x13xf32> -> vector<8x16x16xf32>
    %cst_35 = arith.constant 0.000000e+00 : f32
    %53 = vector.broadcast %cst_35 : f32 to vector<8x16x2xf32>
    %54 = vector.extract_strided_slice %17 {offsets = [0, 0, 0], sizes = [8, 16, 14], strides = [1, 1, 1]} : vector<8x16x16xf32> to vector<8x16x14xf32>
    %55 = tpu.concatenate %53, %54 in 2 : vector<8x16x2xf32>, vector<8x16x14xf32> -> vector<8x16x16xf32>
    %cst_36 = arith.constant 0.000000e+00 : f32
    %56 = vector.broadcast %cst_36 : f32 to vector<8x16x1xf32>
    %57 = vector.extract_strided_slice %17 {offsets = [0, 0, 0], sizes = [8, 16, 15], strides = [1, 1, 1]} : vector<8x16x16xf32> to vector<8x16x15xf32>
    %58 = tpu.concatenate %56, %57 in 2 : vector<8x16x1xf32>, vector<8x16x15xf32> -> vector<8x16x16xf32>
    %59 = vector.extract_strided_slice %17 {offsets = [0, 0, 1], sizes = [8, 16, 15], strides = [1, 1, 1]} : vector<8x16x16xf32> to vector<8x16x15xf32>
    %cst_37 = arith.constant 0.000000e+00 : f32
    %60 = vector.broadcast %cst_37 : f32 to vector<8x16x1xf32>
    %61 = tpu.concatenate %59, %60 in 2 : vector<8x16x15xf32>, vector<8x16x1xf32> -> vector<8x16x16xf32>
    %62 = vector.extract_strided_slice %17 {offsets = [0, 0, 2], sizes = [8, 16, 14], strides = [1, 1, 1]} : vector<8x16x16xf32> to vector<8x16x14xf32>
    %cst_38 = arith.constant 0.000000e+00 : f32
    %63 = vector.broadcast %cst_38 : f32 to vector<8x16x2xf32>
    %64 = tpu.concatenate %62, %63 in 2 : vector<8x16x14xf32>, vector<8x16x2xf32> -> vector<8x16x16xf32>
    %65 = vector.extract_strided_slice %17 {offsets = [0, 0, 3], sizes = [8, 16, 13], strides = [1, 1, 1]} : vector<8x16x16xf32> to vector<8x16x13xf32>
    %cst_39 = arith.constant 0.000000e+00 : f32
    %66 = vector.broadcast %cst_39 : f32 to vector<8x16x3xf32>
    %67 = tpu.concatenate %65, %66 in 2 : vector<8x16x13xf32>, vector<8x16x3xf32> -> vector<8x16x16xf32>
    %68 = tpu.concatenate %52, %55, %58, %17, %61, %64, %67 in 2 : vector<8x16x16xf32>, vector<8x16x16xf32>, vector<8x16x16xf32>, vector<8x16x16xf32>, vector<8x16x16xf32>, vector<8x16x16xf32>, vector<8x16x16xf32> -> vector<8x16x112xf32>
    %c1_40 = arith.constant 1 : index
    %c3_41 = arith.constant 3 : index
    %c0_42 = arith.constant 0 : index
    %c0_43 = arith.constant 0 : index
    %69 = vector.load %arg4[%c1_40, %c3_41, %c0_42, %c0_43] : memref<2x14x16x112xf32, #tpu.memory_space<vmem>>, vector<1x8x16x112xf32>
    %70 = vector.shape_cast %69 : vector<1x8x16x112xf32> to vector<8x16x112xf32>
    %71 = vector.shape_cast %68 : vector<8x16x112xf32> to vector<1x8x16x112xf32>
    tpu.vector_store %arg4[%c1_40, %c3_41, %c0_42, %c0_43], %71 {strides = array<i32>} : memref<2x14x16x112xf32, #tpu.memory_space<vmem>>, vector<1x8x16x112xf32>,
    %c1_44 = arith.constant 1 : index
    %c11_45 = arith.constant 11 : index
    %c0_46 = arith.constant 0 : index
    %c0_47 = arith.constant 0 : index
    %72 = vector.load %arg4[%c1_44, %c11_45, %c0_46, %c0_47] : memref<2x14x16x112xf32, #tpu.memory_space<vmem>>, vector<1x3x16x112xf32>
    %73 = vector.shape_cast %72 : vector<1x3x16x112xf32> to vector<3x16x112xf32>
    %74 = vector.shape_cast %18 : vector<3x16x112xf32> to vector<1x3x16x112xf32>
    tpu.vector_store %arg4[%c1_44, %c11_45, %c0_46, %c0_47], %74 {strides = array<i32>} : memref<2x14x16x112xf32, #tpu.memory_space<vmem>>, vector<1x3x16x112xf32>,
    %cst_48 = arith.constant 0.000000e+00 : f32
    %75 = vector.broadcast %cst_48 : f32 to vector<8x16x112xf32>
    %c0_49 = arith.constant 0 : index
    %c0_50 = arith.constant 0 : index
    %c0_51 = arith.constant 0 : index
    %c0_52 = arith.constant 0 : index
    %76 = vector.load %arg2[%c0_49, %c0_50, %c0_51, %c0_52] : memref<2x7x7x112xf32, #tpu.memory_space<vmem>>, vector<1x1x1x112xf32>
    %77 = vector.shape_cast %76 : vector<1x1x1x112xf32> to vector<1x112xf32>
    %c0_53 = arith.constant 0 : index
    %c0_54 = arith.constant 0 : index
    %c0_55 = arith.constant 0 : index
    %c0_56 = arith.constant 0 : index
    %78 = vector.load %arg4[%c0_53, %c0_54, %c0_55, %c0_56] : memref<2x14x16x112xf32, #tpu.memory_space<vmem>>, vector<1x8x16x112xf32>
    %79 = vector.shape_cast %78 : vector<1x8x16x112xf32> to vector<8x16x112xf32>
    %80 = vector.shape_cast %77 : vector<1x112xf32> to vector<1x1x112xf32>
    %81 = vector.broadcast %80 : vector<1x1x112xf32> to vector<8x16x112xf32>
    %82 = arith.mulf %79, %81 : vector<8x16x112xf32>
    %c0_57 = arith.constant 0 : index
    %c1_58 = arith.constant 1 : index
    %c0_59 = arith.constant 0 : index
    %c0_60 = arith.constant 0 : index
    %83 = vector.load %arg2[%c0_57, %c1_58, %c0_59, %c0_60] : memref<2x7x7x112xf32, #tpu.memory_space<vmem>>, vector<1x1x1x112xf32>
    %84 = vector.shape_cast %83 : vector<1x1x1x112xf32> to vector<1x112xf32>
    %c0_61 = arith.constant 0 : index
    %c1_62 = arith.constant 1 : index
    %c0_63 = arith.constant 0 : index
    %c0_64 = arith.constant 0 : index
    %85 = vector.load %arg4[%c0_61, %c1_62, %c0_63, %c0_64] : memref<2x14x16x112xf32, #tpu.memory_space<vmem>>, vector<1x8x16x112xf32>
    %86 = vector.shape_cast %85 : vector<1x8x16x112xf32> to vector<8x16x112xf32>
    %87 = vector.shape_cast %84 : vector<1x112xf32> to vector<1x1x112xf32>
    %88 = vector.broadcast %87 : vector<1x1x112xf32> to vector<8x16x112xf32>
    %89 = arith.mulf %86, %88 : vector<8x16x112xf32>
    %90 = arith.addf %82, %89 : vector<8x16x112xf32>
    %c0_65 = arith.constant 0 : index
    %c2_66 = arith.constant 2 : index
    %c0_67 = arith.constant 0 : index
    %c0_68 = arith.constant 0 : index
    %91 = vector.load %arg2[%c0_65, %c2_66, %c0_67, %c0_68] : memref<2x7x7x112xf32, #tpu.memory_space<vmem>>, vector<1x1x1x112xf32>
    %92 = vector.shape_cast %91 : vector<1x1x1x112xf32> to vector<1x112xf32>
    %c0_69 = arith.constant 0 : index
    %c2_70 = arith.constant 2 : index
    %c0_71 = arith.constant 0 : index
    %c0_72 = arith.constant 0 : index
    %93 = vector.load %arg4[%c0_69, %c2_70, %c0_71, %c0_72] : memref<2x14x16x112xf32, #tpu.memory_space<vmem>>, vector<1x8x16x112xf32>
    %94 = vector.shape_cast %93 : vector<1x8x16x112xf32> to vector<8x16x112xf32>
    %95 = vector.shape_cast %92 : vector<1x112xf32> to vector<1x1x112xf32>
    %96 = vector.broadcast %95 : vector<1x1x112xf32> to vector<8x16x112xf32>
    %97 = arith.mulf %94, %96 : vector<8x16x112xf32>
    %98 = arith.addf %90, %97 : vector<8x16x112xf32>
    %c0_73 = arith.constant 0 : index
    %c3_74 = arith.constant 3 : index
    %c0_75 = arith.constant 0 : index
    %c0_76 = arith.constant 0 : index
    %99 = vector.load %arg2[%c0_73, %c3_74, %c0_75, %c0_76] : memref<2x7x7x112xf32, #tpu.memory_space<vmem>>, vector<1x1x1x112xf32>
    %100 = vector.shape_cast %99 : vector<1x1x1x112xf32> to vector<1x112xf32>
    %c0_77 = arith.constant 0 : index
    %c3_78 = arith.constant 3 : index
    %c0_79 = arith.constant 0 : index
    %c0_80 = arith.constant 0 : index
    %101 = vector.load %arg4[%c0_77, %c3_78, %c0_79, %c0_80] : memref<2x14x16x112xf32, #tpu.memory_space<vmem>>, vector<1x8x16x112xf32>
    %102 = vector.shape_cast %101 : vector<1x8x16x112xf32> to vector<8x16x112xf32>
    %103 = vector.shape_cast %100 : vector<1x112xf32> to vector<1x1x112xf32>
    %104 = vector.broadcast %103 : vector<1x1x112xf32> to vector<8x16x112xf32>
    %105 = arith.mulf %102, %104 : vector<8x16x112xf32>
    %106 = arith.addf %98, %105 : vector<8x16x112xf32>
    %c0_81 = arith.constant 0 : index
    %c4 = arith.constant 4 : index
    %c0_82 = arith.constant 0 : index
    %c0_83 = arith.constant 0 : index
    %107 = vector.load %arg2[%c0_81, %c4, %c0_82, %c0_83] : memref<2x7x7x112xf32, #tpu.memory_space<vmem>>, vector<1x1x1x112xf32>
    %108 = vector.shape_cast %107 : vector<1x1x1x112xf32> to vector<1x112xf32>
    %c0_84 = arith.constant 0 : index
    %c4_85 = arith.constant 4 : index
    %c0_86 = arith.constant 0 : index
    %c0_87 = arith.constant 0 : index
    %109 = vector.load %arg4[%c0_84, %c4_85, %c0_86, %c0_87] : memref<2x14x16x112xf32, #tpu.memory_space<vmem>>, vector<1x8x16x112xf32>
    %110 = vector.shape_cast %109 : vector<1x8x16x112xf32> to vector<8x16x112xf32>
    %111 = vector.shape_cast %108 : vector<1x112xf32> to vector<1x1x112xf32>
    %112 = vector.broadcast %111 : vector<1x1x112xf32> to vector<8x16x112xf32>
    %113 = arith.mulf %110, %112 : vector<8x16x112xf32>
    %114 = arith.addf %106, %113 : vector<8x16x112xf32>
    %c0_88 = arith.constant 0 : index
    %c5 = arith.constant 5 : index
    %c0_89 = arith.constant 0 : index
    %c0_90 = arith.constant 0 : index
    %115 = vector.load %arg2[%c0_88, %c5, %c0_89, %c0_90] : memref<2x7x7x112xf32, #tpu.memory_space<vmem>>, vector<1x1x1x112xf32>
    %116 = vector.shape_cast %115 : vector<1x1x1x112xf32> to vector<1x112xf32>
    %c0_91 = arith.constant 0 : index
    %c5_92 = arith.constant 5 : index
    %c0_93 = arith.constant 0 : index
    %c0_94 = arith.constant 0 : index
    %117 = vector.load %arg4[%c0_91, %c5_92, %c0_93, %c0_94] : memref<2x14x16x112xf32, #tpu.memory_space<vmem>>, vector<1x8x16x112xf32>
    %118 = vector.shape_cast %117 : vector<1x8x16x112xf32> to vector<8x16x112xf32>
    %119 = vector.shape_cast %116 : vector<1x112xf32> to vector<1x1x112xf32>
    %120 = vector.broadcast %119 : vector<1x1x112xf32> to vector<8x16x112xf32>
    %121 = arith.mulf %118, %120 : vector<8x16x112xf32>
    %122 = arith.addf %114, %121 : vector<8x16x112xf32>
    %c0_95 = arith.constant 0 : index
    %c6 = arith.constant 6 : index
    %c0_96 = arith.constant 0 : index
    %c0_97 = arith.constant 0 : index
    %123 = vector.load %arg2[%c0_95, %c6, %c0_96, %c0_97] : memref<2x7x7x112xf32, #tpu.memory_space<vmem>>, vector<1x1x1x112xf32>
    %124 = vector.shape_cast %123 : vector<1x1x1x112xf32> to vector<1x112xf32>
    %c0_98 = arith.constant 0 : index
    %c6_99 = arith.constant 6 : index
    %c0_100 = arith.constant 0 : index
    %c0_101 = arith.constant 0 : index
    %125 = vector.load %arg4[%c0_98, %c6_99, %c0_100, %c0_101] : memref<2x14x16x112xf32, #tpu.memory_space<vmem>>, vector<1x8x16x112xf32>
    %126 = vector.shape_cast %125 : vector<1x8x16x112xf32> to vector<8x16x112xf32>
    %127 = vector.shape_cast %124 : vector<1x112xf32> to vector<1x1x112xf32>
    %128 = vector.broadcast %127 : vector<1x1x112xf32> to vector<8x16x112xf32>
    %129 = arith.mulf %126, %128 : vector<8x16x112xf32>
    %130 = arith.addf %122, %129 : vector<8x16x112xf32>
    %c1_102 = arith.constant 1 : index
    %c0_103 = arith.constant 0 : index
    %c0_104 = arith.constant 0 : index
    %c0_105 = arith.constant 0 : index
    %131 = vector.load %arg2[%c1_102, %c0_103, %c0_104, %c0_105] : memref<2x7x7x112xf32, #tpu.memory_space<vmem>>, vector<1x1x1x112xf32>
    %132 = vector.shape_cast %131 : vector<1x1x1x112xf32> to vector<1x112xf32>
    %c1_106 = arith.constant 1 : index
    %c0_107 = arith.constant 0 : index
    %c0_108 = arith.constant 0 : index
    %c0_109 = arith.constant 0 : index
    %133 = vector.load %arg4[%c1_106, %c0_107, %c0_108, %c0_109] : memref<2x14x16x112xf32, #tpu.memory_space<vmem>>, vector<1x8x16x112xf32>
    %134 = vector.shape_cast %133 : vector<1x8x16x112xf32> to vector<8x16x112xf32>
    %135 = vector.shape_cast %132 : vector<1x112xf32> to vector<1x1x112xf32>
    %136 = vector.broadcast %135 : vector<1x1x112xf32> to vector<8x16x112xf32>
    %137 = arith.mulf %134, %136 : vector<8x16x112xf32>
    %138 = arith.addf %130, %137 : vector<8x16x112xf32>
    %c1_110 = arith.constant 1 : index
    %c1_111 = arith.constant 1 : index
    %c0_112 = arith.constant 0 : index
    %c0_113 = arith.constant 0 : index
    %139 = vector.load %arg2[%c1_110, %c1_111, %c0_112, %c0_113] : memref<2x7x7x112xf32, #tpu.memory_space<vmem>>, vector<1x1x1x112xf32>
    %140 = vector.shape_cast %139 : vector<1x1x1x112xf32> to vector<1x112xf32>
    %c1_114 = arith.constant 1 : index
    %c1_115 = arith.constant 1 : index
    %c0_116 = arith.constant 0 : index
    %c0_117 = arith.constant 0 : index
    %141 = vector.load %arg4[%c1_114, %c1_115, %c0_116, %c0_117] : memref<2x14x16x112xf32, #tpu.memory_space<vmem>>, vector<1x8x16x112xf32>
    %142 = vector.shape_cast %141 : vector<1x8x16x112xf32> to vector<8x16x112xf32>
    %143 = vector.shape_cast %140 : vector<1x112xf32> to vector<1x1x112xf32>
    %144 = vector.broadcast %143 : vector<1x1x112xf32> to vector<8x16x112xf32>
    %145 = arith.mulf %142, %144 : vector<8x16x112xf32>
    %146 = arith.addf %138, %145 : vector<8x16x112xf32>
    %c1_118 = arith.constant 1 : index
    %c2_119 = arith.constant 2 : index
    %c0_120 = arith.constant 0 : index
    %c0_121 = arith.constant 0 : index
    %147 = vector.load %arg2[%c1_118, %c2_119, %c0_120, %c0_121] : memref<2x7x7x112xf32, #tpu.memory_space<vmem>>, vector<1x1x1x112xf32>
    %148 = vector.shape_cast %147 : vector<1x1x1x112xf32> to vector<1x112xf32>
    %c1_122 = arith.constant 1 : index
    %c2_123 = arith.constant 2 : index
    %c0_124 = arith.constant 0 : index
    %c0_125 = arith.constant 0 : index
    %149 = vector.load %arg4[%c1_122, %c2_123, %c0_124, %c0_125] : memref<2x14x16x112xf32, #tpu.memory_space<vmem>>, vector<1x8x16x112xf32>
    %150 = vector.shape_cast %149 : vector<1x8x16x112xf32> to vector<8x16x112xf32>
    %151 = vector.shape_cast %148 : vector<1x112xf32> to vector<1x1x112xf32>
    %152 = vector.broadcast %151 : vector<1x1x112xf32> to vector<8x16x112xf32>
    %153 = arith.mulf %150, %152 : vector<8x16x112xf32>
    %154 = arith.addf %146, %153 : vector<8x16x112xf32>
    %c1_126 = arith.constant 1 : index
    %c3_127 = arith.constant 3 : index
    %c0_128 = arith.constant 0 : index
    %c0_129 = arith.constant 0 : index
    %155 = vector.load %arg2[%c1_126, %c3_127, %c0_128, %c0_129] : memref<2x7x7x112xf32, #tpu.memory_space<vmem>>, vector<1x1x1x112xf32>
    %156 = vector.shape_cast %155 : vector<1x1x1x112xf32> to vector<1x112xf32>
    %c1_130 = arith.constant 1 : index
    %c3_131 = arith.constant 3 : index
    %c0_132 = arith.constant 0 : index
    %c0_133 = arith.constant 0 : index
    %157 = vector.load %arg4[%c1_130, %c3_131, %c0_132, %c0_133] : memref<2x14x16x112xf32, #tpu.memory_space<vmem>>, vector<1x8x16x112xf32>
    %158 = vector.shape_cast %157 : vector<1x8x16x112xf32> to vector<8x16x112xf32>
    %159 = vector.shape_cast %156 : vector<1x112xf32> to vector<1x1x112xf32>
    %160 = vector.broadcast %159 : vector<1x1x112xf32> to vector<8x16x112xf32>
    %161 = arith.mulf %158, %160 : vector<8x16x112xf32>
    %162 = arith.addf %154, %161 : vector<8x16x112xf32>
    %c1_134 = arith.constant 1 : index
    %c4_135 = arith.constant 4 : index
    %c0_136 = arith.constant 0 : index
    %c0_137 = arith.constant 0 : index
    %163 = vector.load %arg2[%c1_134, %c4_135, %c0_136, %c0_137] : memref<2x7x7x112xf32, #tpu.memory_space<vmem>>, vector<1x1x1x112xf32>
    %164 = vector.shape_cast %163 : vector<1x1x1x112xf32> to vector<1x112xf32>
    %c1_138 = arith.constant 1 : index
    %c4_139 = arith.constant 4 : index
    %c0_140 = arith.constant 0 : index
    %c0_141 = arith.constant 0 : index
    %165 = vector.load %arg4[%c1_138, %c4_139, %c0_140, %c0_141] : memref<2x14x16x112xf32, #tpu.memory_space<vmem>>, vector<1x8x16x112xf32>
    %166 = vector.shape_cast %165 : vector<1x8x16x112xf32> to vector<8x16x112xf32>
    %167 = vector.shape_cast %164 : vector<1x112xf32> to vector<1x1x112xf32>
    %168 = vector.broadcast %167 : vector<1x1x112xf32> to vector<8x16x112xf32>
    %169 = arith.mulf %166, %168 : vector<8x16x112xf32>
    %170 = arith.addf %162, %169 : vector<8x16x112xf32>
    %c1_142 = arith.constant 1 : index
    %c5_143 = arith.constant 5 : index
    %c0_144 = arith.constant 0 : index
    %c0_145 = arith.constant 0 : index
    %171 = vector.load %arg2[%c1_142, %c5_143, %c0_144, %c0_145] : memref<2x7x7x112xf32, #tpu.memory_space<vmem>>, vector<1x1x1x112xf32>
    %172 = vector.shape_cast %171 : vector<1x1x1x112xf32> to vector<1x112xf32>
    %c1_146 = arith.constant 1 : index
    %c5_147 = arith.constant 5 : index
    %c0_148 = arith.constant 0 : index
    %c0_149 = arith.constant 0 : index
    %173 = vector.load %arg4[%c1_146, %c5_147, %c0_148, %c0_149] : memref<2x14x16x112xf32, #tpu.memory_space<vmem>>, vector<1x8x16x112xf32>
    %174 = vector.shape_cast %173 : vector<1x8x16x112xf32> to vector<8x16x112xf32>
    %175 = vector.shape_cast %172 : vector<1x112xf32> to vector<1x1x112xf32>
    %176 = vector.broadcast %175 : vector<1x1x112xf32> to vector<8x16x112xf32>
    %177 = arith.mulf %174, %176 : vector<8x16x112xf32>
    %178 = arith.addf %170, %177 : vector<8x16x112xf32>
    %c1_150 = arith.constant 1 : index
    %c6_151 = arith.constant 6 : index
    %c0_152 = arith.constant 0 : index
    %c0_153 = arith.constant 0 : index
    %179 = vector.load %arg2[%c1_150, %c6_151, %c0_152, %c0_153] : memref<2x7x7x112xf32, #tpu.memory_space<vmem>>, vector<1x1x1x112xf32>
    %180 = vector.shape_cast %179 : vector<1x1x1x112xf32> to vector<1x112xf32>
    %c1_154 = arith.constant 1 : index
    %c6_155 = arith.constant 6 : index
    %c0_156 = arith.constant 0 : index
    %c0_157 = arith.constant 0 : index
    %181 = vector.load %arg4[%c1_154, %c6_155, %c0_156, %c0_157] : memref<2x14x16x112xf32, #tpu.memory_space<vmem>>, vector<1x8x16x112xf32>
    %182 = vector.shape_cast %181 : vector<1x8x16x112xf32> to vector<8x16x112xf32>
    %183 = vector.shape_cast %180 : vector<1x112xf32> to vector<1x1x112xf32>
    %184 = vector.broadcast %183 : vector<1x1x112xf32> to vector<8x16x112xf32>
    %185 = arith.mulf %182, %184 : vector<8x16x112xf32>
    %186 = arith.addf %178, %185 : vector<8x16x112xf32>
    %cst_158 = arith.constant 0.000000e+00 : f32
    %187 = vector.broadcast %cst_158 : f32 to vector<8x3x112xf32>
    %188 = vector.extract_strided_slice %186 {offsets = [0, 0, 0], sizes = [8, 13, 112], strides = [1, 1, 1]} : vector<8x16x112xf32> to vector<8x13x112xf32>
    %189 = tpu.concatenate %187, %188 in 1 : vector<8x3x112xf32>, vector<8x13x112xf32> -> vector<8x16x112xf32>
    %190 = arith.addf %75, %189 : vector<8x16x112xf32>
    %c0_159 = arith.constant 0 : index
    %c0_160 = arith.constant 0 : index
    %c1_161 = arith.constant 1 : index
    %c0_162 = arith.constant 0 : index
    %191 = vector.load %arg2[%c0_159, %c0_160, %c1_161, %c0_162] : memref<2x7x7x112xf32, #tpu.memory_space<vmem>>, vector<1x1x1x112xf32>
    %192 = vector.shape_cast %191 : vector<1x1x1x112xf32> to vector<1x112xf32>
    %c0_163 = arith.constant 0 : index
    %c0_164 = arith.constant 0 : index
    %c0_165 = arith.constant 0 : index
    %c0_166 = arith.constant 0 : index
    %193 = vector.load %arg4[%c0_163, %c0_164, %c0_165, %c0_166] : memref<2x14x16x112xf32, #tpu.memory_space<vmem>>, vector<1x8x16x112xf32>
    %194 = vector.shape_cast %193 : vector<1x8x16x112xf32> to vector<8x16x112xf32>
    %195 = vector.shape_cast %192 : vector<1x112xf32> to vector<1x1x112xf32>
    %196 = vector.broadcast %195 : vector<1x1x112xf32> to vector<8x16x112xf32>
    %197 = arith.mulf %194, %196 : vector<8x16x112xf32>
    %c0_167 = arith.constant 0 : index
    %c1_168 = arith.constant 1 : index
    %c1_169 = arith.constant 1 : index
    %c0_170 = arith.constant 0 : index
    %198 = vector.load %arg2[%c0_167, %c1_168, %c1_169, %c0_170] : memref<2x7x7x112xf32, #tpu.memory_space<vmem>>, vector<1x1x1x112xf32>
    %199 = vector.shape_cast %198 : vector<1x1x1x112xf32> to vector<1x112xf32>
    %c0_171 = arith.constant 0 : index
    %c1_172 = arith.constant 1 : index
    %c0_173 = arith.constant 0 : index
    %c0_174 = arith.constant 0 : index
    %200 = vector.load %arg4[%c0_171, %c1_172, %c0_173, %c0_174] : memref<2x14x16x112xf32, #tpu.memory_space<vmem>>, vector<1x8x16x112xf32>
    %201 = vector.shape_cast %200 : vector<1x8x16x112xf32> to vector<8x16x112xf32>
    %202 = vector.shape_cast %199 : vector<1x112xf32> to vector<1x1x112xf32>
    %203 = vector.broadcast %202 : vector<1x1x112xf32> to vector<8x16x112xf32>
    %204 = arith.mulf %201, %203 : vector<8x16x112xf32>
    %205 = arith.addf %197, %204 : vector<8x16x112xf32>
    %c0_175 = arith.constant 0 : index
    %c2_176 = arith.constant 2 : index
    %c1_177 = arith.constant 1 : index
    %c0_178 = arith.constant 0 : index
    %206 = vector.load %arg2[%c0_175, %c2_176, %c1_177, %c0_178] : memref<2x7x7x112xf32, #tpu.memory_space<vmem>>, vector<1x1x1x112xf32>
    %207 = vector.shape_cast %206 : vector<1x1x1x112xf32> to vector<1x112xf32>
    %c0_179 = arith.constant 0 : index
    %c2_180 = arith.constant 2 : index
    %c0_181 = arith.constant 0 : index
    %c0_182 = arith.constant 0 : index
    %208 = vector.load %arg4[%c0_179, %c2_180, %c0_181, %c0_182] : memref<2x14x16x112xf32, #tpu.memory_space<vmem>>, vector<1x8x16x112xf32>
    %209 = vector.shape_cast %208 : vector<1x8x16x112xf32> to vector<8x16x112xf32>
    %210 = vector.shape_cast %207 : vector<1x112xf32> to vector<1x1x112xf32>
    %211 = vector.broadcast %210 : vector<1x1x112xf32> to vector<8x16x112xf32>
    %212 = arith.mulf %209, %211 : vector<8x16x112xf32>
    %213 = arith.addf %205, %212 : vector<8x16x112xf32>
    %c0_183 = arith.constant 0 : index
    %c3_184 = arith.constant 3 : index
    %c1_185 = arith.constant 1 : index
    %c0_186 = arith.constant 0 : index
    %214 = vector.load %arg2[%c0_183, %c3_184, %c1_185, %c0_186] : memref<2x7x7x112xf32, #tpu.memory_space<vmem>>, vector<1x1x1x112xf32>
    %215 = vector.shape_cast %214 : vector<1x1x1x112xf32> to vector<1x112xf32>
    %c0_187 = arith.constant 0 : index
    %c3_188 = arith.constant 3 : index
    %c0_189 = arith.constant 0 : index
    %c0_190 = arith.constant 0 : index
    %216 = vector.load %arg4[%c0_187, %c3_188, %c0_189, %c0_190] : memref<2x14x16x112xf32, #tpu.memory_space<vmem>>, vector<1x8x16x112xf32>
    %217 = vector.shape_cast %216 : vector<1x8x16x112xf32> to vector<8x16x112xf32>
    %218 = vector.shape_cast %215 : vector<1x112xf32> to vector<1x1x112xf32>
    %219 = vector.broadcast %218 : vector<1x1x112xf32> to vector<8x16x112xf32>
    %220 = arith.mulf %217, %219 : vector<8x16x112xf32>
    %221 = arith.addf %213, %220 : vector<8x16x112xf32>
    %c0_191 = arith.constant 0 : index
    %c4_192 = arith.constant 4 : index
    %c1_193 = arith.constant 1 : index
    %c0_194 = arith.constant 0 : index
    %222 = vector.load %arg2[%c0_191, %c4_192, %c1_193, %c0_194] : memref<2x7x7x112xf32, #tpu.memory_space<vmem>>, vector<1x1x1x112xf32>
    %223 = vector.shape_cast %222 : vector<1x1x1x112xf32> to vector<1x112xf32>
    %c0_195 = arith.constant 0 : index
    %c4_196 = arith.constant 4 : index
    %c0_197 = arith.constant 0 : index
    %c0_198 = arith.constant 0 : index
    %224 = vector.load %arg4[%c0_195, %c4_196, %c0_197, %c0_198] : memref<2x14x16x112xf32, #tpu.memory_space<vmem>>, vector<1x8x16x112xf32>
    %225 = vector.shape_cast %224 : vector<1x8x16x112xf32> to vector<8x16x112xf32>
    %226 = vector.shape_cast %223 : vector<1x112xf32> to vector<1x1x112xf32>
    %227 = vector.broadcast %226 : vector<1x1x112xf32> to vector<8x16x112xf32>
    %228 = arith.mulf %225, %227 : vector<8x16x112xf32>
    %229 = arith.addf %221, %228 : vector<8x16x112xf32>
    %c0_199 = arith.constant 0 : index
    %c5_200 = arith.constant 5 : index
    %c1_201 = arith.constant 1 : index
    %c0_202 = arith.constant 0 : index
    %230 = vector.load %arg2[%c0_199, %c5_200, %c1_201, %c0_202] : memref<2x7x7x112xf32, #tpu.memory_space<vmem>>, vector<1x1x1x112xf32>
    %231 = vector.shape_cast %230 : vector<1x1x1x112xf32> to vector<1x112xf32>
    %c0_203 = arith.constant 0 : index
    %c5_204 = arith.constant 5 : index
    %c0_205 = arith.constant 0 : index
    %c0_206 = arith.constant 0 : index
    %232 = vector.load %arg4[%c0_203, %c5_204, %c0_205, %c0_206] : memref<2x14x16x112xf32, #tpu.memory_space<vmem>>, vector<1x8x16x112xf32>
    %233 = vector.shape_cast %232 : vector<1x8x16x112xf32> to vector<8x16x112xf32>
    %234 = vector.shape_cast %231 : vector<1x112xf32> to vector<1x1x112xf32>
    %235 = vector.broadcast %234 : vector<1x1x112xf32> to vector<8x16x112xf32>
    %236 = arith.mulf %233, %235 : vector<8x16x112xf32>
    %237 = arith.addf %229, %236 : vector<8x16x112xf32>
    %c0_207 = arith.constant 0 : index
    %c6_208 = arith.constant 6 : index
    %c1_209 = arith.constant 1 : index
    %c0_210 = arith.constant 0 : index
    %238 = vector.load %arg2[%c0_207, %c6_208, %c1_209, %c0_210] : memref<2x7x7x112xf32, #tpu.memory_space<vmem>>, vector<1x1x1x112xf32>
    %239 = vector.shape_cast %238 : vector<1x1x1x112xf32> to vector<1x112xf32>
    %c0_211 = arith.constant 0 : index
    %c6_212 = arith.constant 6 : index
    %c0_213 = arith.constant 0 : index
    %c0_214 = arith.constant 0 : index
    %240 = vector.load %arg4[%c0_211, %c6_212, %c0_213, %c0_214] : memref<2x14x16x112xf32, #tpu.memory_space<vmem>>, vector<1x8x16x112xf32>
    %241 = vector.shape_cast %240 : vector<1x8x16x112xf32> to vector<8x16x112xf32>
    %242 = vector.shape_cast %239 : vector<1x112xf32> to vector<1x1x112xf32>
    %243 = vector.broadcast %242 : vector<1x1x112xf32> to vector<8x16x112xf32>
    %244 = arith.mulf %241, %243 : vector<8x16x112xf32>
    %245 = arith.addf %237, %244 : vector<8x16x112xf32>
    %c1_215 = arith.constant 1 : index
    %c0_216 = arith.constant 0 : index
    %c1_217 = arith.constant 1 : index
    %c0_218 = arith.constant 0 : index
    %246 = vector.load %arg2[%c1_215, %c0_216, %c1_217, %c0_218] : memref<2x7x7x112xf32, #tpu.memory_space<vmem>>, vector<1x1x1x112xf32>
    %247 = vector.shape_cast %246 : vector<1x1x1x112xf32> to vector<1x112xf32>
    %c1_219 = arith.constant 1 : index
    %c0_220 = arith.constant 0 : index
    %c0_221 = arith.constant 0 : index
    %c0_222 = arith.constant 0 : index
    %248 = vector.load %arg4[%c1_219, %c0_220, %c0_221, %c0_222] : memref<2x14x16x112xf32, #tpu.memory_space<vmem>>, vector<1x8x16x112xf32>
    %249 = vector.shape_cast %248 : vector<1x8x16x112xf32> to vector<8x16x112xf32>
    %250 = vector.shape_cast %247 : vector<1x112xf32> to vector<1x1x112xf32>
    %251 = vector.broadcast %250 : vector<1x1x112xf32> to vector<8x16x112xf32>
    %252 = arith.mulf %249, %251 : vector<8x16x112xf32>
    %253 = arith.addf %245, %252 : vector<8x16x112xf32>
    %c1_223 = arith.constant 1 : index
    %c1_224 = arith.constant 1 : index
    %c1_225 = arith.constant 1 : index
    %c0_226 = arith.constant 0 : index
    %254 = vector.load %arg2[%c1_223, %c1_224, %c1_225, %c0_226] : memref<2x7x7x112xf32, #tpu.memory_space<vmem>>, vector<1x1x1x112xf32>
    %255 = vector.shape_cast %254 : vector<1x1x1x112xf32> to vector<1x112xf32>
    %c1_227 = arith.constant 1 : index
    %c1_228 = arith.constant 1 : index
    %c0_229 = arith.constant 0 : index
    %c0_230 = arith.constant 0 : index
    %256 = vector.load %arg4[%c1_227, %c1_228, %c0_229, %c0_230] : memref<2x14x16x112xf32, #tpu.memory_space<vmem>>, vector<1x8x16x112xf32>
    %257 = vector.shape_cast %256 : vector<1x8x16x112xf32> to vector<8x16x112xf32>
    %258 = vector.shape_cast %255 : vector<1x112xf32> to vector<1x1x112xf32>
    %259 = vector.broadcast %258 : vector<1x1x112xf32> to vector<8x16x112xf32>
    %260 = arith.mulf %257, %259 : vector<8x16x112xf32>
    %261 = arith.addf %253, %260 : vector<8x16x112xf32>
    %c1_231 = arith.constant 1 : index
    %c2_232 = arith.constant 2 : index
    %c1_233 = arith.constant 1 : index
    %c0_234 = arith.constant 0 : index
    %262 = vector.load %arg2[%c1_231, %c2_232, %c1_233, %c0_234] : memref<2x7x7x112xf32, #tpu.memory_space<vmem>>, vector<1x1x1x112xf32>
    %263 = vector.shape_cast %262 : vector<1x1x1x112xf32> to vector<1x112xf32>
    %c1_235 = arith.constant 1 : index
    %c2_236 = arith.constant 2 : index
    %c0_237 = arith.constant 0 : index
    %c0_238 = arith.constant 0 : index
    %264 = vector.load %arg4[%c1_235, %c2_236, %c0_237, %c0_238] : memref<2x14x16x112xf32, #tpu.memory_space<vmem>>, vector<1x8x16x112xf32>
    %265 = vector.shape_cast %264 : vector<1x8x16x112xf32> to vector<8x16x112xf32>
    %266 = vector.shape_cast %263 : vector<1x112xf32> to vector<1x1x112xf32>
    %267 = vector.broadcast %266 : vector<1x1x112xf32> to vector<8x16x112xf32>
    %268 = arith.mulf %265, %267 : vector<8x16x112xf32>
    %269 = arith.addf %261, %268 : vector<8x16x112xf32>
    %c1_239 = arith.constant 1 : index
    %c3_240 = arith.constant 3 : index
    %c1_241 = arith.constant 1 : index
    %c0_242 = arith.constant 0 : index
    %270 = vector.load %arg2[%c1_239, %c3_240, %c1_241, %c0_242] : memref<2x7x7x112xf32, #tpu.memory_space<vmem>>, vector<1x1x1x112xf32>
    %271 = vector.shape_cast %270 : vector<1x1x1x112xf32> to vector<1x112xf32>
    %c1_243 = arith.constant 1 : index
    %c3_244 = arith.constant 3 : index
    %c0_245 = arith.constant 0 : index
    %c0_246 = arith.constant 0 : index
    %272 = vector.load %arg4[%c1_243, %c3_244, %c0_245, %c0_246] : memref<2x14x16x112xf32, #tpu.memory_space<vmem>>, vector<1x8x16x112xf32>
    %273 = vector.shape_cast %272 : vector<1x8x16x112xf32> to vector<8x16x112xf32>
    %274 = vector.shape_cast %271 : vector<1x112xf32> to vector<1x1x112xf32>
    %275 = vector.broadcast %274 : vector<1x1x112xf32> to vector<8x16x112xf32>
    %276 = arith.mulf %273, %275 : vector<8x16x112xf32>
    %277 = arith.addf %269, %276 : vector<8x16x112xf32>
    %c1_247 = arith.constant 1 : index
    %c4_248 = arith.constant 4 : index
    %c1_249 = arith.constant 1 : index
    %c0_250 = arith.constant 0 : index
    %278 = vector.load %arg2[%c1_247, %c4_248, %c1_249, %c0_250] : memref<2x7x7x112xf32, #tpu.memory_space<vmem>>, vector<1x1x1x112xf32>
    %279 = vector.shape_cast %278 : vector<1x1x1x112xf32> to vector<1x112xf32>
    %c1_251 = arith.constant 1 : index
    %c4_252 = arith.constant 4 : index
    %c0_253 = arith.constant 0 : index
    %c0_254 = arith.constant 0 : index
    %280 = vector.load %arg4[%c1_251, %c4_252, %c0_253, %c0_254] : memref<2x14x16x112xf32, #tpu.memory_space<vmem>>, vector<1x8x16x112xf32>
    %281 = vector.shape_cast %280 : vector<1x8x16x112xf32> to vector<8x16x112xf32>
    %282 = vector.shape_cast %279 : vector<1x112xf32> to vector<1x1x112xf32>
    %283 = vector.broadcast %282 : vector<1x1x112xf32> to vector<8x16x112xf32>
    %284 = arith.mulf %281, %283 : vector<8x16x112xf32>
    %285 = arith.addf %277, %284 : vector<8x16x112xf32>
    %c1_255 = arith.constant 1 : index
    %c5_256 = arith.constant 5 : index
    %c1_257 = arith.constant 1 : index
    %c0_258 = arith.constant 0 : index
    %286 = vector.load %arg2[%c1_255, %c5_256, %c1_257, %c0_258] : memref<2x7x7x112xf32, #tpu.memory_space<vmem>>, vector<1x1x1x112xf32>
    %287 = vector.shape_cast %286 : vector<1x1x1x112xf32> to vector<1x112xf32>
    %c1_259 = arith.constant 1 : index
    %c5_260 = arith.constant 5 : index
    %c0_261 = arith.constant 0 : index
    %c0_262 = arith.constant 0 : index
    %288 = vector.load %arg4[%c1_259, %c5_260, %c0_261, %c0_262] : memref<2x14x16x112xf32, #tpu.memory_space<vmem>>, vector<1x8x16x112xf32>
    %289 = vector.shape_cast %288 : vector<1x8x16x112xf32> to vector<8x16x112xf32>
    %290 = vector.shape_cast %287 : vector<1x112xf32> to vector<1x1x112xf32>
    %291 = vector.broadcast %290 : vector<1x1x112xf32> to vector<8x16x112xf32>
    %292 = arith.mulf %289, %291 : vector<8x16x112xf32>
    %293 = arith.addf %285, %292 : vector<8x16x112xf32>
    %c1_263 = arith.constant 1 : index
    %c6_264 = arith.constant 6 : index
    %c1_265 = arith.constant 1 : index
    %c0_266 = arith.constant 0 : index
    %294 = vector.load %arg2[%c1_263, %c6_264, %c1_265, %c0_266] : memref<2x7x7x112xf32, #tpu.memory_space<vmem>>, vector<1x1x1x112xf32>
    %295 = vector.shape_cast %294 : vector<1x1x1x112xf32> to vector<1x112xf32>
    %c1_267 = arith.constant 1 : index
    %c6_268 = arith.constant 6 : index
    %c0_269 = arith.constant 0 : index
    %c0_270 = arith.constant 0 : index
    %296 = vector.load %arg4[%c1_267, %c6_268, %c0_269, %c0_270] : memref<2x14x16x112xf32, #tpu.memory_space<vmem>>, vector<1x8x16x112xf32>
    %297 = vector.shape_cast %296 : vector<1x8x16x112xf32> to vector<8x16x112xf32>
    %298 = vector.shape_cast %295 : vector<1x112xf32> to vector<1x1x112xf32>
    %299 = vector.broadcast %298 : vector<1x1x112xf32> to vector<8x16x112xf32>
    %300 = arith.mulf %297, %299 : vector<8x16x112xf32>
    %301 = arith.addf %293, %300 : vector<8x16x112xf32>
    %cst_271 = arith.constant 0.000000e+00 : f32
    %302 = vector.broadcast %cst_271 : f32 to vector<8x2x112xf32>
    %303 = vector.extract_strided_slice %301 {offsets = [0, 0, 0], sizes = [8, 14, 112], strides = [1, 1, 1]} : vector<8x16x112xf32> to vector<8x14x112xf32>
    %304 = tpu.concatenate %302, %303 in 1 : vector<8x2x112xf32>, vector<8x14x112xf32> -> vector<8x16x112xf32>
    %305 = arith.addf %190, %304 : vector<8x16x112xf32>
    %c0_272 = arith.constant 0 : index
    %c0_273 = arith.constant 0 : index
    %c2_274 = arith.constant 2 : index
    %c0_275 = arith.constant 0 : index
    %306 = vector.load %arg2[%c0_272, %c0_273, %c2_274, %c0_275] : memref<2x7x7x112xf32, #tpu.memory_space<vmem>>, vector<1x1x1x112xf32>
    %307 = vector.shape_cast %306 : vector<1x1x1x112xf32> to vector<1x112xf32>
    %c0_276 = arith.constant 0 : index
    %c0_277 = arith.constant 0 : index
    %c0_278 = arith.constant 0 : index
    %c0_279 = arith.constant 0 : index
    %308 = vector.load %arg4[%c0_276, %c0_277, %c0_278, %c0_279] : memref<2x14x16x112xf32, #tpu.memory_space<vmem>>, vector<1x8x16x112xf32>
    %309 = vector.shape_cast %308 : vector<1x8x16x112xf32> to vector<8x16x112xf32>
    %310 = vector.shape_cast %307 : vector<1x112xf32> to vector<1x1x112xf32>
    %311 = vector.broadcast %310 : vector<1x1x112xf32> to vector<8x16x112xf32>
    %312 = arith.mulf %309, %311 : vector<8x16x112xf32>
    %c0_280 = arith.constant 0 : index
    %c1_281 = arith.constant 1 : index
    %c2_282 = arith.constant 2 : index
    %c0_283 = arith.constant 0 : index
    %313 = vector.load %arg2[%c0_280, %c1_281, %c2_282, %c0_283] : memref<2x7x7x112xf32, #tpu.memory_space<vmem>>, vector<1x1x1x112xf32>
    %314 = vector.shape_cast %313 : vector<1x1x1x112xf32> to vector<1x112xf32>
    %c0_284 = arith.constant 0 : index
    %c1_285 = arith.constant 1 : index
    %c0_286 = arith.constant 0 : index
    %c0_287 = arith.constant 0 : index
    %315 = vector.load %arg4[%c0_284, %c1_285, %c0_286, %c0_287] : memref<2x14x16x112xf32, #tpu.memory_space<vmem>>, vector<1x8x16x112xf32>
    %316 = vector.shape_cast %315 : vector<1x8x16x112xf32> to vector<8x16x112xf32>
    %317 = vector.shape_cast %314 : vector<1x112xf32> to vector<1x1x112xf32>
    %318 = vector.broadcast %317 : vector<1x1x112xf32> to vector<8x16x112xf32>
    %319 = arith.mulf %316, %318 : vector<8x16x112xf32>
    %320 = arith.addf %312, %319 : vector<8x16x112xf32>
    %c0_288 = arith.constant 0 : index
    %c2_289 = arith.constant 2 : index
    %c2_290 = arith.constant 2 : index
    %c0_291 = arith.constant 0 : index
    %321 = vector.load %arg2[%c0_288, %c2_289, %c2_290, %c0_291] : memref<2x7x7x112xf32, #tpu.memory_space<vmem>>, vector<1x1x1x112xf32>
    %322 = vector.shape_cast %321 : vector<1x1x1x112xf32> to vector<1x112xf32>
    %c0_292 = arith.constant 0 : index
    %c2_293 = arith.constant 2 : index
    %c0_294 = arith.constant 0 : index
    %c0_295 = arith.constant 0 : index
    %323 = vector.load %arg4[%c0_292, %c2_293, %c0_294, %c0_295] : memref<2x14x16x112xf32, #tpu.memory_space<vmem>>, vector<1x8x16x112xf32>
    %324 = vector.shape_cast %323 : vector<1x8x16x112xf32> to vector<8x16x112xf32>
    %325 = vector.shape_cast %322 : vector<1x112xf32> to vector<1x1x112xf32>
    %326 = vector.broadcast %325 : vector<1x1x112xf32> to vector<8x16x112xf32>
    %327 = arith.mulf %324, %326 : vector<8x16x112xf32>
    %328 = arith.addf %320, %327 : vector<8x16x112xf32>
    %c0_296 = arith.constant 0 : index
    %c3_297 = arith.constant 3 : index
    %c2_298 = arith.constant 2 : index
    %c0_299 = arith.constant 0 : index
    %329 = vector.load %arg2[%c0_296, %c3_297, %c2_298, %c0_299] : memref<2x7x7x112xf32, #tpu.memory_space<vmem>>, vector<1x1x1x112xf32>
    %330 = vector.shape_cast %329 : vector<1x1x1x112xf32> to vector<1x112xf32>
    %c0_300 = arith.constant 0 : index
    %c3_301 = arith.constant 3 : index
    %c0_302 = arith.constant 0 : index
    %c0_303 = arith.constant 0 : index
    %331 = vector.load %arg4[%c0_300, %c3_301, %c0_302, %c0_303] : memref<2x14x16x112xf32, #tpu.memory_space<vmem>>, vector<1x8x16x112xf32>
    %332 = vector.shape_cast %331 : vector<1x8x16x112xf32> to vector<8x16x112xf32>
    %333 = vector.shape_cast %330 : vector<1x112xf32> to vector<1x1x112xf32>
    %334 = vector.broadcast %333 : vector<1x1x112xf32> to vector<8x16x112xf32>
    %335 = arith.mulf %332, %334 : vector<8x16x112xf32>
    %336 = arith.addf %328, %335 : vector<8x16x112xf32>
    %c0_304 = arith.constant 0 : index
    %c4_305 = arith.constant 4 : index
    %c2_306 = arith.constant 2 : index
    %c0_307 = arith.constant 0 : index
    %337 = vector.load %arg2[%c0_304, %c4_305, %c2_306, %c0_307] : memref<2x7x7x112xf32, #tpu.memory_space<vmem>>, vector<1x1x1x112xf32>
    %338 = vector.shape_cast %337 : vector<1x1x1x112xf32> to vector<1x112xf32>
    %c0_308 = arith.constant 0 : index
    %c4_309 = arith.constant 4 : index
    %c0_310 = arith.constant 0 : index
    %c0_311 = arith.constant 0 : index
    %339 = vector.load %arg4[%c0_308, %c4_309, %c0_310, %c0_311] : memref<2x14x16x112xf32, #tpu.memory_space<vmem>>, vector<1x8x16x112xf32>
    %340 = vector.shape_cast %339 : vector<1x8x16x112xf32> to vector<8x16x112xf32>
    %341 = vector.shape_cast %338 : vector<1x112xf32> to vector<1x1x112xf32>
    %342 = vector.broadcast %341 : vector<1x1x112xf32> to vector<8x16x112xf32>
    %343 = arith.mulf %340, %342 : vector<8x16x112xf32>
    %344 = arith.addf %336, %343 : vector<8x16x112xf32>
    %c0_312 = arith.constant 0 : index
    %c5_313 = arith.constant 5 : index
    %c2_314 = arith.constant 2 : index
    %c0_315 = arith.constant 0 : index
    %345 = vector.load %arg2[%c0_312, %c5_313, %c2_314, %c0_315] : memref<2x7x7x112xf32, #tpu.memory_space<vmem>>, vector<1x1x1x112xf32>
    %346 = vector.shape_cast %345 : vector<1x1x1x112xf32> to vector<1x112xf32>
    %c0_316 = arith.constant 0 : index
    %c5_317 = arith.constant 5 : index
    %c0_318 = arith.constant 0 : index
    %c0_319 = arith.constant 0 : index
    %347 = vector.load %arg4[%c0_316, %c5_317, %c0_318, %c0_319] : memref<2x14x16x112xf32, #tpu.memory_space<vmem>>, vector<1x8x16x112xf32>
    %348 = vector.shape_cast %347 : vector<1x8x16x112xf32> to vector<8x16x112xf32>
    %349 = vector.shape_cast %346 : vector<1x112xf32> to vector<1x1x112xf32>
    %350 = vector.broadcast %349 : vector<1x1x112xf32> to vector<8x16x112xf32>
    %351 = arith.mulf %348, %350 : vector<8x16x112xf32>
    %352 = arith.addf %344, %351 : vector<8x16x112xf32>
    %c0_320 = arith.constant 0 : index
    %c6_321 = arith.constant 6 : index
    %c2_322 = arith.constant 2 : index
    %c0_323 = arith.constant 0 : index
    %353 = vector.load %arg2[%c0_320, %c6_321, %c2_322, %c0_323] : memref<2x7x7x112xf32, #tpu.memory_space<vmem>>, vector<1x1x1x112xf32>
    %354 = vector.shape_cast %353 : vector<1x1x1x112xf32> to vector<1x112xf32>
    %c0_324 = arith.constant 0 : index
    %c6_325 = arith.constant 6 : index
    %c0_326 = arith.constant 0 : index
    %c0_327 = arith.constant 0 : index
    %355 = vector.load %arg4[%c0_324, %c6_325, %c0_326, %c0_327] : memref<2x14x16x112xf32, #tpu.memory_space<vmem>>, vector<1x8x16x112xf32>
    %356 = vector.shape_cast %355 : vector<1x8x16x112xf32> to vector<8x16x112xf32>
    %357 = vector.shape_cast %354 : vector<1x112xf32> to vector<1x1x112xf32>
    %358 = vector.broadcast %357 : vector<1x1x112xf32> to vector<8x16x112xf32>
    %359 = arith.mulf %356, %358 : vector<8x16x112xf32>
    %360 = arith.addf %352, %359 : vector<8x16x112xf32>
    %c1_328 = arith.constant 1 : index
    %c0_329 = arith.constant 0 : index
    %c2_330 = arith.constant 2 : index
    %c0_331 = arith.constant 0 : index
    %361 = vector.load %arg2[%c1_328, %c0_329, %c2_330, %c0_331] : memref<2x7x7x112xf32, #tpu.memory_space<vmem>>, vector<1x1x1x112xf32>
    %362 = vector.shape_cast %361 : vector<1x1x1x112xf32> to vector<1x112xf32>
    %c1_332 = arith.constant 1 : index
    %c0_333 = arith.constant 0 : index
    %c0_334 = arith.constant 0 : index
    %c0_335 = arith.constant 0 : index
    %363 = vector.load %arg4[%c1_332, %c0_333, %c0_334, %c0_335] : memref<2x14x16x112xf32, #tpu.memory_space<vmem>>, vector<1x8x16x112xf32>
    %364 = vector.shape_cast %363 : vector<1x8x16x112xf32> to vector<8x16x112xf32>
    %365 = vector.shape_cast %362 : vector<1x112xf32> to vector<1x1x112xf32>
    %366 = vector.broadcast %365 : vector<1x1x112xf32> to vector<8x16x112xf32>
    %367 = arith.mulf %364, %366 : vector<8x16x112xf32>
    %368 = arith.addf %360, %367 : vector<8x16x112xf32>
    %c1_336 = arith.constant 1 : index
    %c1_337 = arith.constant 1 : index
    %c2_338 = arith.constant 2 : index
    %c0_339 = arith.constant 0 : index
    %369 = vector.load %arg2[%c1_336, %c1_337, %c2_338, %c0_339] : memref<2x7x7x112xf32, #tpu.memory_space<vmem>>, vector<1x1x1x112xf32>
    %370 = vector.shape_cast %369 : vector<1x1x1x112xf32> to vector<1x112xf32>
    %c1_340 = arith.constant 1 : index
    %c1_341 = arith.constant 1 : index
    %c0_342 = arith.constant 0 : index
    %c0_343 = arith.constant 0 : index
    %371 = vector.load %arg4[%c1_340, %c1_341, %c0_342, %c0_343] : memref<2x14x16x112xf32, #tpu.memory_space<vmem>>, vector<1x8x16x112xf32>
    %372 = vector.shape_cast %371 : vector<1x8x16x112xf32> to vector<8x16x112xf32>
    %373 = vector.shape_cast %370 : vector<1x112xf32> to vector<1x1x112xf32>
    %374 = vector.broadcast %373 : vector<1x1x112xf32> to vector<8x16x112xf32>
    %375 = arith.mulf %372, %374 : vector<8x16x112xf32>
    %376 = arith.addf %368, %375 : vector<8x16x112xf32>
    %c1_344 = arith.constant 1 : index
    %c2_345 = arith.constant 2 : index
    %c2_346 = arith.constant 2 : index
    %c0_347 = arith.constant 0 : index
    %377 = vector.load %arg2[%c1_344, %c2_345, %c2_346, %c0_347] : memref<2x7x7x112xf32, #tpu.memory_space<vmem>>, vector<1x1x1x112xf32>
    %378 = vector.shape_cast %377 : vector<1x1x1x112xf32> to vector<1x112xf32>
    %c1_348 = arith.constant 1 : index
    %c2_349 = arith.constant 2 : index
    %c0_350 = arith.constant 0 : index
    %c0_351 = arith.constant 0 : index
    %379 = vector.load %arg4[%c1_348, %c2_349, %c0_350, %c0_351] : memref<2x14x16x112xf32, #tpu.memory_space<vmem>>, vector<1x8x16x112xf32>
    %380 = vector.shape_cast %379 : vector<1x8x16x112xf32> to vector<8x16x112xf32>
    %381 = vector.shape_cast %378 : vector<1x112xf32> to vector<1x1x112xf32>
    %382 = vector.broadcast %381 : vector<1x1x112xf32> to vector<8x16x112xf32>
    %383 = arith.mulf %380, %382 : vector<8x16x112xf32>
    %384 = arith.addf %376, %383 : vector<8x16x112xf32>
    %c1_352 = arith.constant 1 : index
    %c3_353 = arith.constant 3 : index
    %c2_354 = arith.constant 2 : index
    %c0_355 = arith.constant 0 : index
    %385 = vector.load %arg2[%c1_352, %c3_353, %c2_354, %c0_355] : memref<2x7x7x112xf32, #tpu.memory_space<vmem>>, vector<1x1x1x112xf32>
    %386 = vector.shape_cast %385 : vector<1x1x1x112xf32> to vector<1x112xf32>
    %c1_356 = arith.constant 1 : index
    %c3_357 = arith.constant 3 : index
    %c0_358 = arith.constant 0 : index
    %c0_359 = arith.constant 0 : index
    %387 = vector.load %arg4[%c1_356, %c3_357, %c0_358, %c0_359] : memref<2x14x16x112xf32, #tpu.memory_space<vmem>>, vector<1x8x16x112xf32>
    %388 = vector.shape_cast %387 : vector<1x8x16x112xf32> to vector<8x16x112xf32>
    %389 = vector.shape_cast %386 : vector<1x112xf32> to vector<1x1x112xf32>
    %390 = vector.broadcast %389 : vector<1x1x112xf32> to vector<8x16x112xf32>
    %391 = arith.mulf %388, %390 : vector<8x16x112xf32>
    %392 = arith.addf %384, %391 : vector<8x16x112xf32>
    %c1_360 = arith.constant 1 : index
    %c4_361 = arith.constant 4 : index
    %c2_362 = arith.constant 2 : index
    %c0_363 = arith.constant 0 : index
    %393 = vector.load %arg2[%c1_360, %c4_361, %c2_362, %c0_363] : memref<2x7x7x112xf32, #tpu.memory_space<vmem>>, vector<1x1x1x112xf32>
    %394 = vector.shape_cast %393 : vector<1x1x1x112xf32> to vector<1x112xf32>
    %c1_364 = arith.constant 1 : index
    %c4_365 = arith.constant 4 : index
    %c0_366 = arith.constant 0 : index
    %c0_367 = arith.constant 0 : index
    %395 = vector.load %arg4[%c1_364, %c4_365, %c0_366, %c0_367] : memref<2x14x16x112xf32, #tpu.memory_space<vmem>>, vector<1x8x16x112xf32>
    %396 = vector.shape_cast %395 : vector<1x8x16x112xf32> to vector<8x16x112xf32>
    %397 = vector.shape_cast %394 : vector<1x112xf32> to vector<1x1x112xf32>
    %398 = vector.broadcast %397 : vector<1x1x112xf32> to vector<8x16x112xf32>
    %399 = arith.mulf %396, %398 : vector<8x16x112xf32>
    %400 = arith.addf %392, %399 : vector<8x16x112xf32>
    %c1_368 = arith.constant 1 : index
    %c5_369 = arith.constant 5 : index
    %c2_370 = arith.constant 2 : index
    %c0_371 = arith.constant 0 : index
    %401 = vector.load %arg2[%c1_368, %c5_369, %c2_370, %c0_371] : memref<2x7x7x112xf32, #tpu.memory_space<vmem>>, vector<1x1x1x112xf32>
    %402 = vector.shape_cast %401 : vector<1x1x1x112xf32> to vector<1x112xf32>
    %c1_372 = arith.constant 1 : index
    %c5_373 = arith.constant 5 : index
    %c0_374 = arith.constant 0 : index
    %c0_375 = arith.constant 0 : index
    %403 = vector.load %arg4[%c1_372, %c5_373, %c0_374, %c0_375] : memref<2x14x16x112xf32, #tpu.memory_space<vmem>>, vector<1x8x16x112xf32>
    %404 = vector.shape_cast %403 : vector<1x8x16x112xf32> to vector<8x16x112xf32>
    %405 = vector.shape_cast %402 : vector<1x112xf32> to vector<1x1x112xf32>
    %406 = vector.broadcast %405 : vector<1x1x112xf32> to vector<8x16x112xf32>
    %407 = arith.mulf %404, %406 : vector<8x16x112xf32>
    %408 = arith.addf %400, %407 : vector<8x16x112xf32>
    %c1_376 = arith.constant 1 : index
    %c6_377 = arith.constant 6 : index
    %c2_378 = arith.constant 2 : index
    %c0_379 = arith.constant 0 : index
    %409 = vector.load %arg2[%c1_376, %c6_377, %c2_378, %c0_379] : memref<2x7x7x112xf32, #tpu.memory_space<vmem>>, vector<1x1x1x112xf32>
    %410 = vector.shape_cast %409 : vector<1x1x1x112xf32> to vector<1x112xf32>
    %c1_380 = arith.constant 1 : index
    %c6_381 = arith.constant 6 : index
    %c0_382 = arith.constant 0 : index
    %c0_383 = arith.constant 0 : index
    %411 = vector.load %arg4[%c1_380, %c6_381, %c0_382, %c0_383] : memref<2x14x16x112xf32, #tpu.memory_space<vmem>>, vector<1x8x16x112xf32>
    %412 = vector.shape_cast %411 : vector<1x8x16x112xf32> to vector<8x16x112xf32>
    %413 = vector.shape_cast %410 : vector<1x112xf32> to vector<1x1x112xf32>
    %414 = vector.broadcast %413 : vector<1x1x112xf32> to vector<8x16x112xf32>
    %415 = arith.mulf %412, %414 : vector<8x16x112xf32>
    %416 = arith.addf %408, %415 : vector<8x16x112xf32>
    %cst_384 = arith.constant 0.000000e+00 : f32
    %417 = vector.broadcast %cst_384 : f32 to vector<8x1x112xf32>
    %418 = vector.extract_strided_slice %416 {offsets = [0, 0, 0], sizes = [8, 15, 112], strides = [1, 1, 1]} : vector<8x16x112xf32> to vector<8x15x112xf32>
    %419 = tpu.concatenate %417, %418 in 1 : vector<8x1x112xf32>, vector<8x15x112xf32> -> vector<8x16x112xf32>
    %420 = arith.addf %305, %419 : vector<8x16x112xf32>
    %c0_385 = arith.constant 0 : index
    %c0_386 = arith.constant 0 : index
    %c3_387 = arith.constant 3 : index
    %c0_388 = arith.constant 0 : index
    %421 = vector.load %arg2[%c0_385, %c0_386, %c3_387, %c0_388] : memref<2x7x7x112xf32, #tpu.memory_space<vmem>>, vector<1x1x1x112xf32>
    %422 = vector.shape_cast %421 : vector<1x1x1x112xf32> to vector<1x112xf32>
    %c0_389 = arith.constant 0 : index
    %c0_390 = arith.constant 0 : index
    %c0_391 = arith.constant 0 : index
    %c0_392 = arith.constant 0 : index
    %423 = vector.load %arg4[%c0_389, %c0_390, %c0_391, %c0_392] : memref<2x14x16x112xf32, #tpu.memory_space<vmem>>, vector<1x8x16x112xf32>
    %424 = vector.shape_cast %423 : vector<1x8x16x112xf32> to vector<8x16x112xf32>
    %425 = vector.shape_cast %422 : vector<1x112xf32> to vector<1x1x112xf32>
    %426 = vector.broadcast %425 : vector<1x1x112xf32> to vector<8x16x112xf32>
    %427 = arith.mulf %424, %426 : vector<8x16x112xf32>
    %c0_393 = arith.constant 0 : index
    %c1_394 = arith.constant 1 : index
    %c3_395 = arith.constant 3 : index
    %c0_396 = arith.constant 0 : index
    %428 = vector.load %arg2[%c0_393, %c1_394, %c3_395, %c0_396] : memref<2x7x7x112xf32, #tpu.memory_space<vmem>>, vector<1x1x1x112xf32>
    %429 = vector.shape_cast %428 : vector<1x1x1x112xf32> to vector<1x112xf32>
    %c0_397 = arith.constant 0 : index
    %c1_398 = arith.constant 1 : index
    %c0_399 = arith.constant 0 : index
    %c0_400 = arith.constant 0 : index
    %430 = vector.load %arg4[%c0_397, %c1_398, %c0_399, %c0_400] : memref<2x14x16x112xf32, #tpu.memory_space<vmem>>, vector<1x8x16x112xf32>
    %431 = vector.shape_cast %430 : vector<1x8x16x112xf32> to vector<8x16x112xf32>
    %432 = vector.shape_cast %429 : vector<1x112xf32> to vector<1x1x112xf32>
    %433 = vector.broadcast %432 : vector<1x1x112xf32> to vector<8x16x112xf32>
    %434 = arith.mulf %431, %433 : vector<8x16x112xf32>
    %435 = arith.addf %427, %434 : vector<8x16x112xf32>
    %c0_401 = arith.constant 0 : index
    %c2_402 = arith.constant 2 : index
    %c3_403 = arith.constant 3 : index
    %c0_404 = arith.constant 0 : index
    %436 = vector.load %arg2[%c0_401, %c2_402, %c3_403, %c0_404] : memref<2x7x7x112xf32, #tpu.memory_space<vmem>>, vector<1x1x1x112xf32>
    %437 = vector.shape_cast %436 : vector<1x1x1x112xf32> to vector<1x112xf32>
    %c0_405 = arith.constant 0 : index
    %c2_406 = arith.constant 2 : index
    %c0_407 = arith.constant 0 : index
    %c0_408 = arith.constant 0 : index
    %438 = vector.load %arg4[%c0_405, %c2_406, %c0_407, %c0_408] : memref<2x14x16x112xf32, #tpu.memory_space<vmem>>, vector<1x8x16x112xf32>
    %439 = vector.shape_cast %438 : vector<1x8x16x112xf32> to vector<8x16x112xf32>
    %440 = vector.shape_cast %437 : vector<1x112xf32> to vector<1x1x112xf32>
    %441 = vector.broadcast %440 : vector<1x1x112xf32> to vector<8x16x112xf32>
    %442 = arith.mulf %439, %441 : vector<8x16x112xf32>
    %443 = arith.addf %435, %442 : vector<8x16x112xf32>
    %c0_409 = arith.constant 0 : index
    %c3_410 = arith.constant 3 : index
    %c3_411 = arith.constant 3 : index
    %c0_412 = arith.constant 0 : index
    %444 = vector.load %arg2[%c0_409, %c3_410, %c3_411, %c0_412] : memref<2x7x7x112xf32, #tpu.memory_space<vmem>>, vector<1x1x1x112xf32>
    %445 = vector.shape_cast %444 : vector<1x1x1x112xf32> to vector<1x112xf32>
    %c0_413 = arith.constant 0 : index
    %c3_414 = arith.constant 3 : index
    %c0_415 = arith.constant 0 : index
    %c0_416 = arith.constant 0 : index
    %446 = vector.load %arg4[%c0_413, %c3_414, %c0_415, %c0_416] : memref<2x14x16x112xf32, #tpu.memory_space<vmem>>, vector<1x8x16x112xf32>
    %447 = vector.shape_cast %446 : vector<1x8x16x112xf32> to vector<8x16x112xf32>
    %448 = vector.shape_cast %445 : vector<1x112xf32> to vector<1x1x112xf32>
    %449 = vector.broadcast %448 : vector<1x1x112xf32> to vector<8x16x112xf32>
    %450 = arith.mulf %447, %449 : vector<8x16x112xf32>
    %451 = arith.addf %443, %450 : vector<8x16x112xf32>
    %c0_417 = arith.constant 0 : index
    %c4_418 = arith.constant 4 : index
    %c3_419 = arith.constant 3 : index
    %c0_420 = arith.constant 0 : index
    %452 = vector.load %arg2[%c0_417, %c4_418, %c3_419, %c0_420] : memref<2x7x7x112xf32, #tpu.memory_space<vmem>>, vector<1x1x1x112xf32>
    %453 = vector.shape_cast %452 : vector<1x1x1x112xf32> to vector<1x112xf32>
    %c0_421 = arith.constant 0 : index
    %c4_422 = arith.constant 4 : index
    %c0_423 = arith.constant 0 : index
    %c0_424 = arith.constant 0 : index
    %454 = vector.load %arg4[%c0_421, %c4_422, %c0_423, %c0_424] : memref<2x14x16x112xf32, #tpu.memory_space<vmem>>, vector<1x8x16x112xf32>
    %455 = vector.shape_cast %454 : vector<1x8x16x112xf32> to vector<8x16x112xf32>
    %456 = vector.shape_cast %453 : vector<1x112xf32> to vector<1x1x112xf32>
    %457 = vector.broadcast %456 : vector<1x1x112xf32> to vector<8x16x112xf32>
    %458 = arith.mulf %455, %457 : vector<8x16x112xf32>
    %459 = arith.addf %451, %458 : vector<8x16x112xf32>
    %c0_425 = arith.constant 0 : index
    %c5_426 = arith.constant 5 : index
    %c3_427 = arith.constant 3 : index
    %c0_428 = arith.constant 0 : index
    %460 = vector.load %arg2[%c0_425, %c5_426, %c3_427, %c0_428] : memref<2x7x7x112xf32, #tpu.memory_space<vmem>>, vector<1x1x1x112xf32>
    %461 = vector.shape_cast %460 : vector<1x1x1x112xf32> to vector<1x112xf32>
    %c0_429 = arith.constant 0 : index
    %c5_430 = arith.constant 5 : index
    %c0_431 = arith.constant 0 : index
    %c0_432 = arith.constant 0 : index
    %462 = vector.load %arg4[%c0_429, %c5_430, %c0_431, %c0_432] : memref<2x14x16x112xf32, #tpu.memory_space<vmem>>, vector<1x8x16x112xf32>
    %463 = vector.shape_cast %462 : vector<1x8x16x112xf32> to vector<8x16x112xf32>
    %464 = vector.shape_cast %461 : vector<1x112xf32> to vector<1x1x112xf32>
    %465 = vector.broadcast %464 : vector<1x1x112xf32> to vector<8x16x112xf32>
    %466 = arith.mulf %463, %465 : vector<8x16x112xf32>
    %467 = arith.addf %459, %466 : vector<8x16x112xf32>
    %c0_433 = arith.constant 0 : index
    %c6_434 = arith.constant 6 : index
    %c3_435 = arith.constant 3 : index
    %c0_436 = arith.constant 0 : index
    %468 = vector.load %arg2[%c0_433, %c6_434, %c3_435, %c0_436] : memref<2x7x7x112xf32, #tpu.memory_space<vmem>>, vector<1x1x1x112xf32>
    %469 = vector.shape_cast %468 : vector<1x1x1x112xf32> to vector<1x112xf32>
    %c0_437 = arith.constant 0 : index
    %c6_438 = arith.constant 6 : index
    %c0_439 = arith.constant 0 : index
    %c0_440 = arith.constant 0 : index
    %470 = vector.load %arg4[%c0_437, %c6_438, %c0_439, %c0_440] : memref<2x14x16x112xf32, #tpu.memory_space<vmem>>, vector<1x8x16x112xf32>
    %471 = vector.shape_cast %470 : vector<1x8x16x112xf32> to vector<8x16x112xf32>
    %472 = vector.shape_cast %469 : vector<1x112xf32> to vector<1x1x112xf32>
    %473 = vector.broadcast %472 : vector<1x1x112xf32> to vector<8x16x112xf32>
    %474 = arith.mulf %471, %473 : vector<8x16x112xf32>
    %475 = arith.addf %467, %474 : vector<8x16x112xf32>
    %c1_441 = arith.constant 1 : index
    %c0_442 = arith.constant 0 : index
    %c3_443 = arith.constant 3 : index
    %c0_444 = arith.constant 0 : index
    %476 = vector.load %arg2[%c1_441, %c0_442, %c3_443, %c0_444] : memref<2x7x7x112xf32, #tpu.memory_space<vmem>>, vector<1x1x1x112xf32>
    %477 = vector.shape_cast %476 : vector<1x1x1x112xf32> to vector<1x112xf32>
    %c1_445 = arith.constant 1 : index
    %c0_446 = arith.constant 0 : index
    %c0_447 = arith.constant 0 : index
    %c0_448 = arith.constant 0 : index
    %478 = vector.load %arg4[%c1_445, %c0_446, %c0_447, %c0_448] : memref<2x14x16x112xf32, #tpu.memory_space<vmem>>, vector<1x8x16x112xf32>
    %479 = vector.shape_cast %478 : vector<1x8x16x112xf32> to vector<8x16x112xf32>
    %480 = vector.shape_cast %477 : vector<1x112xf32> to vector<1x1x112xf32>
    %481 = vector.broadcast %480 : vector<1x1x112xf32> to vector<8x16x112xf32>
    %482 = arith.mulf %479, %481 : vector<8x16x112xf32>
    %483 = arith.addf %475, %482 : vector<8x16x112xf32>
    %c1_449 = arith.constant 1 : index
    %c1_450 = arith.constant 1 : index
    %c3_451 = arith.constant 3 : index
    %c0_452 = arith.constant 0 : index
    %484 = vector.load %arg2[%c1_449, %c1_450, %c3_451, %c0_452] : memref<2x7x7x112xf32, #tpu.memory_space<vmem>>, vector<1x1x1x112xf32>
    %485 = vector.shape_cast %484 : vector<1x1x1x112xf32> to vector<1x112xf32>
    %c1_453 = arith.constant 1 : index
    %c1_454 = arith.constant 1 : index
    %c0_455 = arith.constant 0 : index
    %c0_456 = arith.constant 0 : index
    %486 = vector.load %arg4[%c1_453, %c1_454, %c0_455, %c0_456] : memref<2x14x16x112xf32, #tpu.memory_space<vmem>>, vector<1x8x16x112xf32>
    %487 = vector.shape_cast %486 : vector<1x8x16x112xf32> to vector<8x16x112xf32>
    %488 = vector.shape_cast %485 : vector<1x112xf32> to vector<1x1x112xf32>
    %489 = vector.broadcast %488 : vector<1x1x112xf32> to vector<8x16x112xf32>
    %490 = arith.mulf %487, %489 : vector<8x16x112xf32>
    %491 = arith.addf %483, %490 : vector<8x16x112xf32>
    %c1_457 = arith.constant 1 : index
    %c2_458 = arith.constant 2 : index
    %c3_459 = arith.constant 3 : index
    %c0_460 = arith.constant 0 : index
    %492 = vector.load %arg2[%c1_457, %c2_458, %c3_459, %c0_460] : memref<2x7x7x112xf32, #tpu.memory_space<vmem>>, vector<1x1x1x112xf32>
    %493 = vector.shape_cast %492 : vector<1x1x1x112xf32> to vector<1x112xf32>
    %c1_461 = arith.constant 1 : index
    %c2_462 = arith.constant 2 : index
    %c0_463 = arith.constant 0 : index
    %c0_464 = arith.constant 0 : index
    %494 = vector.load %arg4[%c1_461, %c2_462, %c0_463, %c0_464] : memref<2x14x16x112xf32, #tpu.memory_space<vmem>>, vector<1x8x16x112xf32>
    %495 = vector.shape_cast %494 : vector<1x8x16x112xf32> to vector<8x16x112xf32>
    %496 = vector.shape_cast %493 : vector<1x112xf32> to vector<1x1x112xf32>
    %497 = vector.broadcast %496 : vector<1x1x112xf32> to vector<8x16x112xf32>
    %498 = arith.mulf %495, %497 : vector<8x16x112xf32>
    %499 = arith.addf %491, %498 : vector<8x16x112xf32>
    %c1_465 = arith.constant 1 : index
    %c3_466 = arith.constant 3 : index
    %c3_467 = arith.constant 3 : index
    %c0_468 = arith.constant 0 : index
    %500 = vector.load %arg2[%c1_465, %c3_466, %c3_467, %c0_468] : memref<2x7x7x112xf32, #tpu.memory_space<vmem>>, vector<1x1x1x112xf32>
    %501 = vector.shape_cast %500 : vector<1x1x1x112xf32> to vector<1x112xf32>
    %c1_469 = arith.constant 1 : index
    %c3_470 = arith.constant 3 : index
    %c0_471 = arith.constant 0 : index
    %c0_472 = arith.constant 0 : index
    %502 = vector.load %arg4[%c1_469, %c3_470, %c0_471, %c0_472] : memref<2x14x16x112xf32, #tpu.memory_space<vmem>>, vector<1x8x16x112xf32>
    %503 = vector.shape_cast %502 : vector<1x8x16x112xf32> to vector<8x16x112xf32>
    %504 = vector.shape_cast %501 : vector<1x112xf32> to vector<1x1x112xf32>
    %505 = vector.broadcast %504 : vector<1x1x112xf32> to vector<8x16x112xf32>
    %506 = arith.mulf %503, %505 : vector<8x16x112xf32>
    %507 = arith.addf %499, %506 : vector<8x16x112xf32>
    %c1_473 = arith.constant 1 : index
    %c4_474 = arith.constant 4 : index
    %c3_475 = arith.constant 3 : index
    %c0_476 = arith.constant 0 : index
    %508 = vector.load %arg2[%c1_473, %c4_474, %c3_475, %c0_476] : memref<2x7x7x112xf32, #tpu.memory_space<vmem>>, vector<1x1x1x112xf32>
    %509 = vector.shape_cast %508 : vector<1x1x1x112xf32> to vector<1x112xf32>
    %c1_477 = arith.constant 1 : index
    %c4_478 = arith.constant 4 : index
    %c0_479 = arith.constant 0 : index
    %c0_480 = arith.constant 0 : index
    %510 = vector.load %arg4[%c1_477, %c4_478, %c0_479, %c0_480] : memref<2x14x16x112xf32, #tpu.memory_space<vmem>>, vector<1x8x16x112xf32>
    %511 = vector.shape_cast %510 : vector<1x8x16x112xf32> to vector<8x16x112xf32>
    %512 = vector.shape_cast %509 : vector<1x112xf32> to vector<1x1x112xf32>
    %513 = vector.broadcast %512 : vector<1x1x112xf32> to vector<8x16x112xf32>
    %514 = arith.mulf %511, %513 : vector<8x16x112xf32>
    %515 = arith.addf %507, %514 : vector<8x16x112xf32>
    %c1_481 = arith.constant 1 : index
    %c5_482 = arith.constant 5 : index
    %c3_483 = arith.constant 3 : index
    %c0_484 = arith.constant 0 : index
    %516 = vector.load %arg2[%c1_481, %c5_482, %c3_483, %c0_484] : memref<2x7x7x112xf32, #tpu.memory_space<vmem>>, vector<1x1x1x112xf32>
    %517 = vector.shape_cast %516 : vector<1x1x1x112xf32> to vector<1x112xf32>
    %c1_485 = arith.constant 1 : index
    %c5_486 = arith.constant 5 : index
    %c0_487 = arith.constant 0 : index
    %c0_488 = arith.constant 0 : index
    %518 = vector.load %arg4[%c1_485, %c5_486, %c0_487, %c0_488] : memref<2x14x16x112xf32, #tpu.memory_space<vmem>>, vector<1x8x16x112xf32>
    %519 = vector.shape_cast %518 : vector<1x8x16x112xf32> to vector<8x16x112xf32>
    %520 = vector.shape_cast %517 : vector<1x112xf32> to vector<1x1x112xf32>
    %521 = vector.broadcast %520 : vector<1x1x112xf32> to vector<8x16x112xf32>
    %522 = arith.mulf %519, %521 : vector<8x16x112xf32>
    %523 = arith.addf %515, %522 : vector<8x16x112xf32>
    %c1_489 = arith.constant 1 : index
    %c6_490 = arith.constant 6 : index
    %c3_491 = arith.constant 3 : index
    %c0_492 = arith.constant 0 : index
    %524 = vector.load %arg2[%c1_489, %c6_490, %c3_491, %c0_492] : memref<2x7x7x112xf32, #tpu.memory_space<vmem>>, vector<1x1x1x112xf32>
    %525 = vector.shape_cast %524 : vector<1x1x1x112xf32> to vector<1x112xf32>
    %c1_493 = arith.constant 1 : index
    %c6_494 = arith.constant 6 : index
    %c0_495 = arith.constant 0 : index
    %c0_496 = arith.constant 0 : index
    %526 = vector.load %arg4[%c1_493, %c6_494, %c0_495, %c0_496] : memref<2x14x16x112xf32, #tpu.memory_space<vmem>>, vector<1x8x16x112xf32>
    %527 = vector.shape_cast %526 : vector<1x8x16x112xf32> to vector<8x16x112xf32>
    %528 = vector.shape_cast %525 : vector<1x112xf32> to vector<1x1x112xf32>
    %529 = vector.broadcast %528 : vector<1x1x112xf32> to vector<8x16x112xf32>
    %530 = arith.mulf %527, %529 : vector<8x16x112xf32>
    %531 = arith.addf %523, %530 : vector<8x16x112xf32>
    %532 = arith.addf %420, %531 : vector<8x16x112xf32>
    %c0_497 = arith.constant 0 : index
    %c0_498 = arith.constant 0 : index
    %c4_499 = arith.constant 4 : index
    %c0_500 = arith.constant 0 : index
    %533 = vector.load %arg2[%c0_497, %c0_498, %c4_499, %c0_500] : memref<2x7x7x112xf32, #tpu.memory_space<vmem>>, vector<1x1x1x112xf32>
    %534 = vector.shape_cast %533 : vector<1x1x1x112xf32> to vector<1x112xf32>
    %c0_501 = arith.constant 0 : index
    %c0_502 = arith.constant 0 : index
    %c0_503 = arith.constant 0 : index
    %c0_504 = arith.constant 0 : index
    %535 = vector.load %arg4[%c0_501, %c0_502, %c0_503, %c0_504] : memref<2x14x16x112xf32, #tpu.memory_space<vmem>>, vector<1x8x16x112xf32>
    %536 = vector.shape_cast %535 : vector<1x8x16x112xf32> to vector<8x16x112xf32>
    %537 = vector.shape_cast %534 : vector<1x112xf32> to vector<1x1x112xf32>
    %538 = vector.broadcast %537 : vector<1x1x112xf32> to vector<8x16x112xf32>
    %539 = arith.mulf %536, %538 : vector<8x16x112xf32>
    %c0_505 = arith.constant 0 : index
    %c1_506 = arith.constant 1 : index
    %c4_507 = arith.constant 4 : index
    %c0_508 = arith.constant 0 : index
    %540 = vector.load %arg2[%c0_505, %c1_506, %c4_507, %c0_508] : memref<2x7x7x112xf32, #tpu.memory_space<vmem>>, vector<1x1x1x112xf32>
    %541 = vector.shape_cast %540 : vector<1x1x1x112xf32> to vector<1x112xf32>
    %c0_509 = arith.constant 0 : index
    %c1_510 = arith.constant 1 : index
    %c0_511 = arith.constant 0 : index
    %c0_512 = arith.constant 0 : index
    %542 = vector.load %arg4[%c0_509, %c1_510, %c0_511, %c0_512] : memref<2x14x16x112xf32, #tpu.memory_space<vmem>>, vector<1x8x16x112xf32>
    %543 = vector.shape_cast %542 : vector<1x8x16x112xf32> to vector<8x16x112xf32>
    %544 = vector.shape_cast %541 : vector<1x112xf32> to vector<1x1x112xf32>
    %545 = vector.broadcast %544 : vector<1x1x112xf32> to vector<8x16x112xf32>
    %546 = arith.mulf %543, %545 : vector<8x16x112xf32>
    %547 = arith.addf %539, %546 : vector<8x16x112xf32>
    %c0_513 = arith.constant 0 : index
    %c2_514 = arith.constant 2 : index
    %c4_515 = arith.constant 4 : index
    %c0_516 = arith.constant 0 : index
    %548 = vector.load %arg2[%c0_513, %c2_514, %c4_515, %c0_516] : memref<2x7x7x112xf32, #tpu.memory_space<vmem>>, vector<1x1x1x112xf32>
    %549 = vector.shape_cast %548 : vector<1x1x1x112xf32> to vector<1x112xf32>
    %c0_517 = arith.constant 0 : index
    %c2_518 = arith.constant 2 : index
    %c0_519 = arith.constant 0 : index
    %c0_520 = arith.constant 0 : index
    %550 = vector.load %arg4[%c0_517, %c2_518, %c0_519, %c0_520] : memref<2x14x16x112xf32, #tpu.memory_space<vmem>>, vector<1x8x16x112xf32>
    %551 = vector.shape_cast %550 : vector<1x8x16x112xf32> to vector<8x16x112xf32>
    %552 = vector.shape_cast %549 : vector<1x112xf32> to vector<1x1x112xf32>
    %553 = vector.broadcast %552 : vector<1x1x112xf32> to vector<8x16x112xf32>
    %554 = arith.mulf %551, %553 : vector<8x16x112xf32>
    %555 = arith.addf %547, %554 : vector<8x16x112xf32>
    %c0_521 = arith.constant 0 : index
    %c3_522 = arith.constant 3 : index
    %c4_523 = arith.constant 4 : index
    %c0_524 = arith.constant 0 : index
    %556 = vector.load %arg2[%c0_521, %c3_522, %c4_523, %c0_524] : memref<2x7x7x112xf32, #tpu.memory_space<vmem>>, vector<1x1x1x112xf32>
    %557 = vector.shape_cast %556 : vector<1x1x1x112xf32> to vector<1x112xf32>
    %c0_525 = arith.constant 0 : index
    %c3_526 = arith.constant 3 : index
    %c0_527 = arith.constant 0 : index
    %c0_528 = arith.constant 0 : index
    %558 = vector.load %arg4[%c0_525, %c3_526, %c0_527, %c0_528] : memref<2x14x16x112xf32, #tpu.memory_space<vmem>>, vector<1x8x16x112xf32>
    %559 = vector.shape_cast %558 : vector<1x8x16x112xf32> to vector<8x16x112xf32>
    %560 = vector.shape_cast %557 : vector<1x112xf32> to vector<1x1x112xf32>
    %561 = vector.broadcast %560 : vector<1x1x112xf32> to vector<8x16x112xf32>
    %562 = arith.mulf %559, %561 : vector<8x16x112xf32>
    %563 = arith.addf %555, %562 : vector<8x16x112xf32>
    %c0_529 = arith.constant 0 : index
    %c4_530 = arith.constant 4 : index
    %c4_531 = arith.constant 4 : index
    %c0_532 = arith.constant 0 : index
    %564 = vector.load %arg2[%c0_529, %c4_530, %c4_531, %c0_532] : memref<2x7x7x112xf32, #tpu.memory_space<vmem>>, vector<1x1x1x112xf32>
    %565 = vector.shape_cast %564 : vector<1x1x1x112xf32> to vector<1x112xf32>
    %c0_533 = arith.constant 0 : index
    %c4_534 = arith.constant 4 : index
    %c0_535 = arith.constant 0 : index
    %c0_536 = arith.constant 0 : index
    %566 = vector.load %arg4[%c0_533, %c4_534, %c0_535, %c0_536] : memref<2x14x16x112xf32, #tpu.memory_space<vmem>>, vector<1x8x16x112xf32>
    %567 = vector.shape_cast %566 : vector<1x8x16x112xf32> to vector<8x16x112xf32>
    %568 = vector.shape_cast %565 : vector<1x112xf32> to vector<1x1x112xf32>
    %569 = vector.broadcast %568 : vector<1x1x112xf32> to vector<8x16x112xf32>
    %570 = arith.mulf %567, %569 : vector<8x16x112xf32>
    %571 = arith.addf %563, %570 : vector<8x16x112xf32>
    %c0_537 = arith.constant 0 : index
    %c5_538 = arith.constant 5 : index
    %c4_539 = arith.constant 4 : index
    %c0_540 = arith.constant 0 : index
    %572 = vector.load %arg2[%c0_537, %c5_538, %c4_539, %c0_540] : memref<2x7x7x112xf32, #tpu.memory_space<vmem>>, vector<1x1x1x112xf32>
    %573 = vector.shape_cast %572 : vector<1x1x1x112xf32> to vector<1x112xf32>
    %c0_541 = arith.constant 0 : index
    %c5_542 = arith.constant 5 : index
    %c0_543 = arith.constant 0 : index
    %c0_544 = arith.constant 0 : index
    %574 = vector.load %arg4[%c0_541, %c5_542, %c0_543, %c0_544] : memref<2x14x16x112xf32, #tpu.memory_space<vmem>>, vector<1x8x16x112xf32>
    %575 = vector.shape_cast %574 : vector<1x8x16x112xf32> to vector<8x16x112xf32>
    %576 = vector.shape_cast %573 : vector<1x112xf32> to vector<1x1x112xf32>
    %577 = vector.broadcast %576 : vector<1x1x112xf32> to vector<8x16x112xf32>
    %578 = arith.mulf %575, %577 : vector<8x16x112xf32>
    %579 = arith.addf %571, %578 : vector<8x16x112xf32>
    %c0_545 = arith.constant 0 : index
    %c6_546 = arith.constant 6 : index
    %c4_547 = arith.constant 4 : index
    %c0_548 = arith.constant 0 : index
    %580 = vector.load %arg2[%c0_545, %c6_546, %c4_547, %c0_548] : memref<2x7x7x112xf32, #tpu.memory_space<vmem>>, vector<1x1x1x112xf32>
    %581 = vector.shape_cast %580 : vector<1x1x1x112xf32> to vector<1x112xf32>
    %c0_549 = arith.constant 0 : index
    %c6_550 = arith.constant 6 : index
    %c0_551 = arith.constant 0 : index
    %c0_552 = arith.constant 0 : index
    %582 = vector.load %arg4[%c0_549, %c6_550, %c0_551, %c0_552] : memref<2x14x16x112xf32, #tpu.memory_space<vmem>>, vector<1x8x16x112xf32>
    %583 = vector.shape_cast %582 : vector<1x8x16x112xf32> to vector<8x16x112xf32>
    %584 = vector.shape_cast %581 : vector<1x112xf32> to vector<1x1x112xf32>
    %585 = vector.broadcast %584 : vector<1x1x112xf32> to vector<8x16x112xf32>
    %586 = arith.mulf %583, %585 : vector<8x16x112xf32>
    %587 = arith.addf %579, %586 : vector<8x16x112xf32>
    %c1_553 = arith.constant 1 : index
    %c0_554 = arith.constant 0 : index
    %c4_555 = arith.constant 4 : index
    %c0_556 = arith.constant 0 : index
    %588 = vector.load %arg2[%c1_553, %c0_554, %c4_555, %c0_556] : memref<2x7x7x112xf32, #tpu.memory_space<vmem>>, vector<1x1x1x112xf32>
    %589 = vector.shape_cast %588 : vector<1x1x1x112xf32> to vector<1x112xf32>
    %c1_557 = arith.constant 1 : index
    %c0_558 = arith.constant 0 : index
    %c0_559 = arith.constant 0 : index
    %c0_560 = arith.constant 0 : index
    %590 = vector.load %arg4[%c1_557, %c0_558, %c0_559, %c0_560] : memref<2x14x16x112xf32, #tpu.memory_space<vmem>>, vector<1x8x16x112xf32>
    %591 = vector.shape_cast %590 : vector<1x8x16x112xf32> to vector<8x16x112xf32>
    %592 = vector.shape_cast %589 : vector<1x112xf32> to vector<1x1x112xf32>
    %593 = vector.broadcast %592 : vector<1x1x112xf32> to vector<8x16x112xf32>
    %594 = arith.mulf %591, %593 : vector<8x16x112xf32>
    %595 = arith.addf %587, %594 : vector<8x16x112xf32>
    %c1_561 = arith.constant 1 : index
    %c1_562 = arith.constant 1 : index
    %c4_563 = arith.constant 4 : index
    %c0_564 = arith.constant 0 : index
    %596 = vector.load %arg2[%c1_561, %c1_562, %c4_563, %c0_564] : memref<2x7x7x112xf32, #tpu.memory_space<vmem>>, vector<1x1x1x112xf32>
    %597 = vector.shape_cast %596 : vector<1x1x1x112xf32> to vector<1x112xf32>
    %c1_565 = arith.constant 1 : index
    %c1_566 = arith.constant 1 : index
    %c0_567 = arith.constant 0 : index
    %c0_568 = arith.constant 0 : index
    %598 = vector.load %arg4[%c1_565, %c1_566, %c0_567, %c0_568] : memref<2x14x16x112xf32, #tpu.memory_space<vmem>>, vector<1x8x16x112xf32>
    %599 = vector.shape_cast %598 : vector<1x8x16x112xf32> to vector<8x16x112xf32>
    %600 = vector.shape_cast %597 : vector<1x112xf32> to vector<1x1x112xf32>
    %601 = vector.broadcast %600 : vector<1x1x112xf32> to vector<8x16x112xf32>
    %602 = arith.mulf %599, %601 : vector<8x16x112xf32>
    %603 = arith.addf %595, %602 : vector<8x16x112xf32>
    %c1_569 = arith.constant 1 : index
    %c2_570 = arith.constant 2 : index
    %c4_571 = arith.constant 4 : index
    %c0_572 = arith.constant 0 : index
    %604 = vector.load %arg2[%c1_569, %c2_570, %c4_571, %c0_572] : memref<2x7x7x112xf32, #tpu.memory_space<vmem>>, vector<1x1x1x112xf32>
    %605 = vector.shape_cast %604 : vector<1x1x1x112xf32> to vector<1x112xf32>
    %c1_573 = arith.constant 1 : index
    %c2_574 = arith.constant 2 : index
    %c0_575 = arith.constant 0 : index
    %c0_576 = arith.constant 0 : index
    %606 = vector.load %arg4[%c1_573, %c2_574, %c0_575, %c0_576] : memref<2x14x16x112xf32, #tpu.memory_space<vmem>>, vector<1x8x16x112xf32>
    %607 = vector.shape_cast %606 : vector<1x8x16x112xf32> to vector<8x16x112xf32>
    %608 = vector.shape_cast %605 : vector<1x112xf32> to vector<1x1x112xf32>
    %609 = vector.broadcast %608 : vector<1x1x112xf32> to vector<8x16x112xf32>
    %610 = arith.mulf %607, %609 : vector<8x16x112xf32>
    %611 = arith.addf %603, %610 : vector<8x16x112xf32>
    %c1_577 = arith.constant 1 : index
    %c3_578 = arith.constant 3 : index
    %c4_579 = arith.constant 4 : index
    %c0_580 = arith.constant 0 : index
    %612 = vector.load %arg2[%c1_577, %c3_578, %c4_579, %c0_580] : memref<2x7x7x112xf32, #tpu.memory_space<vmem>>, vector<1x1x1x112xf32>
    %613 = vector.shape_cast %612 : vector<1x1x1x112xf32> to vector<1x112xf32>
    %c1_581 = arith.constant 1 : index
    %c3_582 = arith.constant 3 : index
    %c0_583 = arith.constant 0 : index
    %c0_584 = arith.constant 0 : index
    %614 = vector.load %arg4[%c1_581, %c3_582, %c0_583, %c0_584] : memref<2x14x16x112xf32, #tpu.memory_space<vmem>>, vector<1x8x16x112xf32>
    %615 = vector.shape_cast %614 : vector<1x8x16x112xf32> to vector<8x16x112xf32>
    %616 = vector.shape_cast %613 : vector<1x112xf32> to vector<1x1x112xf32>
    %617 = vector.broadcast %616 : vector<1x1x112xf32> to vector<8x16x112xf32>
    %618 = arith.mulf %615, %617 : vector<8x16x112xf32>
    %619 = arith.addf %611, %618 : vector<8x16x112xf32>
    %c1_585 = arith.constant 1 : index
    %c4_586 = arith.constant 4 : index
    %c4_587 = arith.constant 4 : index
    %c0_588 = arith.constant 0 : index
    %620 = vector.load %arg2[%c1_585, %c4_586, %c4_587, %c0_588] : memref<2x7x7x112xf32, #tpu.memory_space<vmem>>, vector<1x1x1x112xf32>
    %621 = vector.shape_cast %620 : vector<1x1x1x112xf32> to vector<1x112xf32>
    %c1_589 = arith.constant 1 : index
    %c4_590 = arith.constant 4 : index
    %c0_591 = arith.constant 0 : index
    %c0_592 = arith.constant 0 : index
    %622 = vector.load %arg4[%c1_589, %c4_590, %c0_591, %c0_592] : memref<2x14x16x112xf32, #tpu.memory_space<vmem>>, vector<1x8x16x112xf32>
    %623 = vector.shape_cast %622 : vector<1x8x16x112xf32> to vector<8x16x112xf32>
    %624 = vector.shape_cast %621 : vector<1x112xf32> to vector<1x1x112xf32>
    %625 = vector.broadcast %624 : vector<1x1x112xf32> to vector<8x16x112xf32>
    %626 = arith.mulf %623, %625 : vector<8x16x112xf32>
    %627 = arith.addf %619, %626 : vector<8x16x112xf32>
    %c1_593 = arith.constant 1 : index
    %c5_594 = arith.constant 5 : index
    %c4_595 = arith.constant 4 : index
    %c0_596 = arith.constant 0 : index
    %628 = vector.load %arg2[%c1_593, %c5_594, %c4_595, %c0_596] : memref<2x7x7x112xf32, #tpu.memory_space<vmem>>, vector<1x1x1x112xf32>
    %629 = vector.shape_cast %628 : vector<1x1x1x112xf32> to vector<1x112xf32>
    %c1_597 = arith.constant 1 : index
    %c5_598 = arith.constant 5 : index
    %c0_599 = arith.constant 0 : index
    %c0_600 = arith.constant 0 : index
    %630 = vector.load %arg4[%c1_597, %c5_598, %c0_599, %c0_600] : memref<2x14x16x112xf32, #tpu.memory_space<vmem>>, vector<1x8x16x112xf32>
    %631 = vector.shape_cast %630 : vector<1x8x16x112xf32> to vector<8x16x112xf32>
    %632 = vector.shape_cast %629 : vector<1x112xf32> to vector<1x1x112xf32>
    %633 = vector.broadcast %632 : vector<1x1x112xf32> to vector<8x16x112xf32>
    %634 = arith.mulf %631, %633 : vector<8x16x112xf32>
    %635 = arith.addf %627, %634 : vector<8x16x112xf32>
    %c1_601 = arith.constant 1 : index
    %c6_602 = arith.constant 6 : index
    %c4_603 = arith.constant 4 : index
    %c0_604 = arith.constant 0 : index
    %636 = vector.load %arg2[%c1_601, %c6_602, %c4_603, %c0_604] : memref<2x7x7x112xf32, #tpu.memory_space<vmem>>, vector<1x1x1x112xf32>
    %637 = vector.shape_cast %636 : vector<1x1x1x112xf32> to vector<1x112xf32>
    %c1_605 = arith.constant 1 : index
    %c6_606 = arith.constant 6 : index
    %c0_607 = arith.constant 0 : index
    %c0_608 = arith.constant 0 : index
    %638 = vector.load %arg4[%c1_605, %c6_606, %c0_607, %c0_608] : memref<2x14x16x112xf32, #tpu.memory_space<vmem>>, vector<1x8x16x112xf32>
    %639 = vector.shape_cast %638 : vector<1x8x16x112xf32> to vector<8x16x112xf32>
    %640 = vector.shape_cast %637 : vector<1x112xf32> to vector<1x1x112xf32>
    %641 = vector.broadcast %640 : vector<1x1x112xf32> to vector<8x16x112xf32>
    %642 = arith.mulf %639, %641 : vector<8x16x112xf32>
    %643 = arith.addf %635, %642 : vector<8x16x112xf32>
    %644 = vector.extract_strided_slice %643 {offsets = [0, 1, 0], sizes = [8, 15, 112], strides = [1, 1, 1]} : vector<8x16x112xf32> to vector<8x15x112xf32>
    %cst_609 = arith.constant 0.000000e+00 : f32
    %645 = vector.broadcast %cst_609 : f32 to vector<8x1x112xf32>
    %646 = tpu.concatenate %644, %645 in 1 : vector<8x15x112xf32>, vector<8x1x112xf32> -> vector<8x16x112xf32>
    %647 = arith.addf %532, %646 : vector<8x16x112xf32>
    %c0_610 = arith.constant 0 : index
    %c0_611 = arith.constant 0 : index
    %c5_612 = arith.constant 5 : index
    %c0_613 = arith.constant 0 : index
    %648 = vector.load %arg2[%c0_610, %c0_611, %c5_612, %c0_613] : memref<2x7x7x112xf32, #tpu.memory_space<vmem>>, vector<1x1x1x112xf32>
    %649 = vector.shape_cast %648 : vector<1x1x1x112xf32> to vector<1x112xf32>
    %c0_614 = arith.constant 0 : index
    %c0_615 = arith.constant 0 : index
    %c0_616 = arith.constant 0 : index
    %c0_617 = arith.constant 0 : index
    %650 = vector.load %arg4[%c0_614, %c0_615, %c0_616, %c0_617] : memref<2x14x16x112xf32, #tpu.memory_space<vmem>>, vector<1x8x16x112xf32>
    %651 = vector.shape_cast %650 : vector<1x8x16x112xf32> to vector<8x16x112xf32>
    %652 = vector.shape_cast %649 : vector<1x112xf32> to vector<1x1x112xf32>
    %653 = vector.broadcast %652 : vector<1x1x112xf32> to vector<8x16x112xf32>
    %654 = arith.mulf %651, %653 : vector<8x16x112xf32>
    %c0_618 = arith.constant 0 : index
    %c1_619 = arith.constant 1 : index
    %c5_620 = arith.constant 5 : index
    %c0_621 = arith.constant 0 : index
    %655 = vector.load %arg2[%c0_618, %c1_619, %c5_620, %c0_621] : memref<2x7x7x112xf32, #tpu.memory_space<vmem>>, vector<1x1x1x112xf32>
    %656 = vector.shape_cast %655 : vector<1x1x1x112xf32> to vector<1x112xf32>
    %c0_622 = arith.constant 0 : index
    %c1_623 = arith.constant 1 : index
    %c0_624 = arith.constant 0 : index
    %c0_625 = arith.constant 0 : index
    %657 = vector.load %arg4[%c0_622, %c1_623, %c0_624, %c0_625] : memref<2x14x16x112xf32, #tpu.memory_space<vmem>>, vector<1x8x16x112xf32>
    %658 = vector.shape_cast %657 : vector<1x8x16x112xf32> to vector<8x16x112xf32>
    %659 = vector.shape_cast %656 : vector<1x112xf32> to vector<1x1x112xf32>
    %660 = vector.broadcast %659 : vector<1x1x112xf32> to vector<8x16x112xf32>
    %661 = arith.mulf %658, %660 : vector<8x16x112xf32>
    %662 = arith.addf %654, %661 : vector<8x16x112xf32>
    %c0_626 = arith.constant 0 : index
    %c2_627 = arith.constant 2 : index
    %c5_628 = arith.constant 5 : index
    %c0_629 = arith.constant 0 : index
    %663 = vector.load %arg2[%c0_626, %c2_627, %c5_628, %c0_629] : memref<2x7x7x112xf32, #tpu.memory_space<vmem>>, vector<1x1x1x112xf32>
    %664 = vector.shape_cast %663 : vector<1x1x1x112xf32> to vector<1x112xf32>
    %c0_630 = arith.constant 0 : index
    %c2_631 = arith.constant 2 : index
    %c0_632 = arith.constant 0 : index
    %c0_633 = arith.constant 0 : index
    %665 = vector.load %arg4[%c0_630, %c2_631, %c0_632, %c0_633] : memref<2x14x16x112xf32, #tpu.memory_space<vmem>>, vector<1x8x16x112xf32>
    %666 = vector.shape_cast %665 : vector<1x8x16x112xf32> to vector<8x16x112xf32>
    %667 = vector.shape_cast %664 : vector<1x112xf32> to vector<1x1x112xf32>
    %668 = vector.broadcast %667 : vector<1x1x112xf32> to vector<8x16x112xf32>
    %669 = arith.mulf %666, %668 : vector<8x16x112xf32>
    %670 = arith.addf %662, %669 : vector<8x16x112xf32>
    %c0_634 = arith.constant 0 : index
    %c3_635 = arith.constant 3 : index
    %c5_636 = arith.constant 5 : index
    %c0_637 = arith.constant 0 : index
    %671 = vector.load %arg2[%c0_634, %c3_635, %c5_636, %c0_637] : memref<2x7x7x112xf32, #tpu.memory_space<vmem>>, vector<1x1x1x112xf32>
    %672 = vector.shape_cast %671 : vector<1x1x1x112xf32> to vector<1x112xf32>
    %c0_638 = arith.constant 0 : index
    %c3_639 = arith.constant 3 : index
    %c0_640 = arith.constant 0 : index
    %c0_641 = arith.constant 0 : index
    %673 = vector.load %arg4[%c0_638, %c3_639, %c0_640, %c0_641] : memref<2x14x16x112xf32, #tpu.memory_space<vmem>>, vector<1x8x16x112xf32>
    %674 = vector.shape_cast %673 : vector<1x8x16x112xf32> to vector<8x16x112xf32>
    %675 = vector.shape_cast %672 : vector<1x112xf32> to vector<1x1x112xf32>
    %676 = vector.broadcast %675 : vector<1x1x112xf32> to vector<8x16x112xf32>
    %677 = arith.mulf %674, %676 : vector<8x16x112xf32>
    %678 = arith.addf %670, %677 : vector<8x16x112xf32>
    %c0_642 = arith.constant 0 : index
    %c4_643 = arith.constant 4 : index
    %c5_644 = arith.constant 5 : index
    %c0_645 = arith.constant 0 : index
    %679 = vector.load %arg2[%c0_642, %c4_643, %c5_644, %c0_645] : memref<2x7x7x112xf32, #tpu.memory_space<vmem>>, vector<1x1x1x112xf32>
    %680 = vector.shape_cast %679 : vector<1x1x1x112xf32> to vector<1x112xf32>
    %c0_646 = arith.constant 0 : index
    %c4_647 = arith.constant 4 : index
    %c0_648 = arith.constant 0 : index
    %c0_649 = arith.constant 0 : index
    %681 = vector.load %arg4[%c0_646, %c4_647, %c0_648, %c0_649] : memref<2x14x16x112xf32, #tpu.memory_space<vmem>>, vector<1x8x16x112xf32>
    %682 = vector.shape_cast %681 : vector<1x8x16x112xf32> to vector<8x16x112xf32>
    %683 = vector.shape_cast %680 : vector<1x112xf32> to vector<1x1x112xf32>
    %684 = vector.broadcast %683 : vector<1x1x112xf32> to vector<8x16x112xf32>
    %685 = arith.mulf %682, %684 : vector<8x16x112xf32>
    %686 = arith.addf %678, %685 : vector<8x16x112xf32>
    %c0_650 = arith.constant 0 : index
    %c5_651 = arith.constant 5 : index
    %c5_652 = arith.constant 5 : index
    %c0_653 = arith.constant 0 : index
    %687 = vector.load %arg2[%c0_650, %c5_651, %c5_652, %c0_653] : memref<2x7x7x112xf32, #tpu.memory_space<vmem>>, vector<1x1x1x112xf32>
    %688 = vector.shape_cast %687 : vector<1x1x1x112xf32> to vector<1x112xf32>
    %c0_654 = arith.constant 0 : index
    %c5_655 = arith.constant 5 : index
    %c0_656 = arith.constant 0 : index
    %c0_657 = arith.constant 0 : index
    %689 = vector.load %arg4[%c0_654, %c5_655, %c0_656, %c0_657] : memref<2x14x16x112xf32, #tpu.memory_space<vmem>>, vector<1x8x16x112xf32>
    %690 = vector.shape_cast %689 : vector<1x8x16x112xf32> to vector<8x16x112xf32>
    %691 = vector.shape_cast %688 : vector<1x112xf32> to vector<1x1x112xf32>
    %692 = vector.broadcast %691 : vector<1x1x112xf32> to vector<8x16x112xf32>
    %693 = arith.mulf %690, %692 : vector<8x16x112xf32>
    %694 = arith.addf %686, %693 : vector<8x16x112xf32>
    %c0_658 = arith.constant 0 : index
    %c6_659 = arith.constant 6 : index
    %c5_660 = arith.constant 5 : index
    %c0_661 = arith.constant 0 : index
    %695 = vector.load %arg2[%c0_658, %c6_659, %c5_660, %c0_661] : memref<2x7x7x112xf32, #tpu.memory_space<vmem>>, vector<1x1x1x112xf32>
    %696 = vector.shape_cast %695 : vector<1x1x1x112xf32> to vector<1x112xf32>
    %c0_662 = arith.constant 0 : index
    %c6_663 = arith.constant 6 : index
    %c0_664 = arith.constant 0 : index
    %c0_665 = arith.constant 0 : index
    %697 = vector.load %arg4[%c0_662, %c6_663, %c0_664, %c0_665] : memref<2x14x16x112xf32, #tpu.memory_space<vmem>>, vector<1x8x16x112xf32>
    %698 = vector.shape_cast %697 : vector<1x8x16x112xf32> to vector<8x16x112xf32>
    %699 = vector.shape_cast %696 : vector<1x112xf32> to vector<1x1x112xf32>
    %700 = vector.broadcast %699 : vector<1x1x112xf32> to vector<8x16x112xf32>
    %701 = arith.mulf %698, %700 : vector<8x16x112xf32>
    %702 = arith.addf %694, %701 : vector<8x16x112xf32>
    %c1_666 = arith.constant 1 : index
    %c0_667 = arith.constant 0 : index
    %c5_668 = arith.constant 5 : index
    %c0_669 = arith.constant 0 : index
    %703 = vector.load %arg2[%c1_666, %c0_667, %c5_668, %c0_669] : memref<2x7x7x112xf32, #tpu.memory_space<vmem>>, vector<1x1x1x112xf32>
    %704 = vector.shape_cast %703 : vector<1x1x1x112xf32> to vector<1x112xf32>
    %c1_670 = arith.constant 1 : index
    %c0_671 = arith.constant 0 : index
    %c0_672 = arith.constant 0 : index
    %c0_673 = arith.constant 0 : index
    %705 = vector.load %arg4[%c1_670, %c0_671, %c0_672, %c0_673] : memref<2x14x16x112xf32, #tpu.memory_space<vmem>>, vector<1x8x16x112xf32>
    %706 = vector.shape_cast %705 : vector<1x8x16x112xf32> to vector<8x16x112xf32>
    %707 = vector.shape_cast %704 : vector<1x112xf32> to vector<1x1x112xf32>
    %708 = vector.broadcast %707 : vector<1x1x112xf32> to vector<8x16x112xf32>
    %709 = arith.mulf %706, %708 : vector<8x16x112xf32>
    %710 = arith.addf %702, %709 : vector<8x16x112xf32>
    %c1_674 = arith.constant 1 : index
    %c1_675 = arith.constant 1 : index
    %c5_676 = arith.constant 5 : index
    %c0_677 = arith.constant 0 : index
    %711 = vector.load %arg2[%c1_674, %c1_675, %c5_676, %c0_677] : memref<2x7x7x112xf32, #tpu.memory_space<vmem>>, vector<1x1x1x112xf32>
    %712 = vector.shape_cast %711 : vector<1x1x1x112xf32> to vector<1x112xf32>
    %c1_678 = arith.constant 1 : index
    %c1_679 = arith.constant 1 : index
    %c0_680 = arith.constant 0 : index
    %c0_681 = arith.constant 0 : index
    %713 = vector.load %arg4[%c1_678, %c1_679, %c0_680, %c0_681] : memref<2x14x16x112xf32, #tpu.memory_space<vmem>>, vector<1x8x16x112xf32>
    %714 = vector.shape_cast %713 : vector<1x8x16x112xf32> to vector<8x16x112xf32>
    %715 = vector.shape_cast %712 : vector<1x112xf32> to vector<1x1x112xf32>
    %716 = vector.broadcast %715 : vector<1x1x112xf32> to vector<8x16x112xf32>
    %717 = arith.mulf %714, %716 : vector<8x16x112xf32>
    %718 = arith.addf %710, %717 : vector<8x16x112xf32>
    %c1_682 = arith.constant 1 : index
    %c2_683 = arith.constant 2 : index
    %c5_684 = arith.constant 5 : index
    %c0_685 = arith.constant 0 : index
    %719 = vector.load %arg2[%c1_682, %c2_683, %c5_684, %c0_685] : memref<2x7x7x112xf32, #tpu.memory_space<vmem>>, vector<1x1x1x112xf32>
    %720 = vector.shape_cast %719 : vector<1x1x1x112xf32> to vector<1x112xf32>
    %c1_686 = arith.constant 1 : index
    %c2_687 = arith.constant 2 : index
    %c0_688 = arith.constant 0 : index
    %c0_689 = arith.constant 0 : index
    %721 = vector.load %arg4[%c1_686, %c2_687, %c0_688, %c0_689] : memref<2x14x16x112xf32, #tpu.memory_space<vmem>>, vector<1x8x16x112xf32>
    %722 = vector.shape_cast %721 : vector<1x8x16x112xf32> to vector<8x16x112xf32>
    %723 = vector.shape_cast %720 : vector<1x112xf32> to vector<1x1x112xf32>
    %724 = vector.broadcast %723 : vector<1x1x112xf32> to vector<8x16x112xf32>
    %725 = arith.mulf %722, %724 : vector<8x16x112xf32>
    %726 = arith.addf %718, %725 : vector<8x16x112xf32>
    %c1_690 = arith.constant 1 : index
    %c3_691 = arith.constant 3 : index
    %c5_692 = arith.constant 5 : index
    %c0_693 = arith.constant 0 : index
    %727 = vector.load %arg2[%c1_690, %c3_691, %c5_692, %c0_693] : memref<2x7x7x112xf32, #tpu.memory_space<vmem>>, vector<1x1x1x112xf32>
    %728 = vector.shape_cast %727 : vector<1x1x1x112xf32> to vector<1x112xf32>
    %c1_694 = arith.constant 1 : index
    %c3_695 = arith.constant 3 : index
    %c0_696 = arith.constant 0 : index
    %c0_697 = arith.constant 0 : index
    %729 = vector.load %arg4[%c1_694, %c3_695, %c0_696, %c0_697] : memref<2x14x16x112xf32, #tpu.memory_space<vmem>>, vector<1x8x16x112xf32>
    %730 = vector.shape_cast %729 : vector<1x8x16x112xf32> to vector<8x16x112xf32>
    %731 = vector.shape_cast %728 : vector<1x112xf32> to vector<1x1x112xf32>
    %732 = vector.broadcast %731 : vector<1x1x112xf32> to vector<8x16x112xf32>
    %733 = arith.mulf %730, %732 : vector<8x16x112xf32>
    %734 = arith.addf %726, %733 : vector<8x16x112xf32>
    %c1_698 = arith.constant 1 : index
    %c4_699 = arith.constant 4 : index
    %c5_700 = arith.constant 5 : index
    %c0_701 = arith.constant 0 : index
    %735 = vector.load %arg2[%c1_698, %c4_699, %c5_700, %c0_701] : memref<2x7x7x112xf32, #tpu.memory_space<vmem>>, vector<1x1x1x112xf32>
    %736 = vector.shape_cast %735 : vector<1x1x1x112xf32> to vector<1x112xf32>
    %c1_702 = arith.constant 1 : index
    %c4_703 = arith.constant 4 : index
    %c0_704 = arith.constant 0 : index
    %c0_705 = arith.constant 0 : index
    %737 = vector.load %arg4[%c1_702, %c4_703, %c0_704, %c0_705] : memref<2x14x16x112xf32, #tpu.memory_space<vmem>>, vector<1x8x16x112xf32>
    %738 = vector.shape_cast %737 : vector<1x8x16x112xf32> to vector<8x16x112xf32>
    %739 = vector.shape_cast %736 : vector<1x112xf32> to vector<1x1x112xf32>
    %740 = vector.broadcast %739 : vector<1x1x112xf32> to vector<8x16x112xf32>
    %741 = arith.mulf %738, %740 : vector<8x16x112xf32>
    %742 = arith.addf %734, %741 : vector<8x16x112xf32>
    %c1_706 = arith.constant 1 : index
    %c5_707 = arith.constant 5 : index
    %c5_708 = arith.constant 5 : index
    %c0_709 = arith.constant 0 : index
    %743 = vector.load %arg2[%c1_706, %c5_707, %c5_708, %c0_709] : memref<2x7x7x112xf32, #tpu.memory_space<vmem>>, vector<1x1x1x112xf32>
    %744 = vector.shape_cast %743 : vector<1x1x1x112xf32> to vector<1x112xf32>
    %c1_710 = arith.constant 1 : index
    %c5_711 = arith.constant 5 : index
    %c0_712 = arith.constant 0 : index
    %c0_713 = arith.constant 0 : index
    %745 = vector.load %arg4[%c1_710, %c5_711, %c0_712, %c0_713] : memref<2x14x16x112xf32, #tpu.memory_space<vmem>>, vector<1x8x16x112xf32>
    %746 = vector.shape_cast %745 : vector<1x8x16x112xf32> to vector<8x16x112xf32>
    %747 = vector.shape_cast %744 : vector<1x112xf32> to vector<1x1x112xf32>
    %748 = vector.broadcast %747 : vector<1x1x112xf32> to vector<8x16x112xf32>
    %749 = arith.mulf %746, %748 : vector<8x16x112xf32>
    %750 = arith.addf %742, %749 : vector<8x16x112xf32>
    %c1_714 = arith.constant 1 : index
    %c6_715 = arith.constant 6 : index
    %c5_716 = arith.constant 5 : index
    %c0_717 = arith.constant 0 : index
    %751 = vector.load %arg2[%c1_714, %c6_715, %c5_716, %c0_717] : memref<2x7x7x112xf32, #tpu.memory_space<vmem>>, vector<1x1x1x112xf32>
    %752 = vector.shape_cast %751 : vector<1x1x1x112xf32> to vector<1x112xf32>
    %c1_718 = arith.constant 1 : index
    %c6_719 = arith.constant 6 : index
    %c0_720 = arith.constant 0 : index
    %c0_721 = arith.constant 0 : index
    %753 = vector.load %arg4[%c1_718, %c6_719, %c0_720, %c0_721] : memref<2x14x16x112xf32, #tpu.memory_space<vmem>>, vector<1x8x16x112xf32>
    %754 = vector.shape_cast %753 : vector<1x8x16x112xf32> to vector<8x16x112xf32>
    %755 = vector.shape_cast %752 : vector<1x112xf32> to vector<1x1x112xf32>
    %756 = vector.broadcast %755 : vector<1x1x112xf32> to vector<8x16x112xf32>
    %757 = arith.mulf %754, %756 : vector<8x16x112xf32>
    %758 = arith.addf %750, %757 : vector<8x16x112xf32>
    %759 = vector.extract_strided_slice %758 {offsets = [0, 2, 0], sizes = [8, 14, 112], strides = [1, 1, 1]} : vector<8x16x112xf32> to vector<8x14x112xf32>
    %cst_722 = arith.constant 0.000000e+00 : f32
    %760 = vector.broadcast %cst_722 : f32 to vector<8x2x112xf32>
    %761 = tpu.concatenate %759, %760 in 1 : vector<8x14x112xf32>, vector<8x2x112xf32> -> vector<8x16x112xf32>
    %762 = arith.addf %647, %761 : vector<8x16x112xf32>
    %c0_723 = arith.constant 0 : index
    %c0_724 = arith.constant 0 : index
    %c6_725 = arith.constant 6 : index
    %c0_726 = arith.constant 0 : index
    %763 = vector.load %arg2[%c0_723, %c0_724, %c6_725, %c0_726] : memref<2x7x7x112xf32, #tpu.memory_space<vmem>>, vector<1x1x1x112xf32>
    %764 = vector.shape_cast %763 : vector<1x1x1x112xf32> to vector<1x112xf32>
    %c0_727 = arith.constant 0 : index
    %c0_728 = arith.constant 0 : index
    %c0_729 = arith.constant 0 : index
    %c0_730 = arith.constant 0 : index
    %765 = vector.load %arg4[%c0_727, %c0_728, %c0_729, %c0_730] : memref<2x14x16x112xf32, #tpu.memory_space<vmem>>, vector<1x8x16x112xf32>
    %766 = vector.shape_cast %765 : vector<1x8x16x112xf32> to vector<8x16x112xf32>
    %767 = vector.shape_cast %764 : vector<1x112xf32> to vector<1x1x112xf32>
    %768 = vector.broadcast %767 : vector<1x1x112xf32> to vector<8x16x112xf32>
    %769 = arith.mulf %766, %768 : vector<8x16x112xf32>
    %c0_731 = arith.constant 0 : index
    %c1_732 = arith.constant 1 : index
    %c6_733 = arith.constant 6 : index
    %c0_734 = arith.constant 0 : index
    %770 = vector.load %arg2[%c0_731, %c1_732, %c6_733, %c0_734] : memref<2x7x7x112xf32, #tpu.memory_space<vmem>>, vector<1x1x1x112xf32>
    %771 = vector.shape_cast %770 : vector<1x1x1x112xf32> to vector<1x112xf32>
    %c0_735 = arith.constant 0 : index
    %c1_736 = arith.constant 1 : index
    %c0_737 = arith.constant 0 : index
    %c0_738 = arith.constant 0 : index
    %772 = vector.load %arg4[%c0_735, %c1_736, %c0_737, %c0_738] : memref<2x14x16x112xf32, #tpu.memory_space<vmem>>, vector<1x8x16x112xf32>
    %773 = vector.shape_cast %772 : vector<1x8x16x112xf32> to vector<8x16x112xf32>
    %774 = vector.shape_cast %771 : vector<1x112xf32> to vector<1x1x112xf32>
    %775 = vector.broadcast %774 : vector<1x1x112xf32> to vector<8x16x112xf32>
    %776 = arith.mulf %773, %775 : vector<8x16x112xf32>
    %777 = arith.addf %769, %776 : vector<8x16x112xf32>
    %c0_739 = arith.constant 0 : index
    %c2_740 = arith.constant 2 : index
    %c6_741 = arith.constant 6 : index
    %c0_742 = arith.constant 0 : index
    %778 = vector.load %arg2[%c0_739, %c2_740, %c6_741, %c0_742] : memref<2x7x7x112xf32, #tpu.memory_space<vmem>>, vector<1x1x1x112xf32>
    %779 = vector.shape_cast %778 : vector<1x1x1x112xf32> to vector<1x112xf32>
    %c0_743 = arith.constant 0 : index
    %c2_744 = arith.constant 2 : index
    %c0_745 = arith.constant 0 : index
    %c0_746 = arith.constant 0 : index
    %780 = vector.load %arg4[%c0_743, %c2_744, %c0_745, %c0_746] : memref<2x14x16x112xf32, #tpu.memory_space<vmem>>, vector<1x8x16x112xf32>
    %781 = vector.shape_cast %780 : vector<1x8x16x112xf32> to vector<8x16x112xf32>
    %782 = vector.shape_cast %779 : vector<1x112xf32> to vector<1x1x112xf32>
    %783 = vector.broadcast %782 : vector<1x1x112xf32> to vector<8x16x112xf32>
    %784 = arith.mulf %781, %783 : vector<8x16x112xf32>
    %785 = arith.addf %777, %784 : vector<8x16x112xf32>
    %c0_747 = arith.constant 0 : index
    %c3_748 = arith.constant 3 : index
    %c6_749 = arith.constant 6 : index
    %c0_750 = arith.constant 0 : index
    %786 = vector.load %arg2[%c0_747, %c3_748, %c6_749, %c0_750] : memref<2x7x7x112xf32, #tpu.memory_space<vmem>>, vector<1x1x1x112xf32>
    %787 = vector.shape_cast %786 : vector<1x1x1x112xf32> to vector<1x112xf32>
    %c0_751 = arith.constant 0 : index
    %c3_752 = arith.constant 3 : index
    %c0_753 = arith.constant 0 : index
    %c0_754 = arith.constant 0 : index
    %788 = vector.load %arg4[%c0_751, %c3_752, %c0_753, %c0_754] : memref<2x14x16x112xf32, #tpu.memory_space<vmem>>, vector<1x8x16x112xf32>
    %789 = vector.shape_cast %788 : vector<1x8x16x112xf32> to vector<8x16x112xf32>
    %790 = vector.shape_cast %787 : vector<1x112xf32> to vector<1x1x112xf32>
    %791 = vector.broadcast %790 : vector<1x1x112xf32> to vector<8x16x112xf32>
    %792 = arith.mulf %789, %791 : vector<8x16x112xf32>
    %793 = arith.addf %785, %792 : vector<8x16x112xf32>
    %c0_755 = arith.constant 0 : index
    %c4_756 = arith.constant 4 : index
    %c6_757 = arith.constant 6 : index
    %c0_758 = arith.constant 0 : index
    %794 = vector.load %arg2[%c0_755, %c4_756, %c6_757, %c0_758] : memref<2x7x7x112xf32, #tpu.memory_space<vmem>>, vector<1x1x1x112xf32>
    %795 = vector.shape_cast %794 : vector<1x1x1x112xf32> to vector<1x112xf32>
    %c0_759 = arith.constant 0 : index
    %c4_760 = arith.constant 4 : index
    %c0_761 = arith.constant 0 : index
    %c0_762 = arith.constant 0 : index
    %796 = vector.load %arg4[%c0_759, %c4_760, %c0_761, %c0_762] : memref<2x14x16x112xf32, #tpu.memory_space<vmem>>, vector<1x8x16x112xf32>
    %797 = vector.shape_cast %796 : vector<1x8x16x112xf32> to vector<8x16x112xf32>
    %798 = vector.shape_cast %795 : vector<1x112xf32> to vector<1x1x112xf32>
    %799 = vector.broadcast %798 : vector<1x1x112xf32> to vector<8x16x112xf32>
    %800 = arith.mulf %797, %799 : vector<8x16x112xf32>
    %801 = arith.addf %793, %800 : vector<8x16x112xf32>
    %c0_763 = arith.constant 0 : index
    %c5_764 = arith.constant 5 : index
    %c6_765 = arith.constant 6 : index
    %c0_766 = arith.constant 0 : index
    %802 = vector.load %arg2[%c0_763, %c5_764, %c6_765, %c0_766] : memref<2x7x7x112xf32, #tpu.memory_space<vmem>>, vector<1x1x1x112xf32>
    %803 = vector.shape_cast %802 : vector<1x1x1x112xf32> to vector<1x112xf32>
    %c0_767 = arith.constant 0 : index
    %c5_768 = arith.constant 5 : index
    %c0_769 = arith.constant 0 : index
    %c0_770 = arith.constant 0 : index
    %804 = vector.load %arg4[%c0_767, %c5_768, %c0_769, %c0_770] : memref<2x14x16x112xf32, #tpu.memory_space<vmem>>, vector<1x8x16x112xf32>
    %805 = vector.shape_cast %804 : vector<1x8x16x112xf32> to vector<8x16x112xf32>
    %806 = vector.shape_cast %803 : vector<1x112xf32> to vector<1x1x112xf32>
    %807 = vector.broadcast %806 : vector<1x1x112xf32> to vector<8x16x112xf32>
    %808 = arith.mulf %805, %807 : vector<8x16x112xf32>
    %809 = arith.addf %801, %808 : vector<8x16x112xf32>
    %c0_771 = arith.constant 0 : index
    %c6_772 = arith.constant 6 : index
    %c6_773 = arith.constant 6 : index
    %c0_774 = arith.constant 0 : index
    %810 = vector.load %arg2[%c0_771, %c6_772, %c6_773, %c0_774] : memref<2x7x7x112xf32, #tpu.memory_space<vmem>>, vector<1x1x1x112xf32>
    %811 = vector.shape_cast %810 : vector<1x1x1x112xf32> to vector<1x112xf32>
    %c0_775 = arith.constant 0 : index
    %c6_776 = arith.constant 6 : index
    %c0_777 = arith.constant 0 : index
    %c0_778 = arith.constant 0 : index
    %812 = vector.load %arg4[%c0_775, %c6_776, %c0_777, %c0_778] : memref<2x14x16x112xf32, #tpu.memory_space<vmem>>, vector<1x8x16x112xf32>
    %813 = vector.shape_cast %812 : vector<1x8x16x112xf32> to vector<8x16x112xf32>
    %814 = vector.shape_cast %811 : vector<1x112xf32> to vector<1x1x112xf32>
    %815 = vector.broadcast %814 : vector<1x1x112xf32> to vector<8x16x112xf32>
    %816 = arith.mulf %813, %815 : vector<8x16x112xf32>
    %817 = arith.addf %809, %816 : vector<8x16x112xf32>
    %c1_779 = arith.constant 1 : index
    %c0_780 = arith.constant 0 : index
    %c6_781 = arith.constant 6 : index
    %c0_782 = arith.constant 0 : index
    %818 = vector.load %arg2[%c1_779, %c0_780, %c6_781, %c0_782] : memref<2x7x7x112xf32, #tpu.memory_space<vmem>>, vector<1x1x1x112xf32>
    %819 = vector.shape_cast %818 : vector<1x1x1x112xf32> to vector<1x112xf32>
    %c1_783 = arith.constant 1 : index
    %c0_784 = arith.constant 0 : index
    %c0_785 = arith.constant 0 : index
    %c0_786 = arith.constant 0 : index
    %820 = vector.load %arg4[%c1_783, %c0_784, %c0_785, %c0_786] : memref<2x14x16x112xf32, #tpu.memory_space<vmem>>, vector<1x8x16x112xf32>
    %821 = vector.shape_cast %820 : vector<1x8x16x112xf32> to vector<8x16x112xf32>
    %822 = vector.shape_cast %819 : vector<1x112xf32> to vector<1x1x112xf32>
    %823 = vector.broadcast %822 : vector<1x1x112xf32> to vector<8x16x112xf32>
    %824 = arith.mulf %821, %823 : vector<8x16x112xf32>
    %825 = arith.addf %817, %824 : vector<8x16x112xf32>
    %c1_787 = arith.constant 1 : index
    %c1_788 = arith.constant 1 : index
    %c6_789 = arith.constant 6 : index
    %c0_790 = arith.constant 0 : index
    %826 = vector.load %arg2[%c1_787, %c1_788, %c6_789, %c0_790] : memref<2x7x7x112xf32, #tpu.memory_space<vmem>>, vector<1x1x1x112xf32>
    %827 = vector.shape_cast %826 : vector<1x1x1x112xf32> to vector<1x112xf32>
    %c1_791 = arith.constant 1 : index
    %c1_792 = arith.constant 1 : index
    %c0_793 = arith.constant 0 : index
    %c0_794 = arith.constant 0 : index
    %828 = vector.load %arg4[%c1_791, %c1_792, %c0_793, %c0_794] : memref<2x14x16x112xf32, #tpu.memory_space<vmem>>, vector<1x8x16x112xf32>
    %829 = vector.shape_cast %828 : vector<1x8x16x112xf32> to vector<8x16x112xf32>
    %830 = vector.shape_cast %827 : vector<1x112xf32> to vector<1x1x112xf32>
    %831 = vector.broadcast %830 : vector<1x1x112xf32> to vector<8x16x112xf32>
    %832 = arith.mulf %829, %831 : vector<8x16x112xf32>
    %833 = arith.addf %825, %832 : vector<8x16x112xf32>
    %c1_795 = arith.constant 1 : index
    %c2_796 = arith.constant 2 : index
    %c6_797 = arith.constant 6 : index
    %c0_798 = arith.constant 0 : index
    %834 = vector.load %arg2[%c1_795, %c2_796, %c6_797, %c0_798] : memref<2x7x7x112xf32, #tpu.memory_space<vmem>>, vector<1x1x1x112xf32>
    %835 = vector.shape_cast %834 : vector<1x1x1x112xf32> to vector<1x112xf32>
    %c1_799 = arith.constant 1 : index
    %c2_800 = arith.constant 2 : index
    %c0_801 = arith.constant 0 : index
    %c0_802 = arith.constant 0 : index
    %836 = vector.load %arg4[%c1_799, %c2_800, %c0_801, %c0_802] : memref<2x14x16x112xf32, #tpu.memory_space<vmem>>, vector<1x8x16x112xf32>
    %837 = vector.shape_cast %836 : vector<1x8x16x112xf32> to vector<8x16x112xf32>
    %838 = vector.shape_cast %835 : vector<1x112xf32> to vector<1x1x112xf32>
    %839 = vector.broadcast %838 : vector<1x1x112xf32> to vector<8x16x112xf32>
    %840 = arith.mulf %837, %839 : vector<8x16x112xf32>
    %841 = arith.addf %833, %840 : vector<8x16x112xf32>
    %c1_803 = arith.constant 1 : index
    %c3_804 = arith.constant 3 : index
    %c6_805 = arith.constant 6 : index
    %c0_806 = arith.constant 0 : index
    %842 = vector.load %arg2[%c1_803, %c3_804, %c6_805, %c0_806] : memref<2x7x7x112xf32, #tpu.memory_space<vmem>>, vector<1x1x1x112xf32>
    %843 = vector.shape_cast %842 : vector<1x1x1x112xf32> to vector<1x112xf32>
    %c1_807 = arith.constant 1 : index
    %c3_808 = arith.constant 3 : index
    %c0_809 = arith.constant 0 : index
    %c0_810 = arith.constant 0 : index
    %844 = vector.load %arg4[%c1_807, %c3_808, %c0_809, %c0_810] : memref<2x14x16x112xf32, #tpu.memory_space<vmem>>, vector<1x8x16x112xf32>
    %845 = vector.shape_cast %844 : vector<1x8x16x112xf32> to vector<8x16x112xf32>
    %846 = vector.shape_cast %843 : vector<1x112xf32> to vector<1x1x112xf32>
    %847 = vector.broadcast %846 : vector<1x1x112xf32> to vector<8x16x112xf32>
    %848 = arith.mulf %845, %847 : vector<8x16x112xf32>
    %849 = arith.addf %841, %848 : vector<8x16x112xf32>
    %c1_811 = arith.constant 1 : index
    %c4_812 = arith.constant 4 : index
    %c6_813 = arith.constant 6 : index
    %c0_814 = arith.constant 0 : index
    %850 = vector.load %arg2[%c1_811, %c4_812, %c6_813, %c0_814] : memref<2x7x7x112xf32, #tpu.memory_space<vmem>>, vector<1x1x1x112xf32>
    %851 = vector.shape_cast %850 : vector<1x1x1x112xf32> to vector<1x112xf32>
    %c1_815 = arith.constant 1 : index
    %c4_816 = arith.constant 4 : index
    %c0_817 = arith.constant 0 : index
    %c0_818 = arith.constant 0 : index
    %852 = vector.load %arg4[%c1_815, %c4_816, %c0_817, %c0_818] : memref<2x14x16x112xf32, #tpu.memory_space<vmem>>, vector<1x8x16x112xf32>
    %853 = vector.shape_cast %852 : vector<1x8x16x112xf32> to vector<8x16x112xf32>
    %854 = vector.shape_cast %851 : vector<1x112xf32> to vector<1x1x112xf32>
    %855 = vector.broadcast %854 : vector<1x1x112xf32> to vector<8x16x112xf32>
    %856 = arith.mulf %853, %855 : vector<8x16x112xf32>
    %857 = arith.addf %849, %856 : vector<8x16x112xf32>
    %c1_819 = arith.constant 1 : index
    %c5_820 = arith.constant 5 : index
    %c6_821 = arith.constant 6 : index
    %c0_822 = arith.constant 0 : index
    %858 = vector.load %arg2[%c1_819, %c5_820, %c6_821, %c0_822] : memref<2x7x7x112xf32, #tpu.memory_space<vmem>>, vector<1x1x1x112xf32>
    %859 = vector.shape_cast %858 : vector<1x1x1x112xf32> to vector<1x112xf32>
    %c1_823 = arith.constant 1 : index
    %c5_824 = arith.constant 5 : index
    %c0_825 = arith.constant 0 : index
    %c0_826 = arith.constant 0 : index
    %860 = vector.load %arg4[%c1_823, %c5_824, %c0_825, %c0_826] : memref<2x14x16x112xf32, #tpu.memory_space<vmem>>, vector<1x8x16x112xf32>
    %861 = vector.shape_cast %860 : vector<1x8x16x112xf32> to vector<8x16x112xf32>
    %862 = vector.shape_cast %859 : vector<1x112xf32> to vector<1x1x112xf32>
    %863 = vector.broadcast %862 : vector<1x1x112xf32> to vector<8x16x112xf32>
    %864 = arith.mulf %861, %863 : vector<8x16x112xf32>
    %865 = arith.addf %857, %864 : vector<8x16x112xf32>
    %c1_827 = arith.constant 1 : index
    %c6_828 = arith.constant 6 : index
    %c6_829 = arith.constant 6 : index
    %c0_830 = arith.constant 0 : index
    %866 = vector.load %arg2[%c1_827, %c6_828, %c6_829, %c0_830] : memref<2x7x7x112xf32, #tpu.memory_space<vmem>>, vector<1x1x1x112xf32>
    %867 = vector.shape_cast %866 : vector<1x1x1x112xf32> to vector<1x112xf32>
    %c1_831 = arith.constant 1 : index
    %c6_832 = arith.constant 6 : index
    %c0_833 = arith.constant 0 : index
    %c0_834 = arith.constant 0 : index
    %868 = vector.load %arg4[%c1_831, %c6_832, %c0_833, %c0_834] : memref<2x14x16x112xf32, #tpu.memory_space<vmem>>, vector<1x8x16x112xf32>
    %869 = vector.shape_cast %868 : vector<1x8x16x112xf32> to vector<8x16x112xf32>
    %870 = vector.shape_cast %867 : vector<1x112xf32> to vector<1x1x112xf32>
    %871 = vector.broadcast %870 : vector<1x1x112xf32> to vector<8x16x112xf32>
    %872 = arith.mulf %869, %871 : vector<8x16x112xf32>
    %873 = arith.addf %865, %872 : vector<8x16x112xf32>
    %874 = vector.extract_strided_slice %873 {offsets = [0, 3, 0], sizes = [8, 13, 112], strides = [1, 1, 1]} : vector<8x16x112xf32> to vector<8x13x112xf32>
    %cst_835 = arith.constant 0.000000e+00 : f32
    %875 = vector.broadcast %cst_835 : f32 to vector<8x3x112xf32>
    %876 = tpu.concatenate %874, %875 in 1 : vector<8x13x112xf32>, vector<8x3x112xf32> -> vector<8x16x112xf32>
    %877 = arith.addf %762, %876 : vector<8x16x112xf32>
    %878 = vector.extract_strided_slice %877 {offsets = [0, 0, 0], sizes = [8, 16, 16], strides = [1, 1, 1]} : vector<8x16x112xf32> to vector<8x16x16xf32>
    %879 = vector.extract_strided_slice %877 {offsets = [0, 0, 16], sizes = [8, 16, 16], strides = [1, 1, 1]} : vector<8x16x112xf32> to vector<8x16x16xf32>
    %880 = arith.addf %878, %879 : vector<8x16x16xf32>
    %881 = vector.extract_strided_slice %877 {offsets = [0, 0, 32], sizes = [8, 16, 16], strides = [1, 1, 1]} : vector<8x16x112xf32> to vector<8x16x16xf32>
    %882 = arith.addf %880, %881 : vector<8x16x16xf32>
    %883 = vector.extract_strided_slice %877 {offsets = [0, 0, 48], sizes = [8, 16, 16], strides = [1, 1, 1]} : vector<8x16x112xf32> to vector<8x16x16xf32>
    %884 = arith.addf %882, %883 : vector<8x16x16xf32>
    %885 = vector.extract_strided_slice %877 {offsets = [0, 0, 64], sizes = [8, 16, 16], strides = [1, 1, 1]} : vector<8x16x112xf32> to vector<8x16x16xf32>
    %886 = arith.addf %884, %885 : vector<8x16x16xf32>
    %887 = vector.extract_strided_slice %877 {offsets = [0, 0, 80], sizes = [8, 16, 16], strides = [1, 1, 1]} : vector<8x16x112xf32> to vector<8x16x16xf32>
    %888 = arith.addf %886, %887 : vector<8x16x16xf32>
    %889 = vector.extract_strided_slice %877 {offsets = [0, 0, 96], sizes = [8, 16, 16], strides = [1, 1, 1]} : vector<8x16x112xf32> to vector<8x16x16xf32>
    %890 = arith.addf %888, %889 : vector<8x16x16xf32>
    %891 = vector.shape_cast %890 : vector<8x16x16xf32> to vector<128x16xf32>
    %892 = arith.negf %891 : vector<128x16xf32>
    %893 = math.exp %892 : vector<128x16xf32>
    %cst_836 = arith.constant 1.000000e+00 : f32
    %894 = vector.broadcast %cst_836 : f32 to vector<128x16xf32>
    %895 = arith.addf %894, %893 : vector<128x16xf32>
    %896 = arith.divf %894, %895 : vector<128x16xf32>
    %c0_837 = arith.constant 0 : index
    %c0_838 = arith.constant 0 : index
    %c0_839 = arith.constant 0 : index
    %897 = vector.load %arg3[%c0_837, %c0_838, %c0_839] : memref<1x128x16xf32, #tpu.memory_space<vmem>>, vector<1x128x16xf32>
    %898 = vector.shape_cast %897 : vector<1x128x16xf32> to vector<128x16xf32>
    %899 = vector.shape_cast %896 : vector<128x16xf32> to vector<1x128x16xf32>
    tpu.vector_store %arg3[%c0_837, %c0_838, %c0_839], %899 {strides = array<i32>} : memref<1x128x16xf32, #tpu.memory_space<vmem>>, vector<1x128x16xf32>,
    return
  }
  func.func @transform_0(%arg0: i32) -> (i32, i32, i32, i32) {
    %c0_i32 = arith.constant 0 : i32
    %c0_i32_0 = arith.constant 0 : i32
    %c0_i32_1 = arith.constant 0 : i32
    %c0_i32_2 = arith.constant 0 : i32
    return %arg0, %c0_i32, %c0_i32_0, %c0_i32_1 : i32, i32, i32, i32
  }
  func.func @transform_1(%arg0: i32) -> (i32, i32, i32, i32) {
    %c0_i32 = arith.constant 0 : i32
    %c0_i32_0 = arith.constant 0 : i32
    %c0_i32_1 = arith.constant 0 : i32
    %c0_i32_2 = arith.constant 0 : i32
    %c0_i32_3 = arith.constant 0 : i32
    return %c0_i32, %c0_i32_0, %c0_i32_1, %c0_i32_2 : i32, i32, i32, i32
  }
  func.func @transform_2(%arg0: i32) -> (i32, i32, i32) {
    %c0_i32 = arith.constant 0 : i32
    %c0_i32_0 = arith.constant 0 : i32
    %c0_i32_1 = arith.constant 0 : i32
    return %arg0, %c0_i32, %c0_i32_0 : i32, i32, i32
  }
}

</mosaic_0001>

<llo_original>
// kernel: tpu_custom_call.1
$region0: #{tpu_custom_call.1}
  #allocation0 [shape = 'u32[]', space=smem, size = 0x4, offset = 0x4, fixed_abs, tag = 'smem constant byte address 0x4 - core index']
  #allocation1 [shape = 'u32[144,128]{1,0:T(1,128)}', space=vmem, size = 0x12000, scoped, tag = 'internal scratch']
  #allocation2 [shape = 'f32[2,14,16,112]{3,2,1,0:T(8,128)}', space=vmem, size = 0x38000, scoped, tag = 'scratch operand']
  %s0 = inlined_call_operand.vmem [shape: f32[2,4,128,16], index: 0, kind: input, shape index: {}]
  %s1 = inlined_call_operand.vmem [shape: f32[2,7,7,112], index: 1, kind: input, shape index: {}]
  %s2 = inlined_call_operand.vmem [shape: f32[2,128,16], index: 2, kind: output, shape index: {}]
  %s3 = sld [smem:[#allocation0]]
  $region41: #{tpu_custom_call.1} parent=0
    _
  %s5 = ssub.s32 1, %s3
  %s6 = scalar_select 0, %s5, %s3
  loop: start=0, step=1, limit=4
  $region2: #{tpu_custom_call.1} parent=0 // loop_pre_header
    _
  $region3: #{tpu_custom_call.1} parent=0 // loop_header
    %s8 = sphi 0, %s12
    %p9 = scmp.ge.s32.totalorder %s8, 4
    %s18 = sphi 0, %s20
    %s21 = sphi 0, %s18
    %s22 = sphi 0, %s21
    %s38 = sphi 0, %s22
    %s42 = sphi 0, %s42
    %s44 = sphi 0, %s42
    %s45 = sphi 0, %s44
    %s59 = sphi 0, %s45
    %s65 = sphi 0, %s67
    %s68 = sphi 0, %s65
    %s69 = sphi 0, %s68
    %s85 = sphi 0, %s69
  $region4: #{tpu_custom_call.1} parent=0 // loop_header_branch
    %11 = sbr.rel (%p9) target = $region8
  $region5: #{tpu_custom_call.1} parent=0 // loop_body
    %s13 = ssub.s32 %s8, 1
    %s14 = ssub.s32 %s8, 2
    %s15 = sadd.s32 %s8, 1
    %s16 = ssub.s32 %s8, %s15
    %p17 = scmp.eq.s32.totalorder %s16, 0
    %s19 = sadd.s32 %s18, 1
    %s20 = scalar_select %p17, %s18, %s19
    %p23 = pneg %p17
    %p24 = scmp.eq.s32.totalorder %s8, 1
    %p25 = por %p23, %p24
    %p26 = scmp.ne.s32.totalorder %s18, %s21
    %p27 = scmp.eq.s32.totalorder %s8, 0
    %p28 = por %p26, %p27
    %p29 = scmp.ne.s32.totalorder %s18, %s21
    %p30 = scmp.eq.s32.totalorder %s13, 1
    %p31 = por %p29, %p30
    %p32 = scmp.ne.s32.totalorder %s21, %s22
    %p33 = scmp.eq.s32.totalorder %s13, 0
    %p34 = por %p32, %p33
    %p35 = scmp.ne.s32.totalorder %s21, %s22
    %p36 = scmp.eq.s32.totalorder %s14, 1
    %p37 = por %p35, %p36
    %p39 = scmp.ne.s32.totalorder %s22, %s38
    %p40 = scmp.eq.s32.totalorder %s14, 0
    %p41 = por %p39, %p40
    %s43 = sadd.s32 %s42, 1
    %p46 = scmp.eq.s32.totalorder %s8, 1
    %p47 = scmp.ne.s32.totalorder %s42, %s44
    %p48 = scmp.eq.s32.totalorder %s8, 0
    %p49 = por %p47, %p48
    %p50 = scmp.ne.s32.totalorder %s42, %s44
    %p51 = scmp.eq.s32.totalorder %s13, 1
    %p52 = por %p50, %p51
    %p53 = scmp.ne.s32.totalorder %s44, %s45
    %p54 = scmp.eq.s32.totalorder %s13, 0
    %p55 = por %p53, %p54
    %p56 = scmp.ne.s32.totalorder %s44, %s45
    %p57 = scmp.eq.s32.totalorder %s14, 1
    %p58 = por %p56, %p57
    %p60 = scmp.ne.s32.totalorder %s45, %s59
    %p61 = scmp.eq.s32.totalorder %s14, 0
    %p62 = por %p60, %p61
    %s63 = ssub.s32 %s8, %s15
    %p64 = scmp.eq.s32.totalorder %s63, 0
    %s66 = sadd.s32 %s65, 1
    %s67 = scalar_select %p64, %s65, %s66
    %p70 = pneg %p64
    %p71 = scmp.eq.s32.totalorder %s8, 1
    %p72 = por %p70, %p71
    %p73 = scmp.ne.s32.totalorder %s65, %s68
    %p74 = scmp.eq.s32.totalorder %s8, 0
    %p75 = por %p73, %p74
    %p76 = scmp.ne.s32.totalorder %s65, %s68
    %p77 = scmp.eq.s32.totalorder %s13, 1
    %p78 = por %p76, %p77
    %p79 = scmp.ne.s32.totalorder %s68, %s69
    %p80 = scmp.eq.s32.totalorder %s13, 0
    %p81 = por %p79, %p80
    %p82 = scmp.ne.s32.totalorder %s68, %s69
    %p83 = scmp.eq.s32.totalorder %s14, 1
    %p84 = por %p82, %p83
    %p86 = scmp.ne.s32.totalorder %s69, %s85
    %p87 = scmp.eq.s32.totalorder %s14, 0
    %p88 = por %p86, %p87
    %p89 = scmp.le.s32.totalorder 1, %s8
    %p90 = scmp.lt.s32.totalorder %s8, 3
    %p91 = pnand %p89, %p90
    %p92 = pneg %p91
    // Predicated region
    $region9: #{tpu_custom_call.1} parent=5 // pred_check
      _
    $region10: #{tpu_custom_call.1} parent=5 // pred_check_branch
      %94 = sbr.rel (%p91) target = $region12
    $region11: #{tpu_custom_call.1} parent=5 // pred_region
      %s95 = ssub.s32 %s8, 1
      // Predicated region
      $region13: #{tpu_custom_call.1} parent=11 // pred_check
        %p96 = pneg %p55
      $region14: #{tpu_custom_call.1} parent=11 // pred_check_branch
        %98 = sbr.rel (%p96) target = $region16
      $region15: #{tpu_custom_call.1} parent=11 // pred_region
        _
      $region16: #{tpu_custom_call.1} parent=11 // pred_fallthru
        _
    $region12: #{tpu_custom_call.1} parent=5 // pred_fallthru
      _
    %p99 = scmp.lt.s32.totalorder %s8, 2
    // Predicated region
    $region17: #{tpu_custom_call.1} parent=5 // pred_check
      %p100 = pneg %p99
    $region18: #{tpu_custom_call.1} parent=5 // pred_check_branch
      %102 = sbr.rel (%p100) target = $region20
    $region19: #{tpu_custom_call.1} parent=5 // pred_region
      // Predicated region
      $region21: #{tpu_custom_call.1} parent=19 // pred_check
        %p103 = pneg %p28
      $region22: #{tpu_custom_call.1} parent=19 // pred_check_branch
        %105 = sbr.rel (%p103) target = $region24
      $region23: #{tpu_custom_call.1} parent=19 // pred_region
        %p106 = scmp.lt.s32.totalorder %s8, 1
        %s107 = scalar_select %p106, %s8, 1
        %s108 = smul.addr %s107, 64
        %s109 = smul.addr %s108, 8
        %s110 = scalar_lea.vmem %s0, %s109
      $region24: #{tpu_custom_call.1} parent=19 // pred_fallthru
        _
    $region20: #{tpu_custom_call.1} parent=5 // pred_fallthru
      _
    %p111 = scmp.le.s32.totalorder 1, %s8
    %p112 = scmp.lt.s32.totalorder %s8, 3
    %p113 = pnand %p111, %p112
    %p114 = pneg %p113
    // Predicated region
    $region25: #{tpu_custom_call.1} parent=5 // pred_check
      _
    $region26: #{tpu_custom_call.1} parent=5 // pred_check_branch
      %116 = sbr.rel (%p113) target = $region28
    $region27: #{tpu_custom_call.1} parent=5 // pred_region
      %s117 = ssub.s32 %s8, 1
      %p118 = scmp.lt.s32.totalorder %s13, 1
      %s119 = scalar_select %p118, %s13, 1
      %s120 = smul.addr %s119, 64
      %s121 = smul.addr %s120, 8
      %s122 = scalar_lea.vmem %s0, %s121
      %p123 = pneg %p34
      %p124 = pneg %p31
      %p125 = pneg %p55
      %p126 = pneg %p52
      %p127 = pneg %p81
      %p128 = pneg %p78
      %p129 = scmp.lt.s32.totalorder %s13, 1
      %s130 = scalar_select %p129, %s13, 1
      %s131 = smul.addr %s130, 16
      %s132 = smul.addr %s131, 8
      %s133 = scalar_lea.vmem %s2, %s132
      %p134 = scmp.lt.s32.totalorder %s13, 1
      %s135 = scalar_select %p134, %s13, 1
      %s136 = smul.addr %s135, 64
      %s137 = smul.addr %s136, 8
      %s138 = scalar_lea.vmem %s0, %s137
      %p139 = scmp.lt.s32.totalorder %s13, 1
      %s140 = scalar_select %p139, %s13, 1
      %s141 = smul.addr %s140, 16
      %s142 = smul.addr %s141, 8
      %s143 = scalar_lea.vmem %s2, %s142
      %v144 = vld [vmem:[%s138] sm:$0xff]
      %v145 = vld [vmem:[%s138 + $0x8] sm:$0xff]
      %v146 = vld [vmem:[%s138 + $0x10] sm:$0xff]
      %v147 = vld [vmem:[%s138 + $0x18] sm:$0xff]
      %v148 = vld [vmem:[%s138 + $0x20] sm:$0xff]
      %v149 = vld [vmem:[%s138 + $0x28] sm:$0xff]
      %v150 = vld [vmem:[%s138 + $0x30] sm:$0xff]
      %v151 = vld [vmem:[%s138 + $0x38] sm:$0xff]
      %v152 = vld [vmem:[%s138 + $0x40] sm:$0xff]
      %v153 = vld [vmem:[%s138 + $0x48] sm:$0xff]
      %v154 = vld [vmem:[%s138 + $0x50] sm:$0xff]
      %v155 = vld [vmem:[%s138 + $0x58] sm:$0xff]
      %v156 = vld [vmem:[%s138 + $0x60] sm:$0xff]
      %v157 = vld [vmem:[%s138 + $0x68] sm:$0xff]
      %v158 = vld [vmem:[%s138 + $0x70] sm:$0xff]
      %v159 = vld [vmem:[%s138 + $0x78] sm:$0xff]
      %s160 = scalar_lea.vmem %s138, 128
      %v161 = vld [vmem:[%s160] sm:$0xff]
      %v162 = vld [vmem:[%s160 + $0x8] sm:$0xff]
      %v163 = vld [vmem:[%s160 + $0x10] sm:$0xff]
      %v164 = vld [vmem:[%s160 + $0x18] sm:$0xff]
      %v165 = vld [vmem:[%s160 + $0x20] sm:$0xff]
      %v166 = vld [vmem:[%s160 + $0x28] sm:$0xff]
      %v167 = vld [vmem:[%s160 + $0x30] sm:$0xff]
      %v168 = vld [vmem:[%s160 + $0x38] sm:$0xff]
      %v169 = vld [vmem:[%s160 + $0x40] sm:$0xff]
      %v170 = vld [vmem:[%s160 + $0x48] sm:$0xff]
      %v171 = vld [vmem:[%s160 + $0x50] sm:$0xff]
      %v172 = vld [vmem:[%s160 + $0x58] sm:$0xff]
      %v173 = vld [vmem:[%s160 + $0x60] sm:$0xff]
      %v174 = vld [vmem:[%s160 + $0x68] sm:$0xff]
      %v175 = vld [vmem:[%s160 + $0x70] sm:$0xff]
      %v176 = vld [vmem:[%s160 + $0x78] sm:$0xff]
      %v177 = vadd.f32 %v144, %v161
      %v178 = vadd.f32 %v145, %v162
      %v179 = vadd.f32 %v146, %v163
      %v180 = vadd.f32 %v147, %v164
      %v181 = vadd.f32 %v148, %v165
      %v182 = vadd.f32 %v149, %v166
      %v183 = vadd.f32 %v150, %v167
      %v184 = vadd.f32 %v151, %v168
      %v185 = vadd.f32 %v152, %v169
      %v186 = vadd.f32 %v153, %v170
      %v187 = vadd.f32 %v154, %v171
      %v188 = vadd.f32 %v155, %v172
      %v189 = vadd.f32 %v156, %v173
      %v190 = vadd.f32 %v157, %v174
      %v191 = vadd.f32 %v158, %v175
      %v192 = vadd.f32 %v159, %v176
      %v193 = vmax.f32 %v144, %v161
      %v194 = vmax.f32 %v145, %v162
      %v195 = vmax.f32 %v146, %v163
      %v196 = vmax.f32 %v147, %v164
      %v197 = vmax.f32 %v148, %v165
      %v198 = vmax.f32 %v149, %v166
      %v199 = vmax.f32 %v150, %v167
      %v200 = vmax.f32 %v151, %v168
      %v201 = vmax.f32 %v152, %v169
      %v202 = vmax.f32 %v153, %v170
      %v203 = vmax.f32 %v154, %v171
      %v204 = vmax.f32 %v155, %v172
      %v205 = vmax.f32 %v156, %v173
      %v206 = vmax.f32 %v157, %v174
      %v207 = vmax.f32 %v158, %v175
      %v208 = vmax.f32 %v159, %v176
      %s209 = scalar_lea.vmem %s138, 256
      %v210 = vld [vmem:[%s209] sm:$0xff]
      %v211 = vld [vmem:[%s209 + $0x8] sm:$0xff]
      %v212 = vld [vmem:[%s209 + $0x10] sm:$0xff]
      %v213 = vld [vmem:[%s209 + $0x18] sm:$0xff]
      %v214 = vld [vmem:[%s209 + $0x20] sm:$0xff]
      %v215 = vld [vmem:[%s209 + $0x28] sm:$0xff]
      %v216 = vld [vmem:[%s209 + $0x30] sm:$0xff]
      %v217 = vld [vmem:[%s209 + $0x38] sm:$0xff]
      %v218 = vld [vmem:[%s209 + $0x40] sm:$0xff]
      %v219 = vld [vmem:[%s209 + $0x48] sm:$0xff]
      %v220 = vld [vmem:[%s209 + $0x50] sm:$0xff]
      %v221 = vld [vmem:[%s209 + $0x58] sm:$0xff]
      %v222 = vld [vmem:[%s209 + $0x60] sm:$0xff]
      %v223 = vld [vmem:[%s209 + $0x68] sm:$0xff]
      %v224 = vld [vmem:[%s209 + $0x70] sm:$0xff]
      %v225 = vld [vmem:[%s209 + $0x78] sm:$0xff]
      %v226 = vadd.f32 %v177, %v210
      %v227 = vadd.f32 %v178, %v211
      %v228 = vadd.f32 %v179, %v212
      %v229 = vadd.f32 %v180, %v213
      %v230 = vadd.f32 %v181, %v214
      %v231 = vadd.f32 %v182, %v215
      %v232 = vadd.f32 %v183, %v216
      %v233 = vadd.f32 %v184, %v217
      %v234 = vadd.f32 %v185, %v218
      %v235 = vadd.f32 %v186, %v219
      %v236 = vadd.f32 %v187, %v220
      %v237 = vadd.f32 %v188, %v221
      %v238 = vadd.f32 %v189, %v222
      %v239 = vadd.f32 %v190, %v223
      %v240 = vadd.f32 %v191, %v224
      %v241 = vadd.f32 %v192, %v225
      %v242 = vmax.f32 %v193, %v210
      %v243 = vmax.f32 %v194, %v211
      %v244 = vmax.f32 %v195, %v212
      %v245 = vmax.f32 %v196, %v213
      %v246 = vmax.f32 %v197, %v214
      %v247 = vmax.f32 %v198, %v215
      %v248 = vmax.f32 %v199, %v216
      %v249 = vmax.f32 %v200, %v217
      %v250 = vmax.f32 %v201, %v218
      %v251 = vmax.f32 %v202, %v219
      %v252 = vmax.f32 %v203, %v220
      %v253 = vmax.f32 %v204, %v221
      %v254 = vmax.f32 %v205, %v222
      %v255 = vmax.f32 %v206, %v223
      %v256 = vmax.f32 %v207, %v224
      %v257 = vmax.f32 %v208, %v225
      %s258 = scalar_lea.vmem %s138, 384
      %v259 = vld [vmem:[%s258] sm:$0xff]
      %v260 = vld [vmem:[%s258 + $0x8] sm:$0xff]
      %v261 = vld [vmem:[%s258 + $0x10] sm:$0xff]
      %v262 = vld [vmem:[%s258 + $0x18] sm:$0xff]
      %v263 = vld [vmem:[%s258 + $0x20] sm:$0xff]
      %v264 = vld [vmem:[%s258 + $0x28] sm:$0xff]
      %v265 = vld [vmem:[%s258 + $0x30] sm:$0xff]
      %v266 = vld [vmem:[%s258 + $0x38] sm:$0xff]
      %v267 = vld [vmem:[%s258 + $0x40] sm:$0xff]
      %v268 = vld [vmem:[%s258 + $0x48] sm:$0xff]
      %v269 = vld [vmem:[%s258 + $0x50] sm:$0xff]
      %v270 = vld [vmem:[%s258 + $0x58] sm:$0xff]
      %v271 = vld [vmem:[%s258 + $0x60] sm:$0xff]
      %v272 = vld [vmem:[%s258 + $0x68] sm:$0xff]
      %v273 = vld [vmem:[%s258 + $0x70] sm:$0xff]
      %v274 = vld [vmem:[%s258 + $0x78] sm:$0xff]
      %v275 = vadd.f32 %v226, %v259
      %v276 = vadd.f32 %v227, %v260
      %v277 = vadd.f32 %v228, %v261
      %v278 = vadd.f32 %v229, %v262
      %v279 = vadd.f32 %v230, %v263
      %v280 = vadd.f32 %v231, %v264
      %v281 = vadd.f32 %v232, %v265
      %v282 = vadd.f32 %v233, %v266
      %v283 = vadd.f32 %v234, %v267
      %v284 = vadd.f32 %v235, %v268
      %v285 = vadd.f32 %v236, %v269
      %v286 = vadd.f32 %v237, %v270
      %v287 = vadd.f32 %v238, %v271
      %v288 = vadd.f32 %v239, %v272
      %v289 = vadd.f32 %v240, %v273
      %v290 = vadd.f32 %v241, %v274
      %v291 = vmax.f32 %v242, %v259
      %v292 = vmax.f32 %v243, %v260
      %v293 = vmax.f32 %v244, %v261
      %v294 = vmax.f32 %v245, %v262
      %v295 = vmax.f32 %v246, %v263
      %v296 = vmax.f32 %v247, %v264
      %v297 = vmax.f32 %v248, %v265
      %v298 = vmax.f32 %v249, %v266
      %v299 = vmax.f32 %v250, %v267
      %v300 = vmax.f32 %v251, %v268
      %v301 = vmax.f32 %v252, %v269
      %v302 = vmax.f32 %v253, %v270
      %v303 = vmax.f32 %v254, %v271
      %v304 = vmax.f32 %v255, %v272
      %v305 = vmax.f32 %v256, %v273
      %v306 = vmax.f32 %v257, %v274
      %v307 = vmul.f32 %v275, 0.25
      %v308 = vmul.f32 %v276, 0.25
      %v309 = vmul.f32 %v277, 0.25
      %v310 = vmul.f32 %v278, 0.25
      %v311 = vmul.f32 %v279, 0.25
      %v312 = vmul.f32 %v280, 0.25
      %v313 = vmul.f32 %v281, 0.25
      %v314 = vmul.f32 %v282, 0.25
      %v315 = vmul.f32 %v283, 0.25
      %v316 = vmul.f32 %v284, 0.25
      %v317 = vmul.f32 %v285, 0.25
      %v318 = vmul.f32 %v286, 0.25
      %v319 = vmul.f32 %v287, 0.25
      %v320 = vmul.f32 %v288, 0.25
      %v321 = vmul.f32 %v289, 0.25
      %v322 = vmul.f32 %v290, 0.25
      %vm323 = vcmask 916480
      %324 = vst.msk [vmem:[#allocation2] sm:$0xff] %vm323, 0.0
      %325 = vst.msk [vmem:[#allocation2 + $0x8] sm:$0xff] %vm323, 0.0
      %326 = vst.msk [vmem:[#allocation2 + $0x10] sm:$0xff] %vm323, 0.0
      %327 = vst.msk [vmem:[#allocation2 + $0x18] sm:$0xff] %vm323, 0.0
      %328 = vst.msk [vmem:[#allocation2 + $0x20] sm:$0xff] %vm323, 0.0
      %329 = vst.msk [vmem:[#allocation2 + $0x28] sm:$0xff] %vm323, 0.0
      %346 = vrot.lane.b32.xlu0 %v307, 3
      %v347 = vpop.permute.xlu0 %346
      %348 = vrot.lane.b32.xlu0 %v308, 3
      %v349 = vpop.permute.xlu0 %348
      %350 = vrot.lane.b32.xlu0 %v309, 3
      %v351 = vpop.permute.xlu0 %350
      %352 = vrot.lane.b32.xlu0 %v310, 3
      %v353 = vpop.permute.xlu0 %352
      %354 = vrot.lane.b32.xlu0 %v311, 3
      %v355 = vpop.permute.xlu0 %354
      %356 = vrot.lane.b32.xlu0 %v312, 3
      %v357 = vpop.permute.xlu0 %356
      %358 = vrot.lane.b32.xlu0 %v313, 3
      %v359 = vpop.permute.xlu0 %358
      %360 = vrot.lane.b32.xlu0 %v314, 3
      %v361 = vpop.permute.xlu0 %360
      %362 = vrot.lane.b32.xlu0 %v315, 3
      %v363 = vpop.permute.xlu0 %362
      %364 = vrot.lane.b32.xlu0 %v316, 3
      %v365 = vpop.permute.xlu0 %364
      %366 = vrot.lane.b32.xlu0 %v317, 3
      %v367 = vpop.permute.xlu0 %366
      %368 = vrot.lane.b32.xlu0 %v318, 3
      %v369 = vpop.permute.xlu0 %368
      %370 = vrot.lane.b32.xlu0 %v319, 3
      %v371 = vpop.permute.xlu0 %370
      %372 = vrot.lane.b32.xlu0 %v320, 3
      %v373 = vpop.permute.xlu0 %372
      %374 = vrot.lane.b32.xlu0 %v321, 3
      %v375 = vpop.permute.xlu0 %374
      %376 = vrot.lane.b32.xlu0 %v322, 3
      %v377 = vpop.permute.xlu0 %376
      %vm394 = vcmask 23552
      %v395 = vsel %vm394, 0.0, %v347
      %v396 = vsel %vm394, 0.0, %v349
      %v397 = vsel %vm394, 0.0, %v351
      %v398 = vsel %vm394, 0.0, %v353
      %v399 = vsel %vm394, 0.0, %v355
      %v400 = vsel %vm394, 0.0, %v357
      %v401 = vsel %vm394, 0.0, %v359
      %v402 = vsel %vm394, 0.0, %v361
      %v403 = vsel %vm394, 0.0, %v363
      %v404 = vsel %vm394, 0.0, %v365
      %v405 = vsel %vm394, 0.0, %v367
      %v406 = vsel %vm394, 0.0, %v369
      %v407 = vsel %vm394, 0.0, %v371
      %v408 = vsel %vm394, 0.0, %v373
      %v409 = vsel %vm394, 0.0, %v375
      %v410 = vsel %vm394, 0.0, %v377
      %411 = vrot.lane.b32.xlu0 %v307, 2
      %v412 = vpop.permute.xlu0 %411
      %413 = vrot.lane.b32.xlu0 %v308, 2
      %v414 = vpop.permute.xlu0 %413
      %415 = vrot.lane.b32.xlu0 %v309, 2
      %v416 = vpop.permute.xlu0 %415
      %417 = vrot.lane.b32.xlu0 %v310, 2
      %v418 = vpop.permute.xlu0 %417
      %419 = vrot.lane.b32.xlu0 %v311, 2
      %v420 = vpop.permute.xlu0 %419
      %421 = vrot.lane.b32.xlu0 %v312, 2
      %v422 = vpop.permute.xlu0 %421
      %423 = vrot.lane.b32.xlu0 %v313, 2
      %v424 = vpop.permute.xlu0 %423
      %425 = vrot.lane.b32.xlu0 %v314, 2
      %v426 = vpop.permute.xlu0 %425
      %427 = vrot.lane.b32.xlu0 %v315, 2
      %v428 = vpop.permute.xlu0 %427
      %429 = vrot.lane.b32.xlu0 %v316, 2
      %v430 = vpop.permute.xlu0 %429
      %431 = vrot.lane.b32.xlu0 %v317, 2
      %v432 = vpop.permute.xlu0 %431
      %433 = vrot.lane.b32.xlu0 %v318, 2
      %v434 = vpop.permute.xlu0 %433
      %435 = vrot.lane.b32.xlu0 %v319, 2
      %v436 = vpop.permute.xlu0 %435
      %437 = vrot.lane.b32.xlu0 %v320, 2
      %v438 = vpop.permute.xlu0 %437
      %439 = vrot.lane.b32.xlu0 %v321, 2
      %v440 = vpop.permute.xlu0 %439
      %441 = vrot.lane.b32.xlu0 %v322, 2
      %v442 = vpop.permute.xlu0 %441
      %vm459 = vcmask 15360
      %v460 = vsel %vm459, 0.0, %v412
      %v461 = vsel %vm459, 0.0, %v414
      %v462 = vsel %vm459, 0.0, %v416
      %v463 = vsel %vm459, 0.0, %v418
      %v464 = vsel %vm459, 0.0, %v420
      %v465 = vsel %vm459, 0.0, %v422
      %v466 = vsel %vm459, 0.0, %v424
      %v467 = vsel %vm459, 0.0, %v426
      %v468 = vsel %vm459, 0.0, %v428
      %v469 = vsel %vm459, 0.0, %v430
      %v470 = vsel %vm459, 0.0, %v432
      %v471 = vsel %vm459, 0.0, %v434
      %v472 = vsel %vm459, 0.0, %v436
      %v473 = vsel %vm459, 0.0, %v438
      %v474 = vsel %vm459, 0.0, %v440
      %v475 = vsel %vm459, 0.0, %v442
      %476 = vrot.lane.b32.xlu0 %v307, 1
      %v477 = vpop.permute.xlu0 %476
      %478 = vrot.lane.b32.xlu0 %v308, 1
      %v479 = vpop.permute.xlu0 %478
      %480 = vrot.lane.b32.xlu0 %v309, 1
      %v481 = vpop.permute.xlu0 %480
      %482 = vrot.lane.b32.xlu0 %v310, 1
      %v483 = vpop.permute.xlu0 %482
      %484 = vrot.lane.b32.xlu0 %v311, 1
      %v485 = vpop.permute.xlu0 %484
      %486 = vrot.lane.b32.xlu0 %v312, 1
      %v487 = vpop.permute.xlu0 %486
      %488 = vrot.lane.b32.xlu0 %v313, 1
      %v489 = vpop.permute.xlu0 %488
      %490 = vrot.lane.b32.xlu0 %v314, 1
      %v491 = vpop.permute.xlu0 %490
      %492 = vrot.lane.b32.xlu0 %v315, 1
      %v493 = vpop.permute.xlu0 %492
      %494 = vrot.lane.b32.xlu0 %v316, 1
      %v495 = vpop.permute.xlu0 %494
      %496 = vrot.lane.b32.xlu0 %v317, 1
      %v497 = vpop.permute.xlu0 %496
      %498 = vrot.lane.b32.xlu0 %v318, 1
      %v499 = vpop.permute.xlu0 %498
      %500 = vrot.lane.b32.xlu0 %v319, 1
      %v501 = vpop.permute.xlu0 %500
      %502 = vrot.lane.b32.xlu0 %v320, 1
      %v503 = vpop.permute.xlu0 %502
      %504 = vrot.lane.b32.xlu0 %v321, 1
      %v505 = vpop.permute.xlu0 %504
      %506 = vrot.lane.b32.xlu0 %v322, 1
      %v507 = vpop.permute.xlu0 %506
      %vm524 = vcmask 7168
      %v525 = vsel %vm524, 0.0, %v477
      %v526 = vsel %vm524, 0.0, %v479
      %v527 = vsel %vm524, 0.0, %v481
      %v528 = vsel %vm524, 0.0, %v483
      %v529 = vsel %vm524, 0.0, %v485
      %v530 = vsel %vm524, 0.0, %v487
      %v531 = vsel %vm524, 0.0, %v489
      %v532 = vsel %vm524, 0.0, %v491
      %v533 = vsel %vm524, 0.0, %v493
      %v534 = vsel %vm524, 0.0, %v495
      %v535 = vsel %vm524, 0.0, %v497
      %v536 = vsel %vm524, 0.0, %v499
      %v537 = vsel %vm524, 0.0, %v501
      %v538 = vsel %vm524, 0.0, %v503
      %v539 = vsel %vm524, 0.0, %v505
      %v540 = vsel %vm524, 0.0, %v507
      %541 = vrot.lane.b32.xlu0 %v307, 127
      %v542 = vpop.permute.xlu0 %541
      %543 = vrot.lane.b32.xlu0 %v308, 127
      %v544 = vpop.permute.xlu0 %543
      %545 = vrot.lane.b32.xlu0 %v309, 127
      %v546 = vpop.permute.xlu0 %545
      %547 = vrot.lane.b32.xlu0 %v310, 127
      %v548 = vpop.permute.xlu0 %547
      %549 = vrot.lane.b32.xlu0 %v311, 127
      %v550 = vpop.permute.xlu0 %549
      %551 = vrot.lane.b32.xlu0 %v312, 127
      %v552 = vpop.permute.xlu0 %551
      %553 = vrot.lane.b32.xlu0 %v313, 127
      %v554 = vpop.permute.xlu0 %553
      %555 = vrot.lane.b32.xlu0 %v314, 127
      %v556 = vpop.permute.xlu0 %555
      %557 = vrot.lane.b32.xlu0 %v315, 127
      %v558 = vpop.permute.xlu0 %557
      %559 = vrot.lane.b32.xlu0 %v316, 127
      %v560 = vpop.permute.xlu0 %559
      %561 = vrot.lane.b32.xlu0 %v317, 127
      %v562 = vpop.permute.xlu0 %561
      %563 = vrot.lane.b32.xlu0 %v318, 127
      %v564 = vpop.permute.xlu0 %563
      %565 = vrot.lane.b32.xlu0 %v319, 127
      %v566 = vpop.permute.xlu0 %565
      %567 = vrot.lane.b32.xlu0 %v320, 127
      %v568 = vpop.permute.xlu0 %567
      %569 = vrot.lane.b32.xlu0 %v321, 127
      %v570 = vpop.permute.xlu0 %569
      %571 = vrot.lane.b32.xlu0 %v322, 127
      %v572 = vpop.permute.xlu0 %571
      %vm589 = vcmask 121856
      %v590 = vsel %vm589, %v542, 0.0
      %v591 = vsel %vm589, %v544, 0.0
      %v592 = vsel %vm589, %v546, 0.0
      %v593 = vsel %vm589, %v548, 0.0
      %v594 = vsel %vm589, %v550, 0.0
      %v595 = vsel %vm589, %v552, 0.0
      %v596 = vsel %vm589, %v554, 0.0
      %v597 = vsel %vm589, %v556, 0.0
      %v598 = vsel %vm589, %v558, 0.0
      %v599 = vsel %vm589, %v560, 0.0
      %v600 = vsel %vm589, %v562, 0.0
      %v601 = vsel %vm589, %v564, 0.0
      %v602 = vsel %vm589, %v566, 0.0
      %v603 = vsel %vm589, %v568, 0.0
      %v604 = vsel %vm589, %v570, 0.0
      %v605 = vsel %vm589, %v572, 0.0
      %606 = vrot.lane.b32.xlu0 %v307, 126
      %v607 = vpop.permute.xlu0 %606
      %608 = vrot.lane.b32.xlu0 %v308, 126
      %v609 = vpop.permute.xlu0 %608
      %610 = vrot.lane.b32.xlu0 %v309, 126
      %v611 = vpop.permute.xlu0 %610
      %612 = vrot.lane.b32.xlu0 %v310, 126
      %v613 = vpop.permute.xlu0 %612
      %614 = vrot.lane.b32.xlu0 %v311, 126
      %v615 = vpop.permute.xlu0 %614
      %616 = vrot.lane.b32.xlu0 %v312, 126
      %v617 = vpop.permute.xlu0 %616
      %618 = vrot.lane.b32.xlu0 %v313, 126
      %v619 = vpop.permute.xlu0 %618
      %620 = vrot.lane.b32.xlu0 %v314, 126
      %v621 = vpop.permute.xlu0 %620
      %622 = vrot.lane.b32.xlu0 %v315, 126
      %v623 = vpop.permute.xlu0 %622
      %624 = vrot.lane.b32.xlu0 %v316, 126
      %v625 = vpop.permute.xlu0 %624
      %626 = vrot.lane.b32.xlu0 %v317, 126
      %v627 = vpop.permute.xlu0 %626
      %628 = vrot.lane.b32.xlu0 %v318, 126
      %v629 = vpop.permute.xlu0 %628
      %630 = vrot.lane.b32.xlu0 %v319, 126
      %v631 = vpop.permute.xlu0 %630
      %632 = vrot.lane.b32.xlu0 %v320, 126
      %v633 = vpop.permute.xlu0 %632
      %634 = vrot.lane.b32.xlu0 %v321, 126
      %v635 = vpop.permute.xlu0 %634
      %636 = vrot.lane.b32.xlu0 %v322, 126
      %v637 = vpop.permute.xlu0 %636
      %vm654 = vcmask 113664
      %v655 = vsel %vm654, %v607, 0.0
      %v656 = vsel %vm654, %v609, 0.0
      %v657 = vsel %vm654, %v611, 0.0
      %v658 = vsel %vm654, %v613, 0.0
      %v659 = vsel %vm654, %v615, 0.0
      %v660 = vsel %vm654, %v617, 0.0
      %v661 = vsel %vm654, %v619, 0.0
      %v662 = vsel %vm654, %v621, 0.0
      %v663 = vsel %vm654, %v623, 0.0
      %v664 = vsel %vm654, %v625, 0.0
      %v665 = vsel %vm654, %v627, 0.0
      %v666 = vsel %vm654, %v629, 0.0
      %v667 = vsel %vm654, %v631, 0.0
      %v668 = vsel %vm654, %v633, 0.0
      %v669 = vsel %vm654, %v635, 0.0
      %v670 = vsel %vm654, %v637, 0.0
      %671 = vrot.lane.b32.xlu0 %v307, 125
      %v672 = vpop.permute.xlu0 %671
      %673 = vrot.lane.b32.xlu0 %v308, 125
      %v674 = vpop.permute.xlu0 %673
      %675 = vrot.lane.b32.xlu0 %v309, 125
      %v676 = vpop.permute.xlu0 %675
      %677 = vrot.lane.b32.xlu0 %v310, 125
      %v678 = vpop.permute.xlu0 %677
      %679 = vrot.lane.b32.xlu0 %v311, 125
      %v680 = vpop.permute.xlu0 %679
      %681 = vrot.lane.b32.xlu0 %v312, 125
      %v682 = vpop.permute.xlu0 %681
      %683 = vrot.lane.b32.xlu0 %v313, 125
      %v684 = vpop.permute.xlu0 %683
      %685 = vrot.lane.b32.xlu0 %v314, 125
      %v686 = vpop.permute.xlu0 %685
      %687 = vrot.lane.b32.xlu0 %v315, 125
      %v688 = vpop.permute.xlu0 %687
      %689 = vrot.lane.b32.xlu0 %v316, 125
      %v690 = vpop.permute.xlu0 %689
      %691 = vrot.lane.b32.xlu0 %v317, 125
      %v692 = vpop.permute.xlu0 %691
      %693 = vrot.lane.b32.xlu0 %v318, 125
      %v694 = vpop.permute.xlu0 %693
      %695 = vrot.lane.b32.xlu0 %v319, 125
      %v696 = vpop.permute.xlu0 %695
      %697 = vrot.lane.b32.xlu0 %v320, 125
      %v698 = vpop.permute.xlu0 %697
      %699 = vrot.lane.b32.xlu0 %v321, 125
      %v700 = vpop.permute.xlu0 %699
      %701 = vrot.lane.b32.xlu0 %v322, 125
      %v702 = vpop.permute.xlu0 %701
      %vm719 = vcmask 105472
      %v720 = vsel %vm719, %v672, 0.0
      %v721 = vsel %vm719, %v674, 0.0
      %v722 = vsel %vm719, %v676, 0.0
      %v723 = vsel %vm719, %v678, 0.0
      %v724 = vsel %vm719, %v680, 0.0
      %v725 = vsel %vm719, %v682, 0.0
      %v726 = vsel %vm719, %v684, 0.0
      %v727 = vsel %vm719, %v686, 0.0
      %v728 = vsel %vm719, %v688, 0.0
      %v729 = vsel %vm719, %v690, 0.0
      %v730 = vsel %vm719, %v692, 0.0
      %v731 = vsel %vm719, %v694, 0.0
      %v732 = vsel %vm719, %v696, 0.0
      %v733 = vsel %vm719, %v698, 0.0
      %v734 = vsel %vm719, %v700, 0.0
      %v735 = vsel %vm719, %v702, 0.0
      %752 = vrot.lane.b32.xlu0 %v460, 16
      %v753 = vpop.permute.xlu0 %752
      %754 = vrot.lane.b32.xlu0 %v461, 16
      %v755 = vpop.permute.xlu0 %754
      %756 = vrot.lane.b32.xlu0 %v462, 16
      %v757 = vpop.permute.xlu0 %756
      %758 = vrot.lane.b32.xlu0 %v463, 16
      %v759 = vpop.permute.xlu0 %758
      %760 = vrot.lane.b32.xlu0 %v464, 16
      %v761 = vpop.permute.xlu0 %760
      %762 = vrot.lane.b32.xlu0 %v465, 16
      %v763 = vpop.permute.xlu0 %762
      %764 = vrot.lane.b32.xlu0 %v466, 16
      %v765 = vpop.permute.xlu0 %764
      %766 = vrot.lane.b32.xlu0 %v467, 16
      %v767 = vpop.permute.xlu0 %766
      %768 = vrot.lane.b32.xlu0 %v468, 16
      %v769 = vpop.permute.xlu0 %768
      %770 = vrot.lane.b32.xlu0 %v469, 16
      %v771 = vpop.permute.xlu0 %770
      %772 = vrot.lane.b32.xlu0 %v470, 16
      %v773 = vpop.permute.xlu0 %772
      %774 = vrot.lane.b32.xlu0 %v471, 16
      %v775 = vpop.permute.xlu0 %774
      %776 = vrot.lane.b32.xlu0 %v472, 16
      %v777 = vpop.permute.xlu0 %776
      %778 = vrot.lane.b32.xlu0 %v473, 16
      %v779 = vpop.permute.xlu0 %778
      %780 = vrot.lane.b32.xlu0 %v474, 16
      %v781 = vpop.permute.xlu0 %780
      %782 = vrot.lane.b32.xlu0 %v475, 16
      %v783 = vpop.permute.xlu0 %782
      %816 = vrot.lane.b32.xlu0 %v525, 32
      %v817 = vpop.permute.xlu0 %816
      %818 = vrot.lane.b32.xlu0 %v526, 32
      %v819 = vpop.permute.xlu0 %818
      %820 = vrot.lane.b32.xlu0 %v527, 32
      %v821 = vpop.permute.xlu0 %820
      %822 = vrot.lane.b32.xlu0 %v528, 32
      %v823 = vpop.permute.xlu0 %822
      %824 = vrot.lane.b32.xlu0 %v529, 32
      %v825 = vpop.permute.xlu0 %824
      %826 = vrot.lane.b32.xlu0 %v530, 32
      %v827 = vpop.permute.xlu0 %826
      %828 = vrot.lane.b32.xlu0 %v531, 32
      %v829 = vpop.permute.xlu0 %828
      %830 = vrot.lane.b32.xlu0 %v532, 32
      %v831 = vpop.permute.xlu0 %830
      %832 = vrot.lane.b32.xlu0 %v533, 32
      %v833 = vpop.permute.xlu0 %832
      %834 = vrot.lane.b32.xlu0 %v534, 32
      %v835 = vpop.permute.xlu0 %834
      %836 = vrot.lane.b32.xlu0 %v535, 32
      %v837 = vpop.permute.xlu0 %836
      %838 = vrot.lane.b32.xlu0 %v536, 32
      %v839 = vpop.permute.xlu0 %838
      %840 = vrot.lane.b32.xlu0 %v537, 32
      %v841 = vpop.permute.xlu0 %840
      %842 = vrot.lane.b32.xlu0 %v538, 32
      %v843 = vpop.permute.xlu0 %842
      %844 = vrot.lane.b32.xlu0 %v539, 32
      %v845 = vpop.permute.xlu0 %844
      %846 = vrot.lane.b32.xlu0 %v540, 32
      %v847 = vpop.permute.xlu0 %846
      %864 = vrot.lane.b32.xlu0 %v307, 48
      %v865 = vpop.permute.xlu0 %864
      %866 = vrot.lane.b32.xlu0 %v308, 48
      %v867 = vpop.permute.xlu0 %866
      %868 = vrot.lane.b32.xlu0 %v309, 48
      %v869 = vpop.permute.xlu0 %868
      %870 = vrot.lane.b32.xlu0 %v310, 48
      %v871 = vpop.permute.xlu0 %870
      %872 = vrot.lane.b32.xlu0 %v311, 48
      %v873 = vpop.permute.xlu0 %872
      %874 = vrot.lane.b32.xlu0 %v312, 48
      %v875 = vpop.permute.xlu0 %874
      %876 = vrot.lane.b32.xlu0 %v313, 48
      %v877 = vpop.permute.xlu0 %876
      %878 = vrot.lane.b32.xlu0 %v314, 48
      %v879 = vpop.permute.xlu0 %878
      %880 = vrot.lane.b32.xlu0 %v315, 48
      %v881 = vpop.permute.xlu0 %880
      %882 = vrot.lane.b32.xlu0 %v316, 48
      %v883 = vpop.permute.xlu0 %882
      %884 = vrot.lane.b32.xlu0 %v317, 48
      %v885 = vpop.permute.xlu0 %884
      %886 = vrot.lane.b32.xlu0 %v318, 48
      %v887 = vpop.permute.xlu0 %886
      %888 = vrot.lane.b32.xlu0 %v319, 48
      %v889 = vpop.permute.xlu0 %888
      %890 = vrot.lane.b32.xlu0 %v320, 48
      %v891 = vpop.permute.xlu0 %890
      %892 = vrot.lane.b32.xlu0 %v321, 48
      %v893 = vpop.permute.xlu0 %892
      %894 = vrot.lane.b32.xlu0 %v322, 48
      %v895 = vpop.permute.xlu0 %894
      %928 = vrot.lane.b32.xlu0 %v590, 64
      %v929 = vpop.permute.xlu0 %928
      %930 = vrot.lane.b32.xlu0 %v591, 64
      %v931 = vpop.permute.xlu0 %930
      %932 = vrot.lane.b32.xlu0 %v592, 64
      %v933 = vpop.permute.xlu0 %932
      %934 = vrot.lane.b32.xlu0 %v593, 64
      %v935 = vpop.permute.xlu0 %934
      %936 = vrot.lane.b32.xlu0 %v594, 64
      %v937 = vpop.permute.xlu0 %936
      %938 = vrot.lane.b32.xlu0 %v595, 64
      %v939 = vpop.permute.xlu0 %938
      %940 = vrot.lane.b32.xlu0 %v596, 64
      %v941 = vpop.permute.xlu0 %940
      %942 = vrot.lane.b32.xlu0 %v597, 64
      %v943 = vpop.permute.xlu0 %942
      %944 = vrot.lane.b32.xlu0 %v598, 64
      %v945 = vpop.permute.xlu0 %944
      %946 = vrot.lane.b32.xlu0 %v599, 64
      %v947 = vpop.permute.xlu0 %946
      %948 = vrot.lane.b32.xlu0 %v600, 64
      %v949 = vpop.permute.xlu0 %948
      %950 = vrot.lane.b32.xlu0 %v601, 64
      %v951 = vpop.permute.xlu0 %950
      %952 = vrot.lane.b32.xlu0 %v602, 64
      %v953 = vpop.permute.xlu0 %952
      %954 = vrot.lane.b32.xlu0 %v603, 64
      %v955 = vpop.permute.xlu0 %954
      %956 = vrot.lane.b32.xlu0 %v604, 64
      %v957 = vpop.permute.xlu0 %956
      %958 = vrot.lane.b32.xlu0 %v605, 64
      %v959 = vpop.permute.xlu0 %958
      %992 = vrot.lane.b32.xlu0 %v655, 80
      %v993 = vpop.permute.xlu0 %992
      %994 = vrot.lane.b32.xlu0 %v656, 80
      %v995 = vpop.permute.xlu0 %994
      %996 = vrot.lane.b32.xlu0 %v657, 80
      %v997 = vpop.permute.xlu0 %996
      %998 = vrot.lane.b32.xlu0 %v658, 80
      %v999 = vpop.permute.xlu0 %998
      %1000 = vrot.lane.b32.xlu0 %v659, 80
      %v1001 = vpop.permute.xlu0 %1000
      %1002 = vrot.lane.b32.xlu0 %v660, 80
      %v1003 = vpop.permute.xlu0 %1002
      %1004 = vrot.lane.b32.xlu0 %v661, 80
      %v1005 = vpop.permute.xlu0 %1004
      %1006 = vrot.lane.b32.xlu0 %v662, 80
      %v1007 = vpop.permute.xlu0 %1006
      %1008 = vrot.lane.b32.xlu0 %v663, 80
      %v1009 = vpop.permute.xlu0 %1008
      %1010 = vrot.lane.b32.xlu0 %v664, 80
      %v1011 = vpop.permute.xlu0 %1010
      %1012 = vrot.lane.b32.xlu0 %v665, 80
      %v1013 = vpop.permute.xlu0 %1012
      %1014 = vrot.lane.b32.xlu0 %v666, 80
      %v1015 = vpop.permute.xlu0 %1014
      %1016 = vrot.lane.b32.xlu0 %v667, 80
      %v1017 = vpop.permute.xlu0 %1016
      %1018 = vrot.lane.b32.xlu0 %v668, 80
      %v1019 = vpop.permute.xlu0 %1018
      %1020 = vrot.lane.b32.xlu0 %v669, 80
      %v1021 = vpop.permute.xlu0 %1020
      %1022 = vrot.lane.b32.xlu0 %v670, 80
      %v1023 = vpop.permute.xlu0 %1022
      %1056 = vrot.lane.b32.xlu0 %v720, 96
      %v1057 = vpop.permute.xlu0 %1056
      %1058 = vrot.lane.b32.xlu0 %v721, 96
      %v1059 = vpop.permute.xlu0 %1058
      %1060 = vrot.lane.b32.xlu0 %v722, 96
      %v1061 = vpop.permute.xlu0 %1060
      %1062 = vrot.lane.b32.xlu0 %v723, 96
      %v1063 = vpop.permute.xlu0 %1062
      %1064 = vrot.lane.b32.xlu0 %v724, 96
      %v1065 = vpop.permute.xlu0 %1064
      %1066 = vrot.lane.b32.xlu0 %v725, 96
      %v1067 = vpop.permute.xlu0 %1066
      %1068 = vrot.lane.b32.xlu0 %v726, 96
      %v1069 = vpop.permute.xlu0 %1068
      %1070 = vrot.lane.b32.xlu0 %v727, 96
      %v1071 = vpop.permute.xlu0 %1070
      %1072 = vrot.lane.b32.xlu0 %v728, 96
      %v1073 = vpop.permute.xlu0 %1072
      %1074 = vrot.lane.b32.xlu0 %v729, 96
      %v1075 = vpop.permute.xlu0 %1074
      %1076 = vrot.lane.b32.xlu0 %v730, 96
      %v1077 = vpop.permute.xlu0 %1076
      %1078 = vrot.lane.b32.xlu0 %v731, 96
      %v1079 = vpop.permute.xlu0 %1078
      %1080 = vrot.lane.b32.xlu0 %v732, 96
      %v1081 = vpop.permute.xlu0 %1080
      %1082 = vrot.lane.b32.xlu0 %v733, 96
      %v1083 = vpop.permute.xlu0 %1082
      %1084 = vrot.lane.b32.xlu0 %v734, 96
      %v1085 = vpop.permute.xlu0 %1084
      %1086 = vrot.lane.b32.xlu0 %v735, 96
      %v1087 = vpop.permute.xlu0 %1086
      %vm1104 = vcmask 130048
      %v1105 = vsel %vm1104, %v395, %v753
      %v1106 = vsel %vm1104, %v396, %v755
      %v1107 = vsel %vm1104, %v397, %v757
      %v1108 = vsel %vm1104, %v398, %v759
      %v1109 = vsel %vm1104, %v399, %v761
      %v1110 = vsel %vm1104, %v400, %v763
      %v1111 = vsel %vm1104, %v401, %v765
      %v1112 = vsel %vm1104, %v402, %v767
      %v1113 = vsel %vm1104, %v403, %v769
      %v1114 = vsel %vm1104, %v404, %v771
      %v1115 = vsel %vm1104, %v405, %v773
      %v1116 = vsel %vm1104, %v406, %v775
      %v1117 = vsel %vm1104, %v407, %v777
      %v1118 = vsel %vm1104, %v408, %v779
      %v1119 = vsel %vm1104, %v409, %v781
      %v1120 = vsel %vm1104, %v410, %v783
      %vm1121 = vcmask 261120
      %v1122 = vsel %vm1121, %v1105, %v817
      %v1123 = vsel %vm1121, %v1106, %v819
      %v1124 = vsel %vm1121, %v1107, %v821
      %v1125 = vsel %vm1121, %v1108, %v823
      %v1126 = vsel %vm1121, %v1109, %v825
      %v1127 = vsel %vm1121, %v1110, %v827
      %v1128 = vsel %vm1121, %v1111, %v829
      %v1129 = vsel %vm1121, %v1112, %v831
      %v1130 = vsel %vm1121, %v1113, %v833
      %v1131 = vsel %vm1121, %v1114, %v835
      %v1132 = vsel %vm1121, %v1115, %v837
      %v1133 = vsel %vm1121, %v1116, %v839
      %v1134 = vsel %vm1121, %v1117, %v841
      %v1135 = vsel %vm1121, %v1118, %v843
      %v1136 = vsel %vm1121, %v1119, %v845
      %v1137 = vsel %vm1121, %v1120, %v847
      %vm1138 = vcmask 392192
      %v1139 = vsel %vm1138, %v1122, %v865
      %v1140 = vsel %vm1138, %v1123, %v867
      %v1141 = vsel %vm1138, %v1124, %v869
      %v1142 = vsel %vm1138, %v1125, %v871
      %v1143 = vsel %vm1138, %v1126, %v873
      %v1144 = vsel %vm1138, %v1127, %v875
      %v1145 = vsel %vm1138, %v1128, %v877
      %v1146 = vsel %vm1138, %v1129, %v879
      %v1147 = vsel %vm1138, %v1130, %v881
      %v1148 = vsel %vm1138, %v1131, %v883
      %v1149 = vsel %vm1138, %v1132, %v885
      %v1150 = vsel %vm1138, %v1133, %v887
      %v1151 = vsel %vm1138, %v1134, %v889
      %v1152 = vsel %vm1138, %v1135, %v891
      %v1153 = vsel %vm1138, %v1136, %v893
      %v1154 = vsel %vm1138, %v1137, %v895
      %vm1155 = vcmask 523264
      %v1156 = vsel %vm1155, %v1139, %v929
      %v1157 = vsel %vm1155, %v1140, %v931
      %v1158 = vsel %vm1155, %v1141, %v933
      %v1159 = vsel %vm1155, %v1142, %v935
      %v1160 = vsel %vm1155, %v1143, %v937
      %v1161 = vsel %vm1155, %v1144, %v939
      %v1162 = vsel %vm1155, %v1145, %v941
      %v1163 = vsel %vm1155, %v1146, %v943
      %v1164 = vsel %vm1155, %v1147, %v945
      %v1165 = vsel %vm1155, %v1148, %v947
      %v1166 = vsel %vm1155, %v1149, %v949
      %v1167 = vsel %vm1155, %v1150, %v951
      %v1168 = vsel %vm1155, %v1151, %v953
      %v1169 = vsel %vm1155, %v1152, %v955
      %v1170 = vsel %vm1155, %v1153, %v957
      %v1171 = vsel %vm1155, %v1154, %v959
      %vm1172 = vcmask 654336
      %v1173 = vsel %vm1172, %v1156, %v993
      %v1174 = vsel %vm1172, %v1157, %v995
      %v1175 = vsel %vm1172, %v1158, %v997
      %v1176 = vsel %vm1172, %v1159, %v999
      %v1177 = vsel %vm1172, %v1160, %v1001
      %v1178 = vsel %vm1172, %v1161, %v1003
      %v1179 = vsel %vm1172, %v1162, %v1005
      %v1180 = vsel %vm1172, %v1163, %v1007
      %v1181 = vsel %vm1172, %v1164, %v1009
      %v1182 = vsel %vm1172, %v1165, %v1011
      %v1183 = vsel %vm1172, %v1166, %v1013
      %v1184 = vsel %vm1172, %v1167, %v1015
      %v1185 = vsel %vm1172, %v1168, %v1017
      %v1186 = vsel %vm1172, %v1169, %v1019
      %v1187 = vsel %vm1172, %v1170, %v1021
      %v1188 = vsel %vm1172, %v1171, %v1023
      %vm1189 = vcmask 785408
      %v1190 = vsel %vm1189, %v1173, %v1057
      %v1191 = vsel %vm1189, %v1174, %v1059
      %v1192 = vsel %vm1189, %v1175, %v1061
      %v1193 = vsel %vm1189, %v1176, %v1063
      %v1194 = vsel %vm1189, %v1177, %v1065
      %v1195 = vsel %vm1189, %v1178, %v1067
      %v1196 = vsel %vm1189, %v1179, %v1069
      %v1197 = vsel %vm1189, %v1180, %v1071
      %v1198 = vsel %vm1189, %v1181, %v1073
      %v1199 = vsel %vm1189, %v1182, %v1075
      %v1200 = vsel %vm1189, %v1183, %v1077
      %v1201 = vsel %vm1189, %v1184, %v1079
      %v1202 = vsel %vm1189, %v1185, %v1081
      %v1203 = vsel %vm1189, %v1186, %v1083
      %v1204 = vsel %vm1189, %v1187, %v1085
      %v1205 = vsel %vm1189, %v1188, %v1087
      %s1206 = scalar_lea.vmem [#allocation2], 48
      %1207 = vst.msk [vmem:[%s1206] sm:$0xff] %vm323, %v1190
      %1208 = vst.msk [vmem:[%s1206 + $0x8] sm:$0xff] %vm323, %v1191
      %1209 = vst.msk [vmem:[%s1206 + $0x10] sm:$0xff] %vm323, %v1192
      %1210 = vst.msk [vmem:[%s1206 + $0x18] sm:$0xff] %vm323, %v1193
      %1211 = vst.msk [vmem:[%s1206 + $0x20] sm:$0xff] %vm323, %v1194
      %1212 = vst.msk [vmem:[%s1206 + $0x28] sm:$0xff] %vm323, %v1195
      %1213 = vst.msk [vmem:[%s1206 + $0x30] sm:$0xff] %vm323, %v1196
      %1214 = vst.msk [vmem:[%s1206 + $0x38] sm:$0xff] %vm323, %v1197
      %1215 = vst.msk [vmem:[%s1206 + $0x40] sm:$0xff] %vm323, %v1198
      %1216 = vst.msk [vmem:[%s1206 + $0x48] sm:$0xff] %vm323, %v1199
      %1217 = vst.msk [vmem:[%s1206 + $0x50] sm:$0xff] %vm323, %v1200
      %1218 = vst.msk [vmem:[%s1206 + $0x58] sm:$0xff] %vm323, %v1201
      %1219 = vst.msk [vmem:[%s1206 + $0x60] sm:$0xff] %vm323, %v1202
      %1220 = vst.msk [vmem:[%s1206 + $0x68] sm:$0xff] %vm323, %v1203
      %1221 = vst.msk [vmem:[%s1206 + $0x70] sm:$0xff] %vm323, %v1204
      %1222 = vst.msk [vmem:[%s1206 + $0x78] sm:$0xff] %vm323, %v1205
      %s1223 = scalar_lea.vmem [#allocation2], 176
      %1224 = vst.msk [vmem:[%s1223] sm:$0xff] %vm323, 0.0
      %1225 = vst.msk [vmem:[%s1223 + $0x8] sm:$0xff] %vm323, 0.0
      %1226 = vst.msk [vmem:[%s1223 + $0x10] sm:$0xff] %vm323, 0.0
      %1227 = vst.msk [vmem:[%s1223 + $0x18] sm:$0xff] %vm323, 0.0
      %1228 = vst.msk [vmem:[%s1223 + $0x20] sm:$0xff] %vm323, 0.0
      %1229 = vst.msk [vmem:[%s1223 + $0x28] sm:$0xff] %vm323, 0.0
      %s1230 = scalar_lea.vmem [#allocation2], 224
      %1231 = vst.msk [vmem:[%s1230] sm:$0xff] %vm323, 0.0
      %1232 = vst.msk [vmem:[%s1230 + $0x8] sm:$0xff] %vm323, 0.0
      %1233 = vst.msk [vmem:[%s1230 + $0x10] sm:$0xff] %vm323, 0.0
      %1234 = vst.msk [vmem:[%s1230 + $0x18] sm:$0xff] %vm323, 0.0
      %1235 = vst.msk [vmem:[%s1230 + $0x20] sm:$0xff] %vm323, 0.0
      %1236 = vst.msk [vmem:[%s1230 + $0x28] sm:$0xff] %vm323, 0.0
      %1253 = vrot.lane.b32.xlu0 %v291, 3
      %v1254 = vpop.permute.xlu0 %1253
      %1255 = vrot.lane.b32.xlu0 %v292, 3
      %v1256 = vpop.permute.xlu0 %1255
      %1257 = vrot.lane.b32.xlu0 %v293, 3
      %v1258 = vpop.permute.xlu0 %1257
      %1259 = vrot.lane.b32.xlu0 %v294, 3
      %v1260 = vpop.permute.xlu0 %1259
      %1261 = vrot.lane.b32.xlu0 %v295, 3
      %v1262 = vpop.permute.xlu0 %1261
      %1263 = vrot.lane.b32.xlu0 %v296, 3
      %v1264 = vpop.permute.xlu0 %1263
      %1265 = vrot.lane.b32.xlu0 %v297, 3
      %v1266 = vpop.permute.xlu0 %1265
      %1267 = vrot.lane.b32.xlu0 %v298, 3
      %v1268 = vpop.permute.xlu0 %1267
      %1269 = vrot.lane.b32.xlu0 %v299, 3
      %v1270 = vpop.permute.xlu0 %1269
      %1271 = vrot.lane.b32.xlu0 %v300, 3
      %v1272 = vpop.permute.xlu0 %1271
      %1273 = vrot.lane.b32.xlu0 %v301, 3
      %v1274 = vpop.permute.xlu0 %1273
      %1275 = vrot.lane.b32.xlu0 %v302, 3
      %v1276 = vpop.permute.xlu0 %1275
      %1277 = vrot.lane.b32.xlu0 %v303, 3
      %v1278 = vpop.permute.xlu0 %1277
      %1279 = vrot.lane.b32.xlu0 %v304, 3
      %v1280 = vpop.permute.xlu0 %1279
      %1281 = vrot.lane.b32.xlu0 %v305, 3
      %v1282 = vpop.permute.xlu0 %1281
      %1283 = vrot.lane.b32.xlu0 %v306, 3
      %v1284 = vpop.permute.xlu0 %1283
      %v1301 = vsel %vm394, 0.0, %v1254
      %v1302 = vsel %vm394, 0.0, %v1256
      %v1303 = vsel %vm394, 0.0, %v1258
      %v1304 = vsel %vm394, 0.0, %v1260
      %v1305 = vsel %vm394, 0.0, %v1262
      %v1306 = vsel %vm394, 0.0, %v1264
      %v1307 = vsel %vm394, 0.0, %v1266
      %v1308 = vsel %vm394, 0.0, %v1268
      %v1309 = vsel %vm394, 0.0, %v1270
      %v1310 = vsel %vm394, 0.0, %v1272
      %v1311 = vsel %vm394, 0.0, %v1274
      %v1312 = vsel %vm394, 0.0, %v1276
      %v1313 = vsel %vm394, 0.0, %v1278
      %v1314 = vsel %vm394, 0.0, %v1280
      %v1315 = vsel %vm394, 0.0, %v1282
      %v1316 = vsel %vm394, 0.0, %v1284
      %1317 = vrot.lane.b32.xlu0 %v291, 2
      %v1318 = vpop.permute.xlu0 %1317
      %1319 = vrot.lane.b32.xlu0 %v292, 2
      %v1320 = vpop.permute.xlu0 %1319
      %1321 = vrot.lane.b32.xlu0 %v293, 2
      %v1322 = vpop.permute.xlu0 %1321
      %1323 = vrot.lane.b32.xlu0 %v294, 2
      %v1324 = vpop.permute.xlu0 %1323
      %1325 = vrot.lane.b32.xlu0 %v295, 2
      %v1326 = vpop.permute.xlu0 %1325
      %1327 = vrot.lane.b32.xlu0 %v296, 2
      %v1328 = vpop.permute.xlu0 %1327
      %1329 = vrot.lane.b32.xlu0 %v297, 2
      %v1330 = vpop.permute.xlu0 %1329
      %1331 = vrot.lane.b32.xlu0 %v298, 2
      %v1332 = vpop.permute.xlu0 %1331
      %1333 = vrot.lane.b32.xlu0 %v299, 2
      %v1334 = vpop.permute.xlu0 %1333
      %1335 = vrot.lane.b32.xlu0 %v300, 2
      %v1336 = vpop.permute.xlu0 %1335
      %1337 = vrot.lane.b32.xlu0 %v301, 2
      %v1338 = vpop.permute.xlu0 %1337
      %1339 = vrot.lane.b32.xlu0 %v302, 2
      %v1340 = vpop.permute.xlu0 %1339
      %1341 = vrot.lane.b32.xlu0 %v303, 2
      %v1342 = vpop.permute.xlu0 %1341
      %1343 = vrot.lane.b32.xlu0 %v304, 2
      %v1344 = vpop.permute.xlu0 %1343
      %1345 = vrot.lane.b32.xlu0 %v305, 2
      %v1346 = vpop.permute.xlu0 %1345
      %1347 = vrot.lane.b32.xlu0 %v306, 2
      %v1348 = vpop.permute.xlu0 %1347
      %v1365 = vsel %vm459, 0.0, %v1318
      %v1366 = vsel %vm459, 0.0, %v1320
      %v1367 = vsel %vm459, 0.0, %v1322
      %v1368 = vsel %vm459, 0.0, %v1324
      %v1369 = vsel %vm459, 0.0, %v1326
      %v1370 = vsel %vm459, 0.0, %v1328
      %v1371 = vsel %vm459, 0.0, %v1330
      %v1372 = vsel %vm459, 0.0, %v1332
      %v1373 = vsel %vm459, 0.0, %v1334
      %v1374 = vsel %vm459, 0.0, %v1336
      %v1375 = vsel %vm459, 0.0, %v1338
      %v1376 = vsel %vm459, 0.0, %v1340
      %v1377 = vsel %vm459, 0.0, %v1342
      %v1378 = vsel %vm459, 0.0, %v1344
      %v1379 = vsel %vm459, 0.0, %v1346
      %v1380 = vsel %vm459, 0.0, %v1348
      %1381 = vrot.lane.b32.xlu0 %v291, 1
      %v1382 = vpop.permute.xlu0 %1381
      %1383 = vrot.lane.b32.xlu0 %v292, 1
      %v1384 = vpop.permute.xlu0 %1383
      %1385 = vrot.lane.b32.xlu0 %v293, 1
      %v1386 = vpop.permute.xlu0 %1385
      %1387 = vrot.lane.b32.xlu0 %v294, 1
      %v1388 = vpop.permute.xlu0 %1387
      %1389 = vrot.lane.b32.xlu0 %v295, 1
      %v1390 = vpop.permute.xlu0 %1389
      %1391 = vrot.lane.b32.xlu0 %v296, 1
      %v1392 = vpop.permute.xlu0 %1391
      %1393 = vrot.lane.b32.xlu0 %v297, 1
      %v1394 = vpop.permute.xlu0 %1393
      %1395 = vrot.lane.b32.xlu0 %v298, 1
      %v1396 = vpop.permute.xlu0 %1395
      %1397 = vrot.lane.b32.xlu0 %v299, 1
      %v1398 = vpop.permute.xlu0 %1397
      %1399 = vrot.lane.b32.xlu0 %v300, 1
      %v1400 = vpop.permute.xlu0 %1399
      %1401 = vrot.lane.b32.xlu0 %v301, 1
      %v1402 = vpop.permute.xlu0 %1401
      %1403 = vrot.lane.b32.xlu0 %v302, 1
      %v1404 = vpop.permute.xlu0 %1403
      %1405 = vrot.lane.b32.xlu0 %v303, 1
      %v1406 = vpop.permute.xlu0 %1405
      %1407 = vrot.lane.b32.xlu0 %v304, 1
      %v1408 = vpop.permute.xlu0 %1407
      %1409 = vrot.lane.b32.xlu0 %v305, 1
      %v1410 = vpop.permute.xlu0 %1409
      %1411 = vrot.lane.b32.xlu0 %v306, 1
      %v1412 = vpop.permute.xlu0 %1411
      %v1429 = vsel %vm524, 0.0, %v1382
      %v1430 = vsel %vm524, 0.0, %v1384
      %v1431 = vsel %vm524, 0.0, %v1386
      %v1432 = vsel %vm524, 0.0, %v1388
      %v1433 = vsel %vm524, 0.0, %v1390
      %v1434 = vsel %vm524, 0.0, %v1392
      %v1435 = vsel %vm524, 0.0, %v1394
      %v1436 = vsel %vm524, 0.0, %v1396
      %v1437 = vsel %vm524, 0.0, %v1398
      %v1438 = vsel %vm524, 0.0, %v1400
      %v1439 = vsel %vm524, 0.0, %v1402
      %v1440 = vsel %vm524, 0.0, %v1404
      %v1441 = vsel %vm524, 0.0, %v1406
      %v1442 = vsel %vm524, 0.0, %v1408
      %v1443 = vsel %vm524, 0.0, %v1410
      %v1444 = vsel %vm524, 0.0, %v1412
      %1445 = vrot.lane.b32.xlu0 %v291, 127
      %v1446 = vpop.permute.xlu0 %1445
      %1447 = vrot.lane.b32.xlu0 %v292, 127
      %v1448 = vpop.permute.xlu0 %1447
      %1449 = vrot.lane.b32.xlu0 %v293, 127
      %v1450 = vpop.permute.xlu0 %1449
      %1451 = vrot.lane.b32.xlu0 %v294, 127
      %v1452 = vpop.permute.xlu0 %1451
      %1453 = vrot.lane.b32.xlu0 %v295, 127
      %v1454 = vpop.permute.xlu0 %1453
      %1455 = vrot.lane.b32.xlu0 %v296, 127
      %v1456 = vpop.permute.xlu0 %1455
      %1457 = vrot.lane.b32.xlu0 %v297, 127
      %v1458 = vpop.permute.xlu0 %1457
      %1459 = vrot.lane.b32.xlu0 %v298, 127
      %v1460 = vpop.permute.xlu0 %1459
      %1461 = vrot.lane.b32.xlu0 %v299, 127
      %v1462 = vpop.permute.xlu0 %1461
      %1463 = vrot.lane.b32.xlu0 %v300, 127
      %v1464 = vpop.permute.xlu0 %1463
      %1465 = vrot.lane.b32.xlu0 %v301, 127
      %v1466 = vpop.permute.xlu0 %1465
      %1467 = vrot.lane.b32.xlu0 %v302, 127
      %v1468 = vpop.permute.xlu0 %1467
      %1469 = vrot.lane.b32.xlu0 %v303, 127
      %v1470 = vpop.permute.xlu0 %1469
      %1471 = vrot.lane.b32.xlu0 %v304, 127
      %v1472 = vpop.permute.xlu0 %1471
      %1473 = vrot.lane.b32.xlu0 %v305, 127
      %v1474 = vpop.permute.xlu0 %1473
      %1475 = vrot.lane.b32.xlu0 %v306, 127
      %v1476 = vpop.permute.xlu0 %1475
      %v1493 = vsel %vm589, %v1446, 0.0
      %v1494 = vsel %vm589, %v1448, 0.0
      %v1495 = vsel %vm589, %v1450, 0.0
      %v1496 = vsel %vm589, %v1452, 0.0
      %v1497 = vsel %vm589, %v1454, 0.0
      %v1498 = vsel %vm589, %v1456, 0.0
      %v1499 = vsel %vm589, %v1458, 0.0
      %v1500 = vsel %vm589, %v1460, 0.0
      %v1501 = vsel %vm589, %v1462, 0.0
      %v1502 = vsel %vm589, %v1464, 0.0
      %v1503 = vsel %vm589, %v1466, 0.0
      %v1504 = vsel %vm589, %v1468, 0.0
      %v1505 = vsel %vm589, %v1470, 0.0
      %v1506 = vsel %vm589, %v1472, 0.0
      %v1507 = vsel %vm589, %v1474, 0.0
      %v1508 = vsel %vm589, %v1476, 0.0
      %1509 = vrot.lane.b32.xlu0 %v291, 126
      %v1510 = vpop.permute.xlu0 %1509
      %1511 = vrot.lane.b32.xlu0 %v292, 126
      %v1512 = vpop.permute.xlu0 %1511
      %1513 = vrot.lane.b32.xlu0 %v293, 126
      %v1514 = vpop.permute.xlu0 %1513
      %1515 = vrot.lane.b32.xlu0 %v294, 126
      %v1516 = vpop.permute.xlu0 %1515
      %1517 = vrot.lane.b32.xlu0 %v295, 126
      %v1518 = vpop.permute.xlu0 %1517
      %1519 = vrot.lane.b32.xlu0 %v296, 126
      %v1520 = vpop.permute.xlu0 %1519
      %1521 = vrot.lane.b32.xlu0 %v297, 126
      %v1522 = vpop.permute.xlu0 %1521
      %1523 = vrot.lane.b32.xlu0 %v298, 126
      %v1524 = vpop.permute.xlu0 %1523
      %1525 = vrot.lane.b32.xlu0 %v299, 126
      %v1526 = vpop.permute.xlu0 %1525
      %1527 = vrot.lane.b32.xlu0 %v300, 126
      %v1528 = vpop.permute.xlu0 %1527
      %1529 = vrot.lane.b32.xlu0 %v301, 126
      %v1530 = vpop.permute.xlu0 %1529
      %1531 = vrot.lane.b32.xlu0 %v302, 126
      %v1532 = vpop.permute.xlu0 %1531
      %1533 = vrot.lane.b32.xlu0 %v303, 126
      %v1534 = vpop.permute.xlu0 %1533
      %1535 = vrot.lane.b32.xlu0 %v304, 126
      %v1536 = vpop.permute.xlu0 %1535
      %1537 = vrot.lane.b32.xlu0 %v305, 126
      %v1538 = vpop.permute.xlu0 %1537
      %1539 = vrot.lane.b32.xlu0 %v306, 126
      %v1540 = vpop.permute.xlu0 %1539
      %v1557 = vsel %vm654, %v1510, 0.0
      %v1558 = vsel %vm654, %v1512, 0.0
      %v1559 = vsel %vm654, %v1514, 0.0
      %v1560 = vsel %vm654, %v1516, 0.0
      %v1561 = vsel %vm654, %v1518, 0.0
      %v1562 = vsel %vm654, %v1520, 0.0
      %v1563 = vsel %vm654, %v1522, 0.0
      %v1564 = vsel %vm654, %v1524, 0.0
      %v1565 = vsel %vm654, %v1526, 0.0
      %v1566 = vsel %vm654, %v1528, 0.0
      %v1567 = vsel %vm654, %v1530, 0.0
      %v1568 = vsel %vm654, %v1532, 0.0
      %v1569 = vsel %vm654, %v1534, 0.0
      %v1570 = vsel %vm654, %v1536, 0.0
      %v1571 = vsel %vm654, %v1538, 0.0
      %v1572 = vsel %vm654, %v1540, 0.0
      %1573 = vrot.lane.b32.xlu0 %v291, 125
      %v1574 = vpop.permute.xlu0 %1573
      %1575 = vrot.lane.b32.xlu0 %v292, 125
      %v1576 = vpop.permute.xlu0 %1575
      %1577 = vrot.lane.b32.xlu0 %v293, 125
      %v1578 = vpop.permute.xlu0 %1577
      %1579 = vrot.lane.b32.xlu0 %v294, 125
      %v1580 = vpop.permute.xlu0 %1579
      %1581 = vrot.lane.b32.xlu0 %v295, 125
      %v1582 = vpop.permute.xlu0 %1581
      %1583 = vrot.lane.b32.xlu0 %v296, 125
      %v1584 = vpop.permute.xlu0 %1583
      %1585 = vrot.lane.b32.xlu0 %v297, 125
      %v1586 = vpop.permute.xlu0 %1585
      %1587 = vrot.lane.b32.xlu0 %v298, 125
      %v1588 = vpop.permute.xlu0 %1587
      %1589 = vrot.lane.b32.xlu0 %v299, 125
      %v1590 = vpop.permute.xlu0 %1589
      %1591 = vrot.lane.b32.xlu0 %v300, 125
      %v1592 = vpop.permute.xlu0 %1591
      %1593 = vrot.lane.b32.xlu0 %v301, 125
      %v1594 = vpop.permute.xlu0 %1593
      %1595 = vrot.lane.b32.xlu0 %v302, 125
      %v1596 = vpop.permute.xlu0 %1595
      %1597 = vrot.lane.b32.xlu0 %v303, 125
      %v1598 = vpop.permute.xlu0 %1597
      %1599 = vrot.lane.b32.xlu0 %v304, 125
      %v1600 = vpop.permute.xlu0 %1599
      %1601 = vrot.lane.b32.xlu0 %v305, 125
      %v1602 = vpop.permute.xlu0 %1601
      %1603 = vrot.lane.b32.xlu0 %v306, 125
      %v1604 = vpop.permute.xlu0 %1603
      %v1621 = vsel %vm719, %v1574, 0.0
      %v1622 = vsel %vm719, %v1576, 0.0
      %v1623 = vsel %vm719, %v1578, 0.0
      %v1624 = vsel %vm719, %v1580, 0.0
      %v1625 = vsel %vm719, %v1582, 0.0
      %v1626 = vsel %vm719, %v1584, 0.0
      %v1627 = vsel %vm719, %v1586, 0.0
      %v1628 = vsel %vm719, %v1588, 0.0
      %v1629 = vsel %vm719, %v1590, 0.0
      %v1630 = vsel %vm719, %v1592, 0.0
      %v1631 = vsel %vm719, %v1594, 0.0
      %v1632 = vsel %vm719, %v1596, 0.0
      %v1633 = vsel %vm719, %v1598, 0.0
      %v1634 = vsel %vm719, %v1600, 0.0
      %v1635 = vsel %vm719, %v1602, 0.0
      %v1636 = vsel %vm719, %v1604, 0.0
      %1653 = vrot.lane.b32.xlu0 %v1365, 16
      %v1654 = vpop.permute.xlu0 %1653
      %1655 = vrot.lane.b32.xlu0 %v1366, 16
      %v1656 = vpop.permute.xlu0 %1655
      %1657 = vrot.lane.b32.xlu0 %v1367, 16
      %v1658 = vpop.permute.xlu0 %1657
      %1659 = vrot.lane.b32.xlu0 %v1368, 16
      %v1660 = vpop.permute.xlu0 %1659
      %1661 = vrot.lane.b32.xlu0 %v1369, 16
      %v1662 = vpop.permute.xlu0 %1661
      %1663 = vrot.lane.b32.xlu0 %v1370, 16
      %v1664 = vpop.permute.xlu0 %1663
      %1665 = vrot.lane.b32.xlu0 %v1371, 16
      %v1666 = vpop.permute.xlu0 %1665
      %1667 = vrot.lane.b32.xlu0 %v1372, 16
      %v1668 = vpop.permute.xlu0 %1667
      %1669 = vrot.lane.b32.xlu0 %v1373, 16
      %v1670 = vpop.permute.xlu0 %1669
      %1671 = vrot.lane.b32.xlu0 %v1374, 16
      %v1672 = vpop.permute.xlu0 %1671
      %1673 = vrot.lane.b32.xlu0 %v1375, 16
      %v1674 = vpop.permute.xlu0 %1673
      %1675 = vrot.lane.b32.xlu0 %v1376, 16
      %v1676 = vpop.permute.xlu0 %1675
      %1677 = vrot.lane.b32.xlu0 %v1377, 16
      %v1678 = vpop.permute.xlu0 %1677
      %1679 = vrot.lane.b32.xlu0 %v1378, 16
      %v1680 = vpop.permute.xlu0 %1679
      %1681 = vrot.lane.b32.xlu0 %v1379, 16
      %v1682 = vpop.permute.xlu0 %1681
      %1683 = vrot.lane.b32.xlu0 %v1380, 16
      %v1684 = vpop.permute.xlu0 %1683
      %1717 = vrot.lane.b32.xlu0 %v1429, 32
      %v1718 = vpop.permute.xlu0 %1717
      %1719 = vrot.lane.b32.xlu0 %v1430, 32
      %v1720 = vpop.permute.xlu0 %1719
      %1721 = vrot.lane.b32.xlu0 %v1431, 32
      %v1722 = vpop.permute.xlu0 %1721
      %1723 = vrot.lane.b32.xlu0 %v1432, 32
      %v1724 = vpop.permute.xlu0 %1723
      %1725 = vrot.lane.b32.xlu0 %v1433, 32
      %v1726 = vpop.permute.xlu0 %1725
      %1727 = vrot.lane.b32.xlu0 %v1434, 32
      %v1728 = vpop.permute.xlu0 %1727
      %1729 = vrot.lane.b32.xlu0 %v1435, 32
      %v1730 = vpop.permute.xlu0 %1729
      %1731 = vrot.lane.b32.xlu0 %v1436, 32
      %v1732 = vpop.permute.xlu0 %1731
      %1733 = vrot.lane.b32.xlu0 %v1437, 32
      %v1734 = vpop.permute.xlu0 %1733
      %1735 = vrot.lane.b32.xlu0 %v1438, 32
      %v1736 = vpop.permute.xlu0 %1735
      %1737 = vrot.lane.b32.xlu0 %v1439, 32
      %v1738 = vpop.permute.xlu0 %1737
      %1739 = vrot.lane.b32.xlu0 %v1440, 32
      %v1740 = vpop.permute.xlu0 %1739
      %1741 = vrot.lane.b32.xlu0 %v1441, 32
      %v1742 = vpop.permute.xlu0 %1741
      %1743 = vrot.lane.b32.xlu0 %v1442, 32
      %v1744 = vpop.permute.xlu0 %1743
      %1745 = vrot.lane.b32.xlu0 %v1443, 32
      %v1746 = vpop.permute.xlu0 %1745
      %1747 = vrot.lane.b32.xlu0 %v1444, 32
      %v1748 = vpop.permute.xlu0 %1747
      %1765 = vrot.lane.b32.xlu0 %v291, 48
      %v1766 = vpop.permute.xlu0 %1765
      %1767 = vrot.lane.b32.xlu0 %v292, 48
      %v1768 = vpop.permute.xlu0 %1767
      %1769 = vrot.lane.b32.xlu0 %v293, 48
      %v1770 = vpop.permute.xlu0 %1769
      %1771 = vrot.lane.b32.xlu0 %v294, 48
      %v1772 = vpop.permute.xlu0 %1771
      %1773 = vrot.lane.b32.xlu0 %v295, 48
      %v1774 = vpop.permute.xlu0 %1773
      %1775 = vrot.lane.b32.xlu0 %v296, 48
      %v1776 = vpop.permute.xlu0 %1775
      %1777 = vrot.lane.b32.xlu0 %v297, 48
      %v1778 = vpop.permute.xlu0 %1777
      %1779 = vrot.lane.b32.xlu0 %v298, 48
      %v1780 = vpop.permute.xlu0 %1779
      %1781 = vrot.lane.b32.xlu0 %v299, 48
      %v1782 = vpop.permute.xlu0 %1781
      %1783 = vrot.lane.b32.xlu0 %v300, 48
      %v1784 = vpop.permute.xlu0 %1783
      %1785 = vrot.lane.b32.xlu0 %v301, 48
      %v1786 = vpop.permute.xlu0 %1785
      %1787 = vrot.lane.b32.xlu0 %v302, 48
      %v1788 = vpop.permute.xlu0 %1787
      %1789 = vrot.lane.b32.xlu0 %v303, 48
      %v1790 = vpop.permute.xlu0 %1789
      %1791 = vrot.lane.b32.xlu0 %v304, 48
      %v1792 = vpop.permute.xlu0 %1791
      %1793 = vrot.lane.b32.xlu0 %v305, 48
      %v1794 = vpop.permute.xlu0 %1793
      %1795 = vrot.lane.b32.xlu0 %v306, 48
      %v1796 = vpop.permute.xlu0 %1795
      %1829 = vrot.lane.b32.xlu0 %v1493, 64
      %v1830 = vpop.permute.xlu0 %1829
      %1831 = vrot.lane.b32.xlu0 %v1494, 64
      %v1832 = vpop.permute.xlu0 %1831
      %1833 = vrot.lane.b32.xlu0 %v1495, 64
      %v1834 = vpop.permute.xlu0 %1833
      %1835 = vrot.lane.b32.xlu0 %v1496, 64
      %v1836 = vpop.permute.xlu0 %1835
      %1837 = vrot.lane.b32.xlu0 %v1497, 64
      %v1838 = vpop.permute.xlu0 %1837
      %1839 = vrot.lane.b32.xlu0 %v1498, 64
      %v1840 = vpop.permute.xlu0 %1839
      %1841 = vrot.lane.b32.xlu0 %v1499, 64
      %v1842 = vpop.permute.xlu0 %1841
      %1843 = vrot.lane.b32.xlu0 %v1500, 64
      %v1844 = vpop.permute.xlu0 %1843
      %1845 = vrot.lane.b32.xlu0 %v1501, 64
      %v1846 = vpop.permute.xlu0 %1845
      %1847 = vrot.lane.b32.xlu0 %v1502, 64
      %v1848 = vpop.permute.xlu0 %1847
      %1849 = vrot.lane.b32.xlu0 %v1503, 64
      %v1850 = vpop.permute.xlu0 %1849
      %1851 = vrot.lane.b32.xlu0 %v1504, 64
      %v1852 = vpop.permute.xlu0 %1851
      %1853 = vrot.lane.b32.xlu0 %v1505, 64
      %v1854 = vpop.permute.xlu0 %1853
      %1855 = vrot.lane.b32.xlu0 %v1506, 64
      %v1856 = vpop.permute.xlu0 %1855
      %1857 = vrot.lane.b32.xlu0 %v1507, 64
      %v1858 = vpop.permute.xlu0 %1857
      %1859 = vrot.lane.b32.xlu0 %v1508, 64
      %v1860 = vpop.permute.xlu0 %1859
      %1893 = vrot.lane.b32.xlu0 %v1557, 80
      %v1894 = vpop.permute.xlu0 %1893
      %1895 = vrot.lane.b32.xlu0 %v1558, 80
      %v1896 = vpop.permute.xlu0 %1895
      %1897 = vrot.lane.b32.xlu0 %v1559, 80
      %v1898 = vpop.permute.xlu0 %1897
      %1899 = vrot.lane.b32.xlu0 %v1560, 80
      %v1900 = vpop.permute.xlu0 %1899
      %1901 = vrot.lane.b32.xlu0 %v1561, 80
      %v1902 = vpop.permute.xlu0 %1901
      %1903 = vrot.lane.b32.xlu0 %v1562, 80
      %v1904 = vpop.permute.xlu0 %1903
      %1905 = vrot.lane.b32.xlu0 %v1563, 80
      %v1906 = vpop.permute.xlu0 %1905
      %1907 = vrot.lane.b32.xlu0 %v1564, 80
      %v1908 = vpop.permute.xlu0 %1907
      %1909 = vrot.lane.b32.xlu0 %v1565, 80
      %v1910 = vpop.permute.xlu0 %1909
      %1911 = vrot.lane.b32.xlu0 %v1566, 80
      %v1912 = vpop.permute.xlu0 %1911
      %1913 = vrot.lane.b32.xlu0 %v1567, 80
      %v1914 = vpop.permute.xlu0 %1913
      %1915 = vrot.lane.b32.xlu0 %v1568, 80
      %v1916 = vpop.permute.xlu0 %1915
      %1917 = vrot.lane.b32.xlu0 %v1569, 80
      %v1918 = vpop.permute.xlu0 %1917
      %1919 = vrot.lane.b32.xlu0 %v1570, 80
      %v1920 = vpop.permute.xlu0 %1919
      %1921 = vrot.lane.b32.xlu0 %v1571, 80
      %v1922 = vpop.permute.xlu0 %1921
      %1923 = vrot.lane.b32.xlu0 %v1572, 80
      %v1924 = vpop.permute.xlu0 %1923
      %1957 = vrot.lane.b32.xlu0 %v1621, 96
      %v1958 = vpop.permute.xlu0 %1957
      %1959 = vrot.lane.b32.xlu0 %v1622, 96
      %v1960 = vpop.permute.xlu0 %1959
      %1961 = vrot.lane.b32.xlu0 %v1623, 96
      %v1962 = vpop.permute.xlu0 %1961
      %1963 = vrot.lane.b32.xlu0 %v1624, 96
      %v1964 = vpop.permute.xlu0 %1963
      %1965 = vrot.lane.b32.xlu0 %v1625, 96
      %v1966 = vpop.permute.xlu0 %1965
      %1967 = vrot.lane.b32.xlu0 %v1626, 96
      %v1968 = vpop.permute.xlu0 %1967
      %1969 = vrot.lane.b32.xlu0 %v1627, 96
      %v1970 = vpop.permute.xlu0 %1969
      %1971 = vrot.lane.b32.xlu0 %v1628, 96
      %v1972 = vpop.permute.xlu0 %1971
      %1973 = vrot.lane.b32.xlu0 %v1629, 96
      %v1974 = vpop.permute.xlu0 %1973
      %1975 = vrot.lane.b32.xlu0 %v1630, 96
      %v1976 = vpop.permute.xlu0 %1975
      %1977 = vrot.lane.b32.xlu0 %v1631, 96
      %v1978 = vpop.permute.xlu0 %1977
      %1979 = vrot.lane.b32.xlu0 %v1632, 96
      %v1980 = vpop.permute.xlu0 %1979
      %1981 = vrot.lane.b32.xlu0 %v1633, 96
      %v1982 = vpop.permute.xlu0 %1981
      %1983 = vrot.lane.b32.xlu0 %v1634, 96
      %v1984 = vpop.permute.xlu0 %1983
      %1985 = vrot.lane.b32.xlu0 %v1635, 96
      %v1986 = vpop.permute.xlu0 %1985
      %1987 = vrot.lane.b32.xlu0 %v1636, 96
      %v1988 = vpop.permute.xlu0 %1987
      %v2005 = vsel %vm1104, %v1301, %v1654
      %v2006 = vsel %vm1104, %v1302, %v1656
      %v2007 = vsel %vm1104, %v1303, %v1658
      %v2008 = vsel %vm1104, %v1304, %v1660
      %v2009 = vsel %vm1104, %v1305, %v1662
      %v2010 = vsel %vm1104, %v1306, %v1664
      %v2011 = vsel %vm1104, %v1307, %v1666
      %v2012 = vsel %vm1104, %v1308, %v1668
      %v2013 = vsel %vm1104, %v1309, %v1670
      %v2014 = vsel %vm1104, %v1310, %v1672
      %v2015 = vsel %vm1104, %v1311, %v1674
      %v2016 = vsel %vm1104, %v1312, %v1676
      %v2017 = vsel %vm1104, %v1313, %v1678
      %v2018 = vsel %vm1104, %v1314, %v1680
      %v2019 = vsel %vm1104, %v1315, %v1682
      %v2020 = vsel %vm1104, %v1316, %v1684
      %v2021 = vsel %vm1121, %v2005, %v1718
      %v2022 = vsel %vm1121, %v2006, %v1720
      %v2023 = vsel %vm1121, %v2007, %v1722
      %v2024 = vsel %vm1121, %v2008, %v1724
      %v2025 = vsel %vm1121, %v2009, %v1726
      %v2026 = vsel %vm1121, %v2010, %v1728
      %v2027 = vsel %vm1121, %v2011, %v1730
      %v2028 = vsel %vm1121, %v2012, %v1732
      %v2029 = vsel %vm1121, %v2013, %v1734
      %v2030 = vsel %vm1121, %v2014, %v1736
      %v2031 = vsel %vm1121, %v2015, %v1738
      %v2032 = vsel %vm1121, %v2016, %v1740
      %v2033 = vsel %vm1121, %v2017, %v1742
      %v2034 = vsel %vm1121, %v2018, %v1744
      %v2035 = vsel %vm1121, %v2019, %v1746
      %v2036 = vsel %vm1121, %v2020, %v1748
      %v2037 = vsel %vm1138, %v2021, %v1766
      %v2038 = vsel %vm1138, %v2022, %v1768
      %v2039 = vsel %vm1138, %v2023, %v1770
      %v2040 = vsel %vm1138, %v2024, %v1772
      %v2041 = vsel %vm1138, %v2025, %v1774
      %v2042 = vsel %vm1138, %v2026, %v1776
      %v2043 = vsel %vm1138, %v2027, %v1778
      %v2044 = vsel %vm1138, %v2028, %v1780
      %v2045 = vsel %vm1138, %v2029, %v1782
      %v2046 = vsel %vm1138, %v2030, %v1784
      %v2047 = vsel %vm1138, %v2031, %v1786
      %v2048 = vsel %vm1138, %v2032, %v1788
      %v2049 = vsel %vm1138, %v2033, %v1790
      %v2050 = vsel %vm1138, %v2034, %v1792
      %v2051 = vsel %vm1138, %v2035, %v1794
      %v2052 = vsel %vm1138, %v2036, %v1796
      %v2053 = vsel %vm1155, %v2037, %v1830
      %v2054 = vsel %vm1155, %v2038, %v1832
      %v2055 = vsel %vm1155, %v2039, %v1834
      %v2056 = vsel %vm1155, %v2040, %v1836
      %v2057 = vsel %vm1155, %v2041, %v1838
      %v2058 = vsel %vm1155, %v2042, %v1840
      %v2059 = vsel %vm1155, %v2043, %v1842
      %v2060 = vsel %vm1155, %v2044, %v1844
      %v2061 = vsel %vm1155, %v2045, %v1846
      %v2062 = vsel %vm1155, %v2046, %v1848
      %v2063 = vsel %vm1155, %v2047, %v1850
      %v2064 = vsel %vm1155, %v2048, %v1852
      %v2065 = vsel %vm1155, %v2049, %v1854
      %v2066 = vsel %vm1155, %v2050, %v1856
      %v2067 = vsel %vm1155, %v2051, %v1858
      %v2068 = vsel %vm1155, %v2052, %v1860
      %v2069 = vsel %vm1172, %v2053, %v1894
      %v2070 = vsel %vm1172, %v2054, %v1896
      %v2071 = vsel %vm1172, %v2055, %v1898
      %v2072 = vsel %vm1172, %v2056, %v1900
      %v2073 = vsel %vm1172, %v2057, %v1902
      %v2074 = vsel %vm1172, %v2058, %v1904
      %v2075 = vsel %vm1172, %v2059, %v1906
      %v2076 = vsel %vm1172, %v2060, %v1908
      %v2077 = vsel %vm1172, %v2061, %v1910
      %v2078 = vsel %vm1172, %v2062, %v1912
      %v2079 = vsel %vm1172, %v2063, %v1914
      %v2080 = vsel %vm1172, %v2064, %v1916
      %v2081 = vsel %vm1172, %v2065, %v1918
      %v2082 = vsel %vm1172, %v2066, %v1920
      %v2083 = vsel %vm1172, %v2067, %v1922
      %v2084 = vsel %vm1172, %v2068, %v1924
      %v2085 = vsel %vm1189, %v2069, %v1958
      %v2086 = vsel %vm1189, %v2070, %v1960
      %v2087 = vsel %vm1189, %v2071, %v1962
      %v2088 = vsel %vm1189, %v2072, %v1964
      %v2089 = vsel %vm1189, %v2073, %v1966
      %v2090 = vsel %vm1189, %v2074, %v1968
      %v2091 = vsel %vm1189, %v2075, %v1970
      %v2092 = vsel %vm1189, %v2076, %v1972
      %v2093 = vsel %vm1189, %v2077, %v1974
      %v2094 = vsel %vm1189, %v2078, %v1976
      %v2095 = vsel %vm1189, %v2079, %v1978
      %v2096 = vsel %vm1189, %v2080, %v1980
      %v2097 = vsel %vm1189, %v2081, %v1982
      %v2098 = vsel %vm1189, %v2082, %v1984
      %v2099 = vsel %vm1189, %v2083, %v1986
      %v2100 = vsel %vm1189, %v2084, %v1988
      %s2101 = scalar_lea.vmem [#allocation2], 272
      %2102 = vst.msk [vmem:[%s2101] sm:$0xff] %vm323, %v2085
      %2103 = vst.msk [vmem:[%s2101 + $0x8] sm:$0xff] %vm323, %v2086
      %2104 = vst.msk [vmem:[%s2101 + $0x10] sm:$0xff] %vm323, %v2087
      %2105 = vst.msk [vmem:[%s2101 + $0x18] sm:$0xff] %vm323, %v2088
      %2106 = vst.msk [vmem:[%s2101 + $0x20] sm:$0xff] %vm323, %v2089
      %2107 = vst.msk [vmem:[%s2101 + $0x28] sm:$0xff] %vm323, %v2090
      %2108 = vst.msk [vmem:[%s2101 + $0x30] sm:$0xff] %vm323, %v2091
      %2109 = vst.msk [vmem:[%s2101 + $0x38] sm:$0xff] %vm323, %v2092
      %2110 = vst.msk [vmem:[%s2101 + $0x40] sm:$0xff] %vm323, %v2093
      %2111 = vst.msk [vmem:[%s2101 + $0x48] sm:$0xff] %vm323, %v2094
      %2112 = vst.msk [vmem:[%s2101 + $0x50] sm:$0xff] %vm323, %v2095
      %2113 = vst.msk [vmem:[%s2101 + $0x58] sm:$0xff] %vm323, %v2096
      %2114 = vst.msk [vmem:[%s2101 + $0x60] sm:$0xff] %vm323, %v2097
      %2115 = vst.msk [vmem:[%s2101 + $0x68] sm:$0xff] %vm323, %v2098
      %2116 = vst.msk [vmem:[%s2101 + $0x70] sm:$0xff] %vm323, %v2099
      %2117 = vst.msk [vmem:[%s2101 + $0x78] sm:$0xff] %vm323, %v2100
      %s2118 = scalar_lea.vmem [#allocation2], 400
      %2119 = vst.msk [vmem:[%s2118] sm:$0xff] %vm323, 0.0
      %2120 = vst.msk [vmem:[%s2118 + $0x8] sm:$0xff] %vm323, 0.0
      %2121 = vst.msk [vmem:[%s2118 + $0x10] sm:$0xff] %vm323, 0.0
      %2122 = vst.msk [vmem:[%s2118 + $0x18] sm:$0xff] %vm323, 0.0
      %2123 = vst.msk [vmem:[%s2118 + $0x20] sm:$0xff] %vm323, 0.0
      %2124 = vst.msk [vmem:[%s2118 + $0x28] sm:$0xff] %vm323, 0.0
      %v2125 = vld [vmem:[%s1] sm:$0x1]
      %v2126 = vld [vmem:[#allocation2] sm:$0xff]
      %v2127 = vld [vmem:[#allocation2 + $0x8] sm:$0xff]
      %v2128 = vld [vmem:[#allocation2 + $0x10] sm:$0xff]
      %v2129 = vld [vmem:[#allocation2 + $0x18] sm:$0xff]
      %v2130 = vld [vmem:[#allocation2 + $0x20] sm:$0xff]
      %v2131 = vld [vmem:[#allocation2 + $0x28] sm:$0xff]
      %v2132 = vld [vmem:[#allocation2 + $0x30] sm:$0xff]
      %v2133 = vld [vmem:[#allocation2 + $0x38] sm:$0xff]
      %v2134 = vld [vmem:[#allocation2 + $0x40] sm:$0xff]
      %v2135 = vld [vmem:[#allocation2 + $0x48] sm:$0xff]
      %v2136 = vld [vmem:[#allocation2 + $0x50] sm:$0xff]
      %v2137 = vld [vmem:[#allocation2 + $0x58] sm:$0xff]
      %v2138 = vld [vmem:[#allocation2 + $0x60] sm:$0xff]
      %v2139 = vld [vmem:[#allocation2 + $0x68] sm:$0xff]
      %v2140 = vld [vmem:[#allocation2 + $0x70] sm:$0xff]
      %v2141 = vld [vmem:[#allocation2 + $0x78] sm:$0xff]
      %v2142 = vlaneseq
      %v2143 = vshrl.u32 %v2142, 7
      %v2144 = vsub.s32 0, %v2143
      %v2145 = vrot.slane %v2125, %v2144
      %v2146 = vmul.f32 %v2126, %v2145
      %v2147 = vmul.f32 %v2127, %v2145
      %v2148 = vmul.f32 %v2128, %v2145
      %v2149 = vmul.f32 %v2129, %v2145
      %v2150 = vmul.f32 %v2130, %v2145
      %v2151 = vmul.f32 %v2131, %v2145
      %v2152 = vmul.f32 %v2132, %v2145
      %v2153 = vmul.f32 %v2133, %v2145
      %v2154 = vmul.f32 %v2134, %v2145
      %v2155 = vmul.f32 %v2135, %v2145
      %v2156 = vmul.f32 %v2136, %v2145
      %v2157 = vmul.f32 %v2137, %v2145
      %v2158 = vmul.f32 %v2138, %v2145
      %v2159 = vmul.f32 %v2139, %v2145
      %v2160 = vmul.f32 %v2140, %v2145
      %v2161 = vmul.f32 %v2141, %v2145
      %s2162 = scalar_lea.vmem %s1, 8
      %v2163 = vld [vmem:[%s2162] sm:$0x1]
      %s2164 = scalar_lea.vmem [#allocation2], 16
      %v2165 = vld [vmem:[%s2164] sm:$0xff]
      %v2166 = vld [vmem:[%s2164 + $0x8] sm:$0xff]
      %v2167 = vld [vmem:[%s2164 + $0x10] sm:$0xff]
      %v2168 = vld [vmem:[%s2164 + $0x18] sm:$0xff]
      %v2169 = vld [vmem:[%s2164 + $0x20] sm:$0xff]
      %v2170 = vld [vmem:[%s2164 + $0x28] sm:$0xff]
      %v2171 = vld [vmem:[%s2164 + $0x30] sm:$0xff]
      %v2172 = vld [vmem:[%s2164 + $0x38] sm:$0xff]
      %v2173 = vld [vmem:[%s2164 + $0x40] sm:$0xff]
      %v2174 = vld [vmem:[%s2164 + $0x48] sm:$0xff]
      %v2175 = vld [vmem:[%s2164 + $0x50] sm:$0xff]
      %v2176 = vld [vmem:[%s2164 + $0x58] sm:$0xff]
      %v2177 = vld [vmem:[%s2164 + $0x60] sm:$0xff]
      %v2178 = vld [vmem:[%s2164 + $0x68] sm:$0xff]
      %v2179 = vld [vmem:[%s2164 + $0x70] sm:$0xff]
      %v2180 = vld [vmem:[%s2164 + $0x78] sm:$0xff]
      %v2181 = vlaneseq
      %v2182 = vshrl.u32 %v2181, 7
      %v2183 = vsub.s32 0, %v2182
      %v2184 = vrot.slane %v2163, %v2183
      %v2185 = vmul.f32 %v2165, %v2184
      %v2186 = vmul.f32 %v2166, %v2184
      %v2187 = vmul.f32 %v2167, %v2184
      %v2188 = vmul.f32 %v2168, %v2184
      %v2189 = vmul.f32 %v2169, %v2184
      %v2190 = vmul.f32 %v2170, %v2184
      %v2191 = vmul.f32 %v2171, %v2184
      %v2192 = vmul.f32 %v2172, %v2184
      %v2193 = vmul.f32 %v2173, %v2184
      %v2194 = vmul.f32 %v2174, %v2184
      %v2195 = vmul.f32 %v2175, %v2184
      %v2196 = vmul.f32 %v2176, %v2184
      %v2197 = vmul.f32 %v2177, %v2184
      %v2198 = vmul.f32 %v2178, %v2184
      %v2199 = vmul.f32 %v2179, %v2184
      %v2200 = vmul.f32 %v2180, %v2184
      %v2201 = vadd.f32 %v2146, %v2185
      %v2202 = vadd.f32 %v2147, %v2186
      %v2203 = vadd.f32 %v2148, %v2187
      %v2204 = vadd.f32 %v2149, %v2188
      %v2205 = vadd.f32 %v2150, %v2189
      %v2206 = vadd.f32 %v2151, %v2190
      %v2207 = vadd.f32 %v2152, %v2191
      %v2208 = vadd.f32 %v2153, %v2192
      %v2209 = vadd.f32 %v2154, %v2193
      %v2210 = vadd.f32 %v2155, %v2194
      %v2211 = vadd.f32 %v2156, %v2195
      %v2212 = vadd.f32 %v2157, %v2196
      %v2213 = vadd.f32 %v2158, %v2197
      %v2214 = vadd.f32 %v2159, %v2198
      %v2215 = vadd.f32 %v2160, %v2199
      %v2216 = vadd.f32 %v2161, %v2200
      %s2217 = scalar_lea.vmem %s1, 16
      %v2218 = vld [vmem:[%s2217] sm:$0x1]
      %s2219 = scalar_lea.vmem [#allocation2], 32
      %v2220 = vld [vmem:[%s2219] sm:$0xff]
      %v2221 = vld [vmem:[%s2219 + $0x8] sm:$0xff]
      %v2222 = vld [vmem:[%s2219 + $0x10] sm:$0xff]
      %v2223 = vld [vmem:[%s2219 + $0x18] sm:$0xff]
      %v2224 = vld [vmem:[%s2219 + $0x20] sm:$0xff]
      %v2225 = vld [vmem:[%s2219 + $0x28] sm:$0xff]
      %v2226 = vld [vmem:[%s2219 + $0x30] sm:$0xff]
      %v2227 = vld [vmem:[%s2219 + $0x38] sm:$0xff]
      %v2228 = vld [vmem:[%s2219 + $0x40] sm:$0xff]
      %v2229 = vld [vmem:[%s2219 + $0x48] sm:$0xff]
      %v2230 = vld [vmem:[%s2219 + $0x50] sm:$0xff]
      %v2231 = vld [vmem:[%s2219 + $0x58] sm:$0xff]
      %v2232 = vld [vmem:[%s2219 + $0x60] sm:$0xff]
      %v2233 = vld [vmem:[%s2219 + $0x68] sm:$0xff]
      %v2234 = vld [vmem:[%s2219 + $0x70] sm:$0xff]
      %v2235 = vld [vmem:[%s2219 + $0x78] sm:$0xff]
      %v2236 = vlaneseq
      %v2237 = vshrl.u32 %v2236, 7
      %v2238 = vsub.s32 0, %v2237
      %v2239 = vrot.slane %v2218, %v2238
      %v2240 = vmul.f32 %v2220, %v2239
      %v2241 = vmul.f32 %v2221, %v2239
      %v2242 = vmul.f32 %v2222, %v2239
      %v2243 = vmul.f32 %v2223, %v2239
      %v2244 = vmul.f32 %v2224, %v2239
      %v2245 = vmul.f32 %v2225, %v2239
      %v2246 = vmul.f32 %v2226, %v2239
      %v2247 = vmul.f32 %v2227, %v2239
      %v2248 = vmul.f32 %v2228, %v2239
      %v2249 = vmul.f32 %v2229, %v2239
      %v2250 = vmul.f32 %v2230, %v2239
      %v2251 = vmul.f32 %v2231, %v2239
      %v2252 = vmul.f32 %v2232, %v2239
      %v2253 = vmul.f32 %v2233, %v2239
      %v2254 = vmul.f32 %v2234, %v2239
      %v2255 = vmul.f32 %v2235, %v2239
      %v2256 = vadd.f32 %v2201, %v2240
      %v2257 = vadd.f32 %v2202, %v2241
      %v2258 = vadd.f32 %v2203, %v2242
      %v2259 = vadd.f32 %v2204, %v2243
      %v2260 = vadd.f32 %v2205, %v2244
      %v2261 = vadd.f32 %v2206, %v2245
      %v2262 = vadd.f32 %v2207, %v2246
      %v2263 = vadd.f32 %v2208, %v2247
      %v2264 = vadd.f32 %v2209, %v2248
      %v2265 = vadd.f32 %v2210, %v2249
      %v2266 = vadd.f32 %v2211, %v2250
      %v2267 = vadd.f32 %v2212, %v2251
      %v2268 = vadd.f32 %v2213, %v2252
      %v2269 = vadd.f32 %v2214, %v2253
      %v2270 = vadd.f32 %v2215, %v2254
      %v2271 = vadd.f32 %v2216, %v2255
      %s2272 = scalar_lea.vmem %s1, 24
      %v2273 = vld [vmem:[%s2272] sm:$0x1]
      %v2274 = vld [vmem:[%s1206] sm:$0xff]
      %v2275 = vld [vmem:[%s1206 + $0x8] sm:$0xff]
      %v2276 = vld [vmem:[%s1206 + $0x10] sm:$0xff]
      %v2277 = vld [vmem:[%s1206 + $0x18] sm:$0xff]
      %v2278 = vld [vmem:[%s1206 + $0x20] sm:$0xff]
      %v2279 = vld [vmem:[%s1206 + $0x28] sm:$0xff]
      %v2280 = vld [vmem:[%s1206 + $0x30] sm:$0xff]
      %v2281 = vld [vmem:[%s1206 + $0x38] sm:$0xff]
      %v2282 = vld [vmem:[%s1206 + $0x40] sm:$0xff]
      %v2283 = vld [vmem:[%s1206 + $0x48] sm:$0xff]
      %v2284 = vld [vmem:[%s1206 + $0x50] sm:$0xff]
      %v2285 = vld [vmem:[%s1206 + $0x58] sm:$0xff]
      %v2286 = vld [vmem:[%s1206 + $0x60] sm:$0xff]
      %v2287 = vld [vmem:[%s1206 + $0x68] sm:$0xff]
      %v2288 = vld [vmem:[%s1206 + $0x70] sm:$0xff]
      %v2289 = vld [vmem:[%s1206 + $0x78] sm:$0xff]
      %v2290 = vlaneseq
      %v2291 = vshrl.u32 %v2290, 7
      %v2292 = vsub.s32 0, %v2291
      %v2293 = vrot.slane %v2273, %v2292
      %v2294 = vmul.f32 %v2274, %v2293
      %v2295 = vmul.f32 %v2275, %v2293
      %v2296 = vmul.f32 %v2276, %v2293
      %v2297 = vmul.f32 %v2277, %v2293
      %v2298 = vmul.f32 %v2278, %v2293
      %v2299 = vmul.f32 %v2279, %v2293
      %v2300 = vmul.f32 %v2280, %v2293
      %v2301 = vmul.f32 %v2281, %v2293
      %v2302 = vmul.f32 %v2282, %v2293
      %v2303 = vmul.f32 %v2283, %v2293
      %v2304 = vmul.f32 %v2284, %v2293
      %v2305 = vmul.f32 %v2285, %v2293
      %v2306 = vmul.f32 %v2286, %v2293
      %v2307 = vmul.f32 %v2287, %v2293
      %v2308 = vmul.f32 %v2288, %v2293
      %v2309 = vmul.f32 %v2289, %v2293
      %v2310 = vadd.f32 %v2256, %v2294
      %v2311 = vadd.f32 %v2257, %v2295
      %v2312 = vadd.f32 %v2258, %v2296
      %v2313 = vadd.f32 %v2259, %v2297
      %v2314 = vadd.f32 %v2260, %v2298
      %v2315 = vadd.f32 %v2261, %v2299
      %v2316 = vadd.f32 %v2262, %v2300
      %v2317 = vadd.f32 %v2263, %v2301
      %v2318 = vadd.f32 %v2264, %v2302
      %v2319 = vadd.f32 %v2265, %v2303
      %v2320 = vadd.f32 %v2266, %v2304
      %v2321 = vadd.f32 %v2267, %v2305
      %v2322 = vadd.f32 %v2268, %v2306
      %v2323 = vadd.f32 %v2269, %v2307
      %v2324 = vadd.f32 %v2270, %v2308
      %v2325 = vadd.f32 %v2271, %v2309
      %s2326 = scalar_lea.vmem %s1, 32
      %v2327 = vld [vmem:[%s2326] sm:$0x1]
      %s2328 = scalar_lea.vmem [#allocation2], 64
      %v2329 = vld [vmem:[%s2328] sm:$0xff]
      %v2330 = vld [vmem:[%s2328 + $0x8] sm:$0xff]
      %v2331 = vld [vmem:[%s2328 + $0x10] sm:$0xff]
      %v2332 = vld [vmem:[%s2328 + $0x18] sm:$0xff]
      %v2333 = vld [vmem:[%s2328 + $0x20] sm:$0xff]
      %v2334 = vld [vmem:[%s2328 + $0x28] sm:$0xff]
      %v2335 = vld [vmem:[%s2328 + $0x30] sm:$0xff]
      %v2336 = vld [vmem:[%s2328 + $0x38] sm:$0xff]
      %v2337 = vld [vmem:[%s2328 + $0x40] sm:$0xff]
      %v2338 = vld [vmem:[%s2328 + $0x48] sm:$0xff]
      %v2339 = vld [vmem:[%s2328 + $0x50] sm:$0xff]
      %v2340 = vld [vmem:[%s2328 + $0x58] sm:$0xff]
      %v2341 = vld [vmem:[%s2328 + $0x60] sm:$0xff]
      %v2342 = vld [vmem:[%s2328 + $0x68] sm:$0xff]
      %v2343 = vld [vmem:[%s2328 + $0x70] sm:$0xff]
      %v2344 = vld [vmem:[%s2328 + $0x78] sm:$0xff]
      %v2345 = vlaneseq
      %v2346 = vshrl.u32 %v2345, 7
      %v2347 = vsub.s32 0, %v2346
      %v2348 = vrot.slane %v2327, %v2347
      %v2349 = vmul.f32 %v2329, %v2348
      %v2350 = vmul.f32 %v2330, %v2348
      %v2351 = vmul.f32 %v2331, %v2348
      %v2352 = vmul.f32 %v2332, %v2348
      %v2353 = vmul.f32 %v2333, %v2348
      %v2354 = vmul.f32 %v2334, %v2348
      %v2355 = vmul.f32 %v2335, %v2348
      %v2356 = vmul.f32 %v2336, %v2348
      %v2357 = vmul.f32 %v2337, %v2348
      %v2358 = vmul.f32 %v2338, %v2348
      %v2359 = vmul.f32 %v2339, %v2348
      %v2360 = vmul.f32 %v2340, %v2348
      %v2361 = vmul.f32 %v2341, %v2348
      %v2362 = vmul.f32 %v2342, %v2348
      %v2363 = vmul.f32 %v2343, %v2348
      %v2364 = vmul.f32 %v2344, %v2348
      %v2365 = vadd.f32 %v2310, %v2349
      %v2366 = vadd.f32 %v2311, %v2350
      %v2367 = vadd.f32 %v2312, %v2351
      %v2368 = vadd.f32 %v2313, %v2352
      %v2369 = vadd.f32 %v2314, %v2353
      %v2370 = vadd.f32 %v2315, %v2354
      %v2371 = vadd.f32 %v2316, %v2355
      %v2372 = vadd.f32 %v2317, %v2356
      %v2373 = vadd.f32 %v2318, %v2357
      %v2374 = vadd.f32 %v2319, %v2358
      %v2375 = vadd.f32 %v2320, %v2359
      %v2376 = vadd.f32 %v2321, %v2360
      %v2377 = vadd.f32 %v2322, %v2361
      %v2378 = vadd.f32 %v2323, %v2362
      %v2379 = vadd.f32 %v2324, %v2363
      %v2380 = vadd.f32 %v2325, %v2364
      %s2381 = scalar_lea.vmem %s1, 40
      %v2382 = vld [vmem:[%s2381] sm:$0x1]
      %s2383 = scalar_lea.vmem [#allocation2], 80
      %v2384 = vld [vmem:[%s2383] sm:$0xff]
      %v2385 = vld [vmem:[%s2383 + $0x8] sm:$0xff]
      %v2386 = vld [vmem:[%s2383 + $0x10] sm:$0xff]
      %v2387 = vld [vmem:[%s2383 + $0x18] sm:$0xff]
      %v2388 = vld [vmem:[%s2383 + $0x20] sm:$0xff]
      %v2389 = vld [vmem:[%s2383 + $0x28] sm:$0xff]
      %v2390 = vld [vmem:[%s2383 + $0x30] sm:$0xff]
      %v2391 = vld [vmem:[%s2383 + $0x38] sm:$0xff]
      %v2392 = vld [vmem:[%s2383 + $0x40] sm:$0xff]
      %v2393 = vld [vmem:[%s2383 + $0x48] sm:$0xff]
      %v2394 = vld [vmem:[%s2383 + $0x50] sm:$0xff]
      %v2395 = vld [vmem:[%s2383 + $0x58] sm:$0xff]
      %v2396 = vld [vmem:[%s2383 + $0x60] sm:$0xff]
      %v2397 = vld [vmem:[%s2383 + $0x68] sm:$0xff]
      %v2398 = vld [vmem:[%s2383 + $0x70] sm:$0xff]
      %v2399 = vld [vmem:[%s2383 + $0x78] sm:$0xff]
      %v2400 = vlaneseq
      %v2401 = vshrl.u32 %v2400, 7
      %v2402 = vsub.s32 0, %v2401
      %v2403 = vrot.slane %v2382, %v2402
      %v2404 = vmul.f32 %v2384, %v2403
      %v2405 = vmul.f32 %v2385, %v2403
      %v2406 = vmul.f32 %v2386, %v2403
      %v2407 = vmul.f32 %v2387, %v2403
      %v2408 = vmul.f32 %v2388, %v2403
      %v2409 = vmul.f32 %v2389, %v2403
      %v2410 = vmul.f32 %v2390, %v2403
      %v2411 = vmul.f32 %v2391, %v2403
      %v2412 = vmul.f32 %v2392, %v2403
      %v2413 = vmul.f32 %v2393, %v2403
      %v2414 = vmul.f32 %v2394, %v2403
      %v2415 = vmul.f32 %v2395, %v2403
      %v2416 = vmul.f32 %v2396, %v2403
      %v2417 = vmul.f32 %v2397, %v2403
      %v2418 = vmul.f32 %v2398, %v2403
      %v2419 = vmul.f32 %v2399, %v2403
      %v2420 = vadd.f32 %v2365, %v2404
      %v2421 = vadd.f32 %v2366, %v2405
      %v2422 = vadd.f32 %v2367, %v2406
      %v2423 = vadd.f32 %v2368, %v2407
      %v2424 = vadd.f32 %v2369, %v2408
      %v2425 = vadd.f32 %v2370, %v2409
      %v2426 = vadd.f32 %v2371, %v2410
      %v2427 = vadd.f32 %v2372, %v2411
      %v2428 = vadd.f32 %v2373, %v2412
      %v2429 = vadd.f32 %v2374, %v2413
      %v2430 = vadd.f32 %v2375, %v2414
      %v2431 = vadd.f32 %v2376, %v2415
      %v2432 = vadd.f32 %v2377, %v2416
      %v2433 = vadd.f32 %v2378, %v2417
      %v2434 = vadd.f32 %v2379, %v2418
      %v2435 = vadd.f32 %v2380, %v2419
      %s2436 = scalar_lea.vmem %s1, 48
      %v2437 = vld [vmem:[%s2436] sm:$0x1]
      %s2438 = scalar_lea.vmem [#allocation2], 96
      %v2439 = vld [vmem:[%s2438] sm:$0xff]
      %v2440 = vld [vmem:[%s2438 + $0x8] sm:$0xff]
      %v2441 = vld [vmem:[%s2438 + $0x10] sm:$0xff]
      %v2442 = vld [vmem:[%s2438 + $0x18] sm:$0xff]
      %v2443 = vld [vmem:[%s2438 + $0x20] sm:$0xff]
      %v2444 = vld [vmem:[%s2438 + $0x28] sm:$0xff]
      %v2445 = vld [vmem:[%s2438 + $0x30] sm:$0xff]
      %v2446 = vld [vmem:[%s2438 + $0x38] sm:$0xff]
      %v2447 = vld [vmem:[%s2438 + $0x40] sm:$0xff]
      %v2448 = vld [vmem:[%s2438 + $0x48] sm:$0xff]
      %v2449 = vld [vmem:[%s2438 + $0x50] sm:$0xff]
      %v2450 = vld [vmem:[%s2438 + $0x58] sm:$0xff]
      %v2451 = vld [vmem:[%s2438 + $0x60] sm:$0xff]
      %v2452 = vld [vmem:[%s2438 + $0x68] sm:$0xff]
      %v2453 = vld [vmem:[%s2438 + $0x70] sm:$0xff]
      %v2454 = vld [vmem:[%s2438 + $0x78] sm:$0xff]
      %v2455 = vlaneseq
      %v2456 = vshrl.u32 %v2455, 7
      %v2457 = vsub.s32 0, %v2456
      %v2458 = vrot.slane %v2437, %v2457
      %v2459 = vmul.f32 %v2439, %v2458
      %v2460 = vmul.f32 %v2440, %v2458
      %v2461 = vmul.f32 %v2441, %v2458
      %v2462 = vmul.f32 %v2442, %v2458
      %v2463 = vmul.f32 %v2443, %v2458
      %v2464 = vmul.f32 %v2444, %v2458
      %v2465 = vmul.f32 %v2445, %v2458
      %v2466 = vmul.f32 %v2446, %v2458
      %v2467 = vmul.f32 %v2447, %v2458
      %v2468 = vmul.f32 %v2448, %v2458
      %v2469 = vmul.f32 %v2449, %v2458
      %v2470 = vmul.f32 %v2450, %v2458
      %v2471 = vmul.f32 %v2451, %v2458
      %v2472 = vmul.f32 %v2452, %v2458
      %v2473 = vmul.f32 %v2453, %v2458
      %v2474 = vmul.f32 %v2454, %v2458
      %v2475 = vadd.f32 %v2420, %v2459
      %v2476 = vadd.f32 %v2421, %v2460
      %v2477 = vadd.f32 %v2422, %v2461
      %v2478 = vadd.f32 %v2423, %v2462
      %v2479 = vadd.f32 %v2424, %v2463
      %v2480 = vadd.f32 %v2425, %v2464
      %v2481 = vadd.f32 %v2426, %v2465
      %v2482 = vadd.f32 %v2427, %v2466
      %v2483 = vadd.f32 %v2428, %v2467
      %v2484 = vadd.f32 %v2429, %v2468
      %v2485 = vadd.f32 %v2430, %v2469
      %v2486 = vadd.f32 %v2431, %v2470
      %v2487 = vadd.f32 %v2432, %v2471
      %v2488 = vadd.f32 %v2433, %v2472
      %v2489 = vadd.f32 %v2434, %v2473
      %v2490 = vadd.f32 %v2435, %v2474
      %s2491 = scalar_lea.vmem %s1, 56
      %v2492 = vld [vmem:[%s2491] sm:$0x1]
      %v2493 = vld [vmem:[%s1230] sm:$0xff]
      %v2494 = vld [vmem:[%s1230 + $0x8] sm:$0xff]
      %v2495 = vld [vmem:[%s1230 + $0x10] sm:$0xff]
      %v2496 = vld [vmem:[%s1230 + $0x18] sm:$0xff]
      %v2497 = vld [vmem:[%s1230 + $0x20] sm:$0xff]
      %v2498 = vld [vmem:[%s1230 + $0x28] sm:$0xff]
      %v2499 = vld [vmem:[%s1230 + $0x30] sm:$0xff]
      %v2500 = vld [vmem:[%s1230 + $0x38] sm:$0xff]
      %v2501 = vld [vmem:[%s1230 + $0x40] sm:$0xff]
      %v2502 = vld [vmem:[%s1230 + $0x48] sm:$0xff]
      %v2503 = vld [vmem:[%s1230 + $0x50] sm:$0xff]
      %v2504 = vld [vmem:[%s1230 + $0x58] sm:$0xff]
      %v2505 = vld [vmem:[%s1230 + $0x60] sm:$0xff]
      %v2506 = vld [vmem:[%s1230 + $0x68] sm:$0xff]
      %v2507 = vld [vmem:[%s1230 + $0x70] sm:$0xff]
      %v2508 = vld [vmem:[%s1230 + $0x78] sm:$0xff]
      %v2509 = vlaneseq
      %v2510 = vshrl.u32 %v2509, 7
      %v2511 = vsub.s32 0, %v2510
      %v2512 = vrot.slane %v2492, %v2511
      %v2513 = vmul.f32 %v2493, %v2512
      %v2514 = vmul.f32 %v2494, %v2512
      %v2515 = vmul.f32 %v2495, %v2512
      %v2516 = vmul.f32 %v2496, %v2512
      %v2517 = vmul.f32 %v2497, %v2512
      %v2518 = vmul.f32 %v2498, %v2512
      %v2519 = vmul.f32 %v2499, %v2512
      %v2520 = vmul.f32 %v2500, %v2512
      %v2521 = vmul.f32 %v2501, %v2512
      %v2522 = vmul.f32 %v2502, %v2512
      %v2523 = vmul.f32 %v2503, %v2512
      %v2524 = vmul.f32 %v2504, %v2512
      %v2525 = vmul.f32 %v2505, %v2512
      %v2526 = vmul.f32 %v2506, %v2512
      %v2527 = vmul.f32 %v2507, %v2512
      %v2528 = vmul.f32 %v2508, %v2512
      %v2529 = vadd.f32 %v2475, %v2513
      %v2530 = vadd.f32 %v2476, %v2514
      %v2531 = vadd.f32 %v2477, %v2515
      %v2532 = vadd.f32 %v2478, %v2516
      %v2533 = vadd.f32 %v2479, %v2517
      %v2534 = vadd.f32 %v2480, %v2518
      %v2535 = vadd.f32 %v2481, %v2519
      %v2536 = vadd.f32 %v2482, %v2520
      %v2537 = vadd.f32 %v2483, %v2521
      %v2538 = vadd.f32 %v2484, %v2522
      %v2539 = vadd.f32 %v2485, %v2523
      %v2540 = vadd.f32 %v2486, %v2524
      %v2541 = vadd.f32 %v2487, %v2525
      %v2542 = vadd.f32 %v2488, %v2526
      %v2543 = vadd.f32 %v2489, %v2527
      %v2544 = vadd.f32 %v2490, %v2528
      %s2545 = scalar_lea.vmem %s1, 64
      %v2546 = vld [vmem:[%s2545] sm:$0x1]
      %s2547 = scalar_lea.vmem [#allocation2], 240
      %v2548 = vld [vmem:[%s2547] sm:$0xff]
      %v2549 = vld [vmem:[%s2547 + $0x8] sm:$0xff]
      %v2550 = vld [vmem:[%s2547 + $0x10] sm:$0xff]
      %v2551 = vld [vmem:[%s2547 + $0x18] sm:$0xff]
      %v2552 = vld [vmem:[%s2547 + $0x20] sm:$0xff]
      %v2553 = vld [vmem:[%s2547 + $0x28] sm:$0xff]
      %v2554 = vld [vmem:[%s2547 + $0x30] sm:$0xff]
      %v2555 = vld [vmem:[%s2547 + $0x38] sm:$0xff]
      %v2556 = vld [vmem:[%s2547 + $0x40] sm:$0xff]
      %v2557 = vld [vmem:[%s2547 + $0x48] sm:$0xff]
      %v2558 = vld [vmem:[%s2547 + $0x50] sm:$0xff]
      %v2559 = vld [vmem:[%s2547 + $0x58] sm:$0xff]
      %v2560 = vld [vmem:[%s2547 + $0x60] sm:$0xff]
      %v2561 = vld [vmem:[%s2547 + $0x68] sm:$0xff]
      %v2562 = vld [vmem:[%s2547 + $0x70] sm:$0xff]
      %v2563 = vld [vmem:[%s2547 + $0x78] sm:$0xff]
      %v2564 = vlaneseq
      %v2565 = vshrl.u32 %v2564, 7
      %v2566 = vsub.s32 0, %v2565
      %v2567 = vrot.slane %v2546, %v2566
      %v2568 = vmul.f32 %v2548, %v2567
      %v2569 = vmul.f32 %v2549, %v2567
      %v2570 = vmul.f32 %v2550, %v2567
      %v2571 = vmul.f32 %v2551, %v2567
      %v2572 = vmul.f32 %v2552, %v2567
      %v2573 = vmul.f32 %v2553, %v2567
      %v2574 = vmul.f32 %v2554, %v2567
      %v2575 = vmul.f32 %v2555, %v2567
      %v2576 = vmul.f32 %v2556, %v2567
      %v2577 = vmul.f32 %v2557, %v2567
      %v2578 = vmul.f32 %v2558, %v2567
      %v2579 = vmul.f32 %v2559, %v2567
      %v2580 = vmul.f32 %v2560, %v2567
      %v2581 = vmul.f32 %v2561, %v2567
      %v2582 = vmul.f32 %v2562, %v2567
      %v2583 = vmul.f32 %v2563, %v2567
      %v2584 = vadd.f32 %v2529, %v2568
      %v2585 = vadd.f32 %v2530, %v2569
      %v2586 = vadd.f32 %v2531, %v2570
      %v2587 = vadd.f32 %v2532, %v2571
      %v2588 = vadd.f32 %v2533, %v2572
      %v2589 = vadd.f32 %v2534, %v2573
      %v2590 = vadd.f32 %v2535, %v2574
      %v2591 = vadd.f32 %v2536, %v2575
      %v2592 = vadd.f32 %v2537, %v2576
      %v2593 = vadd.f32 %v2538, %v2577
      %v2594 = vadd.f32 %v2539, %v2578
      %v2595 = vadd.f32 %v2540, %v2579
      %v2596 = vadd.f32 %v2541, %v2580
      %v2597 = vadd.f32 %v2542, %v2581
      %v2598 = vadd.f32 %v2543, %v2582
      %v2599 = vadd.f32 %v2544, %v2583
      %s2600 = scalar_lea.vmem %s1, 72
      %v2601 = vld [vmem:[%s2600] sm:$0x1]
      %s2602 = scalar_lea.vmem [#allocation2], 256
      %v2603 = vld [vmem:[%s2602] sm:$0xff]
      %v2604 = vld [vmem:[%s2602 + $0x8] sm:$0xff]
      %v2605 = vld [vmem:[%s2602 + $0x10] sm:$0xff]
      %v2606 = vld [vmem:[%s2602 + $0x18] sm:$0xff]
      %v2607 = vld [vmem:[%s2602 + $0x20] sm:$0xff]
      %v2608 = vld [vmem:[%s2602 + $0x28] sm:$0xff]
      %v2609 = vld [vmem:[%s2602 + $0x30] sm:$0xff]
      %v2610 = vld [vmem:[%s2602 + $0x38] sm:$0xff]
      %v2611 = vld [vmem:[%s2602 + $0x40] sm:$0xff]
      %v2612 = vld [vmem:[%s2602 + $0x48] sm:$0xff]
      %v2613 = vld [vmem:[%s2602 + $0x50] sm:$0xff]
      %v2614 = vld [vmem:[%s2602 + $0x58] sm:$0xff]
      %v2615 = vld [vmem:[%s2602 + $0x60] sm:$0xff]
      %v2616 = vld [vmem:[%s2602 + $0x68] sm:$0xff]
      %v2617 = vld [vmem:[%s2602 + $0x70] sm:$0xff]
      %v2618 = vld [vmem:[%s2602 + $0x78] sm:$0xff]
      %v2619 = vlaneseq
      %v2620 = vshrl.u32 %v2619, 7
      %v2621 = vsub.s32 0, %v2620
      %v2622 = vrot.slane %v2601, %v2621
      %v2623 = vmul.f32 %v2603, %v2622
      %v2624 = vmul.f32 %v2604, %v2622
      %v2625 = vmul.f32 %v2605, %v2622
      %v2626 = vmul.f32 %v2606, %v2622
      %v2627 = vmul.f32 %v2607, %v2622
      %v2628 = vmul.f32 %v2608, %v2622
      %v2629 = vmul.f32 %v2609, %v2622
      %v2630 = vmul.f32 %v2610, %v2622
      %v2631 = vmul.f32 %v2611, %v2622
      %v2632 = vmul.f32 %v2612, %v2622
      %v2633 = vmul.f32 %v2613, %v2622
      %v2634 = vmul.f32 %v2614, %v2622
      %v2635 = vmul.f32 %v2615, %v2622
      %v2636 = vmul.f32 %v2616, %v2622
      %v2637 = vmul.f32 %v2617, %v2622
      %v2638 = vmul.f32 %v2618, %v2622
      %v2639 = vadd.f32 %v2584, %v2623
      %v2640 = vadd.f32 %v2585, %v2624
      %v2641 = vadd.f32 %v2586, %v2625
      %v2642 = vadd.f32 %v2587, %v2626
      %v2643 = vadd.f32 %v2588, %v2627
      %v2644 = vadd.f32 %v2589, %v2628
      %v2645 = vadd.f32 %v2590, %v2629
      %v2646 = vadd.f32 %v2591, %v2630
      %v2647 = vadd.f32 %v2592, %v2631
      %v2648 = vadd.f32 %v2593, %v2632
      %v2649 = vadd.f32 %v2594, %v2633
      %v2650 = vadd.f32 %v2595, %v2634
      %v2651 = vadd.f32 %v2596, %v2635
      %v2652 = vadd.f32 %v2597, %v2636
      %v2653 = vadd.f32 %v2598, %v2637
      %v2654 = vadd.f32 %v2599, %v2638
      %s2655 = scalar_lea.vmem %s1, 80
      %v2656 = vld [vmem:[%s2655] sm:$0x1]
      %v2657 = vld [vmem:[%s2101] sm:$0xff]
      %v2658 = vld [vmem:[%s2101 + $0x8] sm:$0xff]
      %v2659 = vld [vmem:[%s2101 + $0x10] sm:$0xff]
      %v2660 = vld [vmem:[%s2101 + $0x18] sm:$0xff]
      %v2661 = vld [vmem:[%s2101 + $0x20] sm:$0xff]
      %v2662 = vld [vmem:[%s2101 + $0x28] sm:$0xff]
      %v2663 = vld [vmem:[%s2101 + $0x30] sm:$0xff]
      %v2664 = vld [vmem:[%s2101 + $0x38] sm:$0xff]
      %v2665 = vld [vmem:[%s2101 + $0x40] sm:$0xff]
      %v2666 = vld [vmem:[%s2101 + $0x48] sm:$0xff]
      %v2667 = vld [vmem:[%s2101 + $0x50] sm:$0xff]
      %v2668 = vld [vmem:[%s2101 + $0x58] sm:$0xff]
      %v2669 = vld [vmem:[%s2101 + $0x60] sm:$0xff]
      %v2670 = vld [vmem:[%s2101 + $0x68] sm:$0xff]
      %v2671 = vld [vmem:[%s2101 + $0x70] sm:$0xff]
      %v2672 = vld [vmem:[%s2101 + $0x78] sm:$0xff]
      %v2673 = vlaneseq
      %v2674 = vshrl.u32 %v2673, 7
      %v2675 = vsub.s32 0, %v2674
      %v2676 = vrot.slane %v2656, %v2675
      %v2677 = vmul.f32 %v2657, %v2676
      %v2678 = vmul.f32 %v2658, %v2676
      %v2679 = vmul.f32 %v2659, %v2676
      %v2680 = vmul.f32 %v2660, %v2676
      %v2681 = vmul.f32 %v2661, %v2676
      %v2682 = vmul.f32 %v2662, %v2676
      %v2683 = vmul.f32 %v2663, %v2676
      %v2684 = vmul.f32 %v2664, %v2676
      %v2685 = vmul.f32 %v2665, %v2676
      %v2686 = vmul.f32 %v2666, %v2676
      %v2687 = vmul.f32 %v2667, %v2676
      %v2688 = vmul.f32 %v2668, %v2676
      %v2689 = vmul.f32 %v2669, %v2676
      %v2690 = vmul.f32 %v2670, %v2676
      %v2691 = vmul.f32 %v2671, %v2676
      %v2692 = vmul.f32 %v2672, %v2676
      %v2693 = vadd.f32 %v2639, %v2677
      %v2694 = vadd.f32 %v2640, %v2678
      %v2695 = vadd.f32 %v2641, %v2679
      %v2696 = vadd.f32 %v2642, %v2680
      %v2697 = vadd.f32 %v2643, %v2681
      %v2698 = vadd.f32 %v2644, %v2682
      %v2699 = vadd.f32 %v2645, %v2683
      %v2700 = vadd.f32 %v2646, %v2684
      %v2701 = vadd.f32 %v2647, %v2685
      %v2702 = vadd.f32 %v2648, %v2686
      %v2703 = vadd.f32 %v2649, %v2687
      %v2704 = vadd.f32 %v2650, %v2688
      %v2705 = vadd.f32 %v2651, %v2689
      %v2706 = vadd.f32 %v2652, %v2690
      %v2707 = vadd.f32 %v2653, %v2691
      %v2708 = vadd.f32 %v2654, %v2692
      %s2709 = scalar_lea.vmem %s1, 88
      %v2710 = vld [vmem:[%s2709] sm:$0x1]
      %s2711 = scalar_lea.vmem [#allocation2], 288
      %v2712 = vld [vmem:[%s2711] sm:$0xff]
      %v2713 = vld [vmem:[%s2711 + $0x8] sm:$0xff]
      %v2714 = vld [vmem:[%s2711 + $0x10] sm:$0xff]
      %v2715 = vld [vmem:[%s2711 + $0x18] sm:$0xff]
      %v2716 = vld [vmem:[%s2711 + $0x20] sm:$0xff]
      %v2717 = vld [vmem:[%s2711 + $0x28] sm:$0xff]
      %v2718 = vld [vmem:[%s2711 + $0x30] sm:$0xff]
      %v2719 = vld [vmem:[%s2711 + $0x38] sm:$0xff]
      %v2720 = vld [vmem:[%s2711 + $0x40] sm:$0xff]
      %v2721 = vld [vmem:[%s2711 + $0x48] sm:$0xff]
      %v2722 = vld [vmem:[%s2711 + $0x50] sm:$0xff]
      %v2723 = vld [vmem:[%s2711 + $0x58] sm:$0xff]
      %v2724 = vld [vmem:[%s2711 + $0x60] sm:$0xff]
      %v2725 = vld [vmem:[%s2711 + $0x68] sm:$0xff]
      %v2726 = vld [vmem:[%s2711 + $0x70] sm:$0xff]
      %v2727 = vld [vmem:[%s2711 + $0x78] sm:$0xff]
      %v2728 = vlaneseq
      %v2729 = vshrl.u32 %v2728, 7
      %v2730 = vsub.s32 0, %v2729
      %v2731 = vrot.slane %v2710, %v2730
      %v2732 = vmul.f32 %v2712, %v2731
      %v2733 = vmul.f32 %v2713, %v2731
      %v2734 = vmul.f32 %v2714, %v2731
      %v2735 = vmul.f32 %v2715, %v2731
      %v2736 = vmul.f32 %v2716, %v2731
      %v2737 = vmul.f32 %v2717, %v2731
      %v2738 = vmul.f32 %v2718, %v2731
      %v2739 = vmul.f32 %v2719, %v2731
      %v2740 = vmul.f32 %v2720, %v2731
      %v2741 = vmul.f32 %v2721, %v2731
      %v2742 = vmul.f32 %v2722, %v2731
      %v2743 = vmul.f32 %v2723, %v2731
      %v2744 = vmul.f32 %v2724, %v2731
      %v2745 = vmul.f32 %v2725, %v2731
      %v2746 = vmul.f32 %v2726, %v2731
      %v2747 = vmul.f32 %v2727, %v2731
      %v2748 = vadd.f32 %v2693, %v2732
      %v2749 = vadd.f32 %v2694, %v2733
      %v2750 = vadd.f32 %v2695, %v2734
      %v2751 = vadd.f32 %v2696, %v2735
      %v2752 = vadd.f32 %v2697, %v2736
      %v2753 = vadd.f32 %v2698, %v2737
      %v2754 = vadd.f32 %v2699, %v2738
      %v2755 = vadd.f32 %v2700, %v2739
      %v2756 = vadd.f32 %v2701, %v2740
      %v2757 = vadd.f32 %v2702, %v2741
      %v2758 = vadd.f32 %v2703, %v2742
      %v2759 = vadd.f32 %v2704, %v2743
      %v2760 = vadd.f32 %v2705, %v2744
      %v2761 = vadd.f32 %v2706, %v2745
      %v2762 = vadd.f32 %v2707, %v2746
      %v2763 = vadd.f32 %v2708, %v2747
      %s2764 = scalar_lea.vmem %s1, 96
      %v2765 = vld [vmem:[%s2764] sm:$0x1]
      %s2766 = scalar_lea.vmem [#allocation2], 304
      %v2767 = vld [vmem:[%s2766] sm:$0xff]
      %v2768 = vld [vmem:[%s2766 + $0x8] sm:$0xff]
      %v2769 = vld [vmem:[%s2766 + $0x10] sm:$0xff]
      %v2770 = vld [vmem:[%s2766 + $0x18] sm:$0xff]
      %v2771 = vld [vmem:[%s2766 + $0x20] sm:$0xff]
      %v2772 = vld [vmem:[%s2766 + $0x28] sm:$0xff]
      %v2773 = vld [vmem:[%s2766 + $0x30] sm:$0xff]
      %v2774 = vld [vmem:[%s2766 + $0x38] sm:$0xff]
      %v2775 = vld [vmem:[%s2766 + $0x40] sm:$0xff]
      %v2776 = vld [vmem:[%s2766 + $0x48] sm:$0xff]
      %v2777 = vld [vmem:[%s2766 + $0x50] sm:$0xff]
      %v2778 = vld [vmem:[%s2766 + $0x58] sm:$0xff]
      %v2779 = vld [vmem:[%s2766 + $0x60] sm:$0xff]
      %v2780 = vld [vmem:[%s2766 + $0x68] sm:$0xff]
      %v2781 = vld [vmem:[%s2766 + $0x70] sm:$0xff]
      %v2782 = vld [vmem:[%s2766 + $0x78] sm:$0xff]
      %v2783 = vlaneseq
      %v2784 = vshrl.u32 %v2783, 7
      %v2785 = vsub.s32 0, %v2784
      %v2786 = vrot.slane %v2765, %v2785
      %v2787 = vmul.f32 %v2767, %v2786
      %v2788 = vmul.f32 %v2768, %v2786
      %v2789 = vmul.f32 %v2769, %v2786
      %v2790 = vmul.f32 %v2770, %v2786
      %v2791 = vmul.f32 %v2771, %v2786
      %v2792 = vmul.f32 %v2772, %v2786
      %v2793 = vmul.f32 %v2773, %v2786
      %v2794 = vmul.f32 %v2774, %v2786
      %v2795 = vmul.f32 %v2775, %v2786
      %v2796 = vmul.f32 %v2776, %v2786
      %v2797 = vmul.f32 %v2777, %v2786
      %v2798 = vmul.f32 %v2778, %v2786
      %v2799 = vmul.f32 %v2779, %v2786
      %v2800 = vmul.f32 %v2780, %v2786
      %v2801 = vmul.f32 %v2781, %v2786
      %v2802 = vmul.f32 %v2782, %v2786
      %v2803 = vadd.f32 %v2748, %v2787
      %v2804 = vadd.f32 %v2749, %v2788
      %v2805 = vadd.f32 %v2750, %v2789
      %v2806 = vadd.f32 %v2751, %v2790
      %v2807 = vadd.f32 %v2752, %v2791
      %v2808 = vadd.f32 %v2753, %v2792
      %v2809 = vadd.f32 %v2754, %v2793
      %v2810 = vadd.f32 %v2755, %v2794
      %v2811 = vadd.f32 %v2756, %v2795
      %v2812 = vadd.f32 %v2757, %v2796
      %v2813 = vadd.f32 %v2758, %v2797
      %v2814 = vadd.f32 %v2759, %v2798
      %v2815 = vadd.f32 %v2760, %v2799
      %v2816 = vadd.f32 %v2761, %v2800
      %v2817 = vadd.f32 %v2762, %v2801
      %v2818 = vadd.f32 %v2763, %v2802
      %s2819 = scalar_lea.vmem %s1, 104
      %v2820 = vld [vmem:[%s2819] sm:$0x1]
      %s2821 = scalar_lea.vmem [#allocation2], 320
      %v2822 = vld [vmem:[%s2821] sm:$0xff]
      %v2823 = vld [vmem:[%s2821 + $0x8] sm:$0xff]
      %v2824 = vld [vmem:[%s2821 + $0x10] sm:$0xff]
      %v2825 = vld [vmem:[%s2821 + $0x18] sm:$0xff]
      %v2826 = vld [vmem:[%s2821 + $0x20] sm:$0xff]
      %v2827 = vld [vmem:[%s2821 + $0x28] sm:$0xff]
      %v2828 = vld [vmem:[%s2821 + $0x30] sm:$0xff]
      %v2829 = vld [vmem:[%s2821 + $0x38] sm:$0xff]
      %v2830 = vld [vmem:[%s2821 + $0x40] sm:$0xff]
      %v2831 = vld [vmem:[%s2821 + $0x48] sm:$0xff]
      %v2832 = vld [vmem:[%s2821 + $0x50] sm:$0xff]
      %v2833 = vld [vmem:[%s2821 + $0x58] sm:$0xff]
      %v2834 = vld [vmem:[%s2821 + $0x60] sm:$0xff]
      %v2835 = vld [vmem:[%s2821 + $0x68] sm:$0xff]
      %v2836 = vld [vmem:[%s2821 + $0x70] sm:$0xff]
      %v2837 = vld [vmem:[%s2821 + $0x78] sm:$0xff]
      %v2838 = vlaneseq
      %v2839 = vshrl.u32 %v2838, 7
      %v2840 = vsub.s32 0, %v2839
      %v2841 = vrot.slane %v2820, %v2840
      %v2842 = vmul.f32 %v2822, %v2841
      %v2843 = vmul.f32 %v2823, %v2841
      %v2844 = vmul.f32 %v2824, %v2841
      %v2845 = vmul.f32 %v2825, %v2841
      %v2846 = vmul.f32 %v2826, %v2841
      %v2847 = vmul.f32 %v2827, %v2841
      %v2848 = vmul.f32 %v2828, %v2841
      %v2849 = vmul.f32 %v2829, %v2841
      %v2850 = vmul.f32 %v2830, %v2841
      %v2851 = vmul.f32 %v2831, %v2841
      %v2852 = vmul.f32 %v2832, %v2841
      %v2853 = vmul.f32 %v2833, %v2841
      %v2854 = vmul.f32 %v2834, %v2841
      %v2855 = vmul.f32 %v2835, %v2841
      %v2856 = vmul.f32 %v2836, %v2841
      %v2857 = vmul.f32 %v2837, %v2841
      %v2858 = vadd.f32 %v2803, %v2842
      %v2859 = vadd.f32 %v2804, %v2843
      %v2860 = vadd.f32 %v2805, %v2844
      %v2861 = vadd.f32 %v2806, %v2845
      %v2862 = vadd.f32 %v2807, %v2846
      %v2863 = vadd.f32 %v2808, %v2847
      %v2864 = vadd.f32 %v2809, %v2848
      %v2865 = vadd.f32 %v2810, %v2849
      %v2866 = vadd.f32 %v2811, %v2850
      %v2867 = vadd.f32 %v2812, %v2851
      %v2868 = vadd.f32 %v2813, %v2852
      %v2869 = vadd.f32 %v2814, %v2853
      %v2870 = vadd.f32 %v2815, %v2854
      %v2871 = vadd.f32 %v2816, %v2855
      %v2872 = vadd.f32 %v2817, %v2856
      %v2873 = vadd.f32 %v2818, %v2857
      %vm2890 = vcmask 1042432
      %v2891 = vrot.slane %v2858, 5
      %v2892 = vrot.slane %v2859, 5
      %v2893 = vsel %vm2890, %v2891, %v2892
      %v2894 = vrot.slane %v2860, 5
      %v2895 = vrot.slane %v2861, 5
      %v2896 = vsel %vm2890, %v2894, %v2895
      %v2897 = vrot.slane %v2862, 5
      %v2898 = vrot.slane %v2863, 5
      %v2899 = vsel %vm2890, %v2897, %v2898
      %v2900 = vrot.slane %v2864, 5
      %v2901 = vrot.slane %v2865, 5
      %v2902 = vsel %vm2890, %v2900, %v2901
      %v2903 = vrot.slane %v2866, 5
      %v2904 = vrot.slane %v2867, 5
      %v2905 = vsel %vm2890, %v2903, %v2904
      %v2906 = vrot.slane %v2868, 5
      %v2907 = vrot.slane %v2869, 5
      %v2908 = vsel %vm2890, %v2906, %v2907
      %v2909 = vrot.slane %v2870, 5
      %v2910 = vrot.slane %v2871, 5
      %v2911 = vsel %vm2890, %v2909, %v2910
      %v2912 = vrot.slane %v2872, 5
      %v2913 = vrot.slane %v2873, 5
      %v2914 = vsel %vm2890, %v2912, %v2913
      %v2931 = vsel %vm2890, 0.0, %v2891
      %v2932 = vsel %vm2890, 0.0, %v2894
      %v2933 = vsel %vm2890, 0.0, %v2897
      %v2934 = vsel %vm2890, 0.0, %v2900
      %v2935 = vsel %vm2890, 0.0, %v2903
      %v2936 = vsel %vm2890, 0.0, %v2906
      %v2937 = vsel %vm2890, 0.0, %v2909
      %v2938 = vsel %vm2890, 0.0, %v2912
      %v2939 = vadd.f32 %v2931, 0.0
      %v2940 = vadd.f32 %v2893, 0.0
      %v2941 = vadd.f32 %v2932, 0.0
      %v2942 = vadd.f32 %v2896, 0.0
      %v2943 = vadd.f32 %v2933, 0.0
      %v2944 = vadd.f32 %v2899, 0.0
      %v2945 = vadd.f32 %v2934, 0.0
      %v2946 = vadd.f32 %v2902, 0.0
      %v2947 = vadd.f32 %v2935, 0.0
      %v2948 = vadd.f32 %v2905, 0.0
      %v2949 = vadd.f32 %v2936, 0.0
      %v2950 = vadd.f32 %v2908, 0.0
      %v2951 = vadd.f32 %v2937, 0.0
      %v2952 = vadd.f32 %v2911, 0.0
      %v2953 = vadd.f32 %v2938, 0.0
      %v2954 = vadd.f32 %v2914, 0.0
      %v2955 = vld [vmem:[%s1 + $0x1] sm:$0x1]
      %v2956 = vlaneseq
      %v2957 = vshrl.u32 %v2956, 7
      %v2958 = vsub.s32 0, %v2957
      %v2959 = vrot.slane %v2955, %v2958
      %v2960 = vmul.f32 %v2126, %v2959
      %v2961 = vmul.f32 %v2127, %v2959
      %v2962 = vmul.f32 %v2128, %v2959
      %v2963 = vmul.f32 %v2129, %v2959
      %v2964 = vmul.f32 %v2130, %v2959
      %v2965 = vmul.f32 %v2131, %v2959
      %v2966 = vmul.f32 %v2132, %v2959
      %v2967 = vmul.f32 %v2133, %v2959
      %v2968 = vmul.f32 %v2134, %v2959
      %v2969 = vmul.f32 %v2135, %v2959
      %v2970 = vmul.f32 %v2136, %v2959
      %v2971 = vmul.f32 %v2137, %v2959
      %v2972 = vmul.f32 %v2138, %v2959
      %v2973 = vmul.f32 %v2139, %v2959
      %v2974 = vmul.f32 %v2140, %v2959
      %v2975 = vmul.f32 %v2141, %v2959
      %v2976 = vld [vmem:[%s2162 + $0x1] sm:$0x1]
      %v2977 = vlaneseq
      %v2978 = vshrl.u32 %v2977, 7
      %v2979 = vsub.s32 0, %v2978
      %v2980 = vrot.slane %v2976, %v2979
      %v2981 = vmul.f32 %v2165, %v2980
      %v2982 = vmul.f32 %v2166, %v2980
      %v2983 = vmul.f32 %v2167, %v2980
      %v2984 = vmul.f32 %v2168, %v2980
      %v2985 = vmul.f32 %v2169, %v2980
      %v2986 = vmul.f32 %v2170, %v2980
      %v2987 = vmul.f32 %v2171, %v2980
      %v2988 = vmul.f32 %v2172, %v2980
      %v2989 = vmul.f32 %v2173, %v2980
      %v2990 = vmul.f32 %v2174, %v2980
      %v2991 = vmul.f32 %v2175, %v2980
      %v2992 = vmul.f32 %v2176, %v2980
      %v2993 = vmul.f32 %v2177, %v2980
      %v2994 = vmul.f32 %v2178, %v2980
      %v2995 = vmul.f32 %v2179, %v2980
      %v2996 = vmul.f32 %v2180, %v2980
      %v2997 = vadd.f32 %v2960, %v2981
      %v2998 = vadd.f32 %v2961, %v2982
      %v2999 = vadd.f32 %v2962, %v2983
      %v3000 = vadd.f32 %v2963, %v2984
      %v3001 = vadd.f32 %v2964, %v2985
      %v3002 = vadd.f32 %v2965, %v2986
      %v3003 = vadd.f32 %v2966, %v2987
      %v3004 = vadd.f32 %v2967, %v2988
      %v3005 = vadd.f32 %v2968, %v2989
      %v3006 = vadd.f32 %v2969, %v2990
      %v3007 = vadd.f32 %v2970, %v2991
      %v3008 = vadd.f32 %v2971, %v2992
      %v3009 = vadd.f32 %v2972, %v2993
      %v3010 = vadd.f32 %v2973, %v2994
      %v3011 = vadd.f32 %v2974, %v2995
      %v3012 = vadd.f32 %v2975, %v2996
      %v3013 = vld [vmem:[%s2217 + $0x1] sm:$0x1]
      %v3014 = vlaneseq
      %v3015 = vshrl.u32 %v3014, 7
      %v3016 = vsub.s32 0, %v3015
      %v3017 = vrot.slane %v3013, %v3016
      %v3018 = vmul.f32 %v2220, %v3017
      %v3019 = vmul.f32 %v2221, %v3017
      %v3020 = vmul.f32 %v2222, %v3017
      %v3021 = vmul.f32 %v2223, %v3017
      %v3022 = vmul.f32 %v2224, %v3017
      %v3023 = vmul.f32 %v2225, %v3017
      %v3024 = vmul.f32 %v2226, %v3017
      %v3025 = vmul.f32 %v2227, %v3017
      %v3026 = vmul.f32 %v2228, %v3017
      %v3027 = vmul.f32 %v2229, %v3017
      %v3028 = vmul.f32 %v2230, %v3017
      %v3029 = vmul.f32 %v2231, %v3017
      %v3030 = vmul.f32 %v2232, %v3017
      %v3031 = vmul.f32 %v2233, %v3017
      %v3032 = vmul.f32 %v2234, %v3017
      %v3033 = vmul.f32 %v2235, %v3017
      %v3034 = vadd.f32 %v2997, %v3018
      %v3035 = vadd.f32 %v2998, %v3019
      %v3036 = vadd.f32 %v2999, %v3020
      %v3037 = vadd.f32 %v3000, %v3021
      %v3038 = vadd.f32 %v3001, %v3022
      %v3039 = vadd.f32 %v3002, %v3023
      %v3040 = vadd.f32 %v3003, %v3024
      %v3041 = vadd.f32 %v3004, %v3025
      %v3042 = vadd.f32 %v3005, %v3026
      %v3043 = vadd.f32 %v3006, %v3027
      %v3044 = vadd.f32 %v3007, %v3028
      %v3045 = vadd.f32 %v3008, %v3029
      %v3046 = vadd.f32 %v3009, %v3030
      %v3047 = vadd.f32 %v3010, %v3031
      %v3048 = vadd.f32 %v3011, %v3032
      %v3049 = vadd.f32 %v3012, %v3033
      %v3050 = vld [vmem:[%s2272 + $0x1] sm:$0x1]
      %v3051 = vlaneseq
      %v3052 = vshrl.u32 %v3051, 7
      %v3053 = vsub.s32 0, %v3052
      %v3054 = vrot.slane %v3050, %v3053
      %v3055 = vmul.f32 %v2274, %v3054
      %v3056 = vmul.f32 %v2275, %v3054
      %v3057 = vmul.f32 %v2276, %v3054
      %v3058 = vmul.f32 %v2277, %v3054
      %v3059 = vmul.f32 %v2278, %v3054
      %v3060 = vmul.f32 %v2279, %v3054
      %v3061 = vmul.f32 %v2280, %v3054
      %v3062 = vmul.f32 %v2281, %v3054
      %v3063 = vmul.f32 %v2282, %v3054
      %v3064 = vmul.f32 %v2283, %v3054
      %v3065 = vmul.f32 %v2284, %v3054
      %v3066 = vmul.f32 %v2285, %v3054
      %v3067 = vmul.f32 %v2286, %v3054
      %v3068 = vmul.f32 %v2287, %v3054
      %v3069 = vmul.f32 %v2288, %v3054
      %v3070 = vmul.f32 %v2289, %v3054
      %v3071 = vadd.f32 %v3034, %v3055
      %v3072 = vadd.f32 %v3035, %v3056
      %v3073 = vadd.f32 %v3036, %v3057
      %v3074 = vadd.f32 %v3037, %v3058
      %v3075 = vadd.f32 %v3038, %v3059
      %v3076 = vadd.f32 %v3039, %v3060
      %v3077 = vadd.f32 %v3040, %v3061
      %v3078 = vadd.f32 %v3041, %v3062
      %v3079 = vadd.f32 %v3042, %v3063
      %v3080 = vadd.f32 %v3043, %v3064
      %v3081 = vadd.f32 %v3044, %v3065
      %v3082 = vadd.f32 %v3045, %v3066
      %v3083 = vadd.f32 %v3046, %v3067
      %v3084 = vadd.f32 %v3047, %v3068
      %v3085 = vadd.f32 %v3048, %v3069
      %v3086 = vadd.f32 %v3049, %v3070
      %v3087 = vld [vmem:[%s2326 + $0x1] sm:$0x1]
      %v3088 = vlaneseq
      %v3089 = vshrl.u32 %v3088, 7
      %v3090 = vsub.s32 0, %v3089
      %v3091 = vrot.slane %v3087, %v3090
      %v3092 = vmul.f32 %v2329, %v3091
      %v3093 = vmul.f32 %v2330, %v3091
      %v3094 = vmul.f32 %v2331, %v3091
      %v3095 = vmul.f32 %v2332, %v3091
      %v3096 = vmul.f32 %v2333, %v3091
      %v3097 = vmul.f32 %v2334, %v3091
      %v3098 = vmul.f32 %v2335, %v3091
      %v3099 = vmul.f32 %v2336, %v3091
      %v3100 = vmul.f32 %v2337, %v3091
      %v3101 = vmul.f32 %v2338, %v3091
      %v3102 = vmul.f32 %v2339, %v3091
      %v3103 = vmul.f32 %v2340, %v3091
      %v3104 = vmul.f32 %v2341, %v3091
      %v3105 = vmul.f32 %v2342, %v3091
      %v3106 = vmul.f32 %v2343, %v3091
      %v3107 = vmul.f32 %v2344, %v3091
      %v3108 = vadd.f32 %v3071, %v3092
      %v3109 = vadd.f32 %v3072, %v3093
      %v3110 = vadd.f32 %v3073, %v3094
      %v3111 = vadd.f32 %v3074, %v3095
      %v3112 = vadd.f32 %v3075, %v3096
      %v3113 = vadd.f32 %v3076, %v3097
      %v3114 = vadd.f32 %v3077, %v3098
      %v3115 = vadd.f32 %v3078, %v3099
      %v3116 = vadd.f32 %v3079, %v3100
      %v3117 = vadd.f32 %v3080, %v3101
      %v3118 = vadd.f32 %v3081, %v3102
      %v3119 = vadd.f32 %v3082, %v3103
      %v3120 = vadd.f32 %v3083, %v3104
      %v3121 = vadd.f32 %v3084, %v3105
      %v3122 = vadd.f32 %v3085, %v3106
      %v3123 = vadd.f32 %v3086, %v3107
      %v3124 = vld [vmem:[%s2381 + $0x1] sm:$0x1]
      %v3125 = vlaneseq
      %v3126 = vshrl.u32 %v3125, 7
      %v3127 = vsub.s32 0, %v3126
      %v3128 = vrot.slane %v3124, %v3127
      %v3129 = vmul.f32 %v2384, %v3128
      %v3130 = vmul.f32 %v2385, %v3128
      %v3131 = vmul.f32 %v2386, %v3128
      %v3132 = vmul.f32 %v2387, %v3128
      %v3133 = vmul.f32 %v2388, %v3128
      %v3134 = vmul.f32 %v2389, %v3128
      %v3135 = vmul.f32 %v2390, %v3128
      %v3136 = vmul.f32 %v2391, %v3128
      %v3137 = vmul.f32 %v2392, %v3128
      %v3138 = vmul.f32 %v2393, %v3128
      %v3139 = vmul.f32 %v2394, %v3128
      %v3140 = vmul.f32 %v2395, %v3128
      %v3141 = vmul.f32 %v2396, %v3128
      %v3142 = vmul.f32 %v2397, %v3128
      %v3143 = vmul.f32 %v2398, %v3128
      %v3144 = vmul.f32 %v2399, %v3128
      %v3145 = vadd.f32 %v3108, %v3129
      %v3146 = vadd.f32 %v3109, %v3130
      %v3147 = vadd.f32 %v3110, %v3131
      %v3148 = vadd.f32 %v3111, %v3132
      %v3149 = vadd.f32 %v3112, %v3133
      %v3150 = vadd.f32 %v3113, %v3134
      %v3151 = vadd.f32 %v3114, %v3135
      %v3152 = vadd.f32 %v3115, %v3136
      %v3153 = vadd.f32 %v3116, %v3137
      %v3154 = vadd.f32 %v3117, %v3138
      %v3155 = vadd.f32 %v3118, %v3139
      %v3156 = vadd.f32 %v3119, %v3140
      %v3157 = vadd.f32 %v3120, %v3141
      %v3158 = vadd.f32 %v3121, %v3142
      %v3159 = vadd.f32 %v3122, %v3143
      %v3160 = vadd.f32 %v3123, %v3144
      %v3161 = vld [vmem:[%s2436 + $0x1] sm:$0x1]
      %v3162 = vlaneseq
      %v3163 = vshrl.u32 %v3162, 7
      %v3164 = vsub.s32 0, %v3163
      %v3165 = vrot.slane %v3161, %v3164
      %v3166 = vmul.f32 %v2439, %v3165
      %v3167 = vmul.f32 %v2440, %v3165
      %v3168 = vmul.f32 %v2441, %v3165
      %v3169 = vmul.f32 %v2442, %v3165
      %v3170 = vmul.f32 %v2443, %v3165
      %v3171 = vmul.f32 %v2444, %v3165
      %v3172 = vmul.f32 %v2445, %v3165
      %v3173 = vmul.f32 %v2446, %v3165
      %v3174 = vmul.f32 %v2447, %v3165
      %v3175 = vmul.f32 %v2448, %v3165
      %v3176 = vmul.f32 %v2449, %v3165
      %v3177 = vmul.f32 %v2450, %v3165
      %v3178 = vmul.f32 %v2451, %v3165
      %v3179 = vmul.f32 %v2452, %v3165
      %v3180 = vmul.f32 %v2453, %v3165
      %v3181 = vmul.f32 %v2454, %v3165
      %v3182 = vadd.f32 %v3145, %v3166
      %v3183 = vadd.f32 %v3146, %v3167
      %v3184 = vadd.f32 %v3147, %v3168
      %v3185 = vadd.f32 %v3148, %v3169
      %v3186 = vadd.f32 %v3149, %v3170
      %v3187 = vadd.f32 %v3150, %v3171
      %v3188 = vadd.f32 %v3151, %v3172
      %v3189 = vadd.f32 %v3152, %v3173
      %v3190 = vadd.f32 %v3153, %v3174
      %v3191 = vadd.f32 %v3154, %v3175
      %v3192 = vadd.f32 %v3155, %v3176
      %v3193 = vadd.f32 %v3156, %v3177
      %v3194 = vadd.f32 %v3157, %v3178
      %v3195 = vadd.f32 %v3158, %v3179
      %v3196 = vadd.f32 %v3159, %v3180
      %v3197 = vadd.f32 %v3160, %v3181
      %v3198 = vld [vmem:[%s2491 + $0x1] sm:$0x1]
      %v3199 = vlaneseq
      %v3200 = vshrl.u32 %v3199, 7
      %v3201 = vsub.s32 0, %v3200
      %v3202 = vrot.slane %v3198, %v3201
      %v3203 = vmul.f32 %v2493, %v3202
      %v3204 = vmul.f32 %v2494, %v3202
      %v3205 = vmul.f32 %v2495, %v3202
      %v3206 = vmul.f32 %v2496, %v3202
      %v3207 = vmul.f32 %v2497, %v3202
      %v3208 = vmul.f32 %v2498, %v3202
      %v3209 = vmul.f32 %v2499, %v3202
      %v3210 = vmul.f32 %v2500, %v3202
      %v3211 = vmul.f32 %v2501, %v3202
      %v3212 = vmul.f32 %v2502, %v3202
      %v3213 = vmul.f32 %v2503, %v3202
      %v3214 = vmul.f32 %v2504, %v3202
      %v3215 = vmul.f32 %v2505, %v3202
      %v3216 = vmul.f32 %v2506, %v3202
      %v3217 = vmul.f32 %v2507, %v3202
      %v3218 = vmul.f32 %v2508, %v3202
      %v3219 = vadd.f32 %v3182, %v3203
      %v3220 = vadd.f32 %v3183, %v3204
      %v3221 = vadd.f32 %v3184, %v3205
      %v3222 = vadd.f32 %v3185, %v3206
      %v3223 = vadd.f32 %v3186, %v3207
      %v3224 = vadd.f32 %v3187, %v3208
      %v3225 = vadd.f32 %v3188, %v3209
      %v3226 = vadd.f32 %v3189, %v3210
      %v3227 = vadd.f32 %v3190, %v3211
      %v3228 = vadd.f32 %v3191, %v3212
      %v3229 = vadd.f32 %v3192, %v3213
      %v3230 = vadd.f32 %v3193, %v3214
      %v3231 = vadd.f32 %v3194, %v3215
      %v3232 = vadd.f32 %v3195, %v3216
      %v3233 = vadd.f32 %v3196, %v3217
      %v3234 = vadd.f32 %v3197, %v3218
      %v3235 = vld [vmem:[%s2545 + $0x1] sm:$0x1]
      %v3236 = vlaneseq
      %v3237 = vshrl.u32 %v3236, 7
      %v3238 = vsub.s32 0, %v3237
      %v3239 = vrot.slane %v3235, %v3238
      %v3240 = vmul.f32 %v2548, %v3239
      %v3241 = vmul.f32 %v2549, %v3239
      %v3242 = vmul.f32 %v2550, %v3239
      %v3243 = vmul.f32 %v2551, %v3239
      %v3244 = vmul.f32 %v2552, %v3239
      %v3245 = vmul.f32 %v2553, %v3239
      %v3246 = vmul.f32 %v2554, %v3239
      %v3247 = vmul.f32 %v2555, %v3239
      %v3248 = vmul.f32 %v2556, %v3239
      %v3249 = vmul.f32 %v2557, %v3239
      %v3250 = vmul.f32 %v2558, %v3239
      %v3251 = vmul.f32 %v2559, %v3239
      %v3252 = vmul.f32 %v2560, %v3239
      %v3253 = vmul.f32 %v2561, %v3239
      %v3254 = vmul.f32 %v2562, %v3239
      %v3255 = vmul.f32 %v2563, %v3239
      %v3256 = vadd.f32 %v3219, %v3240
      %v3257 = vadd.f32 %v3220, %v3241
      %v3258 = vadd.f32 %v3221, %v3242
      %v3259 = vadd.f32 %v3222, %v3243
      %v3260 = vadd.f32 %v3223, %v3244
      %v3261 = vadd.f32 %v3224, %v3245
      %v3262 = vadd.f32 %v3225, %v3246
      %v3263 = vadd.f32 %v3226, %v3247
      %v3264 = vadd.f32 %v3227, %v3248
      %v3265 = vadd.f32 %v3228, %v3249
      %v3266 = vadd.f32 %v3229, %v3250
      %v3267 = vadd.f32 %v3230, %v3251
      %v3268 = vadd.f32 %v3231, %v3252
      %v3269 = vadd.f32 %v3232, %v3253
      %v3270 = vadd.f32 %v3233, %v3254
      %v3271 = vadd.f32 %v3234, %v3255
      %v3272 = vld [vmem:[%s2600 + $0x1] sm:$0x1]
      %v3273 = vlaneseq
      %v3274 = vshrl.u32 %v3273, 7
      %v3275 = vsub.s32 0, %v3274
      %v3276 = vrot.slane %v3272, %v3275
      %v3277 = vmul.f32 %v2603, %v3276
      %v3278 = vmul.f32 %v2604, %v3276
      %v3279 = vmul.f32 %v2605, %v3276
      %v3280 = vmul.f32 %v2606, %v3276
      %v3281 = vmul.f32 %v2607, %v3276
      %v3282 = vmul.f32 %v2608, %v3276
      %v3283 = vmul.f32 %v2609, %v3276
      %v3284 = vmul.f32 %v2610, %v3276
      %v3285 = vmul.f32 %v2611, %v3276
      %v3286 = vmul.f32 %v2612, %v3276
      %v3287 = vmul.f32 %v2613, %v3276
      %v3288 = vmul.f32 %v2614, %v3276
      %v3289 = vmul.f32 %v2615, %v3276
      %v3290 = vmul.f32 %v2616, %v3276
      %v3291 = vmul.f32 %v2617, %v3276
      %v3292 = vmul.f32 %v2618, %v3276
      %v3293 = vadd.f32 %v3256, %v3277
      %v3294 = vadd.f32 %v3257, %v3278
      %v3295 = vadd.f32 %v3258, %v3279
      %v3296 = vadd.f32 %v3259, %v3280
      %v3297 = vadd.f32 %v3260, %v3281
      %v3298 = vadd.f32 %v3261, %v3282
      %v3299 = vadd.f32 %v3262, %v3283
      %v3300 = vadd.f32 %v3263, %v3284
      %v3301 = vadd.f32 %v3264, %v3285
      %v3302 = vadd.f32 %v3265, %v3286
      %v3303 = vadd.f32 %v3266, %v3287
      %v3304 = vadd.f32 %v3267, %v3288
      %v3305 = vadd.f32 %v3268, %v3289
      %v3306 = vadd.f32 %v3269, %v3290
      %v3307 = vadd.f32 %v3270, %v3291
      %v3308 = vadd.f32 %v3271, %v3292
      %v3309 = vld [vmem:[%s2655 + $0x1] sm:$0x1]
      %v3310 = vlaneseq
      %v3311 = vshrl.u32 %v3310, 7
      %v3312 = vsub.s32 0, %v3311
      %v3313 = vrot.slane %v3309, %v3312
      %v3314 = vmul.f32 %v2657, %v3313
      %v3315 = vmul.f32 %v2658, %v3313
      %v3316 = vmul.f32 %v2659, %v3313
      %v3317 = vmul.f32 %v2660, %v3313
      %v3318 = vmul.f32 %v2661, %v3313
      %v3319 = vmul.f32 %v2662, %v3313
      %v3320 = vmul.f32 %v2663, %v3313
      %v3321 = vmul.f32 %v2664, %v3313
      %v3322 = vmul.f32 %v2665, %v3313
      %v3323 = vmul.f32 %v2666, %v3313
      %v3324 = vmul.f32 %v2667, %v3313
      %v3325 = vmul.f32 %v2668, %v3313
      %v3326 = vmul.f32 %v2669, %v3313
      %v3327 = vmul.f32 %v2670, %v3313
      %v3328 = vmul.f32 %v2671, %v3313
      %v3329 = vmul.f32 %v2672, %v3313
      %v3330 = vadd.f32 %v3293, %v3314
      %v3331 = vadd.f32 %v3294, %v3315
      %v3332 = vadd.f32 %v3295, %v3316
      %v3333 = vadd.f32 %v3296, %v3317
      %v3334 = vadd.f32 %v3297, %v3318
      %v3335 = vadd.f32 %v3298, %v3319
      %v3336 = vadd.f32 %v3299, %v3320
      %v3337 = vadd.f32 %v3300, %v3321
      %v3338 = vadd.f32 %v3301, %v3322
      %v3339 = vadd.f32 %v3302, %v3323
      %v3340 = vadd.f32 %v3303, %v3324
      %v3341 = vadd.f32 %v3304, %v3325
      %v3342 = vadd.f32 %v3305, %v3326
      %v3343 = vadd.f32 %v3306, %v3327
      %v3344 = vadd.f32 %v3307, %v3328
      %v3345 = vadd.f32 %v3308, %v3329
      %v3346 = vld [vmem:[%s2709 + $0x1] sm:$0x1]
      %v3347 = vlaneseq
      %v3348 = vshrl.u32 %v3347, 7
      %v3349 = vsub.s32 0, %v3348
      %v3350 = vrot.slane %v3346, %v3349
      %v3351 = vmul.f32 %v2712, %v3350
      %v3352 = vmul.f32 %v2713, %v3350
      %v3353 = vmul.f32 %v2714, %v3350
      %v3354 = vmul.f32 %v2715, %v3350
      %v3355 = vmul.f32 %v2716, %v3350
      %v3356 = vmul.f32 %v2717, %v3350
      %v3357 = vmul.f32 %v2718, %v3350
      %v3358 = vmul.f32 %v2719, %v3350
      %v3359 = vmul.f32 %v2720, %v3350
      %v3360 = vmul.f32 %v2721, %v3350
      %v3361 = vmul.f32 %v2722, %v3350
      %v3362 = vmul.f32 %v2723, %v3350
      %v3363 = vmul.f32 %v2724, %v3350
      %v3364 = vmul.f32 %v2725, %v3350
      %v3365 = vmul.f32 %v2726, %v3350
      %v3366 = vmul.f32 %v2727, %v3350
      %v3367 = vadd.f32 %v3330, %v3351
      %v3368 = vadd.f32 %v3331, %v3352
      %v3369 = vadd.f32 %v3332, %v3353
      %v3370 = vadd.f32 %v3333, %v3354
      %v3371 = vadd.f32 %v3334, %v3355
      %v3372 = vadd.f32 %v3335, %v3356
      %v3373 = vadd.f32 %v3336, %v3357
      %v3374 = vadd.f32 %v3337, %v3358
      %v3375 = vadd.f32 %v3338, %v3359
      %v3376 = vadd.f32 %v3339, %v3360
      %v3377 = vadd.f32 %v3340, %v3361
      %v3378 = vadd.f32 %v3341, %v3362
      %v3379 = vadd.f32 %v3342, %v3363
      %v3380 = vadd.f32 %v3343, %v3364
      %v3381 = vadd.f32 %v3344, %v3365
      %v3382 = vadd.f32 %v3345, %v3366
      %v3383 = vld [vmem:[%s2764 + $0x1] sm:$0x1]
      %v3384 = vlaneseq
      %v3385 = vshrl.u32 %v3384, 7
      %v3386 = vsub.s32 0, %v3385
      %v3387 = vrot.slane %v3383, %v3386
      %v3388 = vmul.f32 %v2767, %v3387
      %v3389 = vmul.f32 %v2768, %v3387
      %v3390 = vmul.f32 %v2769, %v3387
      %v3391 = vmul.f32 %v2770, %v3387
      %v3392 = vmul.f32 %v2771, %v3387
      %v3393 = vmul.f32 %v2772, %v3387
      %v3394 = vmul.f32 %v2773, %v3387
      %v3395 = vmul.f32 %v2774, %v3387
      %v3396 = vmul.f32 %v2775, %v3387
      %v3397 = vmul.f32 %v2776, %v3387
      %v3398 = vmul.f32 %v2777, %v3387
      %v3399 = vmul.f32 %v2778, %v3387
      %v3400 = vmul.f32 %v2779, %v3387
      %v3401 = vmul.f32 %v2780, %v3387
      %v3402 = vmul.f32 %v2781, %v3387
      %v3403 = vmul.f32 %v2782, %v3387
      %v3404 = vadd.f32 %v3367, %v3388
      %v3405 = vadd.f32 %v3368, %v3389
      %v3406 = vadd.f32 %v3369, %v3390
      %v3407 = vadd.f32 %v3370, %v3391
      %v3408 = vadd.f32 %v3371, %v3392
      %v3409 = vadd.f32 %v3372, %v3393
      %v3410 = vadd.f32 %v3373, %v3394
      %v3411 = vadd.f32 %v3374, %v3395
      %v3412 = vadd.f32 %v3375, %v3396
      %v3413 = vadd.f32 %v3376, %v3397
      %v3414 = vadd.f32 %v3377, %v3398
      %v3415 = vadd.f32 %v3378, %v3399
      %v3416 = vadd.f32 %v3379, %v3400
      %v3417 = vadd.f32 %v3380, %v3401
      %v3418 = vadd.f32 %v3381, %v3402
      %v3419 = vadd.f32 %v3382, %v3403
      %v3420 = vld [vmem:[%s2819 + $0x1] sm:$0x1]
      %v3421 = vlaneseq
      %v3422 = vshrl.u32 %v3421, 7
      %v3423 = vsub.s32 0, %v3422
      %v3424 = vrot.slane %v3420, %v3423
      %v3425 = vmul.f32 %v2822, %v3424
      %v3426 = vmul.f32 %v2823, %v3424
      %v3427 = vmul.f32 %v2824, %v3424
      %v3428 = vmul.f32 %v2825, %v3424
      %v3429 = vmul.f32 %v2826, %v3424
      %v3430 = vmul.f32 %v2827, %v3424
      %v3431 = vmul.f32 %v2828, %v3424
      %v3432 = vmul.f32 %v2829, %v3424
      %v3433 = vmul.f32 %v2830, %v3424
      %v3434 = vmul.f32 %v2831, %v3424
      %v3435 = vmul.f32 %v2832, %v3424
      %v3436 = vmul.f32 %v2833, %v3424
      %v3437 = vmul.f32 %v2834, %v3424
      %v3438 = vmul.f32 %v2835, %v3424
      %v3439 = vmul.f32 %v2836, %v3424
      %v3440 = vmul.f32 %v2837, %v3424
      %v3441 = vadd.f32 %v3404, %v3425
      %v3442 = vadd.f32 %v3405, %v3426
      %v3443 = vadd.f32 %v3406, %v3427
      %v3444 = vadd.f32 %v3407, %v3428
      %v3445 = vadd.f32 %v3408, %v3429
      %v3446 = vadd.f32 %v3409, %v3430
      %v3447 = vadd.f32 %v3410, %v3431
      %v3448 = vadd.f32 %v3411, %v3432
      %v3449 = vadd.f32 %v3412, %v3433
      %v3450 = vadd.f32 %v3413, %v3434
      %v3451 = vadd.f32 %v3414, %v3435
      %v3452 = vadd.f32 %v3415, %v3436
      %v3453 = vadd.f32 %v3416, %v3437
      %v3454 = vadd.f32 %v3417, %v3438
      %v3455 = vadd.f32 %v3418, %v3439
      %v3456 = vadd.f32 %v3419, %v3440
      %vm3473 = vcmask 1041408
      %v3474 = vrot.slane %v3441, 6
      %v3475 = vrot.slane %v3442, 6
      %v3476 = vsel %vm3473, %v3474, %v3475
      %v3477 = vrot.slane %v3443, 6
      %v3478 = vrot.slane %v3444, 6
      %v3479 = vsel %vm3473, %v3477, %v3478
      %v3480 = vrot.slane %v3445, 6
      %v3481 = vrot.slane %v3446, 6
      %v3482 = vsel %vm3473, %v3480, %v3481
      %v3483 = vrot.slane %v3447, 6
      %v3484 = vrot.slane %v3448, 6
      %v3485 = vsel %vm3473, %v3483, %v3484
      %v3486 = vrot.slane %v3449, 6
      %v3487 = vrot.slane %v3450, 6
      %v3488 = vsel %vm3473, %v3486, %v3487
      %v3489 = vrot.slane %v3451, 6
      %v3490 = vrot.slane %v3452, 6
      %v3491 = vsel %vm3473, %v3489, %v3490
      %v3492 = vrot.slane %v3453, 6
      %v3493 = vrot.slane %v3454, 6
      %v3494 = vsel %vm3473, %v3492, %v3493
      %v3495 = vrot.slane %v3455, 6
      %v3496 = vrot.slane %v3456, 6
      %v3497 = vsel %vm3473, %v3495, %v3496
      %v3514 = vsel %vm3473, 0.0, %v3474
      %v3515 = vsel %vm3473, 0.0, %v3477
      %v3516 = vsel %vm3473, 0.0, %v3480
      %v3517 = vsel %vm3473, 0.0, %v3483
      %v3518 = vsel %vm3473, 0.0, %v3486
      %v3519 = vsel %vm3473, 0.0, %v3489
      %v3520 = vsel %vm3473, 0.0, %v3492
      %v3521 = vsel %vm3473, 0.0, %v3495
      %v3522 = vadd.f32 %v2939, %v3514
      %v3523 = vadd.f32 %v2940, %v3476
      %v3524 = vadd.f32 %v2941, %v3515
      %v3525 = vadd.f32 %v2942, %v3479
      %v3526 = vadd.f32 %v2943, %v3516
      %v3527 = vadd.f32 %v2944, %v3482
      %v3528 = vadd.f32 %v2945, %v3517
      %v3529 = vadd.f32 %v2946, %v3485
      %v3530 = vadd.f32 %v2947, %v3518
      %v3531 = vadd.f32 %v2948, %v3488
      %v3532 = vadd.f32 %v2949, %v3519
      %v3533 = vadd.f32 %v2950, %v3491
      %v3534 = vadd.f32 %v2951, %v3520
      %v3535 = vadd.f32 %v2952, %v3494
      %v3536 = vadd.f32 %v2953, %v3521
      %v3537 = vadd.f32 %v2954, %v3497
      %v3538 = vld [vmem:[%s1 + $0x2] sm:$0x1]
      %v3539 = vlaneseq
      %v3540 = vshrl.u32 %v3539, 7
      %v3541 = vsub.s32 0, %v3540
      %v3542 = vrot.slane %v3538, %v3541
      %v3543 = vmul.f32 %v2126, %v3542
      %v3544 = vmul.f32 %v2127, %v3542
      %v3545 = vmul.f32 %v2128, %v3542
      %v3546 = vmul.f32 %v2129, %v3542
      %v3547 = vmul.f32 %v2130, %v3542
      %v3548 = vmul.f32 %v2131, %v3542
      %v3549 = vmul.f32 %v2132, %v3542
      %v3550 = vmul.f32 %v2133, %v3542
      %v3551 = vmul.f32 %v2134, %v3542
      %v3552 = vmul.f32 %v2135, %v3542
      %v3553 = vmul.f32 %v2136, %v3542
      %v3554 = vmul.f32 %v2137, %v3542
      %v3555 = vmul.f32 %v2138, %v3542
      %v3556 = vmul.f32 %v2139, %v3542
      %v3557 = vmul.f32 %v2140, %v3542
      %v3558 = vmul.f32 %v2141, %v3542
      %v3559 = vld [vmem:[%s2162 + $0x2] sm:$0x1]
      %v3560 = vlaneseq
      %v3561 = vshrl.u32 %v3560, 7
      %v3562 = vsub.s32 0, %v3561
      %v3563 = vrot.slane %v3559, %v3562
      %v3564 = vmul.f32 %v2165, %v3563
      %v3565 = vmul.f32 %v2166, %v3563
      %v3566 = vmul.f32 %v2167, %v3563
      %v3567 = vmul.f32 %v2168, %v3563
      %v3568 = vmul.f32 %v2169, %v3563
      %v3569 = vmul.f32 %v2170, %v3563
      %v3570 = vmul.f32 %v2171, %v3563
      %v3571 = vmul.f32 %v2172, %v3563
      %v3572 = vmul.f32 %v2173, %v3563
      %v3573 = vmul.f32 %v2174, %v3563
      %v3574 = vmul.f32 %v2175, %v3563
      %v3575 = vmul.f32 %v2176, %v3563
      %v3576 = vmul.f32 %v2177, %v3563
      %v3577 = vmul.f32 %v2178, %v3563
      %v3578 = vmul.f32 %v2179, %v3563
      %v3579 = vmul.f32 %v2180, %v3563
      %v3580 = vadd.f32 %v3543, %v3564
      %v3581 = vadd.f32 %v3544, %v3565
      %v3582 = vadd.f32 %v3545, %v3566
      %v3583 = vadd.f32 %v3546, %v3567
      %v3584 = vadd.f32 %v3547, %v3568
      %v3585 = vadd.f32 %v3548, %v3569
      %v3586 = vadd.f32 %v3549, %v3570
      %v3587 = vadd.f32 %v3550, %v3571
      %v3588 = vadd.f32 %v3551, %v3572
      %v3589 = vadd.f32 %v3552, %v3573
      %v3590 = vadd.f32 %v3553, %v3574
      %v3591 = vadd.f32 %v3554, %v3575
      %v3592 = vadd.f32 %v3555, %v3576
      %v3593 = vadd.f32 %v3556, %v3577
      %v3594 = vadd.f32 %v3557, %v3578
      %v3595 = vadd.f32 %v3558, %v3579
      %v3596 = vld [vmem:[%s2217 + $0x2] sm:$0x1]
      %v3597 = vlaneseq
      %v3598 = vshrl.u32 %v3597, 7
      %v3599 = vsub.s32 0, %v3598
      %v3600 = vrot.slane %v3596, %v3599
      %v3601 = vmul.f32 %v2220, %v3600
      %v3602 = vmul.f32 %v2221, %v3600
      %v3603 = vmul.f32 %v2222, %v3600
      %v3604 = vmul.f32 %v2223, %v3600
      %v3605 = vmul.f32 %v2224, %v3600
      %v3606 = vmul.f32 %v2225, %v3600
      %v3607 = vmul.f32 %v2226, %v3600
      %v3608 = vmul.f32 %v2227, %v3600
      %v3609 = vmul.f32 %v2228, %v3600
      %v3610 = vmul.f32 %v2229, %v3600
      %v3611 = vmul.f32 %v2230, %v3600
      %v3612 = vmul.f32 %v2231, %v3600
      %v3613 = vmul.f32 %v2232, %v3600
      %v3614 = vmul.f32 %v2233, %v3600
      %v3615 = vmul.f32 %v2234, %v3600
      %v3616 = vmul.f32 %v2235, %v3600
      %v3617 = vadd.f32 %v3580, %v3601
      %v3618 = vadd.f32 %v3581, %v3602
      %v3619 = vadd.f32 %v3582, %v3603
      %v3620 = vadd.f32 %v3583, %v3604
      %v3621 = vadd.f32 %v3584, %v3605
      %v3622 = vadd.f32 %v3585, %v3606
      %v3623 = vadd.f32 %v3586, %v3607
      %v3624 = vadd.f32 %v3587, %v3608
      %v3625 = vadd.f32 %v3588, %v3609
      %v3626 = vadd.f32 %v3589, %v3610
      %v3627 = vadd.f32 %v3590, %v3611
      %v3628 = vadd.f32 %v3591, %v3612
      %v3629 = vadd.f32 %v3592, %v3613
      %v3630 = vadd.f32 %v3593, %v3614
      %v3631 = vadd.f32 %v3594, %v3615
      %v3632 = vadd.f32 %v3595, %v3616
      %v3633 = vld [vmem:[%s2272 + $0x2] sm:$0x1]
      %v3634 = vlaneseq
      %v3635 = vshrl.u32 %v3634, 7
      %v3636 = vsub.s32 0, %v3635
      %v3637 = vrot.slane %v3633, %v3636
      %v3638 = vmul.f32 %v2274, %v3637
      %v3639 = vmul.f32 %v2275, %v3637
      %v3640 = vmul.f32 %v2276, %v3637
      %v3641 = vmul.f32 %v2277, %v3637
      %v3642 = vmul.f32 %v2278, %v3637
      %v3643 = vmul.f32 %v2279, %v3637
      %v3644 = vmul.f32 %v2280, %v3637
      %v3645 = vmul.f32 %v2281, %v3637
      %v3646 = vmul.f32 %v2282, %v3637
      %v3647 = vmul.f32 %v2283, %v3637
      %v3648 = vmul.f32 %v2284, %v3637
      %v3649 = vmul.f32 %v2285, %v3637
      %v3650 = vmul.f32 %v2286, %v3637
      %v3651 = vmul.f32 %v2287, %v3637
      %v3652 = vmul.f32 %v2288, %v3637
      %v3653 = vmul.f32 %v2289, %v3637
      %v3654 = vadd.f32 %v3617, %v3638
      %v3655 = vadd.f32 %v3618, %v3639
      %v3656 = vadd.f32 %v3619, %v3640
      %v3657 = vadd.f32 %v3620, %v3641
      %v3658 = vadd.f32 %v3621, %v3642
      %v3659 = vadd.f32 %v3622, %v3643
      %v3660 = vadd.f32 %v3623, %v3644
      %v3661 = vadd.f32 %v3624, %v3645
      %v3662 = vadd.f32 %v3625, %v3646
      %v3663 = vadd.f32 %v3626, %v3647
      %v3664 = vadd.f32 %v3627, %v3648
      %v3665 = vadd.f32 %v3628, %v3649
      %v3666 = vadd.f32 %v3629, %v3650
      %v3667 = vadd.f32 %v3630, %v3651
      %v3668 = vadd.f32 %v3631, %v3652
      %v3669 = vadd.f32 %v3632, %v3653
      %v3670 = vld [vmem:[%s2326 + $0x2] sm:$0x1]
      %v3671 = vlaneseq
      %v3672 = vshrl.u32 %v3671, 7
      %v3673 = vsub.s32 0, %v3672
      %v3674 = vrot.slane %v3670, %v3673
      %v3675 = vmul.f32 %v2329, %v3674
      %v3676 = vmul.f32 %v2330, %v3674
      %v3677 = vmul.f32 %v2331, %v3674
      %v3678 = vmul.f32 %v2332, %v3674
      %v3679 = vmul.f32 %v2333, %v3674
      %v3680 = vmul.f32 %v2334, %v3674
      %v3681 = vmul.f32 %v2335, %v3674
      %v3682 = vmul.f32 %v2336, %v3674
      %v3683 = vmul.f32 %v2337, %v3674
      %v3684 = vmul.f32 %v2338, %v3674
      %v3685 = vmul.f32 %v2339, %v3674
      %v3686 = vmul.f32 %v2340, %v3674
      %v3687 = vmul.f32 %v2341, %v3674
      %v3688 = vmul.f32 %v2342, %v3674
      %v3689 = vmul.f32 %v2343, %v3674
      %v3690 = vmul.f32 %v2344, %v3674
      %v3691 = vadd.f32 %v3654, %v3675
      %v3692 = vadd.f32 %v3655, %v3676
      %v3693 = vadd.f32 %v3656, %v3677
      %v3694 = vadd.f32 %v3657, %v3678
      %v3695 = vadd.f32 %v3658, %v3679
      %v3696 = vadd.f32 %v3659, %v3680
      %v3697 = vadd.f32 %v3660, %v3681
      %v3698 = vadd.f32 %v3661, %v3682
      %v3699 = vadd.f32 %v3662, %v3683
      %v3700 = vadd.f32 %v3663, %v3684
      %v3701 = vadd.f32 %v3664, %v3685
      %v3702 = vadd.f32 %v3665, %v3686
      %v3703 = vadd.f32 %v3666, %v3687
      %v3704 = vadd.f32 %v3667, %v3688
      %v3705 = vadd.f32 %v3668, %v3689
      %v3706 = vadd.f32 %v3669, %v3690
      %v3707 = vld [vmem:[%s2381 + $0x2] sm:$0x1]
      %v3708 = vlaneseq
      %v3709 = vshrl.u32 %v3708, 7
      %v3710 = vsub.s32 0, %v3709
      %v3711 = vrot.slane %v3707, %v3710
      %v3712 = vmul.f32 %v2384, %v3711
      %v3713 = vmul.f32 %v2385, %v3711
      %v3714 = vmul.f32 %v2386, %v3711
      %v3715 = vmul.f32 %v2387, %v3711
      %v3716 = vmul.f32 %v2388, %v3711
      %v3717 = vmul.f32 %v2389, %v3711
      %v3718 = vmul.f32 %v2390, %v3711
      %v3719 = vmul.f32 %v2391, %v3711
      %v3720 = vmul.f32 %v2392, %v3711
      %v3721 = vmul.f32 %v2393, %v3711
      %v3722 = vmul.f32 %v2394, %v3711
      %v3723 = vmul.f32 %v2395, %v3711
      %v3724 = vmul.f32 %v2396, %v3711
      %v3725 = vmul.f32 %v2397, %v3711
      %v3726 = vmul.f32 %v2398, %v3711
      %v3727 = vmul.f32 %v2399, %v3711
      %v3728 = vadd.f32 %v3691, %v3712
      %v3729 = vadd.f32 %v3692, %v3713
      %v3730 = vadd.f32 %v3693, %v3714
      %v3731 = vadd.f32 %v3694, %v3715
      %v3732 = vadd.f32 %v3695, %v3716
      %v3733 = vadd.f32 %v3696, %v3717
      %v3734 = vadd.f32 %v3697, %v3718
      %v3735 = vadd.f32 %v3698, %v3719
      %v3736 = vadd.f32 %v3699, %v3720
      %v3737 = vadd.f32 %v3700, %v3721
      %v3738 = vadd.f32 %v3701, %v3722
      %v3739 = vadd.f32 %v3702, %v3723
      %v3740 = vadd.f32 %v3703, %v3724
      %v3741 = vadd.f32 %v3704, %v3725
      %v3742 = vadd.f32 %v3705, %v3726
      %v3743 = vadd.f32 %v3706, %v3727
      %v3744 = vld [vmem:[%s2436 + $0x2] sm:$0x1]
      %v3745 = vlaneseq
      %v3746 = vshrl.u32 %v3745, 7
      %v3747 = vsub.s32 0, %v3746
      %v3748 = vrot.slane %v3744, %v3747
      %v3749 = vmul.f32 %v2439, %v3748
      %v3750 = vmul.f32 %v2440, %v3748
      %v3751 = vmul.f32 %v2441, %v3748
      %v3752 = vmul.f32 %v2442, %v3748
      %v3753 = vmul.f32 %v2443, %v3748
      %v3754 = vmul.f32 %v2444, %v3748
      %v3755 = vmul.f32 %v2445, %v3748
      %v3756 = vmul.f32 %v2446, %v3748
      %v3757 = vmul.f32 %v2447, %v3748
      %v3758 = vmul.f32 %v2448, %v3748
      %v3759 = vmul.f32 %v2449, %v3748
      %v3760 = vmul.f32 %v2450, %v3748
      %v3761 = vmul.f32 %v2451, %v3748
      %v3762 = vmul.f32 %v2452, %v3748
      %v3763 = vmul.f32 %v2453, %v3748
      %v3764 = vmul.f32 %v2454, %v3748
      %v3765 = vadd.f32 %v3728, %v3749
      %v3766 = vadd.f32 %v3729, %v3750
      %v3767 = vadd.f32 %v3730, %v3751
      %v3768 = vadd.f32 %v3731, %v3752
      %v3769 = vadd.f32 %v3732, %v3753
      %v3770 = vadd.f32 %v3733, %v3754
      %v3771 = vadd.f32 %v3734, %v3755
      %v3772 = vadd.f32 %v3735, %v3756
      %v3773 = vadd.f32 %v3736, %v3757
      %v3774 = vadd.f32 %v3737, %v3758
      %v3775 = vadd.f32 %v3738, %v3759
      %v3776 = vadd.f32 %v3739, %v3760
      %v3777 = vadd.f32 %v3740, %v3761
      %v3778 = vadd.f32 %v3741, %v3762
      %v3779 = vadd.f32 %v3742, %v3763
      %v3780 = vadd.f32 %v3743, %v3764
      %v3781 = vld [vmem:[%s2491 + $0x2] sm:$0x1]
      %v3782 = vlaneseq
      %v3783 = vshrl.u32 %v3782, 7
      %v3784 = vsub.s32 0, %v3783
      %v3785 = vrot.slane %v3781, %v3784
      %v3786 = vmul.f32 %v2493, %v3785
      %v3787 = vmul.f32 %v2494, %v3785
      %v3788 = vmul.f32 %v2495, %v3785
      %v3789 = vmul.f32 %v2496, %v3785
      %v3790 = vmul.f32 %v2497, %v3785
      %v3791 = vmul.f32 %v2498, %v3785
      %v3792 = vmul.f32 %v2499, %v3785
      %v3793 = vmul.f32 %v2500, %v3785
      %v3794 = vmul.f32 %v2501, %v3785
      %v3795 = vmul.f32 %v2502, %v3785
      %v3796 = vmul.f32 %v2503, %v3785
      %v3797 = vmul.f32 %v2504, %v3785
      %v3798 = vmul.f32 %v2505, %v3785
      %v3799 = vmul.f32 %v2506, %v3785
      %v3800 = vmul.f32 %v2507, %v3785
      %v3801 = vmul.f32 %v2508, %v3785
      %v3802 = vadd.f32 %v3765, %v3786
      %v3803 = vadd.f32 %v3766, %v3787
      %v3804 = vadd.f32 %v3767, %v3788
      %v3805 = vadd.f32 %v3768, %v3789
      %v3806 = vadd.f32 %v3769, %v3790
      %v3807 = vadd.f32 %v3770, %v3791
      %v3808 = vadd.f32 %v3771, %v3792
      %v3809 = vadd.f32 %v3772, %v3793
      %v3810 = vadd.f32 %v3773, %v3794
      %v3811 = vadd.f32 %v3774, %v3795
      %v3812 = vadd.f32 %v3775, %v3796
      %v3813 = vadd.f32 %v3776, %v3797
      %v3814 = vadd.f32 %v3777, %v3798
      %v3815 = vadd.f32 %v3778, %v3799
      %v3816 = vadd.f32 %v3779, %v3800
      %v3817 = vadd.f32 %v3780, %v3801
      %v3818 = vld [vmem:[%s2545 + $0x2] sm:$0x1]
      %v3819 = vlaneseq
      %v3820 = vshrl.u32 %v3819, 7
      %v3821 = vsub.s32 0, %v3820
      %v3822 = vrot.slane %v3818, %v3821
      %v3823 = vmul.f32 %v2548, %v3822
      %v3824 = vmul.f32 %v2549, %v3822
      %v3825 = vmul.f32 %v2550, %v3822
      %v3826 = vmul.f32 %v2551, %v3822
      %v3827 = vmul.f32 %v2552, %v3822
      %v3828 = vmul.f32 %v2553, %v3822
      %v3829 = vmul.f32 %v2554, %v3822
      %v3830 = vmul.f32 %v2555, %v3822
      %v3831 = vmul.f32 %v2556, %v3822
      %v3832 = vmul.f32 %v2557, %v3822
      %v3833 = vmul.f32 %v2558, %v3822
      %v3834 = vmul.f32 %v2559, %v3822
      %v3835 = vmul.f32 %v2560, %v3822
      %v3836 = vmul.f32 %v2561, %v3822
      %v3837 = vmul.f32 %v2562, %v3822
      %v3838 = vmul.f32 %v2563, %v3822
      %v3839 = vadd.f32 %v3802, %v3823
      %v3840 = vadd.f32 %v3803, %v3824
      %v3841 = vadd.f32 %v3804, %v3825
      %v3842 = vadd.f32 %v3805, %v3826
      %v3843 = vadd.f32 %v3806, %v3827
      %v3844 = vadd.f32 %v3807, %v3828
      %v3845 = vadd.f32 %v3808, %v3829
      %v3846 = vadd.f32 %v3809, %v3830
      %v3847 = vadd.f32 %v3810, %v3831
      %v3848 = vadd.f32 %v3811, %v3832
      %v3849 = vadd.f32 %v3812, %v3833
      %v3850 = vadd.f32 %v3813, %v3834
      %v3851 = vadd.f32 %v3814, %v3835
      %v3852 = vadd.f32 %v3815, %v3836
      %v3853 = vadd.f32 %v3816, %v3837
      %v3854 = vadd.f32 %v3817, %v3838
      %v3855 = vld [vmem:[%s2600 + $0x2] sm:$0x1]
      %v3856 = vlaneseq
      %v3857 = vshrl.u32 %v3856, 7
      %v3858 = vsub.s32 0, %v3857
      %v3859 = vrot.slane %v3855, %v3858
      %v3860 = vmul.f32 %v2603, %v3859
      %v3861 = vmul.f32 %v2604, %v3859
      %v3862 = vmul.f32 %v2605, %v3859
      %v3863 = vmul.f32 %v2606, %v3859
      %v3864 = vmul.f32 %v2607, %v3859
      %v3865 = vmul.f32 %v2608, %v3859
      %v3866 = vmul.f32 %v2609, %v3859
      %v3867 = vmul.f32 %v2610, %v3859
      %v3868 = vmul.f32 %v2611, %v3859
      %v3869 = vmul.f32 %v2612, %v3859
      %v3870 = vmul.f32 %v2613, %v3859
      %v3871 = vmul.f32 %v2614, %v3859
      %v3872 = vmul.f32 %v2615, %v3859
      %v3873 = vmul.f32 %v2616, %v3859
      %v3874 = vmul.f32 %v2617, %v3859
      %v3875 = vmul.f32 %v2618, %v3859
      %v3876 = vadd.f32 %v3839, %v3860
      %v3877 = vadd.f32 %v3840, %v3861
      %v3878 = vadd.f32 %v3841, %v3862
      %v3879 = vadd.f32 %v3842, %v3863
      %v3880 = vadd.f32 %v3843, %v3864
      %v3881 = vadd.f32 %v3844, %v3865
      %v3882 = vadd.f32 %v3845, %v3866
      %v3883 = vadd.f32 %v3846, %v3867
      %v3884 = vadd.f32 %v3847, %v3868
      %v3885 = vadd.f32 %v3848, %v3869
      %v3886 = vadd.f32 %v3849, %v3870
      %v3887 = vadd.f32 %v3850, %v3871
      %v3888 = vadd.f32 %v3851, %v3872
      %v3889 = vadd.f32 %v3852, %v3873
      %v3890 = vadd.f32 %v3853, %v3874
      %v3891 = vadd.f32 %v3854, %v3875
      %v3892 = vld [vmem:[%s2655 + $0x2] sm:$0x1]
      %v3893 = vlaneseq
      %v3894 = vshrl.u32 %v3893, 7
      %v3895 = vsub.s32 0, %v3894
      %v3896 = vrot.slane %v3892, %v3895
      %v3897 = vmul.f32 %v2657, %v3896
      %v3898 = vmul.f32 %v2658, %v3896
      %v3899 = vmul.f32 %v2659, %v3896
      %v3900 = vmul.f32 %v2660, %v3896
      %v3901 = vmul.f32 %v2661, %v3896
      %v3902 = vmul.f32 %v2662, %v3896
      %v3903 = vmul.f32 %v2663, %v3896
      %v3904 = vmul.f32 %v2664, %v3896
      %v3905 = vmul.f32 %v2665, %v3896
      %v3906 = vmul.f32 %v2666, %v3896
      %v3907 = vmul.f32 %v2667, %v3896
      %v3908 = vmul.f32 %v2668, %v3896
      %v3909 = vmul.f32 %v2669, %v3896
      %v3910 = vmul.f32 %v2670, %v3896
      %v3911 = vmul.f32 %v2671, %v3896
      %v3912 = vmul.f32 %v2672, %v3896
      %v3913 = vadd.f32 %v3876, %v3897
      %v3914 = vadd.f32 %v3877, %v3898
      %v3915 = vadd.f32 %v3878, %v3899
      %v3916 = vadd.f32 %v3879, %v3900
      %v3917 = vadd.f32 %v3880, %v3901
      %v3918 = vadd.f32 %v3881, %v3902
      %v3919 = vadd.f32 %v3882, %v3903
      %v3920 = vadd.f32 %v3883, %v3904
      %v3921 = vadd.f32 %v3884, %v3905
      %v3922 = vadd.f32 %v3885, %v3906
      %v3923 = vadd.f32 %v3886, %v3907
      %v3924 = vadd.f32 %v3887, %v3908
      %v3925 = vadd.f32 %v3888, %v3909
      %v3926 = vadd.f32 %v3889, %v3910
      %v3927 = vadd.f32 %v3890, %v3911
      %v3928 = vadd.f32 %v3891, %v3912
      %v3929 = vld [vmem:[%s2709 + $0x2] sm:$0x1]
      %v3930 = vlaneseq
      %v3931 = vshrl.u32 %v3930, 7
      %v3932 = vsub.s32 0, %v3931
      %v3933 = vrot.slane %v3929, %v3932
      %v3934 = vmul.f32 %v2712, %v3933
      %v3935 = vmul.f32 %v2713, %v3933
      %v3936 = vmul.f32 %v2714, %v3933
      %v3937 = vmul.f32 %v2715, %v3933
      %v3938 = vmul.f32 %v2716, %v3933
      %v3939 = vmul.f32 %v2717, %v3933
      %v3940 = vmul.f32 %v2718, %v3933
      %v3941 = vmul.f32 %v2719, %v3933
      %v3942 = vmul.f32 %v2720, %v3933
      %v3943 = vmul.f32 %v2721, %v3933
      %v3944 = vmul.f32 %v2722, %v3933
      %v3945 = vmul.f32 %v2723, %v3933
      %v3946 = vmul.f32 %v2724, %v3933
      %v3947 = vmul.f32 %v2725, %v3933
      %v3948 = vmul.f32 %v2726, %v3933
      %v3949 = vmul.f32 %v2727, %v3933
      %v3950 = vadd.f32 %v3913, %v3934
      %v3951 = vadd.f32 %v3914, %v3935
      %v3952 = vadd.f32 %v3915, %v3936
      %v3953 = vadd.f32 %v3916, %v3937
      %v3954 = vadd.f32 %v3917, %v3938
      %v3955 = vadd.f32 %v3918, %v3939
      %v3956 = vadd.f32 %v3919, %v3940
      %v3957 = vadd.f32 %v3920, %v3941
      %v3958 = vadd.f32 %v3921, %v3942
      %v3959 = vadd.f32 %v3922, %v3943
      %v3960 = vadd.f32 %v3923, %v3944
      %v3961 = vadd.f32 %v3924, %v3945
      %v3962 = vadd.f32 %v3925, %v3946
      %v3963 = vadd.f32 %v3926, %v3947
      %v3964 = vadd.f32 %v3927, %v3948
      %v3965 = vadd.f32 %v3928, %v3949
      %v3966 = vld [vmem:[%s2764 + $0x2] sm:$0x1]
      %v3967 = vlaneseq
      %v3968 = vshrl.u32 %v3967, 7
      %v3969 = vsub.s32 0, %v3968
      %v3970 = vrot.slane %v3966, %v3969
      %v3971 = vmul.f32 %v2767, %v3970
      %v3972 = vmul.f32 %v2768, %v3970
      %v3973 = vmul.f32 %v2769, %v3970
      %v3974 = vmul.f32 %v2770, %v3970
      %v3975 = vmul.f32 %v2771, %v3970
      %v3976 = vmul.f32 %v2772, %v3970
      %v3977 = vmul.f32 %v2773, %v3970
      %v3978 = vmul.f32 %v2774, %v3970
      %v3979 = vmul.f32 %v2775, %v3970
      %v3980 = vmul.f32 %v2776, %v3970
      %v3981 = vmul.f32 %v2777, %v3970
      %v3982 = vmul.f32 %v2778, %v3970
      %v3983 = vmul.f32 %v2779, %v3970
      %v3984 = vmul.f32 %v2780, %v3970
      %v3985 = vmul.f32 %v2781, %v3970
      %v3986 = vmul.f32 %v2782, %v3970
      %v3987 = vadd.f32 %v3950, %v3971
      %v3988 = vadd.f32 %v3951, %v3972
      %v3989 = vadd.f32 %v3952, %v3973
      %v3990 = vadd.f32 %v3953, %v3974
      %v3991 = vadd.f32 %v3954, %v3975
      %v3992 = vadd.f32 %v3955, %v3976
      %v3993 = vadd.f32 %v3956, %v3977
      %v3994 = vadd.f32 %v3957, %v3978
      %v3995 = vadd.f32 %v3958, %v3979
      %v3996 = vadd.f32 %v3959, %v3980
      %v3997 = vadd.f32 %v3960, %v3981
      %v3998 = vadd.f32 %v3961, %v3982
      %v3999 = vadd.f32 %v3962, %v3983
      %v4000 = vadd.f32 %v3963, %v3984
      %v4001 = vadd.f32 %v3964, %v3985
      %v4002 = vadd.f32 %v3965, %v3986
      %v4003 = vld [vmem:[%s2819 + $0x2] sm:$0x1]
      %v4004 = vlaneseq
      %v4005 = vshrl.u32 %v4004, 7
      %v4006 = vsub.s32 0, %v4005
      %v4007 = vrot.slane %v4003, %v4006
      %v4008 = vmul.f32 %v2822, %v4007
      %v4009 = vmul.f32 %v2823, %v4007
      %v4010 = vmul.f32 %v2824, %v4007
      %v4011 = vmul.f32 %v2825, %v4007
      %v4012 = vmul.f32 %v2826, %v4007
      %v4013 = vmul.f32 %v2827, %v4007
      %v4014 = vmul.f32 %v2828, %v4007
      %v4015 = vmul.f32 %v2829, %v4007
      %v4016 = vmul.f32 %v2830, %v4007
      %v4017 = vmul.f32 %v2831, %v4007
      %v4018 = vmul.f32 %v2832, %v4007
      %v4019 = vmul.f32 %v2833, %v4007
      %v4020 = vmul.f32 %v2834, %v4007
      %v4021 = vmul.f32 %v2835, %v4007
      %v4022 = vmul.f32 %v2836, %v4007
      %v4023 = vmul.f32 %v2837, %v4007
      %v4024 = vadd.f32 %v3987, %v4008
      %v4025 = vadd.f32 %v3988, %v4009
      %v4026 = vadd.f32 %v3989, %v4010
      %v4027 = vadd.f32 %v3990, %v4011
      %v4028 = vadd.f32 %v3991, %v4012
      %v4029 = vadd.f32 %v3992, %v4013
      %v4030 = vadd.f32 %v3993, %v4014
      %v4031 = vadd.f32 %v3994, %v4015
      %v4032 = vadd.f32 %v3995, %v4016
      %v4033 = vadd.f32 %v3996, %v4017
      %v4034 = vadd.f32 %v3997, %v4018
      %v4035 = vadd.f32 %v3998, %v4019
      %v4036 = vadd.f32 %v3999, %v4020
      %v4037 = vadd.f32 %v4000, %v4021
      %v4038 = vadd.f32 %v4001, %v4022
      %v4039 = vadd.f32 %v4002, %v4023
      %vm4056 = vcmask 1040384
      %v4057 = vrot.slane %v4024, 7
      %v4058 = vrot.slane %v4025, 7
      %v4059 = vsel %vm4056, %v4057, %v4058
      %v4060 = vrot.slane %v4026, 7
      %v4061 = vrot.slane %v4027, 7
      %v4062 = vsel %vm4056, %v4060, %v4061
      %v4063 = vrot.slane %v4028, 7
      %v4064 = vrot.slane %v4029, 7
      %v4065 = vsel %vm4056, %v4063, %v4064
      %v4066 = vrot.slane %v4030, 7
      %v4067 = vrot.slane %v4031, 7
      %v4068 = vsel %vm4056, %v4066, %v4067
      %v4069 = vrot.slane %v4032, 7
      %v4070 = vrot.slane %v4033, 7
      %v4071 = vsel %vm4056, %v4069, %v4070
      %v4072 = vrot.slane %v4034, 7
      %v4073 = vrot.slane %v4035, 7
      %v4074 = vsel %vm4056, %v4072, %v4073
      %v4075 = vrot.slane %v4036, 7
      %v4076 = vrot.slane %v4037, 7
      %v4077 = vsel %vm4056, %v4075, %v4076
      %v4078 = vrot.slane %v4038, 7
      %v4079 = vrot.slane %v4039, 7
      %v4080 = vsel %vm4056, %v4078, %v4079
      %v4097 = vsel %vm4056, 0.0, %v4057
      %v4098 = vsel %vm4056, 0.0, %v4060
      %v4099 = vsel %vm4056, 0.0, %v4063
      %v4100 = vsel %vm4056, 0.0, %v4066
      %v4101 = vsel %vm4056, 0.0, %v4069
      %v4102 = vsel %vm4056, 0.0, %v4072
      %v4103 = vsel %vm4056, 0.0, %v4075
      %v4104 = vsel %vm4056, 0.0, %v4078
      %v4105 = vadd.f32 %v3522, %v4097
      %v4106 = vadd.f32 %v3523, %v4059
      %v4107 = vadd.f32 %v3524, %v4098
      %v4108 = vadd.f32 %v3525, %v4062
      %v4109 = vadd.f32 %v3526, %v4099
      %v4110 = vadd.f32 %v3527, %v4065
      %v4111 = vadd.f32 %v3528, %v4100
      %v4112 = vadd.f32 %v3529, %v4068
      %v4113 = vadd.f32 %v3530, %v4101
      %v4114 = vadd.f32 %v3531, %v4071
      %v4115 = vadd.f32 %v3532, %v4102
      %v4116 = vadd.f32 %v3533, %v4074
      %v4117 = vadd.f32 %v3534, %v4103
      %v4118 = vadd.f32 %v3535, %v4077
      %v4119 = vadd.f32 %v3536, %v4104
      %v4120 = vadd.f32 %v3537, %v4080
      %v4121 = vld [vmem:[%s1 + $0x3] sm:$0x1]
      %v4122 = vlaneseq
      %v4123 = vshrl.u32 %v4122, 7
      %v4124 = vsub.s32 0, %v4123
      %v4125 = vrot.slane %v4121, %v4124
      %v4126 = vmul.f32 %v2126, %v4125
      %v4127 = vmul.f32 %v2127, %v4125
      %v4128 = vmul.f32 %v2128, %v4125
      %v4129 = vmul.f32 %v2129, %v4125
      %v4130 = vmul.f32 %v2130, %v4125
      %v4131 = vmul.f32 %v2131, %v4125
      %v4132 = vmul.f32 %v2132, %v4125
      %v4133 = vmul.f32 %v2133, %v4125
      %v4134 = vmul.f32 %v2134, %v4125
      %v4135 = vmul.f32 %v2135, %v4125
      %v4136 = vmul.f32 %v2136, %v4125
      %v4137 = vmul.f32 %v2137, %v4125
      %v4138 = vmul.f32 %v2138, %v4125
      %v4139 = vmul.f32 %v2139, %v4125
      %v4140 = vmul.f32 %v2140, %v4125
      %v4141 = vmul.f32 %v2141, %v4125
      %v4142 = vld [vmem:[%s2162 + $0x3] sm:$0x1]
      %v4143 = vlaneseq
      %v4144 = vshrl.u32 %v4143, 7
      %v4145 = vsub.s32 0, %v4144
      %v4146 = vrot.slane %v4142, %v4145
      %v4147 = vmul.f32 %v2165, %v4146
      %v4148 = vmul.f32 %v2166, %v4146
      %v4149 = vmul.f32 %v2167, %v4146
      %v4150 = vmul.f32 %v2168, %v4146
      %v4151 = vmul.f32 %v2169, %v4146
      %v4152 = vmul.f32 %v2170, %v4146
      %v4153 = vmul.f32 %v2171, %v4146
      %v4154 = vmul.f32 %v2172, %v4146
      %v4155 = vmul.f32 %v2173, %v4146
      %v4156 = vmul.f32 %v2174, %v4146
      %v4157 = vmul.f32 %v2175, %v4146
      %v4158 = vmul.f32 %v2176, %v4146
      %v4159 = vmul.f32 %v2177, %v4146
      %v4160 = vmul.f32 %v2178, %v4146
      %v4161 = vmul.f32 %v2179, %v4146
      %v4162 = vmul.f32 %v2180, %v4146
      %v4163 = vadd.f32 %v4126, %v4147
      %v4164 = vadd.f32 %v4127, %v4148
      %v4165 = vadd.f32 %v4128, %v4149
      %v4166 = vadd.f32 %v4129, %v4150
      %v4167 = vadd.f32 %v4130, %v4151
      %v4168 = vadd.f32 %v4131, %v4152
      %v4169 = vadd.f32 %v4132, %v4153
      %v4170 = vadd.f32 %v4133, %v4154
      %v4171 = vadd.f32 %v4134, %v4155
      %v4172 = vadd.f32 %v4135, %v4156
      %v4173 = vadd.f32 %v4136, %v4157
      %v4174 = vadd.f32 %v4137, %v4158
      %v4175 = vadd.f32 %v4138, %v4159
      %v4176 = vadd.f32 %v4139, %v4160
      %v4177 = vadd.f32 %v4140, %v4161
      %v4178 = vadd.f32 %v4141, %v4162
      %v4179 = vld [vmem:[%s2217 + $0x3] sm:$0x1]
      %v4180 = vlaneseq
      %v4181 = vshrl.u32 %v4180, 7
      %v4182 = vsub.s32 0, %v4181
      %v4183 = vrot.slane %v4179, %v4182
      %v4184 = vmul.f32 %v2220, %v4183
      %v4185 = vmul.f32 %v2221, %v4183
      %v4186 = vmul.f32 %v2222, %v4183
      %v4187 = vmul.f32 %v2223, %v4183
      %v4188 = vmul.f32 %v2224, %v4183
      %v4189 = vmul.f32 %v2225, %v4183
      %v4190 = vmul.f32 %v2226, %v4183
      %v4191 = vmul.f32 %v2227, %v4183
      %v4192 = vmul.f32 %v2228, %v4183
      %v4193 = vmul.f32 %v2229, %v4183
      %v4194 = vmul.f32 %v2230, %v4183
      %v4195 = vmul.f32 %v2231, %v4183
      %v4196 = vmul.f32 %v2232, %v4183
      %v4197 = vmul.f32 %v2233, %v4183
      %v4198 = vmul.f32 %v2234, %v4183
      %v4199 = vmul.f32 %v2235, %v4183
      %v4200 = vadd.f32 %v4163, %v4184
      %v4201 = vadd.f32 %v4164, %v4185
      %v4202 = vadd.f32 %v4165, %v4186
      %v4203 = vadd.f32 %v4166, %v4187
      %v4204 = vadd.f32 %v4167, %v4188
      %v4205 = vadd.f32 %v4168, %v4189
      %v4206 = vadd.f32 %v4169, %v4190
      %v4207 = vadd.f32 %v4170, %v4191
      %v4208 = vadd.f32 %v4171, %v4192
      %v4209 = vadd.f32 %v4172, %v4193
      %v4210 = vadd.f32 %v4173, %v4194
      %v4211 = vadd.f32 %v4174, %v4195
      %v4212 = vadd.f32 %v4175, %v4196
      %v4213 = vadd.f32 %v4176, %v4197
      %v4214 = vadd.f32 %v4177, %v4198
      %v4215 = vadd.f32 %v4178, %v4199
      %v4216 = vld [vmem:[%s2272 + $0x3] sm:$0x1]
      %v4217 = vlaneseq
      %v4218 = vshrl.u32 %v4217, 7
      %v4219 = vsub.s32 0, %v4218
      %v4220 = vrot.slane %v4216, %v4219
      %v4221 = vmul.f32 %v2274, %v4220
      %v4222 = vmul.f32 %v2275, %v4220
      %v4223 = vmul.f32 %v2276, %v4220
      %v4224 = vmul.f32 %v2277, %v4220
      %v4225 = vmul.f32 %v2278, %v4220
      %v4226 = vmul.f32 %v2279, %v4220
      %v4227 = vmul.f32 %v2280, %v4220
      %v4228 = vmul.f32 %v2281, %v4220
      %v4229 = vmul.f32 %v2282, %v4220
      %v4230 = vmul.f32 %v2283, %v4220
      %v4231 = vmul.f32 %v2284, %v4220
      %v4232 = vmul.f32 %v2285, %v4220
      %v4233 = vmul.f32 %v2286, %v4220
      %v4234 = vmul.f32 %v2287, %v4220
      %v4235 = vmul.f32 %v2288, %v4220
      %v4236 = vmul.f32 %v2289, %v4220
      %v4237 = vadd.f32 %v4200, %v4221
      %v4238 = vadd.f32 %v4201, %v4222
      %v4239 = vadd.f32 %v4202, %v4223
      %v4240 = vadd.f32 %v4203, %v4224
      %v4241 = vadd.f32 %v4204, %v4225
      %v4242 = vadd.f32 %v4205, %v4226
      %v4243 = vadd.f32 %v4206, %v4227
      %v4244 = vadd.f32 %v4207, %v4228
      %v4245 = vadd.f32 %v4208, %v4229
      %v4246 = vadd.f32 %v4209, %v4230
      %v4247 = vadd.f32 %v4210, %v4231
      %v4248 = vadd.f32 %v4211, %v4232
      %v4249 = vadd.f32 %v4212, %v4233
      %v4250 = vadd.f32 %v4213, %v4234
      %v4251 = vadd.f32 %v4214, %v4235
      %v4252 = vadd.f32 %v4215, %v4236
      %v4253 = vld [vmem:[%s2326 + $0x3] sm:$0x1]
      %v4254 = vlaneseq
      %v4255 = vshrl.u32 %v4254, 7
      %v4256 = vsub.s32 0, %v4255
      %v4257 = vrot.slane %v4253, %v4256
      %v4258 = vmul.f32 %v2329, %v4257
      %v4259 = vmul.f32 %v2330, %v4257
      %v4260 = vmul.f32 %v2331, %v4257
      %v4261 = vmul.f32 %v2332, %v4257
      %v4262 = vmul.f32 %v2333, %v4257
      %v4263 = vmul.f32 %v2334, %v4257
      %v4264 = vmul.f32 %v2335, %v4257
      %v4265 = vmul.f32 %v2336, %v4257
      %v4266 = vmul.f32 %v2337, %v4257
      %v4267 = vmul.f32 %v2338, %v4257
      %v4268 = vmul.f32 %v2339, %v4257
      %v4269 = vmul.f32 %v2340, %v4257
      %v4270 = vmul.f32 %v2341, %v4257
      %v4271 = vmul.f32 %v2342, %v4257
      %v4272 = vmul.f32 %v2343, %v4257
      %v4273 = vmul.f32 %v2344, %v4257
      %v4274 = vadd.f32 %v4237, %v4258
      %v4275 = vadd.f32 %v4238, %v4259
      %v4276 = vadd.f32 %v4239, %v4260
      %v4277 = vadd.f32 %v4240, %v4261
      %v4278 = vadd.f32 %v4241, %v4262
      %v4279 = vadd.f32 %v4242, %v4263
      %v4280 = vadd.f32 %v4243, %v4264
      %v4281 = vadd.f32 %v4244, %v4265
      %v4282 = vadd.f32 %v4245, %v4266
      %v4283 = vadd.f32 %v4246, %v4267
      %v4284 = vadd.f32 %v4247, %v4268
      %v4285 = vadd.f32 %v4248, %v4269
      %v4286 = vadd.f32 %v4249, %v4270
      %v4287 = vadd.f32 %v4250, %v4271
      %v4288 = vadd.f32 %v4251, %v4272
      %v4289 = vadd.f32 %v4252, %v4273
      %v4290 = vld [vmem:[%s2381 + $0x3] sm:$0x1]
      %v4291 = vlaneseq
      %v4292 = vshrl.u32 %v4291, 7
      %v4293 = vsub.s32 0, %v4292
      %v4294 = vrot.slane %v4290, %v4293
      %v4295 = vmul.f32 %v2384, %v4294
      %v4296 = vmul.f32 %v2385, %v4294
      %v4297 = vmul.f32 %v2386, %v4294
      %v4298 = vmul.f32 %v2387, %v4294
      %v4299 = vmul.f32 %v2388, %v4294
      %v4300 = vmul.f32 %v2389, %v4294
      %v4301 = vmul.f32 %v2390, %v4294
      %v4302 = vmul.f32 %v2391, %v4294
      %v4303 = vmul.f32 %v2392, %v4294
      %v4304 = vmul.f32 %v2393, %v4294
      %v4305 = vmul.f32 %v2394, %v4294
      %v4306 = vmul.f32 %v2395, %v4294
      %v4307 = vmul.f32 %v2396, %v4294
      %v4308 = vmul.f32 %v2397, %v4294
      %v4309 = vmul.f32 %v2398, %v4294
      %v4310 = vmul.f32 %v2399, %v4294
      %v4311 = vadd.f32 %v4274, %v4295
      %v4312 = vadd.f32 %v4275, %v4296
      %v4313 = vadd.f32 %v4276, %v4297
      %v4314 = vadd.f32 %v4277, %v4298
      %v4315 = vadd.f32 %v4278, %v4299
      %v4316 = vadd.f32 %v4279, %v4300
      %v4317 = vadd.f32 %v4280, %v4301
      %v4318 = vadd.f32 %v4281, %v4302
      %v4319 = vadd.f32 %v4282, %v4303
      %v4320 = vadd.f32 %v4283, %v4304
      %v4321 = vadd.f32 %v4284, %v4305
      %v4322 = vadd.f32 %v4285, %v4306
      %v4323 = vadd.f32 %v4286, %v4307
      %v4324 = vadd.f32 %v4287, %v4308
      %v4325 = vadd.f32 %v4288, %v4309
      %v4326 = vadd.f32 %v4289, %v4310
      %v4327 = vld [vmem:[%s2436 + $0x3] sm:$0x1]
      %v4328 = vlaneseq
      %v4329 = vshrl.u32 %v4328, 7
      %v4330 = vsub.s32 0, %v4329
      %v4331 = vrot.slane %v4327, %v4330
      %v4332 = vmul.f32 %v2439, %v4331
      %v4333 = vmul.f32 %v2440, %v4331
      %v4334 = vmul.f32 %v2441, %v4331
      %v4335 = vmul.f32 %v2442, %v4331
      %v4336 = vmul.f32 %v2443, %v4331
      %v4337 = vmul.f32 %v2444, %v4331
      %v4338 = vmul.f32 %v2445, %v4331
      %v4339 = vmul.f32 %v2446, %v4331
      %v4340 = vmul.f32 %v2447, %v4331
      %v4341 = vmul.f32 %v2448, %v4331
      %v4342 = vmul.f32 %v2449, %v4331
      %v4343 = vmul.f32 %v2450, %v4331
      %v4344 = vmul.f32 %v2451, %v4331
      %v4345 = vmul.f32 %v2452, %v4331
      %v4346 = vmul.f32 %v2453, %v4331
      %v4347 = vmul.f32 %v2454, %v4331
      %v4348 = vadd.f32 %v4311, %v4332
      %v4349 = vadd.f32 %v4312, %v4333
      %v4350 = vadd.f32 %v4313, %v4334
      %v4351 = vadd.f32 %v4314, %v4335
      %v4352 = vadd.f32 %v4315, %v4336
      %v4353 = vadd.f32 %v4316, %v4337
      %v4354 = vadd.f32 %v4317, %v4338
      %v4355 = vadd.f32 %v4318, %v4339
      %v4356 = vadd.f32 %v4319, %v4340
      %v4357 = vadd.f32 %v4320, %v4341
      %v4358 = vadd.f32 %v4321, %v4342
      %v4359 = vadd.f32 %v4322, %v4343
      %v4360 = vadd.f32 %v4323, %v4344
      %v4361 = vadd.f32 %v4324, %v4345
      %v4362 = vadd.f32 %v4325, %v4346
      %v4363 = vadd.f32 %v4326, %v4347
      %v4364 = vld [vmem:[%s2491 + $0x3] sm:$0x1]
      %v4365 = vlaneseq
      %v4366 = vshrl.u32 %v4365, 7
      %v4367 = vsub.s32 0, %v4366
      %v4368 = vrot.slane %v4364, %v4367
      %v4369 = vmul.f32 %v2493, %v4368
      %v4370 = vmul.f32 %v2494, %v4368
      %v4371 = vmul.f32 %v2495, %v4368
      %v4372 = vmul.f32 %v2496, %v4368
      %v4373 = vmul.f32 %v2497, %v4368
      %v4374 = vmul.f32 %v2498, %v4368
      %v4375 = vmul.f32 %v2499, %v4368
      %v4376 = vmul.f32 %v2500, %v4368
      %v4377 = vmul.f32 %v2501, %v4368
      %v4378 = vmul.f32 %v2502, %v4368
      %v4379 = vmul.f32 %v2503, %v4368
      %v4380 = vmul.f32 %v2504, %v4368
      %v4381 = vmul.f32 %v2505, %v4368
      %v4382 = vmul.f32 %v2506, %v4368
      %v4383 = vmul.f32 %v2507, %v4368
      %v4384 = vmul.f32 %v2508, %v4368
      %v4385 = vadd.f32 %v4348, %v4369
      %v4386 = vadd.f32 %v4349, %v4370
      %v4387 = vadd.f32 %v4350, %v4371
      %v4388 = vadd.f32 %v4351, %v4372
      %v4389 = vadd.f32 %v4352, %v4373
      %v4390 = vadd.f32 %v4353, %v4374
      %v4391 = vadd.f32 %v4354, %v4375
      %v4392 = vadd.f32 %v4355, %v4376
      %v4393 = vadd.f32 %v4356, %v4377
      %v4394 = vadd.f32 %v4357, %v4378
      %v4395 = vadd.f32 %v4358, %v4379
      %v4396 = vadd.f32 %v4359, %v4380
      %v4397 = vadd.f32 %v4360, %v4381
      %v4398 = vadd.f32 %v4361, %v4382
      %v4399 = vadd.f32 %v4362, %v4383
      %v4400 = vadd.f32 %v4363, %v4384
      %v4401 = vld [vmem:[%s2545 + $0x3] sm:$0x1]
      %v4402 = vlaneseq
      %v4403 = vshrl.u32 %v4402, 7
      %v4404 = vsub.s32 0, %v4403
      %v4405 = vrot.slane %v4401, %v4404
      %v4406 = vmul.f32 %v2548, %v4405
      %v4407 = vmul.f32 %v2549, %v4405
      %v4408 = vmul.f32 %v2550, %v4405
      %v4409 = vmul.f32 %v2551, %v4405
      %v4410 = vmul.f32 %v2552, %v4405
      %v4411 = vmul.f32 %v2553, %v4405
      %v4412 = vmul.f32 %v2554, %v4405
      %v4413 = vmul.f32 %v2555, %v4405
      %v4414 = vmul.f32 %v2556, %v4405
      %v4415 = vmul.f32 %v2557, %v4405
      %v4416 = vmul.f32 %v2558, %v4405
      %v4417 = vmul.f32 %v2559, %v4405
      %v4418 = vmul.f32 %v2560, %v4405
      %v4419 = vmul.f32 %v2561, %v4405
      %v4420 = vmul.f32 %v2562, %v4405
      %v4421 = vmul.f32 %v2563, %v4405
      %v4422 = vadd.f32 %v4385, %v4406
      %v4423 = vadd.f32 %v4386, %v4407
      %v4424 = vadd.f32 %v4387, %v4408
      %v4425 = vadd.f32 %v4388, %v4409
      %v4426 = vadd.f32 %v4389, %v4410
      %v4427 = vadd.f32 %v4390, %v4411
      %v4428 = vadd.f32 %v4391, %v4412
      %v4429 = vadd.f32 %v4392, %v4413
      %v4430 = vadd.f32 %v4393, %v4414
      %v4431 = vadd.f32 %v4394, %v4415
      %v4432 = vadd.f32 %v4395, %v4416
      %v4433 = vadd.f32 %v4396, %v4417
      %v4434 = vadd.f32 %v4397, %v4418
      %v4435 = vadd.f32 %v4398, %v4419
      %v4436 = vadd.f32 %v4399, %v4420
      %v4437 = vadd.f32 %v4400, %v4421
      %v4438 = vld [vmem:[%s2600 + $0x3] sm:$0x1]
      %v4439 = vlaneseq
      %v4440 = vshrl.u32 %v4439, 7
      %v4441 = vsub.s32 0, %v4440
      %v4442 = vrot.slane %v4438, %v4441
      %v4443 = vmul.f32 %v2603, %v4442
      %v4444 = vmul.f32 %v2604, %v4442
      %v4445 = vmul.f32 %v2605, %v4442
      %v4446 = vmul.f32 %v2606, %v4442
      %v4447 = vmul.f32 %v2607, %v4442
      %v4448 = vmul.f32 %v2608, %v4442
      %v4449 = vmul.f32 %v2609, %v4442
      %v4450 = vmul.f32 %v2610, %v4442
      %v4451 = vmul.f32 %v2611, %v4442
      %v4452 = vmul.f32 %v2612, %v4442
      %v4453 = vmul.f32 %v2613, %v4442
      %v4454 = vmul.f32 %v2614, %v4442
      %v4455 = vmul.f32 %v2615, %v4442
      %v4456 = vmul.f32 %v2616, %v4442
      %v4457 = vmul.f32 %v2617, %v4442
      %v4458 = vmul.f32 %v2618, %v4442
      %v4459 = vadd.f32 %v4422, %v4443
      %v4460 = vadd.f32 %v4423, %v4444
      %v4461 = vadd.f32 %v4424, %v4445
      %v4462 = vadd.f32 %v4425, %v4446
      %v4463 = vadd.f32 %v4426, %v4447
      %v4464 = vadd.f32 %v4427, %v4448
      %v4465 = vadd.f32 %v4428, %v4449
      %v4466 = vadd.f32 %v4429, %v4450
      %v4467 = vadd.f32 %v4430, %v4451
      %v4468 = vadd.f32 %v4431, %v4452
      %v4469 = vadd.f32 %v4432, %v4453
      %v4470 = vadd.f32 %v4433, %v4454
      %v4471 = vadd.f32 %v4434, %v4455
      %v4472 = vadd.f32 %v4435, %v4456
      %v4473 = vadd.f32 %v4436, %v4457
      %v4474 = vadd.f32 %v4437, %v4458
      %v4475 = vld [vmem:[%s2655 + $0x3] sm:$0x1]
      %v4476 = vlaneseq
      %v4477 = vshrl.u32 %v4476, 7
      %v4478 = vsub.s32 0, %v4477
      %v4479 = vrot.slane %v4475, %v4478
      %v4480 = vmul.f32 %v2657, %v4479
      %v4481 = vmul.f32 %v2658, %v4479
      %v4482 = vmul.f32 %v2659, %v4479
      %v4483 = vmul.f32 %v2660, %v4479
      %v4484 = vmul.f32 %v2661, %v4479
      %v4485 = vmul.f32 %v2662, %v4479
      %v4486 = vmul.f32 %v2663, %v4479
      %v4487 = vmul.f32 %v2664, %v4479
      %v4488 = vmul.f32 %v2665, %v4479
      %v4489 = vmul.f32 %v2666, %v4479
      %v4490 = vmul.f32 %v2667, %v4479
      %v4491 = vmul.f32 %v2668, %v4479
      %v4492 = vmul.f32 %v2669, %v4479
      %v4493 = vmul.f32 %v2670, %v4479
      %v4494 = vmul.f32 %v2671, %v4479
      %v4495 = vmul.f32 %v2672, %v4479
      %v4496 = vadd.f32 %v4459, %v4480
      %v4497 = vadd.f32 %v4460, %v4481
      %v4498 = vadd.f32 %v4461, %v4482
      %v4499 = vadd.f32 %v4462, %v4483
      %v4500 = vadd.f32 %v4463, %v4484
      %v4501 = vadd.f32 %v4464, %v4485
      %v4502 = vadd.f32 %v4465, %v4486
      %v4503 = vadd.f32 %v4466, %v4487
      %v4504 = vadd.f32 %v4467, %v4488
      %v4505 = vadd.f32 %v4468, %v4489
      %v4506 = vadd.f32 %v4469, %v4490
      %v4507 = vadd.f32 %v4470, %v4491
      %v4508 = vadd.f32 %v4471, %v4492
      %v4509 = vadd.f32 %v4472, %v4493
      %v4510 = vadd.f32 %v4473, %v4494
      %v4511 = vadd.f32 %v4474, %v4495
      %v4512 = vld [vmem:[%s2709 + $0x3] sm:$0x1]
      %v4513 = vlaneseq
      %v4514 = vshrl.u32 %v4513, 7
      %v4515 = vsub.s32 0, %v4514
      %v4516 = vrot.slane %v4512, %v4515
      %v4517 = vmul.f32 %v2712, %v4516
      %v4518 = vmul.f32 %v2713, %v4516
      %v4519 = vmul.f32 %v2714, %v4516
      %v4520 = vmul.f32 %v2715, %v4516
      %v4521 = vmul.f32 %v2716, %v4516
      %v4522 = vmul.f32 %v2717, %v4516
      %v4523 = vmul.f32 %v2718, %v4516
      %v4524 = vmul.f32 %v2719, %v4516
      %v4525 = vmul.f32 %v2720, %v4516
      %v4526 = vmul.f32 %v2721, %v4516
      %v4527 = vmul.f32 %v2722, %v4516
      %v4528 = vmul.f32 %v2723, %v4516
      %v4529 = vmul.f32 %v2724, %v4516
      %v4530 = vmul.f32 %v2725, %v4516
      %v4531 = vmul.f32 %v2726, %v4516
      %v4532 = vmul.f32 %v2727, %v4516
      %v4533 = vadd.f32 %v4496, %v4517
      %v4534 = vadd.f32 %v4497, %v4518
      %v4535 = vadd.f32 %v4498, %v4519
      %v4536 = vadd.f32 %v4499, %v4520
      %v4537 = vadd.f32 %v4500, %v4521
      %v4538 = vadd.f32 %v4501, %v4522
      %v4539 = vadd.f32 %v4502, %v4523
      %v4540 = vadd.f32 %v4503, %v4524
      %v4541 = vadd.f32 %v4504, %v4525
      %v4542 = vadd.f32 %v4505, %v4526
      %v4543 = vadd.f32 %v4506, %v4527
      %v4544 = vadd.f32 %v4507, %v4528
      %v4545 = vadd.f32 %v4508, %v4529
      %v4546 = vadd.f32 %v4509, %v4530
      %v4547 = vadd.f32 %v4510, %v4531
      %v4548 = vadd.f32 %v4511, %v4532
      %v4549 = vld [vmem:[%s2764 + $0x3] sm:$0x1]
      %v4550 = vlaneseq
      %v4551 = vshrl.u32 %v4550, 7
      %v4552 = vsub.s32 0, %v4551
      %v4553 = vrot.slane %v4549, %v4552
      %v4554 = vmul.f32 %v2767, %v4553
      %v4555 = vmul.f32 %v2768, %v4553
      %v4556 = vmul.f32 %v2769, %v4553
      %v4557 = vmul.f32 %v2770, %v4553
      %v4558 = vmul.f32 %v2771, %v4553
      %v4559 = vmul.f32 %v2772, %v4553
      %v4560 = vmul.f32 %v2773, %v4553
      %v4561 = vmul.f32 %v2774, %v4553
      %v4562 = vmul.f32 %v2775, %v4553
      %v4563 = vmul.f32 %v2776, %v4553
      %v4564 = vmul.f32 %v2777, %v4553
      %v4565 = vmul.f32 %v2778, %v4553
      %v4566 = vmul.f32 %v2779, %v4553
      %v4567 = vmul.f32 %v2780, %v4553
      %v4568 = vmul.f32 %v2781, %v4553
      %v4569 = vmul.f32 %v2782, %v4553
      %v4570 = vadd.f32 %v4533, %v4554
      %v4571 = vadd.f32 %v4534, %v4555
      %v4572 = vadd.f32 %v4535, %v4556
      %v4573 = vadd.f32 %v4536, %v4557
      %v4574 = vadd.f32 %v4537, %v4558
      %v4575 = vadd.f32 %v4538, %v4559
      %v4576 = vadd.f32 %v4539, %v4560
      %v4577 = vadd.f32 %v4540, %v4561
      %v4578 = vadd.f32 %v4541, %v4562
      %v4579 = vadd.f32 %v4542, %v4563
      %v4580 = vadd.f32 %v4543, %v4564
      %v4581 = vadd.f32 %v4544, %v4565
      %v4582 = vadd.f32 %v4545, %v4566
      %v4583 = vadd.f32 %v4546, %v4567
      %v4584 = vadd.f32 %v4547, %v4568
      %v4585 = vadd.f32 %v4548, %v4569
      %v4586 = vld [vmem:[%s2819 + $0x3] sm:$0x1]
      %v4587 = vlaneseq
      %v4588 = vshrl.u32 %v4587, 7
      %v4589 = vsub.s32 0, %v4588
      %v4590 = vrot.slane %v4586, %v4589
      %v4591 = vmul.f32 %v2822, %v4590
      %v4592 = vmul.f32 %v2823, %v4590
      %v4593 = vmul.f32 %v2824, %v4590
      %v4594 = vmul.f32 %v2825, %v4590
      %v4595 = vmul.f32 %v2826, %v4590
      %v4596 = vmul.f32 %v2827, %v4590
      %v4597 = vmul.f32 %v2828, %v4590
      %v4598 = vmul.f32 %v2829, %v4590
      %v4599 = vmul.f32 %v2830, %v4590
      %v4600 = vmul.f32 %v2831, %v4590
      %v4601 = vmul.f32 %v2832, %v4590
      %v4602 = vmul.f32 %v2833, %v4590
      %v4603 = vmul.f32 %v2834, %v4590
      %v4604 = vmul.f32 %v2835, %v4590
      %v4605 = vmul.f32 %v2836, %v4590
      %v4606 = vmul.f32 %v2837, %v4590
      %v4607 = vadd.f32 %v4570, %v4591
      %v4608 = vadd.f32 %v4571, %v4592
      %v4609 = vadd.f32 %v4572, %v4593
      %v4610 = vadd.f32 %v4573, %v4594
      %v4611 = vadd.f32 %v4574, %v4595
      %v4612 = vadd.f32 %v4575, %v4596
      %v4613 = vadd.f32 %v4576, %v4597
      %v4614 = vadd.f32 %v4577, %v4598
      %v4615 = vadd.f32 %v4578, %v4599
      %v4616 = vadd.f32 %v4579, %v4600
      %v4617 = vadd.f32 %v4580, %v4601
      %v4618 = vadd.f32 %v4581, %v4602
      %v4619 = vadd.f32 %v4582, %v4603
      %v4620 = vadd.f32 %v4583, %v4604
      %v4621 = vadd.f32 %v4584, %v4605
      %v4622 = vadd.f32 %v4585, %v4606
      %v4623 = vadd.f32 %v4105, %v4607
      %v4624 = vadd.f32 %v4106, %v4608
      %v4625 = vadd.f32 %v4107, %v4609
      %v4626 = vadd.f32 %v4108, %v4610
      %v4627 = vadd.f32 %v4109, %v4611
      %v4628 = vadd.f32 %v4110, %v4612
      %v4629 = vadd.f32 %v4111, %v4613
      %v4630 = vadd.f32 %v4112, %v4614
      %v4631 = vadd.f32 %v4113, %v4615
      %v4632 = vadd.f32 %v4114, %v4616
      %v4633 = vadd.f32 %v4115, %v4617
      %v4634 = vadd.f32 %v4116, %v4618
      %v4635 = vadd.f32 %v4117, %v4619
      %v4636 = vadd.f32 %v4118, %v4620
      %v4637 = vadd.f32 %v4119, %v4621
      %v4638 = vadd.f32 %v4120, %v4622
      %v4639 = vld [vmem:[%s1 + $0x4] sm:$0x1]
      %v4640 = vlaneseq
      %v4641 = vshrl.u32 %v4640, 7
      %v4642 = vsub.s32 0, %v4641
      %v4643 = vrot.slane %v4639, %v4642
      %v4644 = vmul.f32 %v2126, %v4643
      %v4645 = vmul.f32 %v2127, %v4643
      %v4646 = vmul.f32 %v2128, %v4643
      %v4647 = vmul.f32 %v2129, %v4643
      %v4648 = vmul.f32 %v2130, %v4643
      %v4649 = vmul.f32 %v2131, %v4643
      %v4650 = vmul.f32 %v2132, %v4643
      %v4651 = vmul.f32 %v2133, %v4643
      %v4652 = vmul.f32 %v2134, %v4643
      %v4653 = vmul.f32 %v2135, %v4643
      %v4654 = vmul.f32 %v2136, %v4643
      %v4655 = vmul.f32 %v2137, %v4643
      %v4656 = vmul.f32 %v2138, %v4643
      %v4657 = vmul.f32 %v2139, %v4643
      %v4658 = vmul.f32 %v2140, %v4643
      %v4659 = vmul.f32 %v2141, %v4643
      %v4660 = vld [vmem:[%s2162 + $0x4] sm:$0x1]
      %v4661 = vlaneseq
      %v4662 = vshrl.u32 %v4661, 7
      %v4663 = vsub.s32 0, %v4662
      %v4664 = vrot.slane %v4660, %v4663
      %v4665 = vmul.f32 %v2165, %v4664
      %v4666 = vmul.f32 %v2166, %v4664
      %v4667 = vmul.f32 %v2167, %v4664
      %v4668 = vmul.f32 %v2168, %v4664
      %v4669 = vmul.f32 %v2169, %v4664
      %v4670 = vmul.f32 %v2170, %v4664
      %v4671 = vmul.f32 %v2171, %v4664
      %v4672 = vmul.f32 %v2172, %v4664
      %v4673 = vmul.f32 %v2173, %v4664
      %v4674 = vmul.f32 %v2174, %v4664
      %v4675 = vmul.f32 %v2175, %v4664
      %v4676 = vmul.f32 %v2176, %v4664
      %v4677 = vmul.f32 %v2177, %v4664
      %v4678 = vmul.f32 %v2178, %v4664
      %v4679 = vmul.f32 %v2179, %v4664
      %v4680 = vmul.f32 %v2180, %v4664
      %v4681 = vadd.f32 %v4644, %v4665
      %v4682 = vadd.f32 %v4645, %v4666
      %v4683 = vadd.f32 %v4646, %v4667
      %v4684 = vadd.f32 %v4647, %v4668
      %v4685 = vadd.f32 %v4648, %v4669
      %v4686 = vadd.f32 %v4649, %v4670
      %v4687 = vadd.f32 %v4650, %v4671
      %v4688 = vadd.f32 %v4651, %v4672
      %v4689 = vadd.f32 %v4652, %v4673
      %v4690 = vadd.f32 %v4653, %v4674
      %v4691 = vadd.f32 %v4654, %v4675
      %v4692 = vadd.f32 %v4655, %v4676
      %v4693 = vadd.f32 %v4656, %v4677
      %v4694 = vadd.f32 %v4657, %v4678
      %v4695 = vadd.f32 %v4658, %v4679
      %v4696 = vadd.f32 %v4659, %v4680
      %v4697 = vld [vmem:[%s2217 + $0x4] sm:$0x1]
      %v4698 = vlaneseq
      %v4699 = vshrl.u32 %v4698, 7
      %v4700 = vsub.s32 0, %v4699
      %v4701 = vrot.slane %v4697, %v4700
      %v4702 = vmul.f32 %v2220, %v4701
      %v4703 = vmul.f32 %v2221, %v4701
      %v4704 = vmul.f32 %v2222, %v4701
      %v4705 = vmul.f32 %v2223, %v4701
      %v4706 = vmul.f32 %v2224, %v4701
      %v4707 = vmul.f32 %v2225, %v4701
      %v4708 = vmul.f32 %v2226, %v4701
      %v4709 = vmul.f32 %v2227, %v4701
      %v4710 = vmul.f32 %v2228, %v4701
      %v4711 = vmul.f32 %v2229, %v4701
      %v4712 = vmul.f32 %v2230, %v4701
      %v4713 = vmul.f32 %v2231, %v4701
      %v4714 = vmul.f32 %v2232, %v4701
      %v4715 = vmul.f32 %v2233, %v4701
      %v4716 = vmul.f32 %v2234, %v4701
      %v4717 = vmul.f32 %v2235, %v4701
      %v4718 = vadd.f32 %v4681, %v4702
      %v4719 = vadd.f32 %v4682, %v4703
      %v4720 = vadd.f32 %v4683, %v4704
      %v4721 = vadd.f32 %v4684, %v4705
      %v4722 = vadd.f32 %v4685, %v4706
      %v4723 = vadd.f32 %v4686, %v4707
      %v4724 = vadd.f32 %v4687, %v4708
      %v4725 = vadd.f32 %v4688, %v4709
      %v4726 = vadd.f32 %v4689, %v4710
      %v4727 = vadd.f32 %v4690, %v4711
      %v4728 = vadd.f32 %v4691, %v4712
      %v4729 = vadd.f32 %v4692, %v4713
      %v4730 = vadd.f32 %v4693, %v4714
      %v4731 = vadd.f32 %v4694, %v4715
      %v4732 = vadd.f32 %v4695, %v4716
      %v4733 = vadd.f32 %v4696, %v4717
      %v4734 = vld [vmem:[%s2272 + $0x4] sm:$0x1]
      %v4735 = vlaneseq
      %v4736 = vshrl.u32 %v4735, 7
      %v4737 = vsub.s32 0, %v4736
      %v4738 = vrot.slane %v4734, %v4737
      %v4739 = vmul.f32 %v2274, %v4738
      %v4740 = vmul.f32 %v2275, %v4738
      %v4741 = vmul.f32 %v2276, %v4738
      %v4742 = vmul.f32 %v2277, %v4738
      %v4743 = vmul.f32 %v2278, %v4738
      %v4744 = vmul.f32 %v2279, %v4738
      %v4745 = vmul.f32 %v2280, %v4738
      %v4746 = vmul.f32 %v2281, %v4738
      %v4747 = vmul.f32 %v2282, %v4738
      %v4748 = vmul.f32 %v2283, %v4738
      %v4749 = vmul.f32 %v2284, %v4738
      %v4750 = vmul.f32 %v2285, %v4738
      %v4751 = vmul.f32 %v2286, %v4738
      %v4752 = vmul.f32 %v2287, %v4738
      %v4753 = vmul.f32 %v2288, %v4738
      %v4754 = vmul.f32 %v2289, %v4738
      %v4755 = vadd.f32 %v4718, %v4739
      %v4756 = vadd.f32 %v4719, %v4740
      %v4757 = vadd.f32 %v4720, %v4741
      %v4758 = vadd.f32 %v4721, %v4742
      %v4759 = vadd.f32 %v4722, %v4743
      %v4760 = vadd.f32 %v4723, %v4744
      %v4761 = vadd.f32 %v4724, %v4745
      %v4762 = vadd.f32 %v4725, %v4746
      %v4763 = vadd.f32 %v4726, %v4747
      %v4764 = vadd.f32 %v4727, %v4748
      %v4765 = vadd.f32 %v4728, %v4749
      %v4766 = vadd.f32 %v4729, %v4750
      %v4767 = vadd.f32 %v4730, %v4751
      %v4768 = vadd.f32 %v4731, %v4752
      %v4769 = vadd.f32 %v4732, %v4753
      %v4770 = vadd.f32 %v4733, %v4754
      %v4771 = vld [vmem:[%s2326 + $0x4] sm:$0x1]
      %v4772 = vlaneseq
      %v4773 = vshrl.u32 %v4772, 7
      %v4774 = vsub.s32 0, %v4773
      %v4775 = vrot.slane %v4771, %v4774
      %v4776 = vmul.f32 %v2329, %v4775
      %v4777 = vmul.f32 %v2330, %v4775
      %v4778 = vmul.f32 %v2331, %v4775
      %v4779 = vmul.f32 %v2332, %v4775
      %v4780 = vmul.f32 %v2333, %v4775
      %v4781 = vmul.f32 %v2334, %v4775
      %v4782 = vmul.f32 %v2335, %v4775
      %v4783 = vmul.f32 %v2336, %v4775
      %v4784 = vmul.f32 %v2337, %v4775
      %v4785 = vmul.f32 %v2338, %v4775
      %v4786 = vmul.f32 %v2339, %v4775
      %v4787 = vmul.f32 %v2340, %v4775
      %v4788 = vmul.f32 %v2341, %v4775
      %v4789 = vmul.f32 %v2342, %v4775
      %v4790 = vmul.f32 %v2343, %v4775
      %v4791 = vmul.f32 %v2344, %v4775
      %v4792 = vadd.f32 %v4755, %v4776
      %v4793 = vadd.f32 %v4756, %v4777
      %v4794 = vadd.f32 %v4757, %v4778
      %v4795 = vadd.f32 %v4758, %v4779
      %v4796 = vadd.f32 %v4759, %v4780
      %v4797 = vadd.f32 %v4760, %v4781
      %v4798 = vadd.f32 %v4761, %v4782
      %v4799 = vadd.f32 %v4762, %v4783
      %v4800 = vadd.f32 %v4763, %v4784
      %v4801 = vadd.f32 %v4764, %v4785
      %v4802 = vadd.f32 %v4765, %v4786
      %v4803 = vadd.f32 %v4766, %v4787
      %v4804 = vadd.f32 %v4767, %v4788
      %v4805 = vadd.f32 %v4768, %v4789
      %v4806 = vadd.f32 %v4769, %v4790
      %v4807 = vadd.f32 %v4770, %v4791
      %v4808 = vld [vmem:[%s2381 + $0x4] sm:$0x1]
      %v4809 = vlaneseq
      %v4810 = vshrl.u32 %v4809, 7
      %v4811 = vsub.s32 0, %v4810
      %v4812 = vrot.slane %v4808, %v4811
      %v4813 = vmul.f32 %v2384, %v4812
      %v4814 = vmul.f32 %v2385, %v4812
      %v4815 = vmul.f32 %v2386, %v4812
      %v4816 = vmul.f32 %v2387, %v4812
      %v4817 = vmul.f32 %v2388, %v4812
      %v4818 = vmul.f32 %v2389, %v4812
      %v4819 = vmul.f32 %v2390, %v4812
      %v4820 = vmul.f32 %v2391, %v4812
      %v4821 = vmul.f32 %v2392, %v4812
      %v4822 = vmul.f32 %v2393, %v4812
      %v4823 = vmul.f32 %v2394, %v4812
      %v4824 = vmul.f32 %v2395, %v4812
      %v4825 = vmul.f32 %v2396, %v4812
      %v4826 = vmul.f32 %v2397, %v4812
      %v4827 = vmul.f32 %v2398, %v4812
      %v4828 = vmul.f32 %v2399, %v4812
      %v4829 = vadd.f32 %v4792, %v4813
      %v4830 = vadd.f32 %v4793, %v4814
      %v4831 = vadd.f32 %v4794, %v4815
      %v4832 = vadd.f32 %v4795, %v4816
      %v4833 = vadd.f32 %v4796, %v4817
      %v4834 = vadd.f32 %v4797, %v4818
      %v4835 = vadd.f32 %v4798, %v4819
      %v4836 = vadd.f32 %v4799, %v4820
      %v4837 = vadd.f32 %v4800, %v4821
      %v4838 = vadd.f32 %v4801, %v4822
      %v4839 = vadd.f32 %v4802, %v4823
      %v4840 = vadd.f32 %v4803, %v4824
      %v4841 = vadd.f32 %v4804, %v4825
      %v4842 = vadd.f32 %v4805, %v4826
      %v4843 = vadd.f32 %v4806, %v4827
      %v4844 = vadd.f32 %v4807, %v4828
      %v4845 = vld [vmem:[%s2436 + $0x4] sm:$0x1]
      %v4846 = vlaneseq
      %v4847 = vshrl.u32 %v4846, 7
      %v4848 = vsub.s32 0, %v4847
      %v4849 = vrot.slane %v4845, %v4848
      %v4850 = vmul.f32 %v2439, %v4849
      %v4851 = vmul.f32 %v2440, %v4849
      %v4852 = vmul.f32 %v2441, %v4849
      %v4853 = vmul.f32 %v2442, %v4849
      %v4854 = vmul.f32 %v2443, %v4849
      %v4855 = vmul.f32 %v2444, %v4849
      %v4856 = vmul.f32 %v2445, %v4849
      %v4857 = vmul.f32 %v2446, %v4849
      %v4858 = vmul.f32 %v2447, %v4849
      %v4859 = vmul.f32 %v2448, %v4849
      %v4860 = vmul.f32 %v2449, %v4849
      %v4861 = vmul.f32 %v2450, %v4849
      %v4862 = vmul.f32 %v2451, %v4849
      %v4863 = vmul.f32 %v2452, %v4849
      %v4864 = vmul.f32 %v2453, %v4849
      %v4865 = vmul.f32 %v2454, %v4849
      %v4866 = vadd.f32 %v4829, %v4850
      %v4867 = vadd.f32 %v4830, %v4851
      %v4868 = vadd.f32 %v4831, %v4852
      %v4869 = vadd.f32 %v4832, %v4853
      %v4870 = vadd.f32 %v4833, %v4854
      %v4871 = vadd.f32 %v4834, %v4855
      %v4872 = vadd.f32 %v4835, %v4856
      %v4873 = vadd.f32 %v4836, %v4857
      %v4874 = vadd.f32 %v4837, %v4858
      %v4875 = vadd.f32 %v4838, %v4859
      %v4876 = vadd.f32 %v4839, %v4860
      %v4877 = vadd.f32 %v4840, %v4861
      %v4878 = vadd.f32 %v4841, %v4862
      %v4879 = vadd.f32 %v4842, %v4863
      %v4880 = vadd.f32 %v4843, %v4864
      %v4881 = vadd.f32 %v4844, %v4865
      %v4882 = vld [vmem:[%s2491 + $0x4] sm:$0x1]
      %v4883 = vlaneseq
      %v4884 = vshrl.u32 %v4883, 7
      %v4885 = vsub.s32 0, %v4884
      %v4886 = vrot.slane %v4882, %v4885
      %v4887 = vmul.f32 %v2493, %v4886
      %v4888 = vmul.f32 %v2494, %v4886
      %v4889 = vmul.f32 %v2495, %v4886
      %v4890 = vmul.f32 %v2496, %v4886
      %v4891 = vmul.f32 %v2497, %v4886
      %v4892 = vmul.f32 %v2498, %v4886
      %v4893 = vmul.f32 %v2499, %v4886
      %v4894 = vmul.f32 %v2500, %v4886
      %v4895 = vmul.f32 %v2501, %v4886
      %v4896 = vmul.f32 %v2502, %v4886
      %v4897 = vmul.f32 %v2503, %v4886
      %v4898 = vmul.f32 %v2504, %v4886
      %v4899 = vmul.f32 %v2505, %v4886
      %v4900 = vmul.f32 %v2506, %v4886
      %v4901 = vmul.f32 %v2507, %v4886
      %v4902 = vmul.f32 %v2508, %v4886
      %v4903 = vadd.f32 %v4866, %v4887
      %v4904 = vadd.f32 %v4867, %v4888
      %v4905 = vadd.f32 %v4868, %v4889
      %v4906 = vadd.f32 %v4869, %v4890
      %v4907 = vadd.f32 %v4870, %v4891
      %v4908 = vadd.f32 %v4871, %v4892
      %v4909 = vadd.f32 %v4872, %v4893
      %v4910 = vadd.f32 %v4873, %v4894
      %v4911 = vadd.f32 %v4874, %v4895
      %v4912 = vadd.f32 %v4875, %v4896
      %v4913 = vadd.f32 %v4876, %v4897
      %v4914 = vadd.f32 %v4877, %v4898
      %v4915 = vadd.f32 %v4878, %v4899
      %v4916 = vadd.f32 %v4879, %v4900
      %v4917 = vadd.f32 %v4880, %v4901
      %v4918 = vadd.f32 %v4881, %v4902
      %v4919 = vld [vmem:[%s2545 + $0x4] sm:$0x1]
      %v4920 = vlaneseq
      %v4921 = vshrl.u32 %v4920, 7
      %v4922 = vsub.s32 0, %v4921
      %v4923 = vrot.slane %v4919, %v4922
      %v4924 = vmul.f32 %v2548, %v4923
      %v4925 = vmul.f32 %v2549, %v4923
      %v4926 = vmul.f32 %v2550, %v4923
      %v4927 = vmul.f32 %v2551, %v4923
      %v4928 = vmul.f32 %v2552, %v4923
      %v4929 = vmul.f32 %v2553, %v4923
      %v4930 = vmul.f32 %v2554, %v4923
      %v4931 = vmul.f32 %v2555, %v4923
      %v4932 = vmul.f32 %v2556, %v4923
      %v4933 = vmul.f32 %v2557, %v4923
      %v4934 = vmul.f32 %v2558, %v4923
      %v4935 = vmul.f32 %v2559, %v4923
      %v4936 = vmul.f32 %v2560, %v4923
      %v4937 = vmul.f32 %v2561, %v4923
      %v4938 = vmul.f32 %v2562, %v4923
      %v4939 = vmul.f32 %v2563, %v4923
      %v4940 = vadd.f32 %v4903, %v4924
      %v4941 = vadd.f32 %v4904, %v4925
      %v4942 = vadd.f32 %v4905, %v4926
      %v4943 = vadd.f32 %v4906, %v4927
      %v4944 = vadd.f32 %v4907, %v4928
      %v4945 = vadd.f32 %v4908, %v4929
      %v4946 = vadd.f32 %v4909, %v4930
      %v4947 = vadd.f32 %v4910, %v4931
      %v4948 = vadd.f32 %v4911, %v4932
      %v4949 = vadd.f32 %v4912, %v4933
      %v4950 = vadd.f32 %v4913, %v4934
      %v4951 = vadd.f32 %v4914, %v4935
      %v4952 = vadd.f32 %v4915, %v4936
      %v4953 = vadd.f32 %v4916, %v4937
      %v4954 = vadd.f32 %v4917, %v4938
      %v4955 = vadd.f32 %v4918, %v4939
      %v4956 = vld [vmem:[%s2600 + $0x4] sm:$0x1]
      %v4957 = vlaneseq
      %v4958 = vshrl.u32 %v4957, 7
      %v4959 = vsub.s32 0, %v4958
      %v4960 = vrot.slane %v4956, %v4959
      %v4961 = vmul.f32 %v2603, %v4960
      %v4962 = vmul.f32 %v2604, %v4960
      %v4963 = vmul.f32 %v2605, %v4960
      %v4964 = vmul.f32 %v2606, %v4960
      %v4965 = vmul.f32 %v2607, %v4960
      %v4966 = vmul.f32 %v2608, %v4960
      %v4967 = vmul.f32 %v2609, %v4960
      %v4968 = vmul.f32 %v2610, %v4960
      %v4969 = vmul.f32 %v2611, %v4960
      %v4970 = vmul.f32 %v2612, %v4960
      %v4971 = vmul.f32 %v2613, %v4960
      %v4972 = vmul.f32 %v2614, %v4960
      %v4973 = vmul.f32 %v2615, %v4960
      %v4974 = vmul.f32 %v2616, %v4960
      %v4975 = vmul.f32 %v2617, %v4960
      %v4976 = vmul.f32 %v2618, %v4960
      %v4977 = vadd.f32 %v4940, %v4961
      %v4978 = vadd.f32 %v4941, %v4962
      %v4979 = vadd.f32 %v4942, %v4963
      %v4980 = vadd.f32 %v4943, %v4964
      %v4981 = vadd.f32 %v4944, %v4965
      %v4982 = vadd.f32 %v4945, %v4966
      %v4983 = vadd.f32 %v4946, %v4967
      %v4984 = vadd.f32 %v4947, %v4968
      %v4985 = vadd.f32 %v4948, %v4969
      %v4986 = vadd.f32 %v4949, %v4970
      %v4987 = vadd.f32 %v4950, %v4971
      %v4988 = vadd.f32 %v4951, %v4972
      %v4989 = vadd.f32 %v4952, %v4973
      %v4990 = vadd.f32 %v4953, %v4974
      %v4991 = vadd.f32 %v4954, %v4975
      %v4992 = vadd.f32 %v4955, %v4976
      %v4993 = vld [vmem:[%s2655 + $0x4] sm:$0x1]
      %v4994 = vlaneseq
      %v4995 = vshrl.u32 %v4994, 7
      %v4996 = vsub.s32 0, %v4995
      %v4997 = vrot.slane %v4993, %v4996
      %v4998 = vmul.f32 %v2657, %v4997
      %v4999 = vmul.f32 %v2658, %v4997
      %v5000 = vmul.f32 %v2659, %v4997
      %v5001 = vmul.f32 %v2660, %v4997
      %v5002 = vmul.f32 %v2661, %v4997
      %v5003 = vmul.f32 %v2662, %v4997
      %v5004 = vmul.f32 %v2663, %v4997
      %v5005 = vmul.f32 %v2664, %v4997
      %v5006 = vmul.f32 %v2665, %v4997
      %v5007 = vmul.f32 %v2666, %v4997
      %v5008 = vmul.f32 %v2667, %v4997
      %v5009 = vmul.f32 %v2668, %v4997
      %v5010 = vmul.f32 %v2669, %v4997
      %v5011 = vmul.f32 %v2670, %v4997
      %v5012 = vmul.f32 %v2671, %v4997
      %v5013 = vmul.f32 %v2672, %v4997
      %v5014 = vadd.f32 %v4977, %v4998
      %v5015 = vadd.f32 %v4978, %v4999
      %v5016 = vadd.f32 %v4979, %v5000
      %v5017 = vadd.f32 %v4980, %v5001
      %v5018 = vadd.f32 %v4981, %v5002
      %v5019 = vadd.f32 %v4982, %v5003
      %v5020 = vadd.f32 %v4983, %v5004
      %v5021 = vadd.f32 %v4984, %v5005
      %v5022 = vadd.f32 %v4985, %v5006
      %v5023 = vadd.f32 %v4986, %v5007
      %v5024 = vadd.f32 %v4987, %v5008
      %v5025 = vadd.f32 %v4988, %v5009
      %v5026 = vadd.f32 %v4989, %v5010
      %v5027 = vadd.f32 %v4990, %v5011
      %v5028 = vadd.f32 %v4991, %v5012
      %v5029 = vadd.f32 %v4992, %v5013
      %v5030 = vld [vmem:[%s2709 + $0x4] sm:$0x1]
      %v5031 = vlaneseq
      %v5032 = vshrl.u32 %v5031, 7
      %v5033 = vsub.s32 0, %v5032
      %v5034 = vrot.slane %v5030, %v5033
      %v5035 = vmul.f32 %v2712, %v5034
      %v5036 = vmul.f32 %v2713, %v5034
      %v5037 = vmul.f32 %v2714, %v5034
      %v5038 = vmul.f32 %v2715, %v5034
      %v5039 = vmul.f32 %v2716, %v5034
      %v5040 = vmul.f32 %v2717, %v5034
      %v5041 = vmul.f32 %v2718, %v5034
      %v5042 = vmul.f32 %v2719, %v5034
      %v5043 = vmul.f32 %v2720, %v5034
      %v5044 = vmul.f32 %v2721, %v5034
      %v5045 = vmul.f32 %v2722, %v5034
      %v5046 = vmul.f32 %v2723, %v5034
      %v5047 = vmul.f32 %v2724, %v5034
      %v5048 = vmul.f32 %v2725, %v5034
      %v5049 = vmul.f32 %v2726, %v5034
      %v5050 = vmul.f32 %v2727, %v5034
      %v5051 = vadd.f32 %v5014, %v5035
      %v5052 = vadd.f32 %v5015, %v5036
      %v5053 = vadd.f32 %v5016, %v5037
      %v5054 = vadd.f32 %v5017, %v5038
      %v5055 = vadd.f32 %v5018, %v5039
      %v5056 = vadd.f32 %v5019, %v5040
      %v5057 = vadd.f32 %v5020, %v5041
      %v5058 = vadd.f32 %v5021, %v5042
      %v5059 = vadd.f32 %v5022, %v5043
      %v5060 = vadd.f32 %v5023, %v5044
      %v5061 = vadd.f32 %v5024, %v5045
      %v5062 = vadd.f32 %v5025, %v5046
      %v5063 = vadd.f32 %v5026, %v5047
      %v5064 = vadd.f32 %v5027, %v5048
      %v5065 = vadd.f32 %v5028, %v5049
      %v5066 = vadd.f32 %v5029, %v5050
      %v5067 = vld [vmem:[%s2764 + $0x4] sm:$0x1]
      %v5068 = vlaneseq
      %v5069 = vshrl.u32 %v5068, 7
      %v5070 = vsub.s32 0, %v5069
      %v5071 = vrot.slane %v5067, %v5070
      %v5072 = vmul.f32 %v2767, %v5071
      %v5073 = vmul.f32 %v2768, %v5071
      %v5074 = vmul.f32 %v2769, %v5071
      %v5075 = vmul.f32 %v2770, %v5071
      %v5076 = vmul.f32 %v2771, %v5071
      %v5077 = vmul.f32 %v2772, %v5071
      %v5078 = vmul.f32 %v2773, %v5071
      %v5079 = vmul.f32 %v2774, %v5071
      %v5080 = vmul.f32 %v2775, %v5071
      %v5081 = vmul.f32 %v2776, %v5071
      %v5082 = vmul.f32 %v2777, %v5071
      %v5083 = vmul.f32 %v2778, %v5071
      %v5084 = vmul.f32 %v2779, %v5071
      %v5085 = vmul.f32 %v2780, %v5071
      %v5086 = vmul.f32 %v2781, %v5071
      %v5087 = vmul.f32 %v2782, %v5071
      %v5088 = vadd.f32 %v5051, %v5072
      %v5089 = vadd.f32 %v5052, %v5073
      %v5090 = vadd.f32 %v5053, %v5074
      %v5091 = vadd.f32 %v5054, %v5075
      %v5092 = vadd.f32 %v5055, %v5076
      %v5093 = vadd.f32 %v5056, %v5077
      %v5094 = vadd.f32 %v5057, %v5078
      %v5095 = vadd.f32 %v5058, %v5079
      %v5096 = vadd.f32 %v5059, %v5080
      %v5097 = vadd.f32 %v5060, %v5081
      %v5098 = vadd.f32 %v5061, %v5082
      %v5099 = vadd.f32 %v5062, %v5083
      %v5100 = vadd.f32 %v5063, %v5084
      %v5101 = vadd.f32 %v5064, %v5085
      %v5102 = vadd.f32 %v5065, %v5086
      %v5103 = vadd.f32 %v5066, %v5087
      %v5104 = vld [vmem:[%s2819 + $0x4] sm:$0x1]
      %v5105 = vlaneseq
      %v5106 = vshrl.u32 %v5105, 7
      %v5107 = vsub.s32 0, %v5106
      %v5108 = vrot.slane %v5104, %v5107
      %v5109 = vmul.f32 %v2822, %v5108
      %v5110 = vmul.f32 %v2823, %v5108
      %v5111 = vmul.f32 %v2824, %v5108
      %v5112 = vmul.f32 %v2825, %v5108
      %v5113 = vmul.f32 %v2826, %v5108
      %v5114 = vmul.f32 %v2827, %v5108
      %v5115 = vmul.f32 %v2828, %v5108
      %v5116 = vmul.f32 %v2829, %v5108
      %v5117 = vmul.f32 %v2830, %v5108
      %v5118 = vmul.f32 %v2831, %v5108
      %v5119 = vmul.f32 %v2832, %v5108
      %v5120 = vmul.f32 %v2833, %v5108
      %v5121 = vmul.f32 %v2834, %v5108
      %v5122 = vmul.f32 %v2835, %v5108
      %v5123 = vmul.f32 %v2836, %v5108
      %v5124 = vmul.f32 %v2837, %v5108
      %v5125 = vadd.f32 %v5088, %v5109
      %v5126 = vadd.f32 %v5089, %v5110
      %v5127 = vadd.f32 %v5090, %v5111
      %v5128 = vadd.f32 %v5091, %v5112
      %v5129 = vadd.f32 %v5092, %v5113
      %v5130 = vadd.f32 %v5093, %v5114
      %v5131 = vadd.f32 %v5094, %v5115
      %v5132 = vadd.f32 %v5095, %v5116
      %v5133 = vadd.f32 %v5096, %v5117
      %v5134 = vadd.f32 %v5097, %v5118
      %v5135 = vadd.f32 %v5098, %v5119
      %v5136 = vadd.f32 %v5099, %v5120
      %v5137 = vadd.f32 %v5100, %v5121
      %v5138 = vadd.f32 %v5101, %v5122
      %v5139 = vadd.f32 %v5102, %v5123
      %v5140 = vadd.f32 %v5103, %v5124
      %vm5157 = vcmask 1046528
      %v5158 = vrot.slane %v5125, 1
      %v5159 = vrot.slane %v5126, 1
      %v5160 = vsel %vm5157, %v5158, %v5159
      %v5161 = vrot.slane %v5127, 1
      %v5162 = vrot.slane %v5128, 1
      %v5163 = vsel %vm5157, %v5161, %v5162
      %v5164 = vrot.slane %v5129, 1
      %v5165 = vrot.slane %v5130, 1
      %v5166 = vsel %vm5157, %v5164, %v5165
      %v5167 = vrot.slane %v5131, 1
      %v5168 = vrot.slane %v5132, 1
      %v5169 = vsel %vm5157, %v5167, %v5168
      %v5170 = vrot.slane %v5133, 1
      %v5171 = vrot.slane %v5134, 1
      %v5172 = vsel %vm5157, %v5170, %v5171
      %v5173 = vrot.slane %v5135, 1
      %v5174 = vrot.slane %v5136, 1
      %v5175 = vsel %vm5157, %v5173, %v5174
      %v5176 = vrot.slane %v5137, 1
      %v5177 = vrot.slane %v5138, 1
      %v5178 = vsel %vm5157, %v5176, %v5177
      %v5179 = vrot.slane %v5139, 1
      %v5180 = vrot.slane %v5140, 1
      %v5181 = vsel %vm5157, %v5179, %v5180
      %v5198 = vsel %vm5157, %v5159, 0.0
      %v5199 = vsel %vm5157, %v5162, 0.0
      %v5200 = vsel %vm5157, %v5165, 0.0
      %v5201 = vsel %vm5157, %v5168, 0.0
      %v5202 = vsel %vm5157, %v5171, 0.0
      %v5203 = vsel %vm5157, %v5174, 0.0
      %v5204 = vsel %vm5157, %v5177, 0.0
      %v5205 = vsel %vm5157, %v5180, 0.0
      %v5206 = vadd.f32 %v4623, %v5160
      %v5207 = vadd.f32 %v4624, %v5198
      %v5208 = vadd.f32 %v4625, %v5163
      %v5209 = vadd.f32 %v4626, %v5199
      %v5210 = vadd.f32 %v4627, %v5166
      %v5211 = vadd.f32 %v4628, %v5200
      %v5212 = vadd.f32 %v4629, %v5169
      %v5213 = vadd.f32 %v4630, %v5201
      %v5214 = vadd.f32 %v4631, %v5172
      %v5215 = vadd.f32 %v4632, %v5202
      %v5216 = vadd.f32 %v4633, %v5175
      %v5217 = vadd.f32 %v4634, %v5203
      %v5218 = vadd.f32 %v4635, %v5178
      %v5219 = vadd.f32 %v4636, %v5204
      %v5220 = vadd.f32 %v4637, %v5181
      %v5221 = vadd.f32 %v4638, %v5205
      %v5222 = vld [vmem:[%s1 + $0x5] sm:$0x1]
      %v5223 = vlaneseq
      %v5224 = vshrl.u32 %v5223, 7
      %v5225 = vsub.s32 0, %v5224
      %v5226 = vrot.slane %v5222, %v5225
      %v5227 = vmul.f32 %v2126, %v5226
      %v5228 = vmul.f32 %v2127, %v5226
      %v5229 = vmul.f32 %v2128, %v5226
      %v5230 = vmul.f32 %v2129, %v5226
      %v5231 = vmul.f32 %v2130, %v5226
      %v5232 = vmul.f32 %v2131, %v5226
      %v5233 = vmul.f32 %v2132, %v5226
      %v5234 = vmul.f32 %v2133, %v5226
      %v5235 = vmul.f32 %v2134, %v5226
      %v5236 = vmul.f32 %v2135, %v5226
      %v5237 = vmul.f32 %v2136, %v5226
      %v5238 = vmul.f32 %v2137, %v5226
      %v5239 = vmul.f32 %v2138, %v5226
      %v5240 = vmul.f32 %v2139, %v5226
      %v5241 = vmul.f32 %v2140, %v5226
      %v5242 = vmul.f32 %v2141, %v5226
      %v5243 = vld [vmem:[%s2162 + $0x5] sm:$0x1]
      %v5244 = vlaneseq
      %v5245 = vshrl.u32 %v5244, 7
      %v5246 = vsub.s32 0, %v5245
      %v5247 = vrot.slane %v5243, %v5246
      %v5248 = vmul.f32 %v2165, %v5247
      %v5249 = vmul.f32 %v2166, %v5247
      %v5250 = vmul.f32 %v2167, %v5247
      %v5251 = vmul.f32 %v2168, %v5247
      %v5252 = vmul.f32 %v2169, %v5247
      %v5253 = vmul.f32 %v2170, %v5247
      %v5254 = vmul.f32 %v2171, %v5247
      %v5255 = vmul.f32 %v2172, %v5247
      %v5256 = vmul.f32 %v2173, %v5247
      %v5257 = vmul.f32 %v2174, %v5247
      %v5258 = vmul.f32 %v2175, %v5247
      %v5259 = vmul.f32 %v2176, %v5247
      %v5260 = vmul.f32 %v2177, %v5247
      %v5261 = vmul.f32 %v2178, %v5247
      %v5262 = vmul.f32 %v2179, %v5247
      %v5263 = vmul.f32 %v2180, %v5247
      %v5264 = vadd.f32 %v5227, %v5248
      %v5265 = vadd.f32 %v5228, %v5249
      %v5266 = vadd.f32 %v5229, %v5250
      %v5267 = vadd.f32 %v5230, %v5251
      %v5268 = vadd.f32 %v5231, %v5252
      %v5269 = vadd.f32 %v5232, %v5253
      %v5270 = vadd.f32 %v5233, %v5254
      %v5271 = vadd.f32 %v5234, %v5255
      %v5272 = vadd.f32 %v5235, %v5256
      %v5273 = vadd.f32 %v5236, %v5257
      %v5274 = vadd.f32 %v5237, %v5258
      %v5275 = vadd.f32 %v5238, %v5259
      %v5276 = vadd.f32 %v5239, %v5260
      %v5277 = vadd.f32 %v5240, %v5261
      %v5278 = vadd.f32 %v5241, %v5262
      %v5279 = vadd.f32 %v5242, %v5263
      %v5280 = vld [vmem:[%s2217 + $0x5] sm:$0x1]
      %v5281 = vlaneseq
      %v5282 = vshrl.u32 %v5281, 7
      %v5283 = vsub.s32 0, %v5282
      %v5284 = vrot.slane %v5280, %v5283
      %v5285 = vmul.f32 %v2220, %v5284
      %v5286 = vmul.f32 %v2221, %v5284
      %v5287 = vmul.f32 %v2222, %v5284
      %v5288 = vmul.f32 %v2223, %v5284
      %v5289 = vmul.f32 %v2224, %v5284
      %v5290 = vmul.f32 %v2225, %v5284
      %v5291 = vmul.f32 %v2226, %v5284
      %v5292 = vmul.f32 %v2227, %v5284
      %v5293 = vmul.f32 %v2228, %v5284
      %v5294 = vmul.f32 %v2229, %v5284
      %v5295 = vmul.f32 %v2230, %v5284
      %v5296 = vmul.f32 %v2231, %v5284
      %v5297 = vmul.f32 %v2232, %v5284
      %v5298 = vmul.f32 %v2233, %v5284
      %v5299 = vmul.f32 %v2234, %v5284
      %v5300 = vmul.f32 %v2235, %v5284
      %v5301 = vadd.f32 %v5264, %v5285
      %v5302 = vadd.f32 %v5265, %v5286
      %v5303 = vadd.f32 %v5266, %v5287
      %v5304 = vadd.f32 %v5267, %v5288
      %v5305 = vadd.f32 %v5268, %v5289
      %v5306 = vadd.f32 %v5269, %v5290
      %v5307 = vadd.f32 %v5270, %v5291
      %v5308 = vadd.f32 %v5271, %v5292
      %v5309 = vadd.f32 %v5272, %v5293
      %v5310 = vadd.f32 %v5273, %v5294
      %v5311 = vadd.f32 %v5274, %v5295
      %v5312 = vadd.f32 %v5275, %v5296
      %v5313 = vadd.f32 %v5276, %v5297
      %v5314 = vadd.f32 %v5277, %v5298
      %v5315 = vadd.f32 %v5278, %v5299
      %v5316 = vadd.f32 %v5279, %v5300
      %v5317 = vld [vmem:[%s2272 + $0x5] sm:$0x1]
      %v5318 = vlaneseq
      %v5319 = vshrl.u32 %v5318, 7
      %v5320 = vsub.s32 0, %v5319
      %v5321 = vrot.slane %v5317, %v5320
      %v5322 = vmul.f32 %v2274, %v5321
      %v5323 = vmul.f32 %v2275, %v5321
      %v5324 = vmul.f32 %v2276, %v5321
      %v5325 = vmul.f32 %v2277, %v5321
      %v5326 = vmul.f32 %v2278, %v5321
      %v5327 = vmul.f32 %v2279, %v5321
      %v5328 = vmul.f32 %v2280, %v5321
      %v5329 = vmul.f32 %v2281, %v5321
      %v5330 = vmul.f32 %v2282, %v5321
      %v5331 = vmul.f32 %v2283, %v5321
      %v5332 = vmul.f32 %v2284, %v5321
      %v5333 = vmul.f32 %v2285, %v5321
      %v5334 = vmul.f32 %v2286, %v5321
      %v5335 = vmul.f32 %v2287, %v5321
      %v5336 = vmul.f32 %v2288, %v5321
      %v5337 = vmul.f32 %v2289, %v5321
      %v5338 = vadd.f32 %v5301, %v5322
      %v5339 = vadd.f32 %v5302, %v5323
      %v5340 = vadd.f32 %v5303, %v5324
      %v5341 = vadd.f32 %v5304, %v5325
      %v5342 = vadd.f32 %v5305, %v5326
      %v5343 = vadd.f32 %v5306, %v5327
      %v5344 = vadd.f32 %v5307, %v5328
      %v5345 = vadd.f32 %v5308, %v5329
      %v5346 = vadd.f32 %v5309, %v5330
      %v5347 = vadd.f32 %v5310, %v5331
      %v5348 = vadd.f32 %v5311, %v5332
      %v5349 = vadd.f32 %v5312, %v5333
      %v5350 = vadd.f32 %v5313, %v5334
      %v5351 = vadd.f32 %v5314, %v5335
      %v5352 = vadd.f32 %v5315, %v5336
      %v5353 = vadd.f32 %v5316, %v5337
      %v5354 = vld [vmem:[%s2326 + $0x5] sm:$0x1]
      %v5355 = vlaneseq
      %v5356 = vshrl.u32 %v5355, 7
      %v5357 = vsub.s32 0, %v5356
      %v5358 = vrot.slane %v5354, %v5357
      %v5359 = vmul.f32 %v2329, %v5358
      %v5360 = vmul.f32 %v2330, %v5358
      %v5361 = vmul.f32 %v2331, %v5358
      %v5362 = vmul.f32 %v2332, %v5358
      %v5363 = vmul.f32 %v2333, %v5358
      %v5364 = vmul.f32 %v2334, %v5358
      %v5365 = vmul.f32 %v2335, %v5358
      %v5366 = vmul.f32 %v2336, %v5358
      %v5367 = vmul.f32 %v2337, %v5358
      %v5368 = vmul.f32 %v2338, %v5358
      %v5369 = vmul.f32 %v2339, %v5358
      %v5370 = vmul.f32 %v2340, %v5358
      %v5371 = vmul.f32 %v2341, %v5358
      %v5372 = vmul.f32 %v2342, %v5358
      %v5373 = vmul.f32 %v2343, %v5358
      %v5374 = vmul.f32 %v2344, %v5358
      %v5375 = vadd.f32 %v5338, %v5359
      %v5376 = vadd.f32 %v5339, %v5360
      %v5377 = vadd.f32 %v5340, %v5361
      %v5378 = vadd.f32 %v5341, %v5362
      %v5379 = vadd.f32 %v5342, %v5363
      %v5380 = vadd.f32 %v5343, %v5364
      %v5381 = vadd.f32 %v5344, %v5365
      %v5382 = vadd.f32 %v5345, %v5366
      %v5383 = vadd.f32 %v5346, %v5367
      %v5384 = vadd.f32 %v5347, %v5368
      %v5385 = vadd.f32 %v5348, %v5369
      %v5386 = vadd.f32 %v5349, %v5370
      %v5387 = vadd.f32 %v5350, %v5371
      %v5388 = vadd.f32 %v5351, %v5372
      %v5389 = vadd.f32 %v5352, %v5373
      %v5390 = vadd.f32 %v5353, %v5374
      %v5391 = vld [vmem:[%s2381 + $0x5] sm:$0x1]
      %v5392 = vlaneseq
      %v5393 = vshrl.u32 %v5392, 7
      %v5394 = vsub.s32 0, %v5393
      %v5395 = vrot.slane %v5391, %v5394
      %v5396 = vmul.f32 %v2384, %v5395
      %v5397 = vmul.f32 %v2385, %v5395
      %v5398 = vmul.f32 %v2386, %v5395
      %v5399 = vmul.f32 %v2387, %v5395
      %v5400 = vmul.f32 %v2388, %v5395
      %v5401 = vmul.f32 %v2389, %v5395
      %v5402 = vmul.f32 %v2390, %v5395
      %v5403 = vmul.f32 %v2391, %v5395
      %v5404 = vmul.f32 %v2392, %v5395
      %v5405 = vmul.f32 %v2393, %v5395
      %v5406 = vmul.f32 %v2394, %v5395
      %v5407 = vmul.f32 %v2395, %v5395
      %v5408 = vmul.f32 %v2396, %v5395
      %v5409 = vmul.f32 %v2397, %v5395
      %v5410 = vmul.f32 %v2398, %v5395
      %v5411 = vmul.f32 %v2399, %v5395
      %v5412 = vadd.f32 %v5375, %v5396
      %v5413 = vadd.f32 %v5376, %v5397
      %v5414 = vadd.f32 %v5377, %v5398
      %v5415 = vadd.f32 %v5378, %v5399
      %v5416 = vadd.f32 %v5379, %v5400
      %v5417 = vadd.f32 %v5380, %v5401
      %v5418 = vadd.f32 %v5381, %v5402
      %v5419 = vadd.f32 %v5382, %v5403
      %v5420 = vadd.f32 %v5383, %v5404
      %v5421 = vadd.f32 %v5384, %v5405
      %v5422 = vadd.f32 %v5385, %v5406
      %v5423 = vadd.f32 %v5386, %v5407
      %v5424 = vadd.f32 %v5387, %v5408
      %v5425 = vadd.f32 %v5388, %v5409
      %v5426 = vadd.f32 %v5389, %v5410
      %v5427 = vadd.f32 %v5390, %v5411
      %v5428 = vld [vmem:[%s2436 + $0x5] sm:$0x1]
      %v5429 = vlaneseq
      %v5430 = vshrl.u32 %v5429, 7
      %v5431 = vsub.s32 0, %v5430
      %v5432 = vrot.slane %v5428, %v5431
      %v5433 = vmul.f32 %v2439, %v5432
      %v5434 = vmul.f32 %v2440, %v5432
      %v5435 = vmul.f32 %v2441, %v5432
      %v5436 = vmul.f32 %v2442, %v5432
      %v5437 = vmul.f32 %v2443, %v5432
      %v5438 = vmul.f32 %v2444, %v5432
      %v5439 = vmul.f32 %v2445, %v5432
      %v5440 = vmul.f32 %v2446, %v5432
      %v5441 = vmul.f32 %v2447, %v5432
      %v5442 = vmul.f32 %v2448, %v5432
      %v5443 = vmul.f32 %v2449, %v5432
      %v5444 = vmul.f32 %v2450, %v5432
      %v5445 = vmul.f32 %v2451, %v5432
      %v5446 = vmul.f32 %v2452, %v5432
      %v5447 = vmul.f32 %v2453, %v5432
      %v5448 = vmul.f32 %v2454, %v5432
      %v5449 = vadd.f32 %v5412, %v5433
      %v5450 = vadd.f32 %v5413, %v5434
      %v5451 = vadd.f32 %v5414, %v5435
      %v5452 = vadd.f32 %v5415, %v5436
      %v5453 = vadd.f32 %v5416, %v5437
      %v5454 = vadd.f32 %v5417, %v5438
      %v5455 = vadd.f32 %v5418, %v5439
      %v5456 = vadd.f32 %v5419, %v5440
      %v5457 = vadd.f32 %v5420, %v5441
      %v5458 = vadd.f32 %v5421, %v5442
      %v5459 = vadd.f32 %v5422, %v5443
      %v5460 = vadd.f32 %v5423, %v5444
      %v5461 = vadd.f32 %v5424, %v5445
      %v5462 = vadd.f32 %v5425, %v5446
      %v5463 = vadd.f32 %v5426, %v5447
      %v5464 = vadd.f32 %v5427, %v5448
      %v5465 = vld [vmem:[%s2491 + $0x5] sm:$0x1]
      %v5466 = vlaneseq
      %v5467 = vshrl.u32 %v5466, 7
      %v5468 = vsub.s32 0, %v5467
      %v5469 = vrot.slane %v5465, %v5468
      %v5470 = vmul.f32 %v2493, %v5469
      %v5471 = vmul.f32 %v2494, %v5469
      %v5472 = vmul.f32 %v2495, %v5469
      %v5473 = vmul.f32 %v2496, %v5469
      %v5474 = vmul.f32 %v2497, %v5469
      %v5475 = vmul.f32 %v2498, %v5469
      %v5476 = vmul.f32 %v2499, %v5469
      %v5477 = vmul.f32 %v2500, %v5469
      %v5478 = vmul.f32 %v2501, %v5469
      %v5479 = vmul.f32 %v2502, %v5469
      %v5480 = vmul.f32 %v2503, %v5469
      %v5481 = vmul.f32 %v2504, %v5469
      %v5482 = vmul.f32 %v2505, %v5469
      %v5483 = vmul.f32 %v2506, %v5469
      %v5484 = vmul.f32 %v2507, %v5469
      %v5485 = vmul.f32 %v2508, %v5469
      %v5486 = vadd.f32 %v5449, %v5470
      %v5487 = vadd.f32 %v5450, %v5471
      %v5488 = vadd.f32 %v5451, %v5472
      %v5489 = vadd.f32 %v5452, %v5473
      %v5490 = vadd.f32 %v5453, %v5474
      %v5491 = vadd.f32 %v5454, %v5475
      %v5492 = vadd.f32 %v5455, %v5476
      %v5493 = vadd.f32 %v5456, %v5477
      %v5494 = vadd.f32 %v5457, %v5478
      %v5495 = vadd.f32 %v5458, %v5479
      %v5496 = vadd.f32 %v5459, %v5480
      %v5497 = vadd.f32 %v5460, %v5481
      %v5498 = vadd.f32 %v5461, %v5482
      %v5499 = vadd.f32 %v5462, %v5483
      %v5500 = vadd.f32 %v5463, %v5484
      %v5501 = vadd.f32 %v5464, %v5485
      %v5502 = vld [vmem:[%s2545 + $0x5] sm:$0x1]
      %v5503 = vlaneseq
      %v5504 = vshrl.u32 %v5503, 7
      %v5505 = vsub.s32 0, %v5504
      %v5506 = vrot.slane %v5502, %v5505
      %v5507 = vmul.f32 %v2548, %v5506
      %v5508 = vmul.f32 %v2549, %v5506
      %v5509 = vmul.f32 %v2550, %v5506
      %v5510 = vmul.f32 %v2551, %v5506
      %v5511 = vmul.f32 %v2552, %v5506
      %v5512 = vmul.f32 %v2553, %v5506
      %v5513 = vmul.f32 %v2554, %v5506
      %v5514 = vmul.f32 %v2555, %v5506
      %v5515 = vmul.f32 %v2556, %v5506
      %v5516 = vmul.f32 %v2557, %v5506
      %v5517 = vmul.f32 %v2558, %v5506
      %v5518 = vmul.f32 %v2559, %v5506
      %v5519 = vmul.f32 %v2560, %v5506
      %v5520 = vmul.f32 %v2561, %v5506
      %v5521 = vmul.f32 %v2562, %v5506
      %v5522 = vmul.f32 %v2563, %v5506
      %v5523 = vadd.f32 %v5486, %v5507
      %v5524 = vadd.f32 %v5487, %v5508
      %v5525 = vadd.f32 %v5488, %v5509
      %v5526 = vadd.f32 %v5489, %v5510
      %v5527 = vadd.f32 %v5490, %v5511
      %v5528 = vadd.f32 %v5491, %v5512
      %v5529 = vadd.f32 %v5492, %v5513
      %v5530 = vadd.f32 %v5493, %v5514
      %v5531 = vadd.f32 %v5494, %v5515
      %v5532 = vadd.f32 %v5495, %v5516
      %v5533 = vadd.f32 %v5496, %v5517
      %v5534 = vadd.f32 %v5497, %v5518
      %v5535 = vadd.f32 %v5498, %v5519
      %v5536 = vadd.f32 %v5499, %v5520
      %v5537 = vadd.f32 %v5500, %v5521
      %v5538 = vadd.f32 %v5501, %v5522
      %v5539 = vld [vmem:[%s2600 + $0x5] sm:$0x1]
      %v5540 = vlaneseq
      %v5541 = vshrl.u32 %v5540, 7
      %v5542 = vsub.s32 0, %v5541
      %v5543 = vrot.slane %v5539, %v5542
      %v5544 = vmul.f32 %v2603, %v5543
      %v5545 = vmul.f32 %v2604, %v5543
      %v5546 = vmul.f32 %v2605, %v5543
      %v5547 = vmul.f32 %v2606, %v5543
      %v5548 = vmul.f32 %v2607, %v5543
      %v5549 = vmul.f32 %v2608, %v5543
      %v5550 = vmul.f32 %v2609, %v5543
      %v5551 = vmul.f32 %v2610, %v5543
      %v5552 = vmul.f32 %v2611, %v5543
      %v5553 = vmul.f32 %v2612, %v5543
      %v5554 = vmul.f32 %v2613, %v5543
      %v5555 = vmul.f32 %v2614, %v5543
      %v5556 = vmul.f32 %v2615, %v5543
      %v5557 = vmul.f32 %v2616, %v5543
      %v5558 = vmul.f32 %v2617, %v5543
      %v5559 = vmul.f32 %v2618, %v5543
      %v5560 = vadd.f32 %v5523, %v5544
      %v5561 = vadd.f32 %v5524, %v5545
      %v5562 = vadd.f32 %v5525, %v5546
      %v5563 = vadd.f32 %v5526, %v5547
      %v5564 = vadd.f32 %v5527, %v5548
      %v5565 = vadd.f32 %v5528, %v5549
      %v5566 = vadd.f32 %v5529, %v5550
      %v5567 = vadd.f32 %v5530, %v5551
      %v5568 = vadd.f32 %v5531, %v5552
      %v5569 = vadd.f32 %v5532, %v5553
      %v5570 = vadd.f32 %v5533, %v5554
      %v5571 = vadd.f32 %v5534, %v5555
      %v5572 = vadd.f32 %v5535, %v5556
      %v5573 = vadd.f32 %v5536, %v5557
      %v5574 = vadd.f32 %v5537, %v5558
      %v5575 = vadd.f32 %v5538, %v5559
      %v5576 = vld [vmem:[%s2655 + $0x5] sm:$0x1]
      %v5577 = vlaneseq
      %v5578 = vshrl.u32 %v5577, 7
      %v5579 = vsub.s32 0, %v5578
      %v5580 = vrot.slane %v5576, %v5579
      %v5581 = vmul.f32 %v2657, %v5580
      %v5582 = vmul.f32 %v2658, %v5580
      %v5583 = vmul.f32 %v2659, %v5580
      %v5584 = vmul.f32 %v2660, %v5580
      %v5585 = vmul.f32 %v2661, %v5580
      %v5586 = vmul.f32 %v2662, %v5580
      %v5587 = vmul.f32 %v2663, %v5580
      %v5588 = vmul.f32 %v2664, %v5580
      %v5589 = vmul.f32 %v2665, %v5580
      %v5590 = vmul.f32 %v2666, %v5580
      %v5591 = vmul.f32 %v2667, %v5580
      %v5592 = vmul.f32 %v2668, %v5580
      %v5593 = vmul.f32 %v2669, %v5580
      %v5594 = vmul.f32 %v2670, %v5580
      %v5595 = vmul.f32 %v2671, %v5580
      %v5596 = vmul.f32 %v2672, %v5580
      %v5597 = vadd.f32 %v5560, %v5581
      %v5598 = vadd.f32 %v5561, %v5582
      %v5599 = vadd.f32 %v5562, %v5583
      %v5600 = vadd.f32 %v5563, %v5584
      %v5601 = vadd.f32 %v5564, %v5585
      %v5602 = vadd.f32 %v5565, %v5586
      %v5603 = vadd.f32 %v5566, %v5587
      %v5604 = vadd.f32 %v5567, %v5588
      %v5605 = vadd.f32 %v5568, %v5589
      %v5606 = vadd.f32 %v5569, %v5590
      %v5607 = vadd.f32 %v5570, %v5591
      %v5608 = vadd.f32 %v5571, %v5592
      %v5609 = vadd.f32 %v5572, %v5593
      %v5610 = vadd.f32 %v5573, %v5594
      %v5611 = vadd.f32 %v5574, %v5595
      %v5612 = vadd.f32 %v5575, %v5596
      %v5613 = vld [vmem:[%s2709 + $0x5] sm:$0x1]
      %v5614 = vlaneseq
      %v5615 = vshrl.u32 %v5614, 7
      %v5616 = vsub.s32 0, %v5615
      %v5617 = vrot.slane %v5613, %v5616
      %v5618 = vmul.f32 %v2712, %v5617
      %v5619 = vmul.f32 %v2713, %v5617
      %v5620 = vmul.f32 %v2714, %v5617
      %v5621 = vmul.f32 %v2715, %v5617
      %v5622 = vmul.f32 %v2716, %v5617
      %v5623 = vmul.f32 %v2717, %v5617
      %v5624 = vmul.f32 %v2718, %v5617
      %v5625 = vmul.f32 %v2719, %v5617
      %v5626 = vmul.f32 %v2720, %v5617
      %v5627 = vmul.f32 %v2721, %v5617
      %v5628 = vmul.f32 %v2722, %v5617
      %v5629 = vmul.f32 %v2723, %v5617
      %v5630 = vmul.f32 %v2724, %v5617
      %v5631 = vmul.f32 %v2725, %v5617
      %v5632 = vmul.f32 %v2726, %v5617
      %v5633 = vmul.f32 %v2727, %v5617
      %v5634 = vadd.f32 %v5597, %v5618
      %v5635 = vadd.f32 %v5598, %v5619
      %v5636 = vadd.f32 %v5599, %v5620
      %v5637 = vadd.f32 %v5600, %v5621
      %v5638 = vadd.f32 %v5601, %v5622
      %v5639 = vadd.f32 %v5602, %v5623
      %v5640 = vadd.f32 %v5603, %v5624
      %v5641 = vadd.f32 %v5604, %v5625
      %v5642 = vadd.f32 %v5605, %v5626
      %v5643 = vadd.f32 %v5606, %v5627
      %v5644 = vadd.f32 %v5607, %v5628
      %v5645 = vadd.f32 %v5608, %v5629
      %v5646 = vadd.f32 %v5609, %v5630
      %v5647 = vadd.f32 %v5610, %v5631
      %v5648 = vadd.f32 %v5611, %v5632
      %v5649 = vadd.f32 %v5612, %v5633
      %v5650 = vld [vmem:[%s2764 + $0x5] sm:$0x1]
      %v5651 = vlaneseq
      %v5652 = vshrl.u32 %v5651, 7
      %v5653 = vsub.s32 0, %v5652
      %v5654 = vrot.slane %v5650, %v5653
      %v5655 = vmul.f32 %v2767, %v5654
      %v5656 = vmul.f32 %v2768, %v5654
      %v5657 = vmul.f32 %v2769, %v5654
      %v5658 = vmul.f32 %v2770, %v5654
      %v5659 = vmul.f32 %v2771, %v5654
      %v5660 = vmul.f32 %v2772, %v5654
      %v5661 = vmul.f32 %v2773, %v5654
      %v5662 = vmul.f32 %v2774, %v5654
      %v5663 = vmul.f32 %v2775, %v5654
      %v5664 = vmul.f32 %v2776, %v5654
      %v5665 = vmul.f32 %v2777, %v5654
      %v5666 = vmul.f32 %v2778, %v5654
      %v5667 = vmul.f32 %v2779, %v5654
      %v5668 = vmul.f32 %v2780, %v5654
      %v5669 = vmul.f32 %v2781, %v5654
      %v5670 = vmul.f32 %v2782, %v5654
      %v5671 = vadd.f32 %v5634, %v5655
      %v5672 = vadd.f32 %v5635, %v5656
      %v5673 = vadd.f32 %v5636, %v5657
      %v5674 = vadd.f32 %v5637, %v5658
      %v5675 = vadd.f32 %v5638, %v5659
      %v5676 = vadd.f32 %v5639, %v5660
      %v5677 = vadd.f32 %v5640, %v5661
      %v5678 = vadd.f32 %v5641, %v5662
      %v5679 = vadd.f32 %v5642, %v5663
      %v5680 = vadd.f32 %v5643, %v5664
      %v5681 = vadd.f32 %v5644, %v5665
      %v5682 = vadd.f32 %v5645, %v5666
      %v5683 = vadd.f32 %v5646, %v5667
      %v5684 = vadd.f32 %v5647, %v5668
      %v5685 = vadd.f32 %v5648, %v5669
      %v5686 = vadd.f32 %v5649, %v5670
      %v5687 = vld [vmem:[%s2819 + $0x5] sm:$0x1]
      %v5688 = vlaneseq
      %v5689 = vshrl.u32 %v5688, 7
      %v5690 = vsub.s32 0, %v5689
      %v5691 = vrot.slane %v5687, %v5690
      %v5692 = vmul.f32 %v2822, %v5691
      %v5693 = vmul.f32 %v2823, %v5691
      %v5694 = vmul.f32 %v2824, %v5691
      %v5695 = vmul.f32 %v2825, %v5691
      %v5696 = vmul.f32 %v2826, %v5691
      %v5697 = vmul.f32 %v2827, %v5691
      %v5698 = vmul.f32 %v2828, %v5691
      %v5699 = vmul.f32 %v2829, %v5691
      %v5700 = vmul.f32 %v2830, %v5691
      %v5701 = vmul.f32 %v2831, %v5691
      %v5702 = vmul.f32 %v2832, %v5691
      %v5703 = vmul.f32 %v2833, %v5691
      %v5704 = vmul.f32 %v2834, %v5691
      %v5705 = vmul.f32 %v2835, %v5691
      %v5706 = vmul.f32 %v2836, %v5691
      %v5707 = vmul.f32 %v2837, %v5691
      %v5708 = vadd.f32 %v5671, %v5692
      %v5709 = vadd.f32 %v5672, %v5693
      %v5710 = vadd.f32 %v5673, %v5694
      %v5711 = vadd.f32 %v5674, %v5695
      %v5712 = vadd.f32 %v5675, %v5696
      %v5713 = vadd.f32 %v5676, %v5697
      %v5714 = vadd.f32 %v5677, %v5698
      %v5715 = vadd.f32 %v5678, %v5699
      %v5716 = vadd.f32 %v5679, %v5700
      %v5717 = vadd.f32 %v5680, %v5701
      %v5718 = vadd.f32 %v5681, %v5702
      %v5719 = vadd.f32 %v5682, %v5703
      %v5720 = vadd.f32 %v5683, %v5704
      %v5721 = vadd.f32 %v5684, %v5705
      %v5722 = vadd.f32 %v5685, %v5706
      %v5723 = vadd.f32 %v5686, %v5707
      %vm5740 = vcmask 1045504
      %v5741 = vrot.slane %v5708, 2
      %v5742 = vrot.slane %v5709, 2
      %v5743 = vsel %vm5740, %v5741, %v5742
      %v5744 = vrot.slane %v5710, 2
      %v5745 = vrot.slane %v5711, 2
      %v5746 = vsel %vm5740, %v5744, %v5745
      %v5747 = vrot.slane %v5712, 2
      %v5748 = vrot.slane %v5713, 2
      %v5749 = vsel %vm5740, %v5747, %v5748
      %v5750 = vrot.slane %v5714, 2
      %v5751 = vrot.slane %v5715, 2
      %v5752 = vsel %vm5740, %v5750, %v5751
      %v5753 = vrot.slane %v5716, 2
      %v5754 = vrot.slane %v5717, 2
      %v5755 = vsel %vm5740, %v5753, %v5754
      %v5756 = vrot.slane %v5718, 2
      %v5757 = vrot.slane %v5719, 2
      %v5758 = vsel %vm5740, %v5756, %v5757
      %v5759 = vrot.slane %v5720, 2
      %v5760 = vrot.slane %v5721, 2
      %v5761 = vsel %vm5740, %v5759, %v5760
      %v5762 = vrot.slane %v5722, 2
      %v5763 = vrot.slane %v5723, 2
      %v5764 = vsel %vm5740, %v5762, %v5763
      %v5781 = vsel %vm5740, %v5742, 0.0
      %v5782 = vsel %vm5740, %v5745, 0.0
      %v5783 = vsel %vm5740, %v5748, 0.0
      %v5784 = vsel %vm5740, %v5751, 0.0
      %v5785 = vsel %vm5740, %v5754, 0.0
      %v5786 = vsel %vm5740, %v5757, 0.0
      %v5787 = vsel %vm5740, %v5760, 0.0
      %v5788 = vsel %vm5740, %v5763, 0.0
      %v5789 = vadd.f32 %v5206, %v5743
      %v5790 = vadd.f32 %v5207, %v5781
      %v5791 = vadd.f32 %v5208, %v5746
      %v5792 = vadd.f32 %v5209, %v5782
      %v5793 = vadd.f32 %v5210, %v5749
      %v5794 = vadd.f32 %v5211, %v5783
      %v5795 = vadd.f32 %v5212, %v5752
      %v5796 = vadd.f32 %v5213, %v5784
      %v5797 = vadd.f32 %v5214, %v5755
      %v5798 = vadd.f32 %v5215, %v5785
      %v5799 = vadd.f32 %v5216, %v5758
      %v5800 = vadd.f32 %v5217, %v5786
      %v5801 = vadd.f32 %v5218, %v5761
      %v5802 = vadd.f32 %v5219, %v5787
      %v5803 = vadd.f32 %v5220, %v5764
      %v5804 = vadd.f32 %v5221, %v5788
      %v5805 = vld [vmem:[%s1 + $0x6] sm:$0x1]
      %v5806 = vlaneseq
      %v5807 = vshrl.u32 %v5806, 7
      %v5808 = vsub.s32 0, %v5807
      %v5809 = vrot.slane %v5805, %v5808
      %v5810 = vmul.f32 %v2126, %v5809
      %v5811 = vmul.f32 %v2127, %v5809
      %v5812 = vmul.f32 %v2128, %v5809
      %v5813 = vmul.f32 %v2129, %v5809
      %v5814 = vmul.f32 %v2130, %v5809
      %v5815 = vmul.f32 %v2131, %v5809
      %v5816 = vmul.f32 %v2132, %v5809
      %v5817 = vmul.f32 %v2133, %v5809
      %v5818 = vmul.f32 %v2134, %v5809
      %v5819 = vmul.f32 %v2135, %v5809
      %v5820 = vmul.f32 %v2136, %v5809
      %v5821 = vmul.f32 %v2137, %v5809
      %v5822 = vmul.f32 %v2138, %v5809
      %v5823 = vmul.f32 %v2139, %v5809
      %v5824 = vmul.f32 %v2140, %v5809
      %v5825 = vmul.f32 %v2141, %v5809
      %v5826 = vld [vmem:[%s2162 + $0x6] sm:$0x1]
      %v5827 = vlaneseq
      %v5828 = vshrl.u32 %v5827, 7
      %v5829 = vsub.s32 0, %v5828
      %v5830 = vrot.slane %v5826, %v5829
      %v5831 = vmul.f32 %v2165, %v5830
      %v5832 = vmul.f32 %v2166, %v5830
      %v5833 = vmul.f32 %v2167, %v5830
      %v5834 = vmul.f32 %v2168, %v5830
      %v5835 = vmul.f32 %v2169, %v5830
      %v5836 = vmul.f32 %v2170, %v5830
      %v5837 = vmul.f32 %v2171, %v5830
      %v5838 = vmul.f32 %v2172, %v5830
      %v5839 = vmul.f32 %v2173, %v5830
      %v5840 = vmul.f32 %v2174, %v5830
      %v5841 = vmul.f32 %v2175, %v5830
      %v5842 = vmul.f32 %v2176, %v5830
      %v5843 = vmul.f32 %v2177, %v5830
      %v5844 = vmul.f32 %v2178, %v5830
      %v5845 = vmul.f32 %v2179, %v5830
      %v5846 = vmul.f32 %v2180, %v5830
      %v5847 = vadd.f32 %v5810, %v5831
      %v5848 = vadd.f32 %v5811, %v5832
      %v5849 = vadd.f32 %v5812, %v5833
      %v5850 = vadd.f32 %v5813, %v5834
      %v5851 = vadd.f32 %v5814, %v5835
      %v5852 = vadd.f32 %v5815, %v5836
      %v5853 = vadd.f32 %v5816, %v5837
      %v5854 = vadd.f32 %v5817, %v5838
      %v5855 = vadd.f32 %v5818, %v5839
      %v5856 = vadd.f32 %v5819, %v5840
      %v5857 = vadd.f32 %v5820, %v5841
      %v5858 = vadd.f32 %v5821, %v5842
      %v5859 = vadd.f32 %v5822, %v5843
      %v5860 = vadd.f32 %v5823, %v5844
      %v5861 = vadd.f32 %v5824, %v5845
      %v5862 = vadd.f32 %v5825, %v5846
      %v5863 = vld [vmem:[%s2217 + $0x6] sm:$0x1]
      %v5864 = vlaneseq
      %v5865 = vshrl.u32 %v5864, 7
      %v5866 = vsub.s32 0, %v5865
      %v5867 = vrot.slane %v5863, %v5866
      %v5868 = vmul.f32 %v2220, %v5867
      %v5869 = vmul.f32 %v2221, %v5867
      %v5870 = vmul.f32 %v2222, %v5867
      %v5871 = vmul.f32 %v2223, %v5867
      %v5872 = vmul.f32 %v2224, %v5867
      %v5873 = vmul.f32 %v2225, %v5867
      %v5874 = vmul.f32 %v2226, %v5867
      %v5875 = vmul.f32 %v2227, %v5867
      %v5876 = vmul.f32 %v2228, %v5867
      %v5877 = vmul.f32 %v2229, %v5867
      %v5878 = vmul.f32 %v2230, %v5867
      %v5879 = vmul.f32 %v2231, %v5867
      %v5880 = vmul.f32 %v2232, %v5867
      %v5881 = vmul.f32 %v2233, %v5867
      %v5882 = vmul.f32 %v2234, %v5867
      %v5883 = vmul.f32 %v2235, %v5867
      %v5884 = vadd.f32 %v5847, %v5868
      %v5885 = vadd.f32 %v5848, %v5869
      %v5886 = vadd.f32 %v5849, %v5870
      %v5887 = vadd.f32 %v5850, %v5871
      %v5888 = vadd.f32 %v5851, %v5872
      %v5889 = vadd.f32 %v5852, %v5873
      %v5890 = vadd.f32 %v5853, %v5874
      %v5891 = vadd.f32 %v5854, %v5875
      %v5892 = vadd.f32 %v5855, %v5876
      %v5893 = vadd.f32 %v5856, %v5877
      %v5894 = vadd.f32 %v5857, %v5878
      %v5895 = vadd.f32 %v5858, %v5879
      %v5896 = vadd.f32 %v5859, %v5880
      %v5897 = vadd.f32 %v5860, %v5881
      %v5898 = vadd.f32 %v5861, %v5882
      %v5899 = vadd.f32 %v5862, %v5883
      %v5900 = vld [vmem:[%s2272 + $0x6] sm:$0x1]
      %v5901 = vlaneseq
      %v5902 = vshrl.u32 %v5901, 7
      %v5903 = vsub.s32 0, %v5902
      %v5904 = vrot.slane %v5900, %v5903
      %v5905 = vmul.f32 %v2274, %v5904
      %v5906 = vmul.f32 %v2275, %v5904
      %v5907 = vmul.f32 %v2276, %v5904
      %v5908 = vmul.f32 %v2277, %v5904
      %v5909 = vmul.f32 %v2278, %v5904
      %v5910 = vmul.f32 %v2279, %v5904
      %v5911 = vmul.f32 %v2280, %v5904
      %v5912 = vmul.f32 %v2281, %v5904
      %v5913 = vmul.f32 %v2282, %v5904
      %v5914 = vmul.f32 %v2283, %v5904
      %v5915 = vmul.f32 %v2284, %v5904
      %v5916 = vmul.f32 %v2285, %v5904
      %v5917 = vmul.f32 %v2286, %v5904
      %v5918 = vmul.f32 %v2287, %v5904
      %v5919 = vmul.f32 %v2288, %v5904
      %v5920 = vmul.f32 %v2289, %v5904
      %v5921 = vadd.f32 %v5884, %v5905
      %v5922 = vadd.f32 %v5885, %v5906
      %v5923 = vadd.f32 %v5886, %v5907
      %v5924 = vadd.f32 %v5887, %v5908
      %v5925 = vadd.f32 %v5888, %v5909
      %v5926 = vadd.f32 %v5889, %v5910
      %v5927 = vadd.f32 %v5890, %v5911
      %v5928 = vadd.f32 %v5891, %v5912
      %v5929 = vadd.f32 %v5892, %v5913
      %v5930 = vadd.f32 %v5893, %v5914
      %v5931 = vadd.f32 %v5894, %v5915
      %v5932 = vadd.f32 %v5895, %v5916
      %v5933 = vadd.f32 %v5896, %v5917
      %v5934 = vadd.f32 %v5897, %v5918
      %v5935 = vadd.f32 %v5898, %v5919
      %v5936 = vadd.f32 %v5899, %v5920
      %v5937 = vld [vmem:[%s2326 + $0x6] sm:$0x1]
      %v5938 = vlaneseq
      %v5939 = vshrl.u32 %v5938, 7
      %v5940 = vsub.s32 0, %v5939
      %v5941 = vrot.slane %v5937, %v5940
      %v5942 = vmul.f32 %v2329, %v5941
      %v5943 = vmul.f32 %v2330, %v5941
      %v5944 = vmul.f32 %v2331, %v5941
      %v5945 = vmul.f32 %v2332, %v5941
      %v5946 = vmul.f32 %v2333, %v5941
      %v5947 = vmul.f32 %v2334, %v5941
      %v5948 = vmul.f32 %v2335, %v5941
      %v5949 = vmul.f32 %v2336, %v5941
      %v5950 = vmul.f32 %v2337, %v5941
      %v5951 = vmul.f32 %v2338, %v5941
      %v5952 = vmul.f32 %v2339, %v5941
      %v5953 = vmul.f32 %v2340, %v5941
      %v5954 = vmul.f32 %v2341, %v5941
      %v5955 = vmul.f32 %v2342, %v5941
      %v5956 = vmul.f32 %v2343, %v5941
      %v5957 = vmul.f32 %v2344, %v5941
      %v5958 = vadd.f32 %v5921, %v5942
      %v5959 = vadd.f32 %v5922, %v5943
      %v5960 = vadd.f32 %v5923, %v5944
      %v5961 = vadd.f32 %v5924, %v5945
      %v5962 = vadd.f32 %v5925, %v5946
      %v5963 = vadd.f32 %v5926, %v5947
      %v5964 = vadd.f32 %v5927, %v5948
      %v5965 = vadd.f32 %v5928, %v5949
      %v5966 = vadd.f32 %v5929, %v5950
      %v5967 = vadd.f32 %v5930, %v5951
      %v5968 = vadd.f32 %v5931, %v5952
      %v5969 = vadd.f32 %v5932, %v5953
      %v5970 = vadd.f32 %v5933, %v5954
      %v5971 = vadd.f32 %v5934, %v5955
      %v5972 = vadd.f32 %v5935, %v5956
      %v5973 = vadd.f32 %v5936, %v5957
      %v5974 = vld [vmem:[%s2381 + $0x6] sm:$0x1]
      %v5975 = vlaneseq
      %v5976 = vshrl.u32 %v5975, 7
      %v5977 = vsub.s32 0, %v5976
      %v5978 = vrot.slane %v5974, %v5977
      %v5979 = vmul.f32 %v2384, %v5978
      %v5980 = vmul.f32 %v2385, %v5978
      %v5981 = vmul.f32 %v2386, %v5978
      %v5982 = vmul.f32 %v2387, %v5978
      %v5983 = vmul.f32 %v2388, %v5978
      %v5984 = vmul.f32 %v2389, %v5978
      %v5985 = vmul.f32 %v2390, %v5978
      %v5986 = vmul.f32 %v2391, %v5978
      %v5987 = vmul.f32 %v2392, %v5978
      %v5988 = vmul.f32 %v2393, %v5978
      %v5989 = vmul.f32 %v2394, %v5978
      %v5990 = vmul.f32 %v2395, %v5978
      %v5991 = vmul.f32 %v2396, %v5978
      %v5992 = vmul.f32 %v2397, %v5978
      %v5993 = vmul.f32 %v2398, %v5978
      %v5994 = vmul.f32 %v2399, %v5978
      %v5995 = vadd.f32 %v5958, %v5979
      %v5996 = vadd.f32 %v5959, %v5980
      %v5997 = vadd.f32 %v5960, %v5981
      %v5998 = vadd.f32 %v5961, %v5982
      %v5999 = vadd.f32 %v5962, %v5983
      %v6000 = vadd.f32 %v5963, %v5984
      %v6001 = vadd.f32 %v5964, %v5985
      %v6002 = vadd.f32 %v5965, %v5986
      %v6003 = vadd.f32 %v5966, %v5987
      %v6004 = vadd.f32 %v5967, %v5988
      %v6005 = vadd.f32 %v5968, %v5989
      %v6006 = vadd.f32 %v5969, %v5990
      %v6007 = vadd.f32 %v5970, %v5991
      %v6008 = vadd.f32 %v5971, %v5992
      %v6009 = vadd.f32 %v5972, %v5993
      %v6010 = vadd.f32 %v5973, %v5994
      %v6011 = vld [vmem:[%s2436 + $0x6] sm:$0x1]
      %v6012 = vlaneseq
      %v6013 = vshrl.u32 %v6012, 7
      %v6014 = vsub.s32 0, %v6013
      %v6015 = vrot.slane %v6011, %v6014
      %v6016 = vmul.f32 %v2439, %v6015
      %v6017 = vmul.f32 %v2440, %v6015
      %v6018 = vmul.f32 %v2441, %v6015
      %v6019 = vmul.f32 %v2442, %v6015
      %v6020 = vmul.f32 %v2443, %v6015
      %v6021 = vmul.f32 %v2444, %v6015
      %v6022 = vmul.f32 %v2445, %v6015
      %v6023 = vmul.f32 %v2446, %v6015
      %v6024 = vmul.f32 %v2447, %v6015
      %v6025 = vmul.f32 %v2448, %v6015
      %v6026 = vmul.f32 %v2449, %v6015
      %v6027 = vmul.f32 %v2450, %v6015
      %v6028 = vmul.f32 %v2451, %v6015
      %v6029 = vmul.f32 %v2452, %v6015
      %v6030 = vmul.f32 %v2453, %v6015
      %v6031 = vmul.f32 %v2454, %v6015
      %v6032 = vadd.f32 %v5995, %v6016
      %v6033 = vadd.f32 %v5996, %v6017
      %v6034 = vadd.f32 %v5997, %v6018
      %v6035 = vadd.f32 %v5998, %v6019
      %v6036 = vadd.f32 %v5999, %v6020
      %v6037 = vadd.f32 %v6000, %v6021
      %v6038 = vadd.f32 %v6001, %v6022
      %v6039 = vadd.f32 %v6002, %v6023
      %v6040 = vadd.f32 %v6003, %v6024
      %v6041 = vadd.f32 %v6004, %v6025
      %v6042 = vadd.f32 %v6005, %v6026
      %v6043 = vadd.f32 %v6006, %v6027
      %v6044 = vadd.f32 %v6007, %v6028
      %v6045 = vadd.f32 %v6008, %v6029
      %v6046 = vadd.f32 %v6009, %v6030
      %v6047 = vadd.f32 %v6010, %v6031
      %v6048 = vld [vmem:[%s2491 + $0x6] sm:$0x1]
      %v6049 = vlaneseq
      %v6050 = vshrl.u32 %v6049, 7
      %v6051 = vsub.s32 0, %v6050
      %v6052 = vrot.slane %v6048, %v6051
      %v6053 = vmul.f32 %v2493, %v6052
      %v6054 = vmul.f32 %v2494, %v6052
      %v6055 = vmul.f32 %v2495, %v6052
      %v6056 = vmul.f32 %v2496, %v6052
      %v6057 = vmul.f32 %v2497, %v6052
      %v6058 = vmul.f32 %v2498, %v6052
      %v6059 = vmul.f32 %v2499, %v6052
      %v6060 = vmul.f32 %v2500, %v6052
      %v6061 = vmul.f32 %v2501, %v6052
      %v6062 = vmul.f32 %v2502, %v6052
      %v6063 = vmul.f32 %v2503, %v6052
      %v6064 = vmul.f32 %v2504, %v6052
      %v6065 = vmul.f32 %v2505, %v6052
      %v6066 = vmul.f32 %v2506, %v6052
      %v6067 = vmul.f32 %v2507, %v6052
      %v6068 = vmul.f32 %v2508, %v6052
      %v6069 = vadd.f32 %v6032, %v6053
      %v6070 = vadd.f32 %v6033, %v6054
      %v6071 = vadd.f32 %v6034, %v6055
      %v6072 = vadd.f32 %v6035, %v6056
      %v6073 = vadd.f32 %v6036, %v6057
      %v6074 = vadd.f32 %v6037, %v6058
      %v6075 = vadd.f32 %v6038, %v6059
      %v6076 = vadd.f32 %v6039, %v6060
      %v6077 = vadd.f32 %v6040, %v6061
      %v6078 = vadd.f32 %v6041, %v6062
      %v6079 = vadd.f32 %v6042, %v6063
      %v6080 = vadd.f32 %v6043, %v6064
      %v6081 = vadd.f32 %v6044, %v6065
      %v6082 = vadd.f32 %v6045, %v6066
      %v6083 = vadd.f32 %v6046, %v6067
      %v6084 = vadd.f32 %v6047, %v6068
      %v6085 = vld [vmem:[%s2545 + $0x6] sm:$0x1]
      %v6086 = vlaneseq
      %v6087 = vshrl.u32 %v6086, 7
      %v6088 = vsub.s32 0, %v6087
      %v6089 = vrot.slane %v6085, %v6088
      %v6090 = vmul.f32 %v2548, %v6089
      %v6091 = vmul.f32 %v2549, %v6089
      %v6092 = vmul.f32 %v2550, %v6089
      %v6093 = vmul.f32 %v2551, %v6089
      %v6094 = vmul.f32 %v2552, %v6089
      %v6095 = vmul.f32 %v2553, %v6089
      %v6096 = vmul.f32 %v2554, %v6089
      %v6097 = vmul.f32 %v2555, %v6089
      %v6098 = vmul.f32 %v2556, %v6089
      %v6099 = vmul.f32 %v2557, %v6089
      %v6100 = vmul.f32 %v2558, %v6089
      %v6101 = vmul.f32 %v2559, %v6089
      %v6102 = vmul.f32 %v2560, %v6089
      %v6103 = vmul.f32 %v2561, %v6089
      %v6104 = vmul.f32 %v2562, %v6089
      %v6105 = vmul.f32 %v2563, %v6089
      %v6106 = vadd.f32 %v6069, %v6090
      %v6107 = vadd.f32 %v6070, %v6091
      %v6108 = vadd.f32 %v6071, %v6092
      %v6109 = vadd.f32 %v6072, %v6093
      %v6110 = vadd.f32 %v6073, %v6094
      %v6111 = vadd.f32 %v6074, %v6095
      %v6112 = vadd.f32 %v6075, %v6096
      %v6113 = vadd.f32 %v6076, %v6097
      %v6114 = vadd.f32 %v6077, %v6098
      %v6115 = vadd.f32 %v6078, %v6099
      %v6116 = vadd.f32 %v6079, %v6100
      %v6117 = vadd.f32 %v6080, %v6101
      %v6118 = vadd.f32 %v6081, %v6102
      %v6119 = vadd.f32 %v6082, %v6103
      %v6120 = vadd.f32 %v6083, %v6104
      %v6121 = vadd.f32 %v6084, %v6105
      %v6122 = vld [vmem:[%s2600 + $0x6] sm:$0x1]
      %v6123 = vlaneseq
      %v6124 = vshrl.u32 %v6123, 7
      %v6125 = vsub.s32 0, %v6124
      %v6126 = vrot.slane %v6122, %v6125
      %v6127 = vmul.f32 %v2603, %v6126
      %v6128 = vmul.f32 %v2604, %v6126
      %v6129 = vmul.f32 %v2605, %v6126
      %v6130 = vmul.f32 %v2606, %v6126
      %v6131 = vmul.f32 %v2607, %v6126
      %v6132 = vmul.f32 %v2608, %v6126
      %v6133 = vmul.f32 %v2609, %v6126
      %v6134 = vmul.f32 %v2610, %v6126
      %v6135 = vmul.f32 %v2611, %v6126
      %v6136 = vmul.f32 %v2612, %v6126
      %v6137 = vmul.f32 %v2613, %v6126
      %v6138 = vmul.f32 %v2614, %v6126
      %v6139 = vmul.f32 %v2615, %v6126
      %v6140 = vmul.f32 %v2616, %v6126
      %v6141 = vmul.f32 %v2617, %v6126
      %v6142 = vmul.f32 %v2618, %v6126
      %v6143 = vadd.f32 %v6106, %v6127
      %v6144 = vadd.f32 %v6107, %v6128
      %v6145 = vadd.f32 %v6108, %v6129
      %v6146 = vadd.f32 %v6109, %v6130
      %v6147 = vadd.f32 %v6110, %v6131
      %v6148 = vadd.f32 %v6111, %v6132
      %v6149 = vadd.f32 %v6112, %v6133
      %v6150 = vadd.f32 %v6113, %v6134
      %v6151 = vadd.f32 %v6114, %v6135
      %v6152 = vadd.f32 %v6115, %v6136
      %v6153 = vadd.f32 %v6116, %v6137
      %v6154 = vadd.f32 %v6117, %v6138
      %v6155 = vadd.f32 %v6118, %v6139
      %v6156 = vadd.f32 %v6119, %v6140
      %v6157 = vadd.f32 %v6120, %v6141
      %v6158 = vadd.f32 %v6121, %v6142
      %v6159 = vld [vmem:[%s2655 + $0x6] sm:$0x1]
      %v6160 = vlaneseq
      %v6161 = vshrl.u32 %v6160, 7
      %v6162 = vsub.s32 0, %v6161
      %v6163 = vrot.slane %v6159, %v6162
      %v6164 = vmul.f32 %v2657, %v6163
      %v6165 = vmul.f32 %v2658, %v6163
      %v6166 = vmul.f32 %v2659, %v6163
      %v6167 = vmul.f32 %v2660, %v6163
      %v6168 = vmul.f32 %v2661, %v6163
      %v6169 = vmul.f32 %v2662, %v6163
      %v6170 = vmul.f32 %v2663, %v6163
      %v6171 = vmul.f32 %v2664, %v6163
      %v6172 = vmul.f32 %v2665, %v6163
      %v6173 = vmul.f32 %v2666, %v6163
      %v6174 = vmul.f32 %v2667, %v6163
      %v6175 = vmul.f32 %v2668, %v6163
      %v6176 = vmul.f32 %v2669, %v6163
      %v6177 = vmul.f32 %v2670, %v6163
      %v6178 = vmul.f32 %v2671, %v6163
      %v6179 = vmul.f32 %v2672, %v6163
      %v6180 = vadd.f32 %v6143, %v6164
      %v6181 = vadd.f32 %v6144, %v6165
      %v6182 = vadd.f32 %v6145, %v6166
      %v6183 = vadd.f32 %v6146, %v6167
      %v6184 = vadd.f32 %v6147, %v6168
      %v6185 = vadd.f32 %v6148, %v6169
      %v6186 = vadd.f32 %v6149, %v6170
      %v6187 = vadd.f32 %v6150, %v6171
      %v6188 = vadd.f32 %v6151, %v6172
      %v6189 = vadd.f32 %v6152, %v6173
      %v6190 = vadd.f32 %v6153, %v6174
      %v6191 = vadd.f32 %v6154, %v6175
      %v6192 = vadd.f32 %v6155, %v6176
      %v6193 = vadd.f32 %v6156, %v6177
      %v6194 = vadd.f32 %v6157, %v6178
      %v6195 = vadd.f32 %v6158, %v6179
      %v6196 = vld [vmem:[%s2709 + $0x6] sm:$0x1]
      %v6197 = vlaneseq
      %v6198 = vshrl.u32 %v6197, 7
      %v6199 = vsub.s32 0, %v6198
      %v6200 = vrot.slane %v6196, %v6199
      %v6201 = vmul.f32 %v2712, %v6200
      %v6202 = vmul.f32 %v2713, %v6200
      %v6203 = vmul.f32 %v2714, %v6200
      %v6204 = vmul.f32 %v2715, %v6200
      %v6205 = vmul.f32 %v2716, %v6200
      %v6206 = vmul.f32 %v2717, %v6200
      %v6207 = vmul.f32 %v2718, %v6200
      %v6208 = vmul.f32 %v2719, %v6200
      %v6209 = vmul.f32 %v2720, %v6200
      %v6210 = vmul.f32 %v2721, %v6200
      %v6211 = vmul.f32 %v2722, %v6200
      %v6212 = vmul.f32 %v2723, %v6200
      %v6213 = vmul.f32 %v2724, %v6200
      %v6214 = vmul.f32 %v2725, %v6200
      %v6215 = vmul.f32 %v2726, %v6200
      %v6216 = vmul.f32 %v2727, %v6200
      %v6217 = vadd.f32 %v6180, %v6201
      %v6218 = vadd.f32 %v6181, %v6202
      %v6219 = vadd.f32 %v6182, %v6203
      %v6220 = vadd.f32 %v6183, %v6204
      %v6221 = vadd.f32 %v6184, %v6205
      %v6222 = vadd.f32 %v6185, %v6206
      %v6223 = vadd.f32 %v6186, %v6207
      %v6224 = vadd.f32 %v6187, %v6208
      %v6225 = vadd.f32 %v6188, %v6209
      %v6226 = vadd.f32 %v6189, %v6210
      %v6227 = vadd.f32 %v6190, %v6211
      %v6228 = vadd.f32 %v6191, %v6212
      %v6229 = vadd.f32 %v6192, %v6213
      %v6230 = vadd.f32 %v6193, %v6214
      %v6231 = vadd.f32 %v6194, %v6215
      %v6232 = vadd.f32 %v6195, %v6216
      %v6233 = vld [vmem:[%s2764 + $0x6] sm:$0x1]
      %v6234 = vlaneseq
      %v6235 = vshrl.u32 %v6234, 7
      %v6236 = vsub.s32 0, %v6235
      %v6237 = vrot.slane %v6233, %v6236
      %v6238 = vmul.f32 %v2767, %v6237
      %v6239 = vmul.f32 %v2768, %v6237
      %v6240 = vmul.f32 %v2769, %v6237
      %v6241 = vmul.f32 %v2770, %v6237
      %v6242 = vmul.f32 %v2771, %v6237
      %v6243 = vmul.f32 %v2772, %v6237
      %v6244 = vmul.f32 %v2773, %v6237
      %v6245 = vmul.f32 %v2774, %v6237
      %v6246 = vmul.f32 %v2775, %v6237
      %v6247 = vmul.f32 %v2776, %v6237
      %v6248 = vmul.f32 %v2777, %v6237
      %v6249 = vmul.f32 %v2778, %v6237
      %v6250 = vmul.f32 %v2779, %v6237
      %v6251 = vmul.f32 %v2780, %v6237
      %v6252 = vmul.f32 %v2781, %v6237
      %v6253 = vmul.f32 %v2782, %v6237
      %v6254 = vadd.f32 %v6217, %v6238
      %v6255 = vadd.f32 %v6218, %v6239
      %v6256 = vadd.f32 %v6219, %v6240
      %v6257 = vadd.f32 %v6220, %v6241
      %v6258 = vadd.f32 %v6221, %v6242
      %v6259 = vadd.f32 %v6222, %v6243
      %v6260 = vadd.f32 %v6223, %v6244
      %v6261 = vadd.f32 %v6224, %v6245
      %v6262 = vadd.f32 %v6225, %v6246
      %v6263 = vadd.f32 %v6226, %v6247
      %v6264 = vadd.f32 %v6227, %v6248
      %v6265 = vadd.f32 %v6228, %v6249
      %v6266 = vadd.f32 %v6229, %v6250
      %v6267 = vadd.f32 %v6230, %v6251
      %v6268 = vadd.f32 %v6231, %v6252
      %v6269 = vadd.f32 %v6232, %v6253
      %v6270 = vld [vmem:[%s2819 + $0x6] sm:$0x1]
      %v6271 = vlaneseq
      %v6272 = vshrl.u32 %v6271, 7
      %v6273 = vsub.s32 0, %v6272
      %v6274 = vrot.slane %v6270, %v6273
      %v6275 = vmul.f32 %v2822, %v6274
      %v6276 = vmul.f32 %v2823, %v6274
      %v6277 = vmul.f32 %v2824, %v6274
      %v6278 = vmul.f32 %v2825, %v6274
      %v6279 = vmul.f32 %v2826, %v6274
      %v6280 = vmul.f32 %v2827, %v6274
      %v6281 = vmul.f32 %v2828, %v6274
      %v6282 = vmul.f32 %v2829, %v6274
      %v6283 = vmul.f32 %v2830, %v6274
      %v6284 = vmul.f32 %v2831, %v6274
      %v6285 = vmul.f32 %v2832, %v6274
      %v6286 = vmul.f32 %v2833, %v6274
      %v6287 = vmul.f32 %v2834, %v6274
      %v6288 = vmul.f32 %v2835, %v6274
      %v6289 = vmul.f32 %v2836, %v6274
      %v6290 = vmul.f32 %v2837, %v6274
      %v6291 = vadd.f32 %v6254, %v6275
      %v6292 = vadd.f32 %v6255, %v6276
      %v6293 = vadd.f32 %v6256, %v6277
      %v6294 = vadd.f32 %v6257, %v6278
      %v6295 = vadd.f32 %v6258, %v6279
      %v6296 = vadd.f32 %v6259, %v6280
      %v6297 = vadd.f32 %v6260, %v6281
      %v6298 = vadd.f32 %v6261, %v6282
      %v6299 = vadd.f32 %v6262, %v6283
      %v6300 = vadd.f32 %v6263, %v6284
      %v6301 = vadd.f32 %v6264, %v6285
      %v6302 = vadd.f32 %v6265, %v6286
      %v6303 = vadd.f32 %v6266, %v6287
      %v6304 = vadd.f32 %v6267, %v6288
      %v6305 = vadd.f32 %v6268, %v6289
      %v6306 = vadd.f32 %v6269, %v6290
      %vm6323 = vcmask 1044480
      %v6324 = vrot.slane %v6291, 3
      %v6325 = vrot.slane %v6292, 3
      %v6326 = vsel %vm6323, %v6324, %v6325
      %v6327 = vrot.slane %v6293, 3
      %v6328 = vrot.slane %v6294, 3
      %v6329 = vsel %vm6323, %v6327, %v6328
      %v6330 = vrot.slane %v6295, 3
      %v6331 = vrot.slane %v6296, 3
      %v6332 = vsel %vm6323, %v6330, %v6331
      %v6333 = vrot.slane %v6297, 3
      %v6334 = vrot.slane %v6298, 3
      %v6335 = vsel %vm6323, %v6333, %v6334
      %v6336 = vrot.slane %v6299, 3
      %v6337 = vrot.slane %v6300, 3
      %v6338 = vsel %vm6323, %v6336, %v6337
      %v6339 = vrot.slane %v6301, 3
      %v6340 = vrot.slane %v6302, 3
      %v6341 = vsel %vm6323, %v6339, %v6340
      %v6342 = vrot.slane %v6303, 3
      %v6343 = vrot.slane %v6304, 3
      %v6344 = vsel %vm6323, %v6342, %v6343
      %v6345 = vrot.slane %v6305, 3
      %v6346 = vrot.slane %v6306, 3
      %v6347 = vsel %vm6323, %v6345, %v6346
      %v6364 = vsel %vm6323, %v6325, 0.0
      %v6365 = vsel %vm6323, %v6328, 0.0
      %v6366 = vsel %vm6323, %v6331, 0.0
      %v6367 = vsel %vm6323, %v6334, 0.0
      %v6368 = vsel %vm6323, %v6337, 0.0
      %v6369 = vsel %vm6323, %v6340, 0.0
      %v6370 = vsel %vm6323, %v6343, 0.0
      %v6371 = vsel %vm6323, %v6346, 0.0
      %v6372 = vadd.f32 %v5789, %v6326
      %v6373 = vadd.f32 %v5790, %v6364
      %v6374 = vadd.f32 %v5791, %v6329
      %v6375 = vadd.f32 %v5792, %v6365
      %v6376 = vadd.f32 %v5793, %v6332
      %v6377 = vadd.f32 %v5794, %v6366
      %v6378 = vadd.f32 %v5795, %v6335
      %v6379 = vadd.f32 %v5796, %v6367
      %v6380 = vadd.f32 %v5797, %v6338
      %v6381 = vadd.f32 %v5798, %v6368
      %v6382 = vadd.f32 %v5799, %v6341
      %v6383 = vadd.f32 %v5800, %v6369
      %v6384 = vadd.f32 %v5801, %v6344
      %v6385 = vadd.f32 %v5802, %v6370
      %v6386 = vadd.f32 %v5803, %v6347
      %v6387 = vadd.f32 %v5804, %v6371
      %6404 = vrot.lane.b32.xlu0 %v6372, 112
      %v6405 = vpop.permute.xlu0 %6404
      %6406 = vrot.lane.b32.xlu0 %v6373, 112
      %v6407 = vpop.permute.xlu0 %6406
      %6408 = vrot.lane.b32.xlu0 %v6374, 112
      %v6409 = vpop.permute.xlu0 %6408
      %6410 = vrot.lane.b32.xlu0 %v6375, 112
      %v6411 = vpop.permute.xlu0 %6410
      %6412 = vrot.lane.b32.xlu0 %v6376, 112
      %v6413 = vpop.permute.xlu0 %6412
      %6414 = vrot.lane.b32.xlu0 %v6377, 112
      %v6415 = vpop.permute.xlu0 %6414
      %6416 = vrot.lane.b32.xlu0 %v6378, 112
      %v6417 = vpop.permute.xlu0 %6416
      %6418 = vrot.lane.b32.xlu0 %v6379, 112
      %v6419 = vpop.permute.xlu0 %6418
      %6420 = vrot.lane.b32.xlu0 %v6380, 112
      %v6421 = vpop.permute.xlu0 %6420
      %6422 = vrot.lane.b32.xlu0 %v6381, 112
      %v6423 = vpop.permute.xlu0 %6422
      %6424 = vrot.lane.b32.xlu0 %v6382, 112
      %v6425 = vpop.permute.xlu0 %6424
      %6426 = vrot.lane.b32.xlu0 %v6383, 112
      %v6427 = vpop.permute.xlu0 %6426
      %6428 = vrot.lane.b32.xlu0 %v6384, 112
      %v6429 = vpop.permute.xlu0 %6428
      %6430 = vrot.lane.b32.xlu0 %v6385, 112
      %v6431 = vpop.permute.xlu0 %6430
      %6432 = vrot.lane.b32.xlu0 %v6386, 112
      %v6433 = vpop.permute.xlu0 %6432
      %6434 = vrot.lane.b32.xlu0 %v6387, 112
      %v6435 = vpop.permute.xlu0 %6434
      %v6452 = vadd.f32 %v6372, %v6405
      %v6453 = vadd.f32 %v6373, %v6407
      %v6454 = vadd.f32 %v6374, %v6409
      %v6455 = vadd.f32 %v6375, %v6411
      %v6456 = vadd.f32 %v6376, %v6413
      %v6457 = vadd.f32 %v6377, %v6415
      %v6458 = vadd.f32 %v6378, %v6417
      %v6459 = vadd.f32 %v6379, %v6419
      %v6460 = vadd.f32 %v6380, %v6421
      %v6461 = vadd.f32 %v6381, %v6423
      %v6462 = vadd.f32 %v6382, %v6425
      %v6463 = vadd.f32 %v6383, %v6427
      %v6464 = vadd.f32 %v6384, %v6429
      %v6465 = vadd.f32 %v6385, %v6431
      %v6466 = vadd.f32 %v6386, %v6433
      %v6467 = vadd.f32 %v6387, %v6435
      %6468 = vrot.lane.b32.xlu0 %v6372, 96
      %v6469 = vpop.permute.xlu0 %6468
      %6470 = vrot.lane.b32.xlu0 %v6373, 96
      %v6471 = vpop.permute.xlu0 %6470
      %6472 = vrot.lane.b32.xlu0 %v6374, 96
      %v6473 = vpop.permute.xlu0 %6472
      %6474 = vrot.lane.b32.xlu0 %v6375, 96
      %v6475 = vpop.permute.xlu0 %6474
      %6476 = vrot.lane.b32.xlu0 %v6376, 96
      %v6477 = vpop.permute.xlu0 %6476
      %6478 = vrot.lane.b32.xlu0 %v6377, 96
      %v6479 = vpop.permute.xlu0 %6478
      %6480 = vrot.lane.b32.xlu0 %v6378, 96
      %v6481 = vpop.permute.xlu0 %6480
      %6482 = vrot.lane.b32.xlu0 %v6379, 96
      %v6483 = vpop.permute.xlu0 %6482
      %6484 = vrot.lane.b32.xlu0 %v6380, 96
      %v6485 = vpop.permute.xlu0 %6484
      %6486 = vrot.lane.b32.xlu0 %v6381, 96
      %v6487 = vpop.permute.xlu0 %6486
      %6488 = vrot.lane.b32.xlu0 %v6382, 96
      %v6489 = vpop.permute.xlu0 %6488
      %6490 = vrot.lane.b32.xlu0 %v6383, 96
      %v6491 = vpop.permute.xlu0 %6490
      %6492 = vrot.lane.b32.xlu0 %v6384, 96
      %v6493 = vpop.permute.xlu0 %6492
      %6494 = vrot.lane.b32.xlu0 %v6385, 96
      %v6495 = vpop.permute.xlu0 %6494
      %6496 = vrot.lane.b32.xlu0 %v6386, 96
      %v6497 = vpop.permute.xlu0 %6496
      %6498 = vrot.lane.b32.xlu0 %v6387, 96
      %v6499 = vpop.permute.xlu0 %6498
      %v6516 = vadd.f32 %v6452, %v6469
      %v6517 = vadd.f32 %v6453, %v6471
      %v6518 = vadd.f32 %v6454, %v6473
      %v6519 = vadd.f32 %v6455, %v6475
      %v6520 = vadd.f32 %v6456, %v6477
      %v6521 = vadd.f32 %v6457, %v6479
      %v6522 = vadd.f32 %v6458, %v6481
      %v6523 = vadd.f32 %v6459, %v6483
      %v6524 = vadd.f32 %v6460, %v6485
      %v6525 = vadd.f32 %v6461, %v6487
      %v6526 = vadd.f32 %v6462, %v6489
      %v6527 = vadd.f32 %v6463, %v6491
      %v6528 = vadd.f32 %v6464, %v6493
      %v6529 = vadd.f32 %v6465, %v6495
      %v6530 = vadd.f32 %v6466, %v6497
      %v6531 = vadd.f32 %v6467, %v6499
      %6532 = vrot.lane.b32.xlu0 %v6372, 80
      %v6533 = vpop.permute.xlu0 %6532
      %6534 = vrot.lane.b32.xlu0 %v6373, 80
      %v6535 = vpop.permute.xlu0 %6534
      %6536 = vrot.lane.b32.xlu0 %v6374, 80
      %v6537 = vpop.permute.xlu0 %6536
      %6538 = vrot.lane.b32.xlu0 %v6375, 80
      %v6539 = vpop.permute.xlu0 %6538
      %6540 = vrot.lane.b32.xlu0 %v6376, 80
      %v6541 = vpop.permute.xlu0 %6540
      %6542 = vrot.lane.b32.xlu0 %v6377, 80
      %v6543 = vpop.permute.xlu0 %6542
      %6544 = vrot.lane.b32.xlu0 %v6378, 80
      %v6545 = vpop.permute.xlu0 %6544
      %6546 = vrot.lane.b32.xlu0 %v6379, 80
      %v6547 = vpop.permute.xlu0 %6546
      %6548 = vrot.lane.b32.xlu0 %v6380, 80
      %v6549 = vpop.permute.xlu0 %6548
      %6550 = vrot.lane.b32.xlu0 %v6381, 80
      %v6551 = vpop.permute.xlu0 %6550
      %6552 = vrot.lane.b32.xlu0 %v6382, 80
      %v6553 = vpop.permute.xlu0 %6552
      %6554 = vrot.lane.b32.xlu0 %v6383, 80
      %v6555 = vpop.permute.xlu0 %6554
      %6556 = vrot.lane.b32.xlu0 %v6384, 80
      %v6557 = vpop.permute.xlu0 %6556
      %6558 = vrot.lane.b32.xlu0 %v6385, 80
      %v6559 = vpop.permute.xlu0 %6558
      %6560 = vrot.lane.b32.xlu0 %v6386, 80
      %v6561 = vpop.permute.xlu0 %6560
      %6562 = vrot.lane.b32.xlu0 %v6387, 80
      %v6563 = vpop.permute.xlu0 %6562
      %v6580 = vadd.f32 %v6516, %v6533
      %v6581 = vadd.f32 %v6517, %v6535
      %v6582 = vadd.f32 %v6518, %v6537
      %v6583 = vadd.f32 %v6519, %v6539
      %v6584 = vadd.f32 %v6520, %v6541
      %v6585 = vadd.f32 %v6521, %v6543
      %v6586 = vadd.f32 %v6522, %v6545
      %v6587 = vadd.f32 %v6523, %v6547
      %v6588 = vadd.f32 %v6524, %v6549
      %v6589 = vadd.f32 %v6525, %v6551
      %v6590 = vadd.f32 %v6526, %v6553
      %v6591 = vadd.f32 %v6527, %v6555
      %v6592 = vadd.f32 %v6528, %v6557
      %v6593 = vadd.f32 %v6529, %v6559
      %v6594 = vadd.f32 %v6530, %v6561
      %v6595 = vadd.f32 %v6531, %v6563
      %6596 = vrot.lane.b32.xlu0 %v6372, 64
      %v6597 = vpop.permute.xlu0 %6596
      %6598 = vrot.lane.b32.xlu0 %v6373, 64
      %v6599 = vpop.permute.xlu0 %6598
      %6600 = vrot.lane.b32.xlu0 %v6374, 64
      %v6601 = vpop.permute.xlu0 %6600
      %6602 = vrot.lane.b32.xlu0 %v6375, 64
      %v6603 = vpop.permute.xlu0 %6602
      %6604 = vrot.lane.b32.xlu0 %v6376, 64
      %v6605 = vpop.permute.xlu0 %6604
      %6606 = vrot.lane.b32.xlu0 %v6377, 64
      %v6607 = vpop.permute.xlu0 %6606
      %6608 = vrot.lane.b32.xlu0 %v6378, 64
      %v6609 = vpop.permute.xlu0 %6608
      %6610 = vrot.lane.b32.xlu0 %v6379, 64
      %v6611 = vpop.permute.xlu0 %6610
      %6612 = vrot.lane.b32.xlu0 %v6380, 64
      %v6613 = vpop.permute.xlu0 %6612
      %6614 = vrot.lane.b32.xlu0 %v6381, 64
      %v6615 = vpop.permute.xlu0 %6614
      %6616 = vrot.lane.b32.xlu0 %v6382, 64
      %v6617 = vpop.permute.xlu0 %6616
      %6618 = vrot.lane.b32.xlu0 %v6383, 64
      %v6619 = vpop.permute.xlu0 %6618
      %6620 = vrot.lane.b32.xlu0 %v6384, 64
      %v6621 = vpop.permute.xlu0 %6620
      %6622 = vrot.lane.b32.xlu0 %v6385, 64
      %v6623 = vpop.permute.xlu0 %6622
      %6624 = vrot.lane.b32.xlu0 %v6386, 64
      %v6625 = vpop.permute.xlu0 %6624
      %6626 = vrot.lane.b32.xlu0 %v6387, 64
      %v6627 = vpop.permute.xlu0 %6626
      %v6644 = vadd.f32 %v6580, %v6597
      %v6645 = vadd.f32 %v6581, %v6599
      %v6646 = vadd.f32 %v6582, %v6601
      %v6647 = vadd.f32 %v6583, %v6603
      %v6648 = vadd.f32 %v6584, %v6605
      %v6649 = vadd.f32 %v6585, %v6607
      %v6650 = vadd.f32 %v6586, %v6609
      %v6651 = vadd.f32 %v6587, %v6611
      %v6652 = vadd.f32 %v6588, %v6613
      %v6653 = vadd.f32 %v6589, %v6615
      %v6654 = vadd.f32 %v6590, %v6617
      %v6655 = vadd.f32 %v6591, %v6619
      %v6656 = vadd.f32 %v6592, %v6621
      %v6657 = vadd.f32 %v6593, %v6623
      %v6658 = vadd.f32 %v6594, %v6625
      %v6659 = vadd.f32 %v6595, %v6627
      %6660 = vrot.lane.b32.xlu0 %v6372, 48
      %v6661 = vpop.permute.xlu0 %6660
      %6662 = vrot.lane.b32.xlu0 %v6373, 48
      %v6663 = vpop.permute.xlu0 %6662
      %6664 = vrot.lane.b32.xlu0 %v6374, 48
      %v6665 = vpop.permute.xlu0 %6664
      %6666 = vrot.lane.b32.xlu0 %v6375, 48
      %v6667 = vpop.permute.xlu0 %6666
      %6668 = vrot.lane.b32.xlu0 %v6376, 48
      %v6669 = vpop.permute.xlu0 %6668
      %6670 = vrot.lane.b32.xlu0 %v6377, 48
      %v6671 = vpop.permute.xlu0 %6670
      %6672 = vrot.lane.b32.xlu0 %v6378, 48
      %v6673 = vpop.permute.xlu0 %6672
      %6674 = vrot.lane.b32.xlu0 %v6379, 48
      %v6675 = vpop.permute.xlu0 %6674
      %6676 = vrot.lane.b32.xlu0 %v6380, 48
      %v6677 = vpop.permute.xlu0 %6676
      %6678 = vrot.lane.b32.xlu0 %v6381, 48
      %v6679 = vpop.permute.xlu0 %6678
      %6680 = vrot.lane.b32.xlu0 %v6382, 48
      %v6681 = vpop.permute.xlu0 %6680
      %6682 = vrot.lane.b32.xlu0 %v6383, 48
      %v6683 = vpop.permute.xlu0 %6682
      %6684 = vrot.lane.b32.xlu0 %v6384, 48
      %v6685 = vpop.permute.xlu0 %6684
      %6686 = vrot.lane.b32.xlu0 %v6385, 48
      %v6687 = vpop.permute.xlu0 %6686
      %6688 = vrot.lane.b32.xlu0 %v6386, 48
      %v6689 = vpop.permute.xlu0 %6688
      %6690 = vrot.lane.b32.xlu0 %v6387, 48
      %v6691 = vpop.permute.xlu0 %6690
      %v6708 = vadd.f32 %v6644, %v6661
      %v6709 = vadd.f32 %v6645, %v6663
      %v6710 = vadd.f32 %v6646, %v6665
      %v6711 = vadd.f32 %v6647, %v6667
      %v6712 = vadd.f32 %v6648, %v6669
      %v6713 = vadd.f32 %v6649, %v6671
      %v6714 = vadd.f32 %v6650, %v6673
      %v6715 = vadd.f32 %v6651, %v6675
      %v6716 = vadd.f32 %v6652, %v6677
      %v6717 = vadd.f32 %v6653, %v6679
      %v6718 = vadd.f32 %v6654, %v6681
      %v6719 = vadd.f32 %v6655, %v6683
      %v6720 = vadd.f32 %v6656, %v6685
      %v6721 = vadd.f32 %v6657, %v6687
      %v6722 = vadd.f32 %v6658, %v6689
      %v6723 = vadd.f32 %v6659, %v6691
      %6724 = vrot.lane.b32.xlu0 %v6372, 32
      %v6725 = vpop.permute.xlu0 %6724
      %6726 = vrot.lane.b32.xlu0 %v6373, 32
      %v6727 = vpop.permute.xlu0 %6726
      %6728 = vrot.lane.b32.xlu0 %v6374, 32
      %v6729 = vpop.permute.xlu0 %6728
      %6730 = vrot.lane.b32.xlu0 %v6375, 32
      %v6731 = vpop.permute.xlu0 %6730
      %6732 = vrot.lane.b32.xlu0 %v6376, 32
      %v6733 = vpop.permute.xlu0 %6732
      %6734 = vrot.lane.b32.xlu0 %v6377, 32
      %v6735 = vpop.permute.xlu0 %6734
      %6736 = vrot.lane.b32.xlu0 %v6378, 32
      %v6737 = vpop.permute.xlu0 %6736
      %6738 = vrot.lane.b32.xlu0 %v6379, 32
      %v6739 = vpop.permute.xlu0 %6738
      %6740 = vrot.lane.b32.xlu0 %v6380, 32
      %v6741 = vpop.permute.xlu0 %6740
      %6742 = vrot.lane.b32.xlu0 %v6381, 32
      %v6743 = vpop.permute.xlu0 %6742
      %6744 = vrot.lane.b32.xlu0 %v6382, 32
      %v6745 = vpop.permute.xlu0 %6744
      %6746 = vrot.lane.b32.xlu0 %v6383, 32
      %v6747 = vpop.permute.xlu0 %6746
      %6748 = vrot.lane.b32.xlu0 %v6384, 32
      %v6749 = vpop.permute.xlu0 %6748
      %6750 = vrot.lane.b32.xlu0 %v6385, 32
      %v6751 = vpop.permute.xlu0 %6750
      %6752 = vrot.lane.b32.xlu0 %v6386, 32
      %v6753 = vpop.permute.xlu0 %6752
      %6754 = vrot.lane.b32.xlu0 %v6387, 32
      %v6755 = vpop.permute.xlu0 %6754
      %v6772 = vadd.f32 %v6708, %v6725
      %v6773 = vadd.f32 %v6709, %v6727
      %v6774 = vadd.f32 %v6710, %v6729
      %v6775 = vadd.f32 %v6711, %v6731
      %v6776 = vadd.f32 %v6712, %v6733
      %v6777 = vadd.f32 %v6713, %v6735
      %v6778 = vadd.f32 %v6714, %v6737
      %v6779 = vadd.f32 %v6715, %v6739
      %v6780 = vadd.f32 %v6716, %v6741
      %v6781 = vadd.f32 %v6717, %v6743
      %v6782 = vadd.f32 %v6718, %v6745
      %v6783 = vadd.f32 %v6719, %v6747
      %v6784 = vadd.f32 %v6720, %v6749
      %v6785 = vadd.f32 %v6721, %v6751
      %v6786 = vadd.f32 %v6722, %v6753
      %v6787 = vadd.f32 %v6723, %v6755
      %v6788 = vxor.u32 %v6772, 2147483648
      %v6789 = vxor.u32 %v6773, 2147483648
      %v6790 = vxor.u32 %v6774, 2147483648
      %v6791 = vxor.u32 %v6775, 2147483648
      %v6792 = vxor.u32 %v6776, 2147483648
      %v6793 = vxor.u32 %v6777, 2147483648
      %v6794 = vxor.u32 %v6778, 2147483648
      %v6795 = vxor.u32 %v6779, 2147483648
      %v6796 = vxor.u32 %v6780, 2147483648
      %v6797 = vxor.u32 %v6781, 2147483648
      %v6798 = vxor.u32 %v6782, 2147483648
      %v6799 = vxor.u32 %v6783, 2147483648
      %v6800 = vxor.u32 %v6784, 2147483648
      %v6801 = vxor.u32 %v6785, 2147483648
      %v6802 = vxor.u32 %v6786, 2147483648
      %v6803 = vxor.u32 %v6787, 2147483648
      %v6804 = vmul.f32 %v6788, 1.442695
      %v6805 = vpow.pop %v6804
      %v6806 = vmul.f32 %v6789, 1.442695
      %v6807 = vpow.pop %v6806
      %v6808 = vmul.f32 %v6790, 1.442695
      %v6809 = vpow.pop %v6808
      %v6810 = vmul.f32 %v6791, 1.442695
      %v6811 = vpow.pop %v6810
      %v6812 = vmul.f32 %v6792, 1.442695
      %v6813 = vpow.pop %v6812
      %v6814 = vmul.f32 %v6793, 1.442695
      %v6815 = vpow.pop %v6814
      %v6816 = vmul.f32 %v6794, 1.442695
      %v6817 = vpow.pop %v6816
      %v6818 = vmul.f32 %v6795, 1.442695
      %v6819 = vpow.pop %v6818
      %v6820 = vmul.f32 %v6796, 1.442695
      %v6821 = vpow.pop %v6820
      %v6822 = vmul.f32 %v6797, 1.442695
      %v6823 = vpow.pop %v6822
      %v6824 = vmul.f32 %v6798, 1.442695
      %v6825 = vpow.pop %v6824
      %v6826 = vmul.f32 %v6799, 1.442695
      %v6827 = vpow.pop %v6826
      %v6828 = vmul.f32 %v6800, 1.442695
      %v6829 = vpow.pop %v6828
      %v6830 = vmul.f32 %v6801, 1.442695
      %v6831 = vpow.pop %v6830
      %v6832 = vmul.f32 %v6802, 1.442695
      %v6833 = vpow.pop %v6832
      %v6834 = vmul.f32 %v6803, 1.442695
      %v6835 = vpow.pop %v6834
      %v6836 = vadd.f32 %v6805, 1.0
      %v6837 = vadd.f32 %v6807, 1.0
      %v6838 = vadd.f32 %v6809, 1.0
      %v6839 = vadd.f32 %v6811, 1.0
      %v6840 = vadd.f32 %v6813, 1.0
      %v6841 = vadd.f32 %v6815, 1.0
      %v6842 = vadd.f32 %v6817, 1.0
      %v6843 = vadd.f32 %v6819, 1.0
      %v6844 = vadd.f32 %v6821, 1.0
      %v6845 = vadd.f32 %v6823, 1.0
      %v6846 = vadd.f32 %v6825, 1.0
      %v6847 = vadd.f32 %v6827, 1.0
      %v6848 = vadd.f32 %v6829, 1.0
      %v6849 = vadd.f32 %v6831, 1.0
      %v6850 = vadd.f32 %v6833, 1.0
      %v6851 = vadd.f32 %v6835, 1.0
      %v6852 = vrcp.pop %v6836
      %v6853 = vmul.f32 1.0, %v6852
      %v6854 = vrcp.pop %v6837
      %v6855 = vmul.f32 1.0, %v6854
      %v6856 = vrcp.pop %v6838
      %v6857 = vmul.f32 1.0, %v6856
      %v6858 = vrcp.pop %v6839
      %v6859 = vmul.f32 1.0, %v6858
      %v6860 = vrcp.pop %v6840
      %v6861 = vmul.f32 1.0, %v6860
      %v6862 = vrcp.pop %v6841
      %v6863 = vmul.f32 1.0, %v6862
      %v6864 = vrcp.pop %v6842
      %v6865 = vmul.f32 1.0, %v6864
      %v6866 = vrcp.pop %v6843
      %v6867 = vmul.f32 1.0, %v6866
      %v6868 = vrcp.pop %v6844
      %v6869 = vmul.f32 1.0, %v6868
      %v6870 = vrcp.pop %v6845
      %v6871 = vmul.f32 1.0, %v6870
      %v6872 = vrcp.pop %v6846
      %v6873 = vmul.f32 1.0, %v6872
      %v6874 = vrcp.pop %v6847
      %v6875 = vmul.f32 1.0, %v6874
      %v6876 = vrcp.pop %v6848
      %v6877 = vmul.f32 1.0, %v6876
      %v6878 = vrcp.pop %v6849
      %v6879 = vmul.f32 1.0, %v6878
      %v6880 = vrcp.pop %v6850
      %v6881 = vmul.f32 1.0, %v6880
      %v6882 = vrcp.pop %v6851
      %v6883 = vmul.f32 1.0, %v6882
      %6884 = vst.msk [vmem:[%s143] sm:$0xff] %vm1104, %v6853
      %6885 = vst.msk [vmem:[%s143 + $0x8] sm:$0xff] %vm1104, %v6855
      %6886 = vst.msk [vmem:[%s143 + $0x10] sm:$0xff] %vm1104, %v6857
      %6887 = vst.msk [vmem:[%s143 + $0x18] sm:$0xff] %vm1104, %v6859
      %6888 = vst.msk [vmem:[%s143 + $0x20] sm:$0xff] %vm1104, %v6861
      %6889 = vst.msk [vmem:[%s143 + $0x28] sm:$0xff] %vm1104, %v6863
      %6890 = vst.msk [vmem:[%s143 + $0x30] sm:$0xff] %vm1104, %v6865
      %6891 = vst.msk [vmem:[%s143 + $0x38] sm:$0xff] %vm1104, %v6867
      %6892 = vst.msk [vmem:[%s143 + $0x40] sm:$0xff] %vm1104, %v6869
      %6893 = vst.msk [vmem:[%s143 + $0x48] sm:$0xff] %vm1104, %v6871
      %6894 = vst.msk [vmem:[%s143 + $0x50] sm:$0xff] %vm1104, %v6873
      %6895 = vst.msk [vmem:[%s143 + $0x58] sm:$0xff] %vm1104, %v6875
      %6896 = vst.msk [vmem:[%s143 + $0x60] sm:$0xff] %vm1104, %v6877
      %6897 = vst.msk [vmem:[%s143 + $0x68] sm:$0xff] %vm1104, %v6879
      %6898 = vst.msk [vmem:[%s143 + $0x70] sm:$0xff] %vm1104, %v6881
      %6899 = vst.msk [vmem:[%s143 + $0x78] sm:$0xff] %vm1104, %v6883
      %p6900 = scmp.lt.s32.totalorder %s13, 1
      %s6901 = scalar_select %p6900, %s13, 1
      %s6902 = smul.addr %s6901, 16
      %s6903 = smul.addr %s6902, 8
      %s6904 = scalar_lea.vmem %s2, %s6903
      // Predicated region
      $region29: #{tpu_custom_call.1} parent=27 // pred_check
        %p6905 = pneg %p78
      $region30: #{tpu_custom_call.1} parent=27 // pred_check_branch
        %6907 = sbr.rel (%p6905) target = $region32
      $region31: #{tpu_custom_call.1} parent=27 // pred_region
        _
      $region32: #{tpu_custom_call.1} parent=27 // pred_fallthru
        _
    $region28: #{tpu_custom_call.1} parent=5 // pred_fallthru
      _
    %p6908 = scmp.le.s32.totalorder 2, %s8
    // Predicated region
    $region33: #{tpu_custom_call.1} parent=5 // pred_check
      %p6909 = pneg %p6908
    $region34: #{tpu_custom_call.1} parent=5 // pred_check_branch
      %6911 = sbr.rel (%p6909) target = $region36
    $region35: #{tpu_custom_call.1} parent=5 // pred_region
      %s6912 = ssub.s32 %s8, 2
      // Predicated region
      $region37: #{tpu_custom_call.1} parent=35 // pred_check
        %p6913 = pneg %p84
      $region38: #{tpu_custom_call.1} parent=35 // pred_check_branch
        %6915 = sbr.rel (%p6913) target = $region40
      $region39: #{tpu_custom_call.1} parent=35 // pred_region
        %p6916 = scmp.lt.s32.totalorder %s14, 1
        %s6917 = scalar_select %p6916, %s14, 1
        %s6918 = smul.addr %s6917, 16
        %s6919 = smul.addr %s6918, 8
        %s6920 = scalar_lea.vmem %s2, %s6919
      $region40: #{tpu_custom_call.1} parent=35 // pred_fallthru
        _
    $region36: #{tpu_custom_call.1} parent=5 // pred_fallthru
      _
  $region6: #{tpu_custom_call.1} parent=0 // loop_footer
    %s12 = sadd.s32 1, %s8
  $region7: #{tpu_custom_call.1} parent=0 // loop_footer_branch
    %7 = sbr.rel target = $region3
  $region8: #{tpu_custom_call.1} parent=0 // loop_exit
    _

</llo_original>
